<compile_context>
chip_gen: v6e
topology: v6e:2x2x1
jax: 0.10.0
libtpu: 0.0.40
codegen_flags: <defaults>
</compile_context>

<pallas_src>
import jax
import jax.numpy as jnp
from jax.experimental import pallas as pl
from jax.experimental.pallas import tpu as pltpu


D_IN = 512
D_HID = 1024


def mlp_kernel(x_ref, w1_ref, b1_ref, w2_ref, b2_ref, o_ref):
    # Entire forward (l1 -> l2 -> l1 -> l2) fused: weights stay resident in VMEM,
    # intermediates never touch HBM.
    x = x_ref[...].astype(jnp.bfloat16)   # f32 from HBM -> bf16 MXU operand (in-kernel cast)
    w1 = w1_ref[...]                      # (512, 1024) bf16
    b1 = b1_ref[...]                      # (1, 1024)   f32
    w2 = w2_ref[...]                      # (1024, 512) bf16
    b2 = b2_ref[...]                      # (1, 512)    f32

    # bf16 operands on the MXU, f32 accumulation, f32 bias adds.
    h = jnp.dot(x, w1, preferred_element_type=jnp.float32) + b1                       # l1
    y = jnp.dot(h.astype(jnp.bfloat16), w2, preferred_element_type=jnp.float32) + b2  # l2
    h = jnp.dot(y.astype(jnp.bfloat16), w1, preferred_element_type=jnp.float32) + b1  # l1
    y = jnp.dot(h.astype(jnp.bfloat16), w2, preferred_element_type=jnp.float32) + b2  # l2
    o_ref[...] = y.astype(o_ref.dtype)


def _round_up(n, m):
    return ((n + m - 1) // m) * m


def _pick_tile(B):
    if B <= 512:
        # Small/medium batch: one kernel step over the whole batch.  This regime is
        # weight-DMA bound; a grid loop would only add per-step overhead.
        return B if B % 8 == 0 else _round_up(B, 8)
    if B <= 2048:
        # Multiple of 256 (MXU height); guarantees >= 2 parallel steps for v7x's 2 TCs.
        return 512
    # Very large batch: amortize the ~0.35 us per-grid-step overhead further.
    return 1024


def _vmem_estimate(tm, out_itemsize):
    x_io = 2 * tm * D_IN * 4                              # f32 x input, double-buffered
    o_io = 2 * tm * D_IN * out_itemsize                   # output, double-buffered
    w = (D_IN * D_HID + D_HID * D_IN) * 2                 # bf16 weights (resident)
    b = (D_HID + D_IN) * 4 * 2                            # f32 biases
    interm = tm * D_HID * (4 + 2) + tm * D_IN * (4 + 2)   # f32 + bf16 temporaries
    return x_io + o_io + w + b + interm


def _build_call(B, tm, out_dtype, single_buffer_weights):
    grid_m = pl.cdiv(B, tm)
    resident = dict(pipeline_mode=pl.Buffered(1)) if single_buffer_weights else {}

    out_itemsize = jnp.dtype(out_dtype).itemsize
    vmem_limit = int(
        min(max(_vmem_estimate(tm, out_itemsize) + (8 << 20), 32 << 20), 56 << 20)
    )

    b_work = grid_m * tm
    flops = 4 * 2 * b_work * D_IN * D_HID
    bytes_accessed = (
        B * D_IN * 4                                # f32 x
        + (D_IN * D_HID + D_HID * D_IN) * 2         # bf16 weights
        + (D_HID + D_IN) * 4                        # f32 biases
        + B * D_IN * out_itemsize                   # output
    )

    return pl.pallas_call(
        mlp_kernel,
        out_shape=jax.ShapeDtypeStruct((B, D_IN), out_dtype),
        grid_spec=pltpu.PrefetchScalarGridSpec(
            num_scalar_prefetch=0,
            grid=(grid_m,),
            in_specs=[
                # x tile, pipelined along the batch; boundary block is masked when
                # tm does not divide B (no wrapper padding needed).
                pl.BlockSpec((tm, D_IN), lambda i: (i, 0)),
                # Weights & biases: constant index -> resident in VMEM, no re-DMA.
                pl.BlockSpec((D_IN, D_HID), lambda i: (0, 0), **resident),  # W1^T
                pl.BlockSpec((1, D_HID), lambda i: (0, 0), **resident),     # b1
                pl.BlockSpec((D_HID, D_IN), lambda i: (0, 0), **resident),  # W2^T
                pl.BlockSpec((1, D_IN), lambda i: (0, 0), **resident),      # b2
            ],
            out_specs=pl.BlockSpec((tm, D_IN), lambda i: (i, 0)),
        ),
        compiler_params=pltpu.CompilerParams(
            dimension_semantics=("parallel",),
            vmem_limit_bytes=vmem_limit,
        ),
        cost_estimate=pl.CostEstimate(
            flops=int(flops), transcendentals=0, bytes_accessed=int(bytes_accessed)
        ),
    )


def mlp_forward(x, w1_t, b1, w2_t, b2, *, tm=None, out_dtype=jnp.float32):
    """x: (B, 512). w1_t: (512, 1024), b1: (1024,), w2_t: (1024, 512), b2: (512,)."""
    B, d_in = x.shape
    assert d_in == D_IN
    assert w1_t.shape == (D_IN, D_HID) and b1.shape == (D_HID,)
    assert w2_t.shape == (D_HID, D_IN) and b2.shape == (D_IN,)

    if tm is None:
        tm = _pick_tile(B)
    assert tm % 8 == 0 or tm == B, "tm must be a multiple of 8 (sublanes) or the full batch"

    # Weights cast to bf16 once per call (halves their HBM/VMEM traffic); x is passed
    # through in f32 (or bf16) and cast inside the kernel; biases stay f32.
    if x.dtype not in (jnp.float32, jnp.bfloat16):
        x = x.astype(jnp.float32)
    w1_b = w1_t.astype(jnp.bfloat16)
    w2_b = w2_t.astype(jnp.bfloat16)
    b1_2d = b1.reshape(1, D_HID).astype(jnp.float32)
    b2_2d = b2.reshape(1, D_IN).astype(jnp.float32)

    args = (x, w1_b, b1_2d, w2_b, b2_2d)
    try:
        return _build_call(B, tm, out_dtype, single_buffer_weights=True)(*args)
    except Exception:
        # pipeline_mode=pl.Buffered(1) on the top-level grid pipeline only saves ~2 MiB
        # of VMEM; fall back cleanly if this jax build does not accept it there.
        return _build_call(B, tm, out_dtype, single_buffer_weights=False)(*args)


def reference_bf16(x, w1_t, b1, w2_t, b2):
    # Same numerics recipe as the kernel: bf16 operands, f32 accumulation, f32 bias.
    xb = x.astype(jnp.bfloat16)
    w1b = w1_t.astype(jnp.bfloat16)
    w2b = w2_t.astype(jnp.bfloat16)
    h = jnp.dot(xb, w1b, preferred_element_type=jnp.float32) + b1
    y = jnp.dot(h.astype(jnp.bfloat16), w2b, preferred_element_type=jnp.float32) + b2
    h = jnp.dot(y.astype(jnp.bfloat16), w1b, preferred_element_type=jnp.float32) + b1
    y = jnp.dot(h.astype(jnp.bfloat16), w2b, preferred_element_type=jnp.float32) + b2
    return y


def reference_f32(x, w1_t, b1, w2_t, b2):
    h = x @ w1_t + b1
    y = h @ w2_t + b2
    h = y @ w1_t + b1
    y = h @ w2_t + b2
    return y


if __name__ == "__main__":
    key = jax.random.PRNGKey(0)
    k_x, k_w1, k_b1, k_w2, k_b2, k_x2 = jax.random.split(key, 6)

    # PyTorch nn.Linear(512, 1024).weight is (1024, 512); we store its transpose.
    # Deterministic init scaled like kaiming-uniform (1/sqrt(fan_in)).
    w1_t = jax.random.uniform(k_w1, (512, 1024), jnp.float32, -1.0, 1.0) / jnp.sqrt(512.0)
    b1 = jax.random.uniform(k_b1, (1024,), jnp.float32, -1.0, 1.0) / jnp.sqrt(512.0)
    w2_t = jax.random.uniform(k_w2, (1024, 512), jnp.float32, -1.0, 1.0) / jnp.sqrt(1024.0)
    b2 = jax.random.uniform(k_b2, (512,), jnp.float32, -1.0, 1.0) / jnp.sqrt(1024.0)

    # Small batch: single kernel step, whole batch in one tile (weight-DMA-bound regime).
    x_small = jax.random.normal(k_x, (8, 512), jnp.float32)
    out_small = jax.block_until_ready(mlp_forward(x_small, w1_t, b1, w2_t, b2))
    ref_small = reference_bf16(x_small, w1_t, b1, w2_t, b2)
    assert out_small.shape == (8, 512) and out_small.dtype == jnp.float32
    assert jnp.allclose(out_small, ref_small, atol=2e-2, rtol=2e-2), "mismatch (small batch)"

    # Ragged batch > 512: tm=512, two "parallel" grid steps, masked boundary block
    # (no wrapper pad and no out[:B] slice).
    x_big = jax.random.normal(k_x2, (600, 512), jnp.float32)
    out_big = jax.block_until_ready(mlp_forward(x_big, w1_t, b1, w2_t, b2))
    ref_big = reference_bf16(x_big, w1_t, b1, w2_t, b2)
    assert out_big.shape == (600, 512)
    assert jnp.allclose(out_big, ref_big, atol=2e-2, rtol=2e-2), "mismatch (ragged batch)"

    # Informational only: drift vs. the full-f32 (PyTorch) reference due to bf16 operands.
    _max_drift = float(jnp.max(jnp.abs(out_small - reference_f32(x_small, w1_t, b1, w2_t, b2))))

    print("KERNEL_OK")
</pallas_src>

<mosaic_0001>
module attributes {stable_mosaic.version = 11 : i64} {
  func.func @mlp_kernel(%arg0: i32, %arg1: memref<8x512xf32, #tpu.memory_space<vmem>>, %arg2: memref<512x1024xbf16, #tpu.memory_space<vmem>>, %arg3: memref<1x1024xf32, #tpu.memory_space<vmem>>, %arg4: memref<1024x512xbf16, #tpu.memory_space<vmem>>, %arg5: memref<1x512xf32, #tpu.memory_space<vmem>>, %arg6: memref<8x512xf32, #tpu.memory_space<vmem>>) attributes {dimension_semantics = [#tpu.dimension_semantics<parallel>], iteration_bounds = array<i64: 1>, scalar_prefetch = 0 : i64, scratch_operands = 0 : i64, tpu.core_type = #tpu.core_type<tc>, window_params = [{transform_indices = @transform_0, window_bounds = array<i64: 8, 512>}, {pipeline_mode = #tpu.pipeline_mode<synchronous>, transform_indices = @transform_1, window_bounds = array<i64: 512, 1024>}, {pipeline_mode = #tpu.pipeline_mode<synchronous>, transform_indices = @transform_2, window_bounds = array<i64: 1, 1024>}, {pipeline_mode = #tpu.pipeline_mode<synchronous>, transform_indices = @transform_3, window_bounds = array<i64: 1024, 512>}, {pipeline_mode = #tpu.pipeline_mode<synchronous>, transform_indices = @transform_4, window_bounds = array<i64: 1, 512>}, {transform_indices = @transform_5, window_bounds = array<i64: 8, 512>}]} {
    %c0 = arith.constant 0 : index
    %c0_0 = arith.constant 0 : index
    %0 = vector.load %arg1[%c0, %c0_0] : memref<8x512xf32, #tpu.memory_space<vmem>>, vector<8x512xf32>
    %1 = arith.truncf %0 : vector<8x512xf32> to vector<8x512xbf16>
    %c0_1 = arith.constant 0 : index
    %c0_2 = arith.constant 0 : index
    %2 = vector.load %arg2[%c0_1, %c0_2] : memref<512x1024xbf16, #tpu.memory_space<vmem>>, vector<512x1024xbf16>
    %c0_3 = arith.constant 0 : index
    %c0_4 = arith.constant 0 : index
    %3 = vector.load %arg3[%c0_3, %c0_4] : memref<1x1024xf32, #tpu.memory_space<vmem>>, vector<1x1024xf32>
    %c0_5 = arith.constant 0 : index
    %c0_6 = arith.constant 0 : index
    %4 = vector.load %arg4[%c0_5, %c0_6] : memref<1024x512xbf16, #tpu.memory_space<vmem>>, vector<1024x512xbf16>
    %c0_7 = arith.constant 0 : index
    %c0_8 = arith.constant 0 : index
    %5 = vector.load %arg5[%c0_7, %c0_8] : memref<1x512xf32, #tpu.memory_space<vmem>>, vector<1x512xf32>
    %cst = arith.constant dense<0.000000e+00> : vector<8x1024xf32>
    %6 = tpu.matmul %1, %2, %cst {dimension_numbers = #tpu.dot_dimension_numbers<[1], [0], [0], [1], [0, 0, 1, 1], [], []>} : vector<8x512xbf16>, vector<512x1024xbf16>, vector<8x1024xf32> -> vector<8x1024xf32>
    %7 = vector.broadcast %3 : vector<1x1024xf32> to vector<8x1024xf32>
    %8 = arith.addf %6, %7 : vector<8x1024xf32>
    %9 = arith.truncf %8 : vector<8x1024xf32> to vector<8x1024xbf16>
    %cst_9 = arith.constant dense<0.000000e+00> : vector<8x512xf32>
    %10 = tpu.matmul %9, %4, %cst_9 {dimension_numbers = #tpu.dot_dimension_numbers<[1], [0], [0], [1], [0, 0, 1, 1], [], []>} : vector<8x1024xbf16>, vector<1024x512xbf16>, vector<8x512xf32> -> vector<8x512xf32>
    %11 = vector.broadcast %5 : vector<1x512xf32> to vector<8x512xf32>
    %12 = arith.addf %10, %11 : vector<8x512xf32>
    %13 = arith.truncf %12 : vector<8x512xf32> to vector<8x512xbf16>
    %cst_10 = arith.constant dense<0.000000e+00> : vector<8x1024xf32>
    %14 = tpu.matmul %13, %2, %cst_10 {dimension_numbers = #tpu.dot_dimension_numbers<[1], [0], [0], [1], [0, 0, 1, 1], [], []>} : vector<8x512xbf16>, vector<512x1024xbf16>, vector<8x1024xf32> -> vector<8x1024xf32>
    %15 = vector.broadcast %3 : vector<1x1024xf32> to vector<8x1024xf32>
    %16 = arith.addf %14, %15 : vector<8x1024xf32>
    %17 = arith.truncf %16 : vector<8x1024xf32> to vector<8x1024xbf16>
    %cst_11 = arith.constant dense<0.000000e+00> : vector<8x512xf32>
    %18 = tpu.matmul %17, %4, %cst_11 {dimension_numbers = #tpu.dot_dimension_numbers<[1], [0], [0], [1], [0, 0, 1, 1], [], []>} : vector<8x1024xbf16>, vector<1024x512xbf16>, vector<8x512xf32> -> vector<8x512xf32>
    %19 = vector.broadcast %5 : vector<1x512xf32> to vector<8x512xf32>
    %20 = arith.addf %18, %19 : vector<8x512xf32>
    %c0_12 = arith.constant 0 : index
    %c0_13 = arith.constant 0 : index
    %21 = vector.load %arg6[%c0_12, %c0_13] : memref<8x512xf32, #tpu.memory_space<vmem>>, vector<8x512xf32>
    tpu.vector_store %arg6[%c0_12, %c0_13], %20 {strides = array<i32>} : memref<8x512xf32, #tpu.memory_space<vmem>>, vector<8x512xf32>,
    return
  }
  func.func @transform_0(%arg0: i32) -> (i32, i32) {
    %c0_i32 = arith.constant 0 : i32
    %c0_i32_0 = arith.constant 0 : i32
    return %arg0, %c0_i32 : i32, i32
  }
  func.func @transform_1(%arg0: i32) -> (i32, i32) {
    %c0_i32 = arith.constant 0 : i32
    %c0_i32_0 = arith.constant 0 : i32
    %c0_i32_1 = arith.constant 0 : i32
    return %c0_i32, %c0_i32_0 : i32, i32
  }
  func.func @transform_2(%arg0: i32) -> (i32, i32) {
    %c0_i32 = arith.constant 0 : i32
    %c0_i32_0 = arith.constant 0 : i32
    %c0_i32_1 = arith.constant 0 : i32
    return %c0_i32, %c0_i32_0 : i32, i32
  }
  func.func @transform_3(%arg0: i32) -> (i32, i32) {
    %c0_i32 = arith.constant 0 : i32
    %c0_i32_0 = arith.constant 0 : i32
    %c0_i32_1 = arith.constant 0 : i32
    return %c0_i32, %c0_i32_0 : i32, i32
  }
  func.func @transform_4(%arg0: i32) -> (i32, i32) {
    %c0_i32 = arith.constant 0 : i32
    %c0_i32_0 = arith.constant 0 : i32
    %c0_i32_1 = arith.constant 0 : i32
    return %c0_i32, %c0_i32_0 : i32, i32
  }
  func.func @transform_5(%arg0: i32) -> (i32, i32) {
    %c0_i32 = arith.constant 0 : i32
    %c0_i32_0 = arith.constant 0 : i32
    return %arg0, %c0_i32 : i32, i32
  }
}

module attributes {stable_mosaic.version = 11 : i64} {
  func.func @mlp_kernel(%arg0: i32, %arg1: memref<8x512xf32, #tpu.memory_space<vmem>>, %arg2: memref<512x1024xbf16, #tpu.memory_space<vmem>>, %arg3: memref<1x1024xf32, #tpu.memory_space<vmem>>, %arg4: memref<1024x512xbf16, #tpu.memory_space<vmem>>, %arg5: memref<1x512xf32, #tpu.memory_space<vmem>>, %arg6: memref<8x512xf32, #tpu.memory_space<vmem>>) attributes {dimension_semantics = [#tpu.dimension_semantics<parallel>], iteration_bounds = array<i64: 1>, scalar_prefetch = 0 : i64, scratch_operands = 0 : i64, tpu.core_type = #tpu.core_type<tc>, window_params = [{transform_indices = @transform_0, window_bounds = array<i64: 8, 512>}, {pipeline_mode = #tpu.pipeline_mode<synchronous>, transform_indices = @transform_1, window_bounds = array<i64: 512, 1024>}, {pipeline_mode = #tpu.pipeline_mode<synchronous>, transform_indices = @transform_2, window_bounds = array<i64: 1, 1024>}, {pipeline_mode = #tpu.pipeline_mode<synchronous>, transform_indices = @transform_3, window_bounds = array<i64: 1024, 512>}, {pipeline_mode = #tpu.pipeline_mode<synchronous>, transform_indices = @transform_4, window_bounds = array<i64: 1, 512>}, {transform_indices = @transform_5, window_bounds = array<i64: 8, 512>}]} {
    %c0 = arith.constant 0 : index
    %c0_0 = arith.constant 0 : index
    %0 = vector.load %arg1[%c0, %c0_0] : memref<8x512xf32, #tpu.memory_space<vmem>>, vector<8x512xf32>
    %1 = arith.truncf %0 : vector<8x512xf32> to vector<8x512xbf16>
    %c0_1 = arith.constant 0 : index
    %c0_2 = arith.constant 0 : index
    %2 = vector.load %arg2[%c0_1, %c0_2] : memref<512x1024xbf16, #tpu.memory_space<vmem>>, vector<512x1024xbf16>
    %c0_3 = arith.constant 0 : index
    %c0_4 = arith.constant 0 : index
    %3 = vector.load %arg3[%c0_3, %c0_4] : memref<1x1024xf32, #tpu.memory_space<vmem>>, vector<1x1024xf32>
    %c0_5 = arith.constant 0 : index
    %c0_6 = arith.constant 0 : index
    %4 = vector.load %arg4[%c0_5, %c0_6] : memref<1024x512xbf16, #tpu.memory_space<vmem>>, vector<1024x512xbf16>
    %c0_7 = arith.constant 0 : index
    %c0_8 = arith.constant 0 : index
    %5 = vector.load %arg5[%c0_7, %c0_8] : memref<1x512xf32, #tpu.memory_space<vmem>>, vector<1x512xf32>
    %cst = arith.constant dense<0.000000e+00> : vector<8x1024xf32>
    %6 = tpu.matmul %1, %2, %cst {dimension_numbers = #tpu.dot_dimension_numbers<[1], [0], [0], [1], [0, 0, 1, 1], [], []>} : vector<8x512xbf16>, vector<512x1024xbf16>, vector<8x1024xf32> -> vector<8x1024xf32>
    %7 = vector.broadcast %3 : vector<1x1024xf32> to vector<8x1024xf32>
    %8 = arith.addf %6, %7 : vector<8x1024xf32>
    %9 = arith.truncf %8 : vector<8x1024xf32> to vector<8x1024xbf16>
    %cst_9 = arith.constant dense<0.000000e+00> : vector<8x512xf32>
    %10 = tpu.matmul %9, %4, %cst_9 {dimension_numbers = #tpu.dot_dimension_numbers<[1], [0], [0], [1], [0, 0, 1, 1], [], []>} : vector<8x1024xbf16>, vector<1024x512xbf16>, vector<8x512xf32> -> vector<8x512xf32>
    %11 = vector.broadcast %5 : vector<1x512xf32> to vector<8x512xf32>
    %12 = arith.addf %10, %11 : vector<8x512xf32>
    %13 = arith.truncf %12 : vector<8x512xf32> to vector<8x512xbf16>
    %cst_10 = arith.constant dense<0.000000e+00> : vector<8x1024xf32>
    %14 = tpu.matmul %13, %2, %cst_10 {dimension_numbers = #tpu.dot_dimension_numbers<[1], [0], [0], [1], [0, 0, 1, 1], [], []>} : vector<8x512xbf16>, vector<512x1024xbf16>, vector<8x1024xf32> -> vector<8x1024xf32>
    %15 = vector.broadcast %3 : vector<1x1024xf32> to vector<8x1024xf32>
    %16 = arith.addf %14, %15 : vector<8x1024xf32>
    %17 = arith.truncf %16 : vector<8x1024xf32> to vector<8x1024xbf16>
    %cst_11 = arith.constant dense<0.000000e+00> : vector<8x512xf32>
    %18 = tpu.matmul %17, %4, %cst_11 {dimension_numbers = #tpu.dot_dimension_numbers<[1], [0], [0], [1], [0, 0, 1, 1], [], []>} : vector<8x1024xbf16>, vector<1024x512xbf16>, vector<8x512xf32> -> vector<8x512xf32>
    %19 = vector.broadcast %5 : vector<1x512xf32> to vector<8x512xf32>
    %20 = arith.addf %18, %19 : vector<8x512xf32>
    %c0_12 = arith.constant 0 : index
    %c0_13 = arith.constant 0 : index
    %21 = vector.load %arg6[%c0_12, %c0_13] : memref<8x512xf32, #tpu.memory_space<vmem>>, vector<8x512xf32>
    tpu.vector_store %arg6[%c0_12, %c0_13], %20 {strides = array<i32>} : memref<8x512xf32, #tpu.memory_space<vmem>>, vector<8x512xf32>,
    return
  }
  func.func @transform_0(%arg0: i32) -> (i32, i32) {
    %c0_i32 = arith.constant 0 : i32
    %c0_i32_0 = arith.constant 0 : i32
    return %arg0, %c0_i32 : i32, i32
  }
  func.func @transform_1(%arg0: i32) -> (i32, i32) {
    %c0_i32 = arith.constant 0 : i32
    %c0_i32_0 = arith.constant 0 : i32
    %c0_i32_1 = arith.constant 0 : i32
    return %c0_i32, %c0_i32_0 : i32, i32
  }
  func.func @transform_2(%arg0: i32) -> (i32, i32) {
    %c0_i32 = arith.constant 0 : i32
    %c0_i32_0 = arith.constant 0 : i32
    %c0_i32_1 = arith.constant 0 : i32
    return %c0_i32, %c0_i32_0 : i32, i32
  }
  func.func @transform_3(%arg0: i32) -> (i32, i32) {
    %c0_i32 = arith.constant 0 : i32
    %c0_i32_0 = arith.constant 0 : i32
    %c0_i32_1 = arith.constant 0 : i32
    return %c0_i32, %c0_i32_0 : i32, i32
  }
  func.func @transform_4(%arg0: i32) -> (i32, i32) {
    %c0_i32 = arith.constant 0 : i32
    %c0_i32_0 = arith.constant 0 : i32
    %c0_i32_1 = arith.constant 0 : i32
    return %c0_i32, %c0_i32_0 : i32, i32
  }
  func.func @transform_5(%arg0: i32) -> (i32, i32) {
    %c0_i32 = arith.constant 0 : i32
    %c0_i32_0 = arith.constant 0 : i32
    return %arg0, %c0_i32 : i32, i32
  }
}

</mosaic_0001>

<llo_original>
// kernel: tpu_custom_call.1
$region0: #{tpu_custom_call.1}
  #allocation0 [shape = 'u32[]', space=smem, size = 0x4, offset = 0x4, fixed_abs, tag = 'smem constant byte address 0x4 - core index']
  #allocation1 [shape = 'u32[144,128]{1,0:T(1,128)}', space=vmem, size = 0x12000, scoped, tag = 'internal scratch']
  %s0 = inlined_call_operand.hbm [shape: f32[8,512], index: 0, kind: input, shape index: {}]
  %s1 = inlined_call_operand.hbm [shape: bf16[512,1024], index: 1, kind: input, shape index: {}]
  %s2 = inlined_call_operand.hbm [shape: f32[1,1024], index: 2, kind: input, shape index: {}]
  %s3 = inlined_call_operand.hbm [shape: bf16[1024,512], index: 3, kind: input, shape index: {}]
  %s4 = inlined_call_operand.vmem [shape: f32[1,512], index: 4, kind: input, shape index: {}]
  %s5 = inlined_call_operand.hbm [shape: f32[8,512], index: 5, kind: output, shape index: {}]
  %s6 = sld [smem:[#allocation0]]
  $region46: #{tpu_custom_call.1} parent=0
    _
  %s8 = ssub.s32 1, %s6
  %s9 = scalar_select 0, %s8, %s6
  $region1: #{tpu_custom_call.1} parent=0
    #allocation2 [shape = 'u8[16384]{0}', space=vmem, size = 0x4000, scoped, tag = 'input window, operand 0, single buffered']
    #allocation3 [shape = 's32[1]{0}', space=sflag, size = 0x4, scoped, tag = 'scoped memory for tpu_custom_call.1']
    #allocation4 [shape = 's32[1]{0}', space=sflag, size = 0x4, scoped, tag = 'scoped memory for tpu_custom_call.1']
    #allocation5 [shape = 'u8[1048576]{0}', space=vmem, size = 0x100000, scoped, tag = 'input window, operand 1, single buffered']
    #allocation6 [shape = 's32[1]{0}', space=sflag, size = 0x4, scoped, tag = 'scoped memory for tpu_custom_call.1']
    #allocation7 [shape = 'u8[4096]{0}', space=vmem, size = 0x1000, scoped, tag = 'input window, operand 2, single buffered']
    #allocation8 [shape = 'u8[1048576]{0}', space=vmem, size = 0x100000, scoped, tag = 'input window, operand 3, single buffered']
    #allocation9 [shape = 's32[1]{0}', space=sflag, size = 0x4, scoped, tag = 'scoped memory for tpu_custom_call.1']
    #allocation10 [shape = 'u8[16384]{0}', space=vmem, size = 0x4000, scoped, tag = 'output window, operand 0, single buffered']
    %10 = vsyncpa [#allocation3], 0
    %11 = vsyncpa [#allocation6], 0
    %12 = vsyncpa [#allocation9], 0
    %13 = vsyncpa [#allocation4], 0
    // Predicated region
    $region2: #{tpu_custom_call.1} parent=1 // pred_check
      _
    $region3: #{tpu_custom_call.1} parent=1 // pred_check_branch
      %15 = sbr.rel (0) target = $region5
    $region4: #{tpu_custom_call.1} parent=1 // pred_region
      %s17 = ssub.s32 512, 512
      %18 = vsyncadd [#allocation3], %s17
      %s20 = sshll.u32 [#allocation2], 4
      %s21 = int_to_ptr.vmem [resolvable:$true] %s20
      %23 = dma.hbm_to_vmem [thread:$0]  %s0, 512, %s21, [#allocation3]
    $region5: #{tpu_custom_call.1} parent=1 // pred_fallthru
      _
    // Predicated region
    $region6: #{tpu_custom_call.1} parent=1 // pred_check
      _
    $region7: #{tpu_custom_call.1} parent=1 // pred_check_branch
      %25 = sbr.rel (0) target = $region9
    $region8: #{tpu_custom_call.1} parent=1 // pred_region
      %s27 = ssub.s32 32768, 32768
      %28 = vsyncadd [#allocation6], %s27
      %s29 = sshll.u32 [#allocation5], 4
      %s30 = int_to_ptr.vmem [resolvable:$true] %s29
      %35 = dma.hbm_to_vmem [thread:$0]  %s1, 32768, %s30, [#allocation6], 512, 512, 32
    $region9: #{tpu_custom_call.1} parent=1 // pred_fallthru
      _
    // Predicated region
    $region10: #{tpu_custom_call.1} parent=1 // pred_check
      _
    $region11: #{tpu_custom_call.1} parent=1 // pred_check_branch
      %37 = sbr.rel (0) target = $region13
    $region12: #{tpu_custom_call.1} parent=1 // pred_region
      %s39 = ssub.s32 128, 128
      %40 = vsyncadd [#allocation6], %s39
      %s42 = sshll.u32 [#allocation7], 4
      %s43 = int_to_ptr.vmem [resolvable:$true] %s42
      %45 = dma.hbm_to_vmem [thread:$0]  %s2, 128, %s43, [#allocation6]
    $region13: #{tpu_custom_call.1} parent=1 // pred_fallthru
      _
    // Predicated region
    $region14: #{tpu_custom_call.1} parent=1 // pred_check
      _
    $region15: #{tpu_custom_call.1} parent=1 // pred_check_branch
      %47 = sbr.rel (0) target = $region17
    $region16: #{tpu_custom_call.1} parent=1 // pred_region
      %s49 = ssub.s32 32768, 32768
      %50 = vsyncadd [#allocation9], %s49
      %s51 = sshll.u32 [#allocation8], 4
      %s52 = int_to_ptr.vmem [resolvable:$true] %s51
      %57 = dma.hbm_to_vmem [thread:$0]  %s3, 32768, %s52, [#allocation9], 256, 256, 16
    $region17: #{tpu_custom_call.1} parent=1 // pred_fallthru
      _
    // Predicated region
    $region18: #{tpu_custom_call.1} parent=1 // pred_check
      _
    $region19: #{tpu_custom_call.1} parent=1 // pred_check_branch
      %59 = sbr.rel (0) target = $region21
    $region20: #{tpu_custom_call.1} parent=1 // pred_region
      _
    $region21: #{tpu_custom_call.1} parent=1 // pred_fallthru
      _
    // Predicated region
    $region22: #{tpu_custom_call.1} parent=1 // pred_check
      _
    $region23: #{tpu_custom_call.1} parent=1 // pred_check_branch
      %61 = sbr.rel (0) target = $region25
    $region24: #{tpu_custom_call.1} parent=1 // pred_region
      %62 = dma.done [#allocation3], 512
    $region25: #{tpu_custom_call.1} parent=1 // pred_fallthru
      _
    // Predicated region
    $region26: #{tpu_custom_call.1} parent=1 // pred_check
      _
    $region27: #{tpu_custom_call.1} parent=1 // pred_check_branch
      %64 = sbr.rel (0) target = $region29
    $region28: #{tpu_custom_call.1} parent=1 // pred_region
      %65 = dma.done [#allocation6], 32768
    $region29: #{tpu_custom_call.1} parent=1 // pred_fallthru
      _
    // Predicated region
    $region30: #{tpu_custom_call.1} parent=1 // pred_check
      _
    $region31: #{tpu_custom_call.1} parent=1 // pred_check_branch
      %67 = sbr.rel (0) target = $region33
    $region32: #{tpu_custom_call.1} parent=1 // pred_region
      %68 = dma.done [#allocation6], 128
    $region33: #{tpu_custom_call.1} parent=1 // pred_fallthru
      _
    // Predicated region
    $region34: #{tpu_custom_call.1} parent=1 // pred_check
      _
    $region35: #{tpu_custom_call.1} parent=1 // pred_check_branch
      %70 = sbr.rel (0) target = $region37
    $region36: #{tpu_custom_call.1} parent=1 // pred_region
      %71 = dma.done [#allocation9], 32768
    $region37: #{tpu_custom_call.1} parent=1 // pred_fallthru
      _
    %v72 = vld [vmem:[#allocation2] sm:$0xff]
    %v73 = vld [vmem:[#allocation2 + $0x8] sm:$0xff]
    %v74 = vld [vmem:[#allocation2 + $0x10] sm:$0xff]
    %v75 = vld [vmem:[#allocation2 + $0x18] sm:$0xff]
    %v76 = vpack.c.bf16 %v72, %v72
    %v77 = vpack.c.bf16 %v73, %v73
    %v78 = vpack.c.bf16 %v74, %v74
    %v79 = vpack.c.bf16 %v75, %v75
    %v80 = vld [vmem:[#allocation5] sm:$0xff]
    %v81 = vld [vmem:[#allocation5 + $0x8] sm:$0xff]
    %v82 = vld [vmem:[#allocation5 + $0x10] sm:$0xff]
    %v83 = vld [vmem:[#allocation5 + $0x18] sm:$0xff]
    %v84 = vld [vmem:[#allocation5 + $0x20] sm:$0xff]
    %v85 = vld [vmem:[#allocation5 + $0x28] sm:$0xff]
    %v86 = vld [vmem:[#allocation5 + $0x30] sm:$0xff]
    %v87 = vld [vmem:[#allocation5 + $0x38] sm:$0xff]
    %v88 = vld [vmem:[#allocation5 + $0x40] sm:$0xff]
    %v89 = vld [vmem:[#allocation5 + $0x48] sm:$0xff]
    %v90 = vld [vmem:[#allocation5 + $0x50] sm:$0xff]
    %v91 = vld [vmem:[#allocation5 + $0x58] sm:$0xff]
    %v92 = vld [vmem:[#allocation5 + $0x60] sm:$0xff]
    %v93 = vld [vmem:[#allocation5 + $0x68] sm:$0xff]
    %v94 = vld [vmem:[#allocation5 + $0x70] sm:$0xff]
    %v95 = vld [vmem:[#allocation5 + $0x78] sm:$0xff]
    %v96 = vld [vmem:[#allocation5 + $0x80] sm:$0xff]
    %v97 = vld [vmem:[#allocation5 + $0x88] sm:$0xff]
    %v98 = vld [vmem:[#allocation5 + $0x90] sm:$0xff]
    %v99 = vld [vmem:[#allocation5 + $0x98] sm:$0xff]
    %v100 = vld [vmem:[#allocation5 + $0xa0] sm:$0xff]
    %v101 = vld [vmem:[#allocation5 + $0xa8] sm:$0xff]
    %v102 = vld [vmem:[#allocation5 + $0xb0] sm:$0xff]
    %v103 = vld [vmem:[#allocation5 + $0xb8] sm:$0xff]
    %v104 = vld [vmem:[#allocation5 + $0xc0] sm:$0xff]
    %v105 = vld [vmem:[#allocation5 + $0xc8] sm:$0xff]
    %v106 = vld [vmem:[#allocation5 + $0xd0] sm:$0xff]
    %v107 = vld [vmem:[#allocation5 + $0xd8] sm:$0xff]
    %v108 = vld [vmem:[#allocation5 + $0xe0] sm:$0xff]
    %v109 = vld [vmem:[#allocation5 + $0xe8] sm:$0xff]
    %v110 = vld [vmem:[#allocation5 + $0xf0] sm:$0xff]
    %v111 = vld [vmem:[#allocation5 + $0xf8] sm:$0xff]
    %v112 = vld [vmem:[#allocation5 + $0x100] sm:$0xff]
    %v113 = vld [vmem:[#allocation5 + $0x108] sm:$0xff]
    %v114 = vld [vmem:[#allocation5 + $0x110] sm:$0xff]
    %v115 = vld [vmem:[#allocation5 + $0x118] sm:$0xff]
    %v116 = vld [vmem:[#allocation5 + $0x120] sm:$0xff]
    %v117 = vld [vmem:[#allocation5 + $0x128] sm:$0xff]
    %v118 = vld [vmem:[#allocation5 + $0x130] sm:$0xff]
    %v119 = vld [vmem:[#allocation5 + $0x138] sm:$0xff]
    %v120 = vld [vmem:[#allocation5 + $0x140] sm:$0xff]
    %v121 = vld [vmem:[#allocation5 + $0x148] sm:$0xff]
    %v122 = vld [vmem:[#allocation5 + $0x150] sm:$0xff]
    %v123 = vld [vmem:[#allocation5 + $0x158] sm:$0xff]
    %v124 = vld [vmem:[#allocation5 + $0x160] sm:$0xff]
    %v125 = vld [vmem:[#allocation5 + $0x168] sm:$0xff]
    %v126 = vld [vmem:[#allocation5 + $0x170] sm:$0xff]
    %v127 = vld [vmem:[#allocation5 + $0x178] sm:$0xff]
    %v128 = vld [vmem:[#allocation5 + $0x180] sm:$0xff]
    %v129 = vld [vmem:[#allocation5 + $0x188] sm:$0xff]
    %v130 = vld [vmem:[#allocation5 + $0x190] sm:$0xff]
    %v131 = vld [vmem:[#allocation5 + $0x198] sm:$0xff]
    %v132 = vld [vmem:[#allocation5 + $0x1a0] sm:$0xff]
    %v133 = vld [vmem:[#allocation5 + $0x1a8] sm:$0xff]
    %v134 = vld [vmem:[#allocation5 + $0x1b0] sm:$0xff]
    %v135 = vld [vmem:[#allocation5 + $0x1b8] sm:$0xff]
    %v136 = vld [vmem:[#allocation5 + $0x1c0] sm:$0xff]
    %v137 = vld [vmem:[#allocation5 + $0x1c8] sm:$0xff]
    %v138 = vld [vmem:[#allocation5 + $0x1d0] sm:$0xff]
    %v139 = vld [vmem:[#allocation5 + $0x1d8] sm:$0xff]
    %v140 = vld [vmem:[#allocation5 + $0x1e0] sm:$0xff]
    %v141 = vld [vmem:[#allocation5 + $0x1e8] sm:$0xff]
    %v142 = vld [vmem:[#allocation5 + $0x1f0] sm:$0xff]
    %v143 = vld [vmem:[#allocation5 + $0x1f8] sm:$0xff]
    %v144 = vld [vmem:[#allocation5 + $0x200] sm:$0xff]
    %v145 = vld [vmem:[#allocation5 + $0x208] sm:$0xff]
    %v146 = vld [vmem:[#allocation5 + $0x210] sm:$0xff]
    %v147 = vld [vmem:[#allocation5 + $0x218] sm:$0xff]
    %v148 = vld [vmem:[#allocation5 + $0x220] sm:$0xff]
    %v149 = vld [vmem:[#allocation5 + $0x228] sm:$0xff]
    %v150 = vld [vmem:[#allocation5 + $0x230] sm:$0xff]
    %v151 = vld [vmem:[#allocation5 + $0x238] sm:$0xff]
    %v152 = vld [vmem:[#allocation5 + $0x240] sm:$0xff]
    %v153 = vld [vmem:[#allocation5 + $0x248] sm:$0xff]
    %v154 = vld [vmem:[#allocation5 + $0x250] sm:$0xff]
    %v155 = vld [vmem:[#allocation5 + $0x258] sm:$0xff]
    %v156 = vld [vmem:[#allocation5 + $0x260] sm:$0xff]
    %v157 = vld [vmem:[#allocation5 + $0x268] sm:$0xff]
    %v158 = vld [vmem:[#allocation5 + $0x270] sm:$0xff]
    %v159 = vld [vmem:[#allocation5 + $0x278] sm:$0xff]
    %v160 = vld [vmem:[#allocation5 + $0x280] sm:$0xff]
    %v161 = vld [vmem:[#allocation5 + $0x288] sm:$0xff]
    %v162 = vld [vmem:[#allocation5 + $0x290] sm:$0xff]
    %v163 = vld [vmem:[#allocation5 + $0x298] sm:$0xff]
    %v164 = vld [vmem:[#allocation5 + $0x2a0] sm:$0xff]
    %v165 = vld [vmem:[#allocation5 + $0x2a8] sm:$0xff]
    %v166 = vld [vmem:[#allocation5 + $0x2b0] sm:$0xff]
    %v167 = vld [vmem:[#allocation5 + $0x2b8] sm:$0xff]
    %v168 = vld [vmem:[#allocation5 + $0x2c0] sm:$0xff]
    %v169 = vld [vmem:[#allocation5 + $0x2c8] sm:$0xff]
    %v170 = vld [vmem:[#allocation5 + $0x2d0] sm:$0xff]
    %v171 = vld [vmem:[#allocation5 + $0x2d8] sm:$0xff]
    %v172 = vld [vmem:[#allocation5 + $0x2e0] sm:$0xff]
    %v173 = vld [vmem:[#allocation5 + $0x2e8] sm:$0xff]
    %v174 = vld [vmem:[#allocation5 + $0x2f0] sm:$0xff]
    %v175 = vld [vmem:[#allocation5 + $0x2f8] sm:$0xff]
    %v176 = vld [vmem:[#allocation5 + $0x300] sm:$0xff]
    %v177 = vld [vmem:[#allocation5 + $0x308] sm:$0xff]
    %v178 = vld [vmem:[#allocation5 + $0x310] sm:$0xff]
    %v179 = vld [vmem:[#allocation5 + $0x318] sm:$0xff]
    %v180 = vld [vmem:[#allocation5 + $0x320] sm:$0xff]
    %v181 = vld [vmem:[#allocation5 + $0x328] sm:$0xff]
    %v182 = vld [vmem:[#allocation5 + $0x330] sm:$0xff]
    %v183 = vld [vmem:[#allocation5 + $0x338] sm:$0xff]
    %v184 = vld [vmem:[#allocation5 + $0x340] sm:$0xff]
    %v185 = vld [vmem:[#allocation5 + $0x348] sm:$0xff]
    %v186 = vld [vmem:[#allocation5 + $0x350] sm:$0xff]
    %v187 = vld [vmem:[#allocation5 + $0x358] sm:$0xff]
    %v188 = vld [vmem:[#allocation5 + $0x360] sm:$0xff]
    %v189 = vld [vmem:[#allocation5 + $0x368] sm:$0xff]
    %v190 = vld [vmem:[#allocation5 + $0x370] sm:$0xff]
    %v191 = vld [vmem:[#allocation5 + $0x378] sm:$0xff]
    %v192 = vld [vmem:[#allocation5 + $0x380] sm:$0xff]
    %v193 = vld [vmem:[#allocation5 + $0x388] sm:$0xff]
    %v194 = vld [vmem:[#allocation5 + $0x390] sm:$0xff]
    %v195 = vld [vmem:[#allocation5 + $0x398] sm:$0xff]
    %v196 = vld [vmem:[#allocation5 + $0x3a0] sm:$0xff]
    %v197 = vld [vmem:[#allocation5 + $0x3a8] sm:$0xff]
    %v198 = vld [vmem:[#allocation5 + $0x3b0] sm:$0xff]
    %v199 = vld [vmem:[#allocation5 + $0x3b8] sm:$0xff]
    %v200 = vld [vmem:[#allocation5 + $0x3c0] sm:$0xff]
    %v201 = vld [vmem:[#allocation5 + $0x3c8] sm:$0xff]
    %v202 = vld [vmem:[#allocation5 + $0x3d0] sm:$0xff]
    %v203 = vld [vmem:[#allocation5 + $0x3d8] sm:$0xff]
    %v204 = vld [vmem:[#allocation5 + $0x3e0] sm:$0xff]
    %v205 = vld [vmem:[#allocation5 + $0x3e8] sm:$0xff]
    %v206 = vld [vmem:[#allocation5 + $0x3f0] sm:$0xff]
    %v207 = vld [vmem:[#allocation5 + $0x3f8] sm:$0xff]
    %v208 = vld [vmem:[#allocation5 + $0x400] sm:$0xff]
    %v209 = vld [vmem:[#allocation5 + $0x408] sm:$0xff]
    %v210 = vld [vmem:[#allocation5 + $0x410] sm:$0xff]
    %v211 = vld [vmem:[#allocation5 + $0x418] sm:$0xff]
    %v212 = vld [vmem:[#allocation5 + $0x420] sm:$0xff]
    %v213 = vld [vmem:[#allocation5 + $0x428] sm:$0xff]
    %v214 = vld [vmem:[#allocation5 + $0x430] sm:$0xff]
    %v215 = vld [vmem:[#allocation5 + $0x438] sm:$0xff]
    %v216 = vld [vmem:[#allocation5 + $0x440] sm:$0xff]
    %v217 = vld [vmem:[#allocation5 + $0x448] sm:$0xff]
    %v218 = vld [vmem:[#allocation5 + $0x450] sm:$0xff]
    %v219 = vld [vmem:[#allocation5 + $0x458] sm:$0xff]
    %v220 = vld [vmem:[#allocation5 + $0x460] sm:$0xff]
    %v221 = vld [vmem:[#allocation5 + $0x468] sm:$0xff]
    %v222 = vld [vmem:[#allocation5 + $0x470] sm:$0xff]
    %v223 = vld [vmem:[#allocation5 + $0x478] sm:$0xff]
    %v224 = vld [vmem:[#allocation5 + $0x480] sm:$0xff]
    %v225 = vld [vmem:[#allocation5 + $0x488] sm:$0xff]
    %v226 = vld [vmem:[#allocation5 + $0x490] sm:$0xff]
    %v227 = vld [vmem:[#allocation5 + $0x498] sm:$0xff]
    %v228 = vld [vmem:[#allocation5 + $0x4a0] sm:$0xff]
    %v229 = vld [vmem:[#allocation5 + $0x4a8] sm:$0xff]
    %v230 = vld [vmem:[#allocation5 + $0x4b0] sm:$0xff]
    %v231 = vld [vmem:[#allocation5 + $0x4b8] sm:$0xff]
    %v232 = vld [vmem:[#allocation5 + $0x4c0] sm:$0xff]
    %v233 = vld [vmem:[#allocation5 + $0x4c8] sm:$0xff]
    %v234 = vld [vmem:[#allocation5 + $0x4d0] sm:$0xff]
    %v235 = vld [vmem:[#allocation5 + $0x4d8] sm:$0xff]
    %v236 = vld [vmem:[#allocation5 + $0x4e0] sm:$0xff]
    %v237 = vld [vmem:[#allocation5 + $0x4e8] sm:$0xff]
    %v238 = vld [vmem:[#allocation5 + $0x4f0] sm:$0xff]
    %v239 = vld [vmem:[#allocation5 + $0x4f8] sm:$0xff]
    %v240 = vld [vmem:[#allocation5 + $0x500] sm:$0xff]
    %v241 = vld [vmem:[#allocation5 + $0x508] sm:$0xff]
    %v242 = vld [vmem:[#allocation5 + $0x510] sm:$0xff]
    %v243 = vld [vmem:[#allocation5 + $0x518] sm:$0xff]
    %v244 = vld [vmem:[#allocation5 + $0x520] sm:$0xff]
    %v245 = vld [vmem:[#allocation5 + $0x528] sm:$0xff]
    %v246 = vld [vmem:[#allocation5 + $0x530] sm:$0xff]
    %v247 = vld [vmem:[#allocation5 + $0x538] sm:$0xff]
    %v248 = vld [vmem:[#allocation5 + $0x540] sm:$0xff]
    %v249 = vld [vmem:[#allocation5 + $0x548] sm:$0xff]
    %v250 = vld [vmem:[#allocation5 + $0x550] sm:$0xff]
    %v251 = vld [vmem:[#allocation5 + $0x558] sm:$0xff]
    %v252 = vld [vmem:[#allocation5 + $0x560] sm:$0xff]
    %v253 = vld [vmem:[#allocation5 + $0x568] sm:$0xff]
    %v254 = vld [vmem:[#allocation5 + $0x570] sm:$0xff]
    %v255 = vld [vmem:[#allocation5 + $0x578] sm:$0xff]
    %v256 = vld [vmem:[#allocation5 + $0x580] sm:$0xff]
    %v257 = vld [vmem:[#allocation5 + $0x588] sm:$0xff]
    %v258 = vld [vmem:[#allocation5 + $0x590] sm:$0xff]
    %v259 = vld [vmem:[#allocation5 + $0x598] sm:$0xff]
    %v260 = vld [vmem:[#allocation5 + $0x5a0] sm:$0xff]
    %v261 = vld [vmem:[#allocation5 + $0x5a8] sm:$0xff]
    %v262 = vld [vmem:[#allocation5 + $0x5b0] sm:$0xff]
    %v263 = vld [vmem:[#allocation5 + $0x5b8] sm:$0xff]
    %v264 = vld [vmem:[#allocation5 + $0x5c0] sm:$0xff]
    %v265 = vld [vmem:[#allocation5 + $0x5c8] sm:$0xff]
    %v266 = vld [vmem:[#allocation5 + $0x5d0] sm:$0xff]
    %v267 = vld [vmem:[#allocation5 + $0x5d8] sm:$0xff]
    %v268 = vld [vmem:[#allocation5 + $0x5e0] sm:$0xff]
    %v269 = vld [vmem:[#allocation5 + $0x5e8] sm:$0xff]
    %v270 = vld [vmem:[#allocation5 + $0x5f0] sm:$0xff]
    %v271 = vld [vmem:[#allocation5 + $0x5f8] sm:$0xff]
    %v272 = vld [vmem:[#allocation5 + $0x600] sm:$0xff]
    %v273 = vld [vmem:[#allocation5 + $0x608] sm:$0xff]
    %v274 = vld [vmem:[#allocation5 + $0x610] sm:$0xff]
    %v275 = vld [vmem:[#allocation5 + $0x618] sm:$0xff]
    %v276 = vld [vmem:[#allocation5 + $0x620] sm:$0xff]
    %v277 = vld [vmem:[#allocation5 + $0x628] sm:$0xff]
    %v278 = vld [vmem:[#allocation5 + $0x630] sm:$0xff]
    %v279 = vld [vmem:[#allocation5 + $0x638] sm:$0xff]
    %v280 = vld [vmem:[#allocation5 + $0x640] sm:$0xff]
    %v281 = vld [vmem:[#allocation5 + $0x648] sm:$0xff]
    %v282 = vld [vmem:[#allocation5 + $0x650] sm:$0xff]
    %v283 = vld [vmem:[#allocation5 + $0x658] sm:$0xff]
    %v284 = vld [vmem:[#allocation5 + $0x660] sm:$0xff]
    %v285 = vld [vmem:[#allocation5 + $0x668] sm:$0xff]
    %v286 = vld [vmem:[#allocation5 + $0x670] sm:$0xff]
    %v287 = vld [vmem:[#allocation5 + $0x678] sm:$0xff]
    %v288 = vld [vmem:[#allocation5 + $0x680] sm:$0xff]
    %v289 = vld [vmem:[#allocation5 + $0x688] sm:$0xff]
    %v290 = vld [vmem:[#allocation5 + $0x690] sm:$0xff]
    %v291 = vld [vmem:[#allocation5 + $0x698] sm:$0xff]
    %v292 = vld [vmem:[#allocation5 + $0x6a0] sm:$0xff]
    %v293 = vld [vmem:[#allocation5 + $0x6a8] sm:$0xff]
    %v294 = vld [vmem:[#allocation5 + $0x6b0] sm:$0xff]
    %v295 = vld [vmem:[#allocation5 + $0x6b8] sm:$0xff]
    %v296 = vld [vmem:[#allocation5 + $0x6c0] sm:$0xff]
    %v297 = vld [vmem:[#allocation5 + $0x6c8] sm:$0xff]
    %v298 = vld [vmem:[#allocation5 + $0x6d0] sm:$0xff]
    %v299 = vld [vmem:[#allocation5 + $0x6d8] sm:$0xff]
    %v300 = vld [vmem:[#allocation5 + $0x6e0] sm:$0xff]
    %v301 = vld [vmem:[#allocation5 + $0x6e8] sm:$0xff]
    %v302 = vld [vmem:[#allocation5 + $0x6f0] sm:$0xff]
    %v303 = vld [vmem:[#allocation5 + $0x6f8] sm:$0xff]
    %v304 = vld [vmem:[#allocation5 + $0x700] sm:$0xff]
    %v305 = vld [vmem:[#allocation5 + $0x708] sm:$0xff]
    %v306 = vld [vmem:[#allocation5 + $0x710] sm:$0xff]
    %v307 = vld [vmem:[#allocation5 + $0x718] sm:$0xff]
    %v308 = vld [vmem:[#allocation5 + $0x720] sm:$0xff]
    %v309 = vld [vmem:[#allocation5 + $0x728] sm:$0xff]
    %v310 = vld [vmem:[#allocation5 + $0x730] sm:$0xff]
    %v311 = vld [vmem:[#allocation5 + $0x738] sm:$0xff]
    %v312 = vld [vmem:[#allocation5 + $0x740] sm:$0xff]
    %v313 = vld [vmem:[#allocation5 + $0x748] sm:$0xff]
    %v314 = vld [vmem:[#allocation5 + $0x750] sm:$0xff]
    %v315 = vld [vmem:[#allocation5 + $0x758] sm:$0xff]
    %v316 = vld [vmem:[#allocation5 + $0x760] sm:$0xff]
    %v317 = vld [vmem:[#allocation5 + $0x768] sm:$0xff]
    %v318 = vld [vmem:[#allocation5 + $0x770] sm:$0xff]
    %v319 = vld [vmem:[#allocation5 + $0x778] sm:$0xff]
    %v320 = vld [vmem:[#allocation5 + $0x780] sm:$0xff]
    %v321 = vld [vmem:[#allocation5 + $0x788] sm:$0xff]
    %v322 = vld [vmem:[#allocation5 + $0x790] sm:$0xff]
    %v323 = vld [vmem:[#allocation5 + $0x798] sm:$0xff]
    %v324 = vld [vmem:[#allocation5 + $0x7a0] sm:$0xff]
    %v325 = vld [vmem:[#allocation5 + $0x7a8] sm:$0xff]
    %v326 = vld [vmem:[#allocation5 + $0x7b0] sm:$0xff]
    %v327 = vld [vmem:[#allocation5 + $0x7b8] sm:$0xff]
    %v328 = vld [vmem:[#allocation5 + $0x7c0] sm:$0xff]
    %v329 = vld [vmem:[#allocation5 + $0x7c8] sm:$0xff]
    %v330 = vld [vmem:[#allocation5 + $0x7d0] sm:$0xff]
    %v331 = vld [vmem:[#allocation5 + $0x7d8] sm:$0xff]
    %v332 = vld [vmem:[#allocation5 + $0x7e0] sm:$0xff]
    %v333 = vld [vmem:[#allocation5 + $0x7e8] sm:$0xff]
    %v334 = vld [vmem:[#allocation5 + $0x7f0] sm:$0xff]
    %v335 = vld [vmem:[#allocation5 + $0x7f8] sm:$0xff]
    %v336 = vld [vmem:[#allocation7] sm:$0xff]
    %v337 = vld [vmem:[#allocation8] sm:$0xff]
    %v338 = vld [vmem:[#allocation8 + $0x8] sm:$0xff]
    %v339 = vld [vmem:[#allocation8 + $0x10] sm:$0xff]
    %v340 = vld [vmem:[#allocation8 + $0x18] sm:$0xff]
    %v341 = vld [vmem:[#allocation8 + $0x20] sm:$0xff]
    %v342 = vld [vmem:[#allocation8 + $0x28] sm:$0xff]
    %v343 = vld [vmem:[#allocation8 + $0x30] sm:$0xff]
    %v344 = vld [vmem:[#allocation8 + $0x38] sm:$0xff]
    %v345 = vld [vmem:[#allocation8 + $0x40] sm:$0xff]
    %v346 = vld [vmem:[#allocation8 + $0x48] sm:$0xff]
    %v347 = vld [vmem:[#allocation8 + $0x50] sm:$0xff]
    %v348 = vld [vmem:[#allocation8 + $0x58] sm:$0xff]
    %v349 = vld [vmem:[#allocation8 + $0x60] sm:$0xff]
    %v350 = vld [vmem:[#allocation8 + $0x68] sm:$0xff]
    %v351 = vld [vmem:[#allocation8 + $0x70] sm:$0xff]
    %v352 = vld [vmem:[#allocation8 + $0x78] sm:$0xff]
    %v353 = vld [vmem:[#allocation8 + $0x80] sm:$0xff]
    %v354 = vld [vmem:[#allocation8 + $0x88] sm:$0xff]
    %v355 = vld [vmem:[#allocation8 + $0x90] sm:$0xff]
    %v356 = vld [vmem:[#allocation8 + $0x98] sm:$0xff]
    %v357 = vld [vmem:[#allocation8 + $0xa0] sm:$0xff]
    %v358 = vld [vmem:[#allocation8 + $0xa8] sm:$0xff]
    %v359 = vld [vmem:[#allocation8 + $0xb0] sm:$0xff]
    %v360 = vld [vmem:[#allocation8 + $0xb8] sm:$0xff]
    %v361 = vld [vmem:[#allocation8 + $0xc0] sm:$0xff]
    %v362 = vld [vmem:[#allocation8 + $0xc8] sm:$0xff]
    %v363 = vld [vmem:[#allocation8 + $0xd0] sm:$0xff]
    %v364 = vld [vmem:[#allocation8 + $0xd8] sm:$0xff]
    %v365 = vld [vmem:[#allocation8 + $0xe0] sm:$0xff]
    %v366 = vld [vmem:[#allocation8 + $0xe8] sm:$0xff]
    %v367 = vld [vmem:[#allocation8 + $0xf0] sm:$0xff]
    %v368 = vld [vmem:[#allocation8 + $0xf8] sm:$0xff]
    %v369 = vld [vmem:[#allocation8 + $0x100] sm:$0xff]
    %v370 = vld [vmem:[#allocation8 + $0x108] sm:$0xff]
    %v371 = vld [vmem:[#allocation8 + $0x110] sm:$0xff]
    %v372 = vld [vmem:[#allocation8 + $0x118] sm:$0xff]
    %v373 = vld [vmem:[#allocation8 + $0x120] sm:$0xff]
    %v374 = vld [vmem:[#allocation8 + $0x128] sm:$0xff]
    %v375 = vld [vmem:[#allocation8 + $0x130] sm:$0xff]
    %v376 = vld [vmem:[#allocation8 + $0x138] sm:$0xff]
    %v377 = vld [vmem:[#allocation8 + $0x140] sm:$0xff]
    %v378 = vld [vmem:[#allocation8 + $0x148] sm:$0xff]
    %v379 = vld [vmem:[#allocation8 + $0x150] sm:$0xff]
    %v380 = vld [vmem:[#allocation8 + $0x158] sm:$0xff]
    %v381 = vld [vmem:[#allocation8 + $0x160] sm:$0xff]
    %v382 = vld [vmem:[#allocation8 + $0x168] sm:$0xff]
    %v383 = vld [vmem:[#allocation8 + $0x170] sm:$0xff]
    %v384 = vld [vmem:[#allocation8 + $0x178] sm:$0xff]
    %v385 = vld [vmem:[#allocation8 + $0x180] sm:$0xff]
    %v386 = vld [vmem:[#allocation8 + $0x188] sm:$0xff]
    %v387 = vld [vmem:[#allocation8 + $0x190] sm:$0xff]
    %v388 = vld [vmem:[#allocation8 + $0x198] sm:$0xff]
    %v389 = vld [vmem:[#allocation8 + $0x1a0] sm:$0xff]
    %v390 = vld [vmem:[#allocation8 + $0x1a8] sm:$0xff]
    %v391 = vld [vmem:[#allocation8 + $0x1b0] sm:$0xff]
    %v392 = vld [vmem:[#allocation8 + $0x1b8] sm:$0xff]
    %v393 = vld [vmem:[#allocation8 + $0x1c0] sm:$0xff]
    %v394 = vld [vmem:[#allocation8 + $0x1c8] sm:$0xff]
    %v395 = vld [vmem:[#allocation8 + $0x1d0] sm:$0xff]
    %v396 = vld [vmem:[#allocation8 + $0x1d8] sm:$0xff]
    %v397 = vld [vmem:[#allocation8 + $0x1e0] sm:$0xff]
    %v398 = vld [vmem:[#allocation8 + $0x1e8] sm:$0xff]
    %v399 = vld [vmem:[#allocation8 + $0x1f0] sm:$0xff]
    %v400 = vld [vmem:[#allocation8 + $0x1f8] sm:$0xff]
    %v401 = vld [vmem:[#allocation8 + $0x200] sm:$0xff]
    %v402 = vld [vmem:[#allocation8 + $0x208] sm:$0xff]
    %v403 = vld [vmem:[#allocation8 + $0x210] sm:$0xff]
    %v404 = vld [vmem:[#allocation8 + $0x218] sm:$0xff]
    %v405 = vld [vmem:[#allocation8 + $0x220] sm:$0xff]
    %v406 = vld [vmem:[#allocation8 + $0x228] sm:$0xff]
    %v407 = vld [vmem:[#allocation8 + $0x230] sm:$0xff]
    %v408 = vld [vmem:[#allocation8 + $0x238] sm:$0xff]
    %v409 = vld [vmem:[#allocation8 + $0x240] sm:$0xff]
    %v410 = vld [vmem:[#allocation8 + $0x248] sm:$0xff]
    %v411 = vld [vmem:[#allocation8 + $0x250] sm:$0xff]
    %v412 = vld [vmem:[#allocation8 + $0x258] sm:$0xff]
    %v413 = vld [vmem:[#allocation8 + $0x260] sm:$0xff]
    %v414 = vld [vmem:[#allocation8 + $0x268] sm:$0xff]
    %v415 = vld [vmem:[#allocation8 + $0x270] sm:$0xff]
    %v416 = vld [vmem:[#allocation8 + $0x278] sm:$0xff]
    %v417 = vld [vmem:[#allocation8 + $0x280] sm:$0xff]
    %v418 = vld [vmem:[#allocation8 + $0x288] sm:$0xff]
    %v419 = vld [vmem:[#allocation8 + $0x290] sm:$0xff]
    %v420 = vld [vmem:[#allocation8 + $0x298] sm:$0xff]
    %v421 = vld [vmem:[#allocation8 + $0x2a0] sm:$0xff]
    %v422 = vld [vmem:[#allocation8 + $0x2a8] sm:$0xff]
    %v423 = vld [vmem:[#allocation8 + $0x2b0] sm:$0xff]
    %v424 = vld [vmem:[#allocation8 + $0x2b8] sm:$0xff]
    %v425 = vld [vmem:[#allocation8 + $0x2c0] sm:$0xff]
    %v426 = vld [vmem:[#allocation8 + $0x2c8] sm:$0xff]
    %v427 = vld [vmem:[#allocation8 + $0x2d0] sm:$0xff]
    %v428 = vld [vmem:[#allocation8 + $0x2d8] sm:$0xff]
    %v429 = vld [vmem:[#allocation8 + $0x2e0] sm:$0xff]
    %v430 = vld [vmem:[#allocation8 + $0x2e8] sm:$0xff]
    %v431 = vld [vmem:[#allocation8 + $0x2f0] sm:$0xff]
    %v432 = vld [vmem:[#allocation8 + $0x2f8] sm:$0xff]
    %v433 = vld [vmem:[#allocation8 + $0x300] sm:$0xff]
    %v434 = vld [vmem:[#allocation8 + $0x308] sm:$0xff]
    %v435 = vld [vmem:[#allocation8 + $0x310] sm:$0xff]
    %v436 = vld [vmem:[#allocation8 + $0x318] sm:$0xff]
    %v437 = vld [vmem:[#allocation8 + $0x320] sm:$0xff]
    %v438 = vld [vmem:[#allocation8 + $0x328] sm:$0xff]
    %v439 = vld [vmem:[#allocation8 + $0x330] sm:$0xff]
    %v440 = vld [vmem:[#allocation8 + $0x338] sm:$0xff]
    %v441 = vld [vmem:[#allocation8 + $0x340] sm:$0xff]
    %v442 = vld [vmem:[#allocation8 + $0x348] sm:$0xff]
    %v443 = vld [vmem:[#allocation8 + $0x350] sm:$0xff]
    %v444 = vld [vmem:[#allocation8 + $0x358] sm:$0xff]
    %v445 = vld [vmem:[#allocation8 + $0x360] sm:$0xff]
    %v446 = vld [vmem:[#allocation8 + $0x368] sm:$0xff]
    %v447 = vld [vmem:[#allocation8 + $0x370] sm:$0xff]
    %v448 = vld [vmem:[#allocation8 + $0x378] sm:$0xff]
    %v449 = vld [vmem:[#allocation8 + $0x380] sm:$0xff]
    %v450 = vld [vmem:[#allocation8 + $0x388] sm:$0xff]
    %v451 = vld [vmem:[#allocation8 + $0x390] sm:$0xff]
    %v452 = vld [vmem:[#allocation8 + $0x398] sm:$0xff]
    %v453 = vld [vmem:[#allocation8 + $0x3a0] sm:$0xff]
    %v454 = vld [vmem:[#allocation8 + $0x3a8] sm:$0xff]
    %v455 = vld [vmem:[#allocation8 + $0x3b0] sm:$0xff]
    %v456 = vld [vmem:[#allocation8 + $0x3b8] sm:$0xff]
    %v457 = vld [vmem:[#allocation8 + $0x3c0] sm:$0xff]
    %v458 = vld [vmem:[#allocation8 + $0x3c8] sm:$0xff]
    %v459 = vld [vmem:[#allocation8 + $0x3d0] sm:$0xff]
    %v460 = vld [vmem:[#allocation8 + $0x3d8] sm:$0xff]
    %v461 = vld [vmem:[#allocation8 + $0x3e0] sm:$0xff]
    %v462 = vld [vmem:[#allocation8 + $0x3e8] sm:$0xff]
    %v463 = vld [vmem:[#allocation8 + $0x3f0] sm:$0xff]
    %v464 = vld [vmem:[#allocation8 + $0x3f8] sm:$0xff]
    %v465 = vld [vmem:[#allocation8 + $0x400] sm:$0xff]
    %v466 = vld [vmem:[#allocation8 + $0x408] sm:$0xff]
    %v467 = vld [vmem:[#allocation8 + $0x410] sm:$0xff]
    %v468 = vld [vmem:[#allocation8 + $0x418] sm:$0xff]
    %v469 = vld [vmem:[#allocation8 + $0x420] sm:$0xff]
    %v470 = vld [vmem:[#allocation8 + $0x428] sm:$0xff]
    %v471 = vld [vmem:[#allocation8 + $0x430] sm:$0xff]
    %v472 = vld [vmem:[#allocation8 + $0x438] sm:$0xff]
    %v473 = vld [vmem:[#allocation8 + $0x440] sm:$0xff]
    %v474 = vld [vmem:[#allocation8 + $0x448] sm:$0xff]
    %v475 = vld [vmem:[#allocation8 + $0x450] sm:$0xff]
    %v476 = vld [vmem:[#allocation8 + $0x458] sm:$0xff]
    %v477 = vld [vmem:[#allocation8 + $0x460] sm:$0xff]
    %v478 = vld [vmem:[#allocation8 + $0x468] sm:$0xff]
    %v479 = vld [vmem:[#allocation8 + $0x470] sm:$0xff]
    %v480 = vld [vmem:[#allocation8 + $0x478] sm:$0xff]
    %v481 = vld [vmem:[#allocation8 + $0x480] sm:$0xff]
    %v482 = vld [vmem:[#allocation8 + $0x488] sm:$0xff]
    %v483 = vld [vmem:[#allocation8 + $0x490] sm:$0xff]
    %v484 = vld [vmem:[#allocation8 + $0x498] sm:$0xff]
    %v485 = vld [vmem:[#allocation8 + $0x4a0] sm:$0xff]
    %v486 = vld [vmem:[#allocation8 + $0x4a8] sm:$0xff]
    %v487 = vld [vmem:[#allocation8 + $0x4b0] sm:$0xff]
    %v488 = vld [vmem:[#allocation8 + $0x4b8] sm:$0xff]
    %v489 = vld [vmem:[#allocation8 + $0x4c0] sm:$0xff]
    %v490 = vld [vmem:[#allocation8 + $0x4c8] sm:$0xff]
    %v491 = vld [vmem:[#allocation8 + $0x4d0] sm:$0xff]
    %v492 = vld [vmem:[#allocation8 + $0x4d8] sm:$0xff]
    %v493 = vld [vmem:[#allocation8 + $0x4e0] sm:$0xff]
    %v494 = vld [vmem:[#allocation8 + $0x4e8] sm:$0xff]
    %v495 = vld [vmem:[#allocation8 + $0x4f0] sm:$0xff]
    %v496 = vld [vmem:[#allocation8 + $0x4f8] sm:$0xff]
    %v497 = vld [vmem:[#allocation8 + $0x500] sm:$0xff]
    %v498 = vld [vmem:[#allocation8 + $0x508] sm:$0xff]
    %v499 = vld [vmem:[#allocation8 + $0x510] sm:$0xff]
    %v500 = vld [vmem:[#allocation8 + $0x518] sm:$0xff]
    %v501 = vld [vmem:[#allocation8 + $0x520] sm:$0xff]
    %v502 = vld [vmem:[#allocation8 + $0x528] sm:$0xff]
    %v503 = vld [vmem:[#allocation8 + $0x530] sm:$0xff]
    %v504 = vld [vmem:[#allocation8 + $0x538] sm:$0xff]
    %v505 = vld [vmem:[#allocation8 + $0x540] sm:$0xff]
    %v506 = vld [vmem:[#allocation8 + $0x548] sm:$0xff]
    %v507 = vld [vmem:[#allocation8 + $0x550] sm:$0xff]
    %v508 = vld [vmem:[#allocation8 + $0x558] sm:$0xff]
    %v509 = vld [vmem:[#allocation8 + $0x560] sm:$0xff]
    %v510 = vld [vmem:[#allocation8 + $0x568] sm:$0xff]
    %v511 = vld [vmem:[#allocation8 + $0x570] sm:$0xff]
    %v512 = vld [vmem:[#allocation8 + $0x578] sm:$0xff]
    %v513 = vld [vmem:[#allocation8 + $0x580] sm:$0xff]
    %v514 = vld [vmem:[#allocation8 + $0x588] sm:$0xff]
    %v515 = vld [vmem:[#allocation8 + $0x590] sm:$0xff]
    %v516 = vld [vmem:[#allocation8 + $0x598] sm:$0xff]
    %v517 = vld [vmem:[#allocation8 + $0x5a0] sm:$0xff]
    %v518 = vld [vmem:[#allocation8 + $0x5a8] sm:$0xff]
    %v519 = vld [vmem:[#allocation8 + $0x5b0] sm:$0xff]
    %v520 = vld [vmem:[#allocation8 + $0x5b8] sm:$0xff]
    %v521 = vld [vmem:[#allocation8 + $0x5c0] sm:$0xff]
    %v522 = vld [vmem:[#allocation8 + $0x5c8] sm:$0xff]
    %v523 = vld [vmem:[#allocation8 + $0x5d0] sm:$0xff]
    %v524 = vld [vmem:[#allocation8 + $0x5d8] sm:$0xff]
    %v525 = vld [vmem:[#allocation8 + $0x5e0] sm:$0xff]
    %v526 = vld [vmem:[#allocation8 + $0x5e8] sm:$0xff]
    %v527 = vld [vmem:[#allocation8 + $0x5f0] sm:$0xff]
    %v528 = vld [vmem:[#allocation8 + $0x5f8] sm:$0xff]
    %v529 = vld [vmem:[#allocation8 + $0x600] sm:$0xff]
    %v530 = vld [vmem:[#allocation8 + $0x608] sm:$0xff]
    %v531 = vld [vmem:[#allocation8 + $0x610] sm:$0xff]
    %v532 = vld [vmem:[#allocation8 + $0x618] sm:$0xff]
    %v533 = vld [vmem:[#allocation8 + $0x620] sm:$0xff]
    %v534 = vld [vmem:[#allocation8 + $0x628] sm:$0xff]
    %v535 = vld [vmem:[#allocation8 + $0x630] sm:$0xff]
    %v536 = vld [vmem:[#allocation8 + $0x638] sm:$0xff]
    %v537 = vld [vmem:[#allocation8 + $0x640] sm:$0xff]
    %v538 = vld [vmem:[#allocation8 + $0x648] sm:$0xff]
    %v539 = vld [vmem:[#allocation8 + $0x650] sm:$0xff]
    %v540 = vld [vmem:[#allocation8 + $0x658] sm:$0xff]
    %v541 = vld [vmem:[#allocation8 + $0x660] sm:$0xff]
    %v542 = vld [vmem:[#allocation8 + $0x668] sm:$0xff]
    %v543 = vld [vmem:[#allocation8 + $0x670] sm:$0xff]
    %v544 = vld [vmem:[#allocation8 + $0x678] sm:$0xff]
    %v545 = vld [vmem:[#allocation8 + $0x680] sm:$0xff]
    %v546 = vld [vmem:[#allocation8 + $0x688] sm:$0xff]
    %v547 = vld [vmem:[#allocation8 + $0x690] sm:$0xff]
    %v548 = vld [vmem:[#allocation8 + $0x698] sm:$0xff]
    %v549 = vld [vmem:[#allocation8 + $0x6a0] sm:$0xff]
    %v550 = vld [vmem:[#allocation8 + $0x6a8] sm:$0xff]
    %v551 = vld [vmem:[#allocation8 + $0x6b0] sm:$0xff]
    %v552 = vld [vmem:[#allocation8 + $0x6b8] sm:$0xff]
    %v553 = vld [vmem:[#allocation8 + $0x6c0] sm:$0xff]
    %v554 = vld [vmem:[#allocation8 + $0x6c8] sm:$0xff]
    %v555 = vld [vmem:[#allocation8 + $0x6d0] sm:$0xff]
    %v556 = vld [vmem:[#allocation8 + $0x6d8] sm:$0xff]
    %v557 = vld [vmem:[#allocation8 + $0x6e0] sm:$0xff]
    %v558 = vld [vmem:[#allocation8 + $0x6e8] sm:$0xff]
    %v559 = vld [vmem:[#allocation8 + $0x6f0] sm:$0xff]
    %v560 = vld [vmem:[#allocation8 + $0x6f8] sm:$0xff]
    %v561 = vld [vmem:[#allocation8 + $0x700] sm:$0xff]
    %v562 = vld [vmem:[#allocation8 + $0x708] sm:$0xff]
    %v563 = vld [vmem:[#allocation8 + $0x710] sm:$0xff]
    %v564 = vld [vmem:[#allocation8 + $0x718] sm:$0xff]
    %v565 = vld [vmem:[#allocation8 + $0x720] sm:$0xff]
    %v566 = vld [vmem:[#allocation8 + $0x728] sm:$0xff]
    %v567 = vld [vmem:[#allocation8 + $0x730] sm:$0xff]
    %v568 = vld [vmem:[#allocation8 + $0x738] sm:$0xff]
    %v569 = vld [vmem:[#allocation8 + $0x740] sm:$0xff]
    %v570 = vld [vmem:[#allocation8 + $0x748] sm:$0xff]
    %v571 = vld [vmem:[#allocation8 + $0x750] sm:$0xff]
    %v572 = vld [vmem:[#allocation8 + $0x758] sm:$0xff]
    %v573 = vld [vmem:[#allocation8 + $0x760] sm:$0xff]
    %v574 = vld [vmem:[#allocation8 + $0x768] sm:$0xff]
    %v575 = vld [vmem:[#allocation8 + $0x770] sm:$0xff]
    %v576 = vld [vmem:[#allocation8 + $0x778] sm:$0xff]
    %v577 = vld [vmem:[#allocation8 + $0x780] sm:$0xff]
    %v578 = vld [vmem:[#allocation8 + $0x788] sm:$0xff]
    %v579 = vld [vmem:[#allocation8 + $0x790] sm:$0xff]
    %v580 = vld [vmem:[#allocation8 + $0x798] sm:$0xff]
    %v581 = vld [vmem:[#allocation8 + $0x7a0] sm:$0xff]
    %v582 = vld [vmem:[#allocation8 + $0x7a8] sm:$0xff]
    %v583 = vld [vmem:[#allocation8 + $0x7b0] sm:$0xff]
    %v584 = vld [vmem:[#allocation8 + $0x7b8] sm:$0xff]
    %v585 = vld [vmem:[#allocation8 + $0x7c0] sm:$0xff]
    %v586 = vld [vmem:[#allocation8 + $0x7c8] sm:$0xff]
    %v587 = vld [vmem:[#allocation8 + $0x7d0] sm:$0xff]
    %v588 = vld [vmem:[#allocation8 + $0x7d8] sm:$0xff]
    %v589 = vld [vmem:[#allocation8 + $0x7e0] sm:$0xff]
    %v590 = vld [vmem:[#allocation8 + $0x7e8] sm:$0xff]
    %v591 = vld [vmem:[#allocation8 + $0x7f0] sm:$0xff]
    %v592 = vld [vmem:[#allocation8 + $0x7f8] sm:$0xff]
    %v593 = vld [vmem:[%s4] sm:$0xf]
    %v595 = vlaneseq
    %v596 = vshrl.u32 %v595, 7
    %v597 = vsub.s32 0, %v596
    %v598 = vrot.slane %v336, %v597
    %v599 = vlaneseq
    %v600 = vshrl.u32 %v599, 7
    %v601 = vsub.s32 1, %v600
    %v602 = vrot.slane %v336, %v601
    %v603 = vlaneseq
    %v604 = vshrl.u32 %v603, 7
    %v605 = vsub.s32 2, %v604
    %v606 = vrot.slane %v336, %v605
    %v607 = vlaneseq
    %v608 = vshrl.u32 %v607, 7
    %v609 = vsub.s32 3, %v608
    %v610 = vrot.slane %v336, %v609
    %v611 = vlaneseq
    %v612 = vshrl.u32 %v611, 7
    %v613 = vsub.s32 4, %v612
    %v614 = vrot.slane %v336, %v613
    %v615 = vlaneseq
    %v616 = vshrl.u32 %v615, 7
    %v617 = vsub.s32 5, %v616
    %v618 = vrot.slane %v336, %v617
    %v619 = vlaneseq
    %v620 = vshrl.u32 %v619, 7
    %v621 = vsub.s32 6, %v620
    %v622 = vrot.slane %v336, %v621
    %v623 = vlaneseq
    %v624 = vshrl.u32 %v623, 7
    %v625 = vsub.s32 7, %v624
    %v626 = vrot.slane %v336, %v625
    %v891 = vunpack.c.l.b16 %v80
    %v892 = vunpack.c.h.b16 %v80
    %v893 = vunpack.c.l.b16 %v81
    %v894 = vunpack.c.h.b16 %v81
    %v895 = vunpack.c.l.b16 %v82
    %v896 = vunpack.c.h.b16 %v82
    %v897 = vunpack.c.l.b16 %v83
    %v898 = vunpack.c.h.b16 %v83
    %v899 = vunpack.c.l.b16 %v84
    %v900 = vunpack.c.h.b16 %v84
    %v901 = vunpack.c.l.b16 %v85
    %v902 = vunpack.c.h.b16 %v85
    %v903 = vunpack.c.l.b16 %v86
    %v904 = vunpack.c.h.b16 %v86
    %v905 = vunpack.c.l.b16 %v87
    %v906 = vunpack.c.h.b16 %v87
    %v907 = vunpack.c.l.b16 %v88
    %v908 = vunpack.c.h.b16 %v88
    %v909 = vunpack.c.l.b16 %v89
    %v910 = vunpack.c.h.b16 %v89
    %v911 = vunpack.c.l.b16 %v90
    %v912 = vunpack.c.h.b16 %v90
    %v913 = vunpack.c.l.b16 %v91
    %v914 = vunpack.c.h.b16 %v91
    %v915 = vunpack.c.l.b16 %v92
    %v916 = vunpack.c.h.b16 %v92
    %v917 = vunpack.c.l.b16 %v93
    %v918 = vunpack.c.h.b16 %v93
    %v919 = vunpack.c.l.b16 %v94
    %v920 = vunpack.c.h.b16 %v94
    %v921 = vunpack.c.l.b16 %v95
    %v922 = vunpack.c.h.b16 %v95
    %v923 = vunpack.c.l.b16 %v96
    %v924 = vunpack.c.h.b16 %v96
    %v925 = vunpack.c.l.b16 %v97
    %v926 = vunpack.c.h.b16 %v97
    %v927 = vunpack.c.l.b16 %v98
    %v928 = vunpack.c.h.b16 %v98
    %v929 = vunpack.c.l.b16 %v99
    %v930 = vunpack.c.h.b16 %v99
    %v931 = vunpack.c.l.b16 %v100
    %v932 = vunpack.c.h.b16 %v100
    %v933 = vunpack.c.l.b16 %v101
    %v934 = vunpack.c.h.b16 %v101
    %v935 = vunpack.c.l.b16 %v102
    %v936 = vunpack.c.h.b16 %v102
    %v937 = vunpack.c.l.b16 %v103
    %v938 = vunpack.c.h.b16 %v103
    %v939 = vunpack.c.l.b16 %v104
    %v940 = vunpack.c.h.b16 %v104
    %v941 = vunpack.c.l.b16 %v105
    %v942 = vunpack.c.h.b16 %v105
    %v943 = vunpack.c.l.b16 %v106
    %v944 = vunpack.c.h.b16 %v106
    %v945 = vunpack.c.l.b16 %v107
    %v946 = vunpack.c.h.b16 %v107
    %v947 = vunpack.c.l.b16 %v108
    %v948 = vunpack.c.h.b16 %v108
    %v949 = vunpack.c.l.b16 %v109
    %v950 = vunpack.c.h.b16 %v109
    %v951 = vunpack.c.l.b16 %v110
    %v952 = vunpack.c.h.b16 %v110
    %v953 = vunpack.c.l.b16 %v111
    %v954 = vunpack.c.h.b16 %v111
    %v955 = vunpack.c.l.b16 %v112
    %v956 = vunpack.c.h.b16 %v112
    %v957 = vunpack.c.l.b16 %v113
    %v958 = vunpack.c.h.b16 %v113
    %v959 = vunpack.c.l.b16 %v114
    %v960 = vunpack.c.h.b16 %v114
    %v961 = vunpack.c.l.b16 %v115
    %v962 = vunpack.c.h.b16 %v115
    %v963 = vunpack.c.l.b16 %v116
    %v964 = vunpack.c.h.b16 %v116
    %v965 = vunpack.c.l.b16 %v117
    %v966 = vunpack.c.h.b16 %v117
    %v967 = vunpack.c.l.b16 %v118
    %v968 = vunpack.c.h.b16 %v118
    %v969 = vunpack.c.l.b16 %v119
    %v970 = vunpack.c.h.b16 %v119
    %v971 = vunpack.c.l.b16 %v120
    %v972 = vunpack.c.h.b16 %v120
    %v973 = vunpack.c.l.b16 %v121
    %v974 = vunpack.c.h.b16 %v121
    %v975 = vunpack.c.l.b16 %v122
    %v976 = vunpack.c.h.b16 %v122
    %v977 = vunpack.c.l.b16 %v123
    %v978 = vunpack.c.h.b16 %v123
    %v979 = vunpack.c.l.b16 %v124
    %v980 = vunpack.c.h.b16 %v124
    %v981 = vunpack.c.l.b16 %v125
    %v982 = vunpack.c.h.b16 %v125
    %v983 = vunpack.c.l.b16 %v126
    %v984 = vunpack.c.h.b16 %v126
    %v985 = vunpack.c.l.b16 %v127
    %v986 = vunpack.c.h.b16 %v127
    %v987 = vunpack.c.l.b16 %v128
    %v988 = vunpack.c.h.b16 %v128
    %v989 = vunpack.c.l.b16 %v129
    %v990 = vunpack.c.h.b16 %v129
    %v991 = vunpack.c.l.b16 %v130
    %v992 = vunpack.c.h.b16 %v130
    %v993 = vunpack.c.l.b16 %v131
    %v994 = vunpack.c.h.b16 %v131
    %v995 = vunpack.c.l.b16 %v132
    %v996 = vunpack.c.h.b16 %v132
    %v997 = vunpack.c.l.b16 %v133
    %v998 = vunpack.c.h.b16 %v133
    %v999 = vunpack.c.l.b16 %v134
    %v1000 = vunpack.c.h.b16 %v134
    %v1001 = vunpack.c.l.b16 %v135
    %v1002 = vunpack.c.h.b16 %v135
    %v1003 = vunpack.c.l.b16 %v136
    %v1004 = vunpack.c.h.b16 %v136
    %v1005 = vunpack.c.l.b16 %v137
    %v1006 = vunpack.c.h.b16 %v137
    %v1007 = vunpack.c.l.b16 %v138
    %v1008 = vunpack.c.h.b16 %v138
    %v1009 = vunpack.c.l.b16 %v139
    %v1010 = vunpack.c.h.b16 %v139
    %v1011 = vunpack.c.l.b16 %v140
    %v1012 = vunpack.c.h.b16 %v140
    %v1013 = vunpack.c.l.b16 %v141
    %v1014 = vunpack.c.h.b16 %v141
    %v1015 = vunpack.c.l.b16 %v142
    %v1016 = vunpack.c.h.b16 %v142
    %v1017 = vunpack.c.l.b16 %v143
    %v1018 = vunpack.c.h.b16 %v143
    %v1019 = vunpack.c.l.b16 %v144
    %v1020 = vunpack.c.h.b16 %v144
    %v1021 = vunpack.c.l.b16 %v145
    %v1022 = vunpack.c.h.b16 %v145
    %v1023 = vunpack.c.l.b16 %v146
    %v1024 = vunpack.c.h.b16 %v146
    %v1025 = vunpack.c.l.b16 %v147
    %v1026 = vunpack.c.h.b16 %v147
    %v1027 = vunpack.c.l.b16 %v148
    %v1028 = vunpack.c.h.b16 %v148
    %v1029 = vunpack.c.l.b16 %v149
    %v1030 = vunpack.c.h.b16 %v149
    %v1031 = vunpack.c.l.b16 %v150
    %v1032 = vunpack.c.h.b16 %v150
    %v1033 = vunpack.c.l.b16 %v151
    %v1034 = vunpack.c.h.b16 %v151
    %v1035 = vunpack.c.l.b16 %v152
    %v1036 = vunpack.c.h.b16 %v152
    %v1037 = vunpack.c.l.b16 %v153
    %v1038 = vunpack.c.h.b16 %v153
    %v1039 = vunpack.c.l.b16 %v154
    %v1040 = vunpack.c.h.b16 %v154
    %v1041 = vunpack.c.l.b16 %v155
    %v1042 = vunpack.c.h.b16 %v155
    %v1043 = vunpack.c.l.b16 %v156
    %v1044 = vunpack.c.h.b16 %v156
    %v1045 = vunpack.c.l.b16 %v157
    %v1046 = vunpack.c.h.b16 %v157
    %v1047 = vunpack.c.l.b16 %v158
    %v1048 = vunpack.c.h.b16 %v158
    %v1049 = vunpack.c.l.b16 %v159
    %v1050 = vunpack.c.h.b16 %v159
    %v1051 = vunpack.c.l.b16 %v160
    %v1052 = vunpack.c.h.b16 %v160
    %v1053 = vunpack.c.l.b16 %v161
    %v1054 = vunpack.c.h.b16 %v161
    %v1055 = vunpack.c.l.b16 %v162
    %v1056 = vunpack.c.h.b16 %v162
    %v1057 = vunpack.c.l.b16 %v163
    %v1058 = vunpack.c.h.b16 %v163
    %v1059 = vunpack.c.l.b16 %v164
    %v1060 = vunpack.c.h.b16 %v164
    %v1061 = vunpack.c.l.b16 %v165
    %v1062 = vunpack.c.h.b16 %v165
    %v1063 = vunpack.c.l.b16 %v166
    %v1064 = vunpack.c.h.b16 %v166
    %v1065 = vunpack.c.l.b16 %v167
    %v1066 = vunpack.c.h.b16 %v167
    %v1067 = vunpack.c.l.b16 %v168
    %v1068 = vunpack.c.h.b16 %v168
    %v1069 = vunpack.c.l.b16 %v169
    %v1070 = vunpack.c.h.b16 %v169
    %v1071 = vunpack.c.l.b16 %v170
    %v1072 = vunpack.c.h.b16 %v170
    %v1073 = vunpack.c.l.b16 %v171
    %v1074 = vunpack.c.h.b16 %v171
    %v1075 = vunpack.c.l.b16 %v172
    %v1076 = vunpack.c.h.b16 %v172
    %v1077 = vunpack.c.l.b16 %v173
    %v1078 = vunpack.c.h.b16 %v173
    %v1079 = vunpack.c.l.b16 %v174
    %v1080 = vunpack.c.h.b16 %v174
    %v1081 = vunpack.c.l.b16 %v175
    %v1082 = vunpack.c.h.b16 %v175
    %v1083 = vunpack.c.l.b16 %v176
    %v1084 = vunpack.c.h.b16 %v176
    %v1085 = vunpack.c.l.b16 %v177
    %v1086 = vunpack.c.h.b16 %v177
    %v1087 = vunpack.c.l.b16 %v178
    %v1088 = vunpack.c.h.b16 %v178
    %v1089 = vunpack.c.l.b16 %v179
    %v1090 = vunpack.c.h.b16 %v179
    %v1091 = vunpack.c.l.b16 %v180
    %v1092 = vunpack.c.h.b16 %v180
    %v1093 = vunpack.c.l.b16 %v181
    %v1094 = vunpack.c.h.b16 %v181
    %v1095 = vunpack.c.l.b16 %v182
    %v1096 = vunpack.c.h.b16 %v182
    %v1097 = vunpack.c.l.b16 %v183
    %v1098 = vunpack.c.h.b16 %v183
    %v1099 = vunpack.c.l.b16 %v184
    %v1100 = vunpack.c.h.b16 %v184
    %v1101 = vunpack.c.l.b16 %v185
    %v1102 = vunpack.c.h.b16 %v185
    %v1103 = vunpack.c.l.b16 %v186
    %v1104 = vunpack.c.h.b16 %v186
    %v1105 = vunpack.c.l.b16 %v187
    %v1106 = vunpack.c.h.b16 %v187
    %v1107 = vunpack.c.l.b16 %v188
    %v1108 = vunpack.c.h.b16 %v188
    %v1109 = vunpack.c.l.b16 %v189
    %v1110 = vunpack.c.h.b16 %v189
    %v1111 = vunpack.c.l.b16 %v190
    %v1112 = vunpack.c.h.b16 %v190
    %v1113 = vunpack.c.l.b16 %v191
    %v1114 = vunpack.c.h.b16 %v191
    %v1115 = vunpack.c.l.b16 %v192
    %v1116 = vunpack.c.h.b16 %v192
    %v1117 = vunpack.c.l.b16 %v193
    %v1118 = vunpack.c.h.b16 %v193
    %v1119 = vunpack.c.l.b16 %v194
    %v1120 = vunpack.c.h.b16 %v194
    %v1121 = vunpack.c.l.b16 %v195
    %v1122 = vunpack.c.h.b16 %v195
    %v1123 = vunpack.c.l.b16 %v196
    %v1124 = vunpack.c.h.b16 %v196
    %v1125 = vunpack.c.l.b16 %v197
    %v1126 = vunpack.c.h.b16 %v197
    %v1127 = vunpack.c.l.b16 %v198
    %v1128 = vunpack.c.h.b16 %v198
    %v1129 = vunpack.c.l.b16 %v199
    %v1130 = vunpack.c.h.b16 %v199
    %v1131 = vunpack.c.l.b16 %v200
    %v1132 = vunpack.c.h.b16 %v200
    %v1133 = vunpack.c.l.b16 %v201
    %v1134 = vunpack.c.h.b16 %v201
    %v1135 = vunpack.c.l.b16 %v202
    %v1136 = vunpack.c.h.b16 %v202
    %v1137 = vunpack.c.l.b16 %v203
    %v1138 = vunpack.c.h.b16 %v203
    %v1139 = vunpack.c.l.b16 %v204
    %v1140 = vunpack.c.h.b16 %v204
    %v1141 = vunpack.c.l.b16 %v205
    %v1142 = vunpack.c.h.b16 %v205
    %v1143 = vunpack.c.l.b16 %v206
    %v1144 = vunpack.c.h.b16 %v206
    %v1145 = vunpack.c.l.b16 %v207
    %v1146 = vunpack.c.h.b16 %v207
    %v1147 = vunpack.c.l.b16 %v208
    %v1148 = vunpack.c.h.b16 %v208
    %v1149 = vunpack.c.l.b16 %v209
    %v1150 = vunpack.c.h.b16 %v209
    %v1151 = vunpack.c.l.b16 %v210
    %v1152 = vunpack.c.h.b16 %v210
    %v1153 = vunpack.c.l.b16 %v211
    %v1154 = vunpack.c.h.b16 %v211
    %v1155 = vunpack.c.l.b16 %v212
    %v1156 = vunpack.c.h.b16 %v212
    %v1157 = vunpack.c.l.b16 %v213
    %v1158 = vunpack.c.h.b16 %v213
    %v1159 = vunpack.c.l.b16 %v214
    %v1160 = vunpack.c.h.b16 %v214
    %v1161 = vunpack.c.l.b16 %v215
    %v1162 = vunpack.c.h.b16 %v215
    %v1163 = vunpack.c.l.b16 %v216
    %v1164 = vunpack.c.h.b16 %v216
    %v1165 = vunpack.c.l.b16 %v217
    %v1166 = vunpack.c.h.b16 %v217
    %v1167 = vunpack.c.l.b16 %v218
    %v1168 = vunpack.c.h.b16 %v218
    %v1169 = vunpack.c.l.b16 %v219
    %v1170 = vunpack.c.h.b16 %v219
    %v1171 = vunpack.c.l.b16 %v220
    %v1172 = vunpack.c.h.b16 %v220
    %v1173 = vunpack.c.l.b16 %v221
    %v1174 = vunpack.c.h.b16 %v221
    %v1175 = vunpack.c.l.b16 %v222
    %v1176 = vunpack.c.h.b16 %v222
    %v1177 = vunpack.c.l.b16 %v223
    %v1178 = vunpack.c.h.b16 %v223
    %v1179 = vunpack.c.l.b16 %v224
    %v1180 = vunpack.c.h.b16 %v224
    %v1181 = vunpack.c.l.b16 %v225
    %v1182 = vunpack.c.h.b16 %v225
    %v1183 = vunpack.c.l.b16 %v226
    %v1184 = vunpack.c.h.b16 %v226
    %v1185 = vunpack.c.l.b16 %v227
    %v1186 = vunpack.c.h.b16 %v227
    %v1187 = vunpack.c.l.b16 %v228
    %v1188 = vunpack.c.h.b16 %v228
    %v1189 = vunpack.c.l.b16 %v229
    %v1190 = vunpack.c.h.b16 %v229
    %v1191 = vunpack.c.l.b16 %v230
    %v1192 = vunpack.c.h.b16 %v230
    %v1193 = vunpack.c.l.b16 %v231
    %v1194 = vunpack.c.h.b16 %v231
    %v1195 = vunpack.c.l.b16 %v232
    %v1196 = vunpack.c.h.b16 %v232
    %v1197 = vunpack.c.l.b16 %v233
    %v1198 = vunpack.c.h.b16 %v233
    %v1199 = vunpack.c.l.b16 %v234
    %v1200 = vunpack.c.h.b16 %v234
    %v1201 = vunpack.c.l.b16 %v235
    %v1202 = vunpack.c.h.b16 %v235
    %v1203 = vunpack.c.l.b16 %v236
    %v1204 = vunpack.c.h.b16 %v236
    %v1205 = vunpack.c.l.b16 %v237
    %v1206 = vunpack.c.h.b16 %v237
    %v1207 = vunpack.c.l.b16 %v238
    %v1208 = vunpack.c.h.b16 %v238
    %v1209 = vunpack.c.l.b16 %v239
    %v1210 = vunpack.c.h.b16 %v239
    %v1211 = vunpack.c.l.b16 %v240
    %v1212 = vunpack.c.h.b16 %v240
    %v1213 = vunpack.c.l.b16 %v241
    %v1214 = vunpack.c.h.b16 %v241
    %v1215 = vunpack.c.l.b16 %v242
    %v1216 = vunpack.c.h.b16 %v242
    %v1217 = vunpack.c.l.b16 %v243
    %v1218 = vunpack.c.h.b16 %v243
    %v1219 = vunpack.c.l.b16 %v244
    %v1220 = vunpack.c.h.b16 %v244
    %v1221 = vunpack.c.l.b16 %v245
    %v1222 = vunpack.c.h.b16 %v245
    %v1223 = vunpack.c.l.b16 %v246
    %v1224 = vunpack.c.h.b16 %v246
    %v1225 = vunpack.c.l.b16 %v247
    %v1226 = vunpack.c.h.b16 %v247
    %v1227 = vunpack.c.l.b16 %v248
    %v1228 = vunpack.c.h.b16 %v248
    %v1229 = vunpack.c.l.b16 %v249
    %v1230 = vunpack.c.h.b16 %v249
    %v1231 = vunpack.c.l.b16 %v250
    %v1232 = vunpack.c.h.b16 %v250
    %v1233 = vunpack.c.l.b16 %v251
    %v1234 = vunpack.c.h.b16 %v251
    %v1235 = vunpack.c.l.b16 %v252
    %v1236 = vunpack.c.h.b16 %v252
    %v1237 = vunpack.c.l.b16 %v253
    %v1238 = vunpack.c.h.b16 %v253
    %v1239 = vunpack.c.l.b16 %v254
    %v1240 = vunpack.c.h.b16 %v254
    %v1241 = vunpack.c.l.b16 %v255
    %v1242 = vunpack.c.h.b16 %v255
    %v1243 = vunpack.c.l.b16 %v256
    %v1244 = vunpack.c.h.b16 %v256
    %v1245 = vunpack.c.l.b16 %v257
    %v1246 = vunpack.c.h.b16 %v257
    %v1247 = vunpack.c.l.b16 %v258
    %v1248 = vunpack.c.h.b16 %v258
    %v1249 = vunpack.c.l.b16 %v259
    %v1250 = vunpack.c.h.b16 %v259
    %v1251 = vunpack.c.l.b16 %v260
    %v1252 = vunpack.c.h.b16 %v260
    %v1253 = vunpack.c.l.b16 %v261
    %v1254 = vunpack.c.h.b16 %v261
    %v1255 = vunpack.c.l.b16 %v262
    %v1256 = vunpack.c.h.b16 %v262
    %v1257 = vunpack.c.l.b16 %v263
    %v1258 = vunpack.c.h.b16 %v263
    %v1259 = vunpack.c.l.b16 %v264
    %v1260 = vunpack.c.h.b16 %v264
    %v1261 = vunpack.c.l.b16 %v265
    %v1262 = vunpack.c.h.b16 %v265
    %v1263 = vunpack.c.l.b16 %v266
    %v1264 = vunpack.c.h.b16 %v266
    %v1265 = vunpack.c.l.b16 %v267
    %v1266 = vunpack.c.h.b16 %v267
    %v1267 = vunpack.c.l.b16 %v268
    %v1268 = vunpack.c.h.b16 %v268
    %v1269 = vunpack.c.l.b16 %v269
    %v1270 = vunpack.c.h.b16 %v269
    %v1271 = vunpack.c.l.b16 %v270
    %v1272 = vunpack.c.h.b16 %v270
    %v1273 = vunpack.c.l.b16 %v271
    %v1274 = vunpack.c.h.b16 %v271
    %v1275 = vunpack.c.l.b16 %v272
    %v1276 = vunpack.c.h.b16 %v272
    %v1277 = vunpack.c.l.b16 %v273
    %v1278 = vunpack.c.h.b16 %v273
    %v1279 = vunpack.c.l.b16 %v274
    %v1280 = vunpack.c.h.b16 %v274
    %v1281 = vunpack.c.l.b16 %v275
    %v1282 = vunpack.c.h.b16 %v275
    %v1283 = vunpack.c.l.b16 %v276
    %v1284 = vunpack.c.h.b16 %v276
    %v1285 = vunpack.c.l.b16 %v277
    %v1286 = vunpack.c.h.b16 %v277
    %v1287 = vunpack.c.l.b16 %v278
    %v1288 = vunpack.c.h.b16 %v278
    %v1289 = vunpack.c.l.b16 %v279
    %v1290 = vunpack.c.h.b16 %v279
    %v1291 = vunpack.c.l.b16 %v280
    %v1292 = vunpack.c.h.b16 %v280
    %v1293 = vunpack.c.l.b16 %v281
    %v1294 = vunpack.c.h.b16 %v281
    %v1295 = vunpack.c.l.b16 %v282
    %v1296 = vunpack.c.h.b16 %v282
    %v1297 = vunpack.c.l.b16 %v283
    %v1298 = vunpack.c.h.b16 %v283
    %v1299 = vunpack.c.l.b16 %v284
    %v1300 = vunpack.c.h.b16 %v284
    %v1301 = vunpack.c.l.b16 %v285
    %v1302 = vunpack.c.h.b16 %v285
    %v1303 = vunpack.c.l.b16 %v286
    %v1304 = vunpack.c.h.b16 %v286
    %v1305 = vunpack.c.l.b16 %v287
    %v1306 = vunpack.c.h.b16 %v287
    %v1307 = vunpack.c.l.b16 %v288
    %v1308 = vunpack.c.h.b16 %v288
    %v1309 = vunpack.c.l.b16 %v289
    %v1310 = vunpack.c.h.b16 %v289
    %v1311 = vunpack.c.l.b16 %v290
    %v1312 = vunpack.c.h.b16 %v290
    %v1313 = vunpack.c.l.b16 %v291
    %v1314 = vunpack.c.h.b16 %v291
    %v1315 = vunpack.c.l.b16 %v292
    %v1316 = vunpack.c.h.b16 %v292
    %v1317 = vunpack.c.l.b16 %v293
    %v1318 = vunpack.c.h.b16 %v293
    %v1319 = vunpack.c.l.b16 %v294
    %v1320 = vunpack.c.h.b16 %v294
    %v1321 = vunpack.c.l.b16 %v295
    %v1322 = vunpack.c.h.b16 %v295
    %v1323 = vunpack.c.l.b16 %v296
    %v1324 = vunpack.c.h.b16 %v296
    %v1325 = vunpack.c.l.b16 %v297
    %v1326 = vunpack.c.h.b16 %v297
    %v1327 = vunpack.c.l.b16 %v298
    %v1328 = vunpack.c.h.b16 %v298
    %v1329 = vunpack.c.l.b16 %v299
    %v1330 = vunpack.c.h.b16 %v299
    %v1331 = vunpack.c.l.b16 %v300
    %v1332 = vunpack.c.h.b16 %v300
    %v1333 = vunpack.c.l.b16 %v301
    %v1334 = vunpack.c.h.b16 %v301
    %v1335 = vunpack.c.l.b16 %v302
    %v1336 = vunpack.c.h.b16 %v302
    %v1337 = vunpack.c.l.b16 %v303
    %v1338 = vunpack.c.h.b16 %v303
    %v1339 = vunpack.c.l.b16 %v304
    %v1340 = vunpack.c.h.b16 %v304
    %v1341 = vunpack.c.l.b16 %v305
    %v1342 = vunpack.c.h.b16 %v305
    %v1343 = vunpack.c.l.b16 %v306
    %v1344 = vunpack.c.h.b16 %v306
    %v1345 = vunpack.c.l.b16 %v307
    %v1346 = vunpack.c.h.b16 %v307
    %v1347 = vunpack.c.l.b16 %v308
    %v1348 = vunpack.c.h.b16 %v308
    %v1349 = vunpack.c.l.b16 %v309
    %v1350 = vunpack.c.h.b16 %v309
    %v1351 = vunpack.c.l.b16 %v310
    %v1352 = vunpack.c.h.b16 %v310
    %v1353 = vunpack.c.l.b16 %v311
    %v1354 = vunpack.c.h.b16 %v311
    %v1355 = vunpack.c.l.b16 %v312
    %v1356 = vunpack.c.h.b16 %v312
    %v1357 = vunpack.c.l.b16 %v313
    %v1358 = vunpack.c.h.b16 %v313
    %v1359 = vunpack.c.l.b16 %v314
    %v1360 = vunpack.c.h.b16 %v314
    %v1361 = vunpack.c.l.b16 %v315
    %v1362 = vunpack.c.h.b16 %v315
    %v1363 = vunpack.c.l.b16 %v316
    %v1364 = vunpack.c.h.b16 %v316
    %v1365 = vunpack.c.l.b16 %v317
    %v1366 = vunpack.c.h.b16 %v317
    %v1367 = vunpack.c.l.b16 %v318
    %v1368 = vunpack.c.h.b16 %v318
    %v1369 = vunpack.c.l.b16 %v319
    %v1370 = vunpack.c.h.b16 %v319
    %v1371 = vunpack.c.l.b16 %v320
    %v1372 = vunpack.c.h.b16 %v320
    %v1373 = vunpack.c.l.b16 %v321
    %v1374 = vunpack.c.h.b16 %v321
    %v1375 = vunpack.c.l.b16 %v322
    %v1376 = vunpack.c.h.b16 %v322
    %v1377 = vunpack.c.l.b16 %v323
    %v1378 = vunpack.c.h.b16 %v323
    %v1379 = vunpack.c.l.b16 %v324
    %v1380 = vunpack.c.h.b16 %v324
    %v1381 = vunpack.c.l.b16 %v325
    %v1382 = vunpack.c.h.b16 %v325
    %v1383 = vunpack.c.l.b16 %v326
    %v1384 = vunpack.c.h.b16 %v326
    %v1385 = vunpack.c.l.b16 %v327
    %v1386 = vunpack.c.h.b16 %v327
    %v1387 = vunpack.c.l.b16 %v328
    %v1388 = vunpack.c.h.b16 %v328
    %v1389 = vunpack.c.l.b16 %v329
    %v1390 = vunpack.c.h.b16 %v329
    %v1391 = vunpack.c.l.b16 %v330
    %v1392 = vunpack.c.h.b16 %v330
    %v1393 = vunpack.c.l.b16 %v331
    %v1394 = vunpack.c.h.b16 %v331
    %v1395 = vunpack.c.l.b16 %v332
    %v1396 = vunpack.c.h.b16 %v332
    %v1397 = vunpack.c.l.b16 %v333
    %v1398 = vunpack.c.h.b16 %v333
    %v1399 = vunpack.c.l.b16 %v334
    %v1400 = vunpack.c.h.b16 %v334
    %v1401 = vunpack.c.l.b16 %v335
    %v1402 = vunpack.c.h.b16 %v335
    %v1403 = vpack.c.b16 %v899, %v891
    %v1404 = vpack.c.b16 %v900, %v892
    %v1405 = vpack.c.b16 %v901, %v893
    %v1406 = vpack.c.b16 %v902, %v894
    %v1407 = vpack.c.b16 %v903, %v895
    %v1408 = vpack.c.b16 %v904, %v896
    %v1409 = vpack.c.b16 %v905, %v897
    %v1410 = vpack.c.b16 %v906, %v898
    %v1411 = vpack.c.b16 %v915, %v907
    %v1412 = vpack.c.b16 %v916, %v908
    %v1413 = vpack.c.b16 %v917, %v909
    %v1414 = vpack.c.b16 %v918, %v910
    %v1415 = vpack.c.b16 %v919, %v911
    %v1416 = vpack.c.b16 %v920, %v912
    %v1417 = vpack.c.b16 %v921, %v913
    %v1418 = vpack.c.b16 %v922, %v914
    %v1419 = vpack.c.b16 %v931, %v923
    %v1420 = vpack.c.b16 %v932, %v924
    %v1421 = vpack.c.b16 %v933, %v925
    %v1422 = vpack.c.b16 %v934, %v926
    %v1423 = vpack.c.b16 %v935, %v927
    %v1424 = vpack.c.b16 %v936, %v928
    %v1425 = vpack.c.b16 %v937, %v929
    %v1426 = vpack.c.b16 %v938, %v930
    %v1427 = vpack.c.b16 %v947, %v939
    %v1428 = vpack.c.b16 %v948, %v940
    %v1429 = vpack.c.b16 %v949, %v941
    %v1430 = vpack.c.b16 %v950, %v942
    %v1431 = vpack.c.b16 %v951, %v943
    %v1432 = vpack.c.b16 %v952, %v944
    %v1433 = vpack.c.b16 %v953, %v945
    %v1434 = vpack.c.b16 %v954, %v946
    %v1435 = vpack.c.b16 %v963, %v955
    %v1436 = vpack.c.b16 %v964, %v956
    %v1437 = vpack.c.b16 %v965, %v957
    %v1438 = vpack.c.b16 %v966, %v958
    %v1439 = vpack.c.b16 %v967, %v959
    %v1440 = vpack.c.b16 %v968, %v960
    %v1441 = vpack.c.b16 %v969, %v961
    %v1442 = vpack.c.b16 %v970, %v962
    %v1443 = vpack.c.b16 %v979, %v971
    %v1444 = vpack.c.b16 %v980, %v972
    %v1445 = vpack.c.b16 %v981, %v973
    %v1446 = vpack.c.b16 %v982, %v974
    %v1447 = vpack.c.b16 %v983, %v975
    %v1448 = vpack.c.b16 %v984, %v976
    %v1449 = vpack.c.b16 %v985, %v977
    %v1450 = vpack.c.b16 %v986, %v978
    %v1451 = vpack.c.b16 %v995, %v987
    %v1452 = vpack.c.b16 %v996, %v988
    %v1453 = vpack.c.b16 %v997, %v989
    %v1454 = vpack.c.b16 %v998, %v990
    %v1455 = vpack.c.b16 %v999, %v991
    %v1456 = vpack.c.b16 %v1000, %v992
    %v1457 = vpack.c.b16 %v1001, %v993
    %v1458 = vpack.c.b16 %v1002, %v994
    %v1459 = vpack.c.b16 %v1011, %v1003
    %v1460 = vpack.c.b16 %v1012, %v1004
    %v1461 = vpack.c.b16 %v1013, %v1005
    %v1462 = vpack.c.b16 %v1014, %v1006
    %v1463 = vpack.c.b16 %v1015, %v1007
    %v1464 = vpack.c.b16 %v1016, %v1008
    %v1465 = vpack.c.b16 %v1017, %v1009
    %v1466 = vpack.c.b16 %v1018, %v1010
    %v1467 = vpack.c.b16 %v1027, %v1019
    %v1468 = vpack.c.b16 %v1028, %v1020
    %v1469 = vpack.c.b16 %v1029, %v1021
    %v1470 = vpack.c.b16 %v1030, %v1022
    %v1471 = vpack.c.b16 %v1031, %v1023
    %v1472 = vpack.c.b16 %v1032, %v1024
    %v1473 = vpack.c.b16 %v1033, %v1025
    %v1474 = vpack.c.b16 %v1034, %v1026
    %v1475 = vpack.c.b16 %v1043, %v1035
    %v1476 = vpack.c.b16 %v1044, %v1036
    %v1477 = vpack.c.b16 %v1045, %v1037
    %v1478 = vpack.c.b16 %v1046, %v1038
    %v1479 = vpack.c.b16 %v1047, %v1039
    %v1480 = vpack.c.b16 %v1048, %v1040
    %v1481 = vpack.c.b16 %v1049, %v1041
    %v1482 = vpack.c.b16 %v1050, %v1042
    %v1483 = vpack.c.b16 %v1059, %v1051
    %v1484 = vpack.c.b16 %v1060, %v1052
    %v1485 = vpack.c.b16 %v1061, %v1053
    %v1486 = vpack.c.b16 %v1062, %v1054
    %v1487 = vpack.c.b16 %v1063, %v1055
    %v1488 = vpack.c.b16 %v1064, %v1056
    %v1489 = vpack.c.b16 %v1065, %v1057
    %v1490 = vpack.c.b16 %v1066, %v1058
    %v1491 = vpack.c.b16 %v1075, %v1067
    %v1492 = vpack.c.b16 %v1076, %v1068
    %v1493 = vpack.c.b16 %v1077, %v1069
    %v1494 = vpack.c.b16 %v1078, %v1070
    %v1495 = vpack.c.b16 %v1079, %v1071
    %v1496 = vpack.c.b16 %v1080, %v1072
    %v1497 = vpack.c.b16 %v1081, %v1073
    %v1498 = vpack.c.b16 %v1082, %v1074
    %v1499 = vpack.c.b16 %v1091, %v1083
    %v1500 = vpack.c.b16 %v1092, %v1084
    %v1501 = vpack.c.b16 %v1093, %v1085
    %v1502 = vpack.c.b16 %v1094, %v1086
    %v1503 = vpack.c.b16 %v1095, %v1087
    %v1504 = vpack.c.b16 %v1096, %v1088
    %v1505 = vpack.c.b16 %v1097, %v1089
    %v1506 = vpack.c.b16 %v1098, %v1090
    %v1507 = vpack.c.b16 %v1107, %v1099
    %v1508 = vpack.c.b16 %v1108, %v1100
    %v1509 = vpack.c.b16 %v1109, %v1101
    %v1510 = vpack.c.b16 %v1110, %v1102
    %v1511 = vpack.c.b16 %v1111, %v1103
    %v1512 = vpack.c.b16 %v1112, %v1104
    %v1513 = vpack.c.b16 %v1113, %v1105
    %v1514 = vpack.c.b16 %v1114, %v1106
    %v1515 = vpack.c.b16 %v1123, %v1115
    %v1516 = vpack.c.b16 %v1124, %v1116
    %v1517 = vpack.c.b16 %v1125, %v1117
    %v1518 = vpack.c.b16 %v1126, %v1118
    %v1519 = vpack.c.b16 %v1127, %v1119
    %v1520 = vpack.c.b16 %v1128, %v1120
    %v1521 = vpack.c.b16 %v1129, %v1121
    %v1522 = vpack.c.b16 %v1130, %v1122
    %v1523 = vpack.c.b16 %v1139, %v1131
    %v1524 = vpack.c.b16 %v1140, %v1132
    %v1525 = vpack.c.b16 %v1141, %v1133
    %v1526 = vpack.c.b16 %v1142, %v1134
    %v1527 = vpack.c.b16 %v1143, %v1135
    %v1528 = vpack.c.b16 %v1144, %v1136
    %v1529 = vpack.c.b16 %v1145, %v1137
    %v1530 = vpack.c.b16 %v1146, %v1138
    %v1531 = vpack.c.b16 %v1155, %v1147
    %v1532 = vpack.c.b16 %v1156, %v1148
    %v1533 = vpack.c.b16 %v1157, %v1149
    %v1534 = vpack.c.b16 %v1158, %v1150
    %v1535 = vpack.c.b16 %v1159, %v1151
    %v1536 = vpack.c.b16 %v1160, %v1152
    %v1537 = vpack.c.b16 %v1161, %v1153
    %v1538 = vpack.c.b16 %v1162, %v1154
    %v1539 = vpack.c.b16 %v1171, %v1163
    %v1540 = vpack.c.b16 %v1172, %v1164
    %v1541 = vpack.c.b16 %v1173, %v1165
    %v1542 = vpack.c.b16 %v1174, %v1166
    %v1543 = vpack.c.b16 %v1175, %v1167
    %v1544 = vpack.c.b16 %v1176, %v1168
    %v1545 = vpack.c.b16 %v1177, %v1169
    %v1546 = vpack.c.b16 %v1178, %v1170
    %v1547 = vpack.c.b16 %v1187, %v1179
    %v1548 = vpack.c.b16 %v1188, %v1180
    %v1549 = vpack.c.b16 %v1189, %v1181
    %v1550 = vpack.c.b16 %v1190, %v1182
    %v1551 = vpack.c.b16 %v1191, %v1183
    %v1552 = vpack.c.b16 %v1192, %v1184
    %v1553 = vpack.c.b16 %v1193, %v1185
    %v1554 = vpack.c.b16 %v1194, %v1186
    %v1555 = vpack.c.b16 %v1203, %v1195
    %v1556 = vpack.c.b16 %v1204, %v1196
    %v1557 = vpack.c.b16 %v1205, %v1197
    %v1558 = vpack.c.b16 %v1206, %v1198
    %v1559 = vpack.c.b16 %v1207, %v1199
    %v1560 = vpack.c.b16 %v1208, %v1200
    %v1561 = vpack.c.b16 %v1209, %v1201
    %v1562 = vpack.c.b16 %v1210, %v1202
    %v1563 = vpack.c.b16 %v1219, %v1211
    %v1564 = vpack.c.b16 %v1220, %v1212
    %v1565 = vpack.c.b16 %v1221, %v1213
    %v1566 = vpack.c.b16 %v1222, %v1214
    %v1567 = vpack.c.b16 %v1223, %v1215
    %v1568 = vpack.c.b16 %v1224, %v1216
    %v1569 = vpack.c.b16 %v1225, %v1217
    %v1570 = vpack.c.b16 %v1226, %v1218
    %v1571 = vpack.c.b16 %v1235, %v1227
    %v1572 = vpack.c.b16 %v1236, %v1228
    %v1573 = vpack.c.b16 %v1237, %v1229
    %v1574 = vpack.c.b16 %v1238, %v1230
    %v1575 = vpack.c.b16 %v1239, %v1231
    %v1576 = vpack.c.b16 %v1240, %v1232
    %v1577 = vpack.c.b16 %v1241, %v1233
    %v1578 = vpack.c.b16 %v1242, %v1234
    %v1579 = vpack.c.b16 %v1251, %v1243
    %v1580 = vpack.c.b16 %v1252, %v1244
    %v1581 = vpack.c.b16 %v1253, %v1245
    %v1582 = vpack.c.b16 %v1254, %v1246
    %v1583 = vpack.c.b16 %v1255, %v1247
    %v1584 = vpack.c.b16 %v1256, %v1248
    %v1585 = vpack.c.b16 %v1257, %v1249
    %v1586 = vpack.c.b16 %v1258, %v1250
    %v1587 = vpack.c.b16 %v1267, %v1259
    %v1588 = vpack.c.b16 %v1268, %v1260
    %v1589 = vpack.c.b16 %v1269, %v1261
    %v1590 = vpack.c.b16 %v1270, %v1262
    %v1591 = vpack.c.b16 %v1271, %v1263
    %v1592 = vpack.c.b16 %v1272, %v1264
    %v1593 = vpack.c.b16 %v1273, %v1265
    %v1594 = vpack.c.b16 %v1274, %v1266
    %v1595 = vpack.c.b16 %v1283, %v1275
    %v1596 = vpack.c.b16 %v1284, %v1276
    %v1597 = vpack.c.b16 %v1285, %v1277
    %v1598 = vpack.c.b16 %v1286, %v1278
    %v1599 = vpack.c.b16 %v1287, %v1279
    %v1600 = vpack.c.b16 %v1288, %v1280
    %v1601 = vpack.c.b16 %v1289, %v1281
    %v1602 = vpack.c.b16 %v1290, %v1282
    %v1603 = vpack.c.b16 %v1299, %v1291
    %v1604 = vpack.c.b16 %v1300, %v1292
    %v1605 = vpack.c.b16 %v1301, %v1293
    %v1606 = vpack.c.b16 %v1302, %v1294
    %v1607 = vpack.c.b16 %v1303, %v1295
    %v1608 = vpack.c.b16 %v1304, %v1296
    %v1609 = vpack.c.b16 %v1305, %v1297
    %v1610 = vpack.c.b16 %v1306, %v1298
    %v1611 = vpack.c.b16 %v1315, %v1307
    %v1612 = vpack.c.b16 %v1316, %v1308
    %v1613 = vpack.c.b16 %v1317, %v1309
    %v1614 = vpack.c.b16 %v1318, %v1310
    %v1615 = vpack.c.b16 %v1319, %v1311
    %v1616 = vpack.c.b16 %v1320, %v1312
    %v1617 = vpack.c.b16 %v1321, %v1313
    %v1618 = vpack.c.b16 %v1322, %v1314
    %v1619 = vpack.c.b16 %v1331, %v1323
    %v1620 = vpack.c.b16 %v1332, %v1324
    %v1621 = vpack.c.b16 %v1333, %v1325
    %v1622 = vpack.c.b16 %v1334, %v1326
    %v1623 = vpack.c.b16 %v1335, %v1327
    %v1624 = vpack.c.b16 %v1336, %v1328
    %v1625 = vpack.c.b16 %v1337, %v1329
    %v1626 = vpack.c.b16 %v1338, %v1330
    %v1627 = vpack.c.b16 %v1347, %v1339
    %v1628 = vpack.c.b16 %v1348, %v1340
    %v1629 = vpack.c.b16 %v1349, %v1341
    %v1630 = vpack.c.b16 %v1350, %v1342
    %v1631 = vpack.c.b16 %v1351, %v1343
    %v1632 = vpack.c.b16 %v1352, %v1344
    %v1633 = vpack.c.b16 %v1353, %v1345
    %v1634 = vpack.c.b16 %v1354, %v1346
    %v1635 = vpack.c.b16 %v1363, %v1355
    %v1636 = vpack.c.b16 %v1364, %v1356
    %v1637 = vpack.c.b16 %v1365, %v1357
    %v1638 = vpack.c.b16 %v1366, %v1358
    %v1639 = vpack.c.b16 %v1367, %v1359
    %v1640 = vpack.c.b16 %v1368, %v1360
    %v1641 = vpack.c.b16 %v1369, %v1361
    %v1642 = vpack.c.b16 %v1370, %v1362
    %v1643 = vpack.c.b16 %v1379, %v1371
    %v1644 = vpack.c.b16 %v1380, %v1372
    %v1645 = vpack.c.b16 %v1381, %v1373
    %v1646 = vpack.c.b16 %v1382, %v1374
    %v1647 = vpack.c.b16 %v1383, %v1375
    %v1648 = vpack.c.b16 %v1384, %v1376
    %v1649 = vpack.c.b16 %v1385, %v1377
    %v1650 = vpack.c.b16 %v1386, %v1378
    %v1651 = vpack.c.b16 %v1395, %v1387
    %v1652 = vpack.c.b16 %v1396, %v1388
    %v1653 = vpack.c.b16 %v1397, %v1389
    %v1654 = vpack.c.b16 %v1398, %v1390
    %v1655 = vpack.c.b16 %v1399, %v1391
    %v1656 = vpack.c.b16 %v1400, %v1392
    %v1657 = vpack.c.b16 %v1401, %v1393
    %v1658 = vpack.c.b16 %v1402, %v1394
    %1915 = vmatprep.subr.bf16.mxu0 %v1460
    %1916 = vmatpush1.bf16.msra.mxu0 %v1459
    %1917 = vmatprep.subr.bf16.mxu0 %v1452
    %1918 = vmatpush1.bf16.msra.mxu0 %v1451
    %1919 = vmatprep.subr.bf16.mxu0 %v1444
    %1920 = vmatpush1.bf16.msra.mxu0 %v1443
    %1921 = vmatprep.subr.bf16.mxu0 %v1436
    %1922 = vmatpush1.bf16.msra.mxu0 %v1435
    %1923 = vmatprep.subr.bf16.mxu0 %v1428
    %1924 = vmatpush1.bf16.msra.mxu0 %v1427
    %1925 = vmatprep.subr.bf16.mxu0 %v1420
    %1926 = vmatpush1.bf16.msra.mxu0 %v1419
    %1927 = vmatprep.subr.bf16.mxu0 %v1412
    %1928 = vmatpush1.bf16.msra.mxu0 %v1411
    %1929 = vmatprep.subr.bf16.mxu0 %v1404
    %1930 = vmatpush1.bf16.msra.mxu0 %v1403
    %1931 = vmatprep.subr.bf16.mxu0 %v1524
    %1932 = vmatpush2.bf16.msra.mxu0 %v1523
    %1933 = vmatprep.subr.bf16.mxu0 %v1516
    %1934 = vmatpush2.bf16.msra.mxu0 %v1515
    %1935 = vmatprep.subr.bf16.mxu0 %v1508
    %1936 = vmatpush2.bf16.msra.mxu0 %v1507
    %1937 = vmatprep.subr.bf16.mxu0 %v1500
    %1938 = vmatpush2.bf16.msra.mxu0 %v1499
    %1939 = vmatprep.subr.bf16.mxu0 %v1492
    %1940 = vmatpush2.bf16.msra.mxu0 %v1491
    %1941 = vmatprep.subr.bf16.mxu0 %v1484
    %1942 = vmatpush2.bf16.msra.mxu0 %v1483
    %1943 = vmatprep.subr.bf16.mxu0 %v1476
    %1944 = vmatpush2.bf16.msra.mxu0 %v1475
    %1945 = vmatprep.subr.bf16.mxu0 %v1468
    %1946 = vmatpush2.bf16.msra.mxu0 %v1467
    %1947 = vmatprep.mubr.bf16.mxu0 %v77
    %1948 = vmatmul.mubr.bf16.gmra.mxu0 %v76
    %v1949 = vpop.f32.mrf.mxu0
    %v1950 = vadd.f32 %v598, %v1949
    %v1951 = vpop.f32.mrf.mxu0
    %v1952 = vadd.f32 %v602, %v1951
    %v1953 = vpop.f32.mrf.mxu0
    %v1954 = vpop.f32.mrf.mxu0
    %1955 = vdwg.mxu0
    %1956 = vmatprep.subr.bf16.mxu0 %v1588
    %1957 = vmatpush1.bf16.msra.mxu0 %v1587
    %1958 = vmatprep.subr.bf16.mxu0 %v1580
    %1959 = vmatpush1.bf16.msra.mxu0 %v1579
    %1960 = vmatprep.subr.bf16.mxu0 %v1572
    %1961 = vmatpush1.bf16.msra.mxu0 %v1571
    %1962 = vmatprep.subr.bf16.mxu0 %v1564
    %1963 = vmatpush1.bf16.msra.mxu0 %v1563
    %1964 = vmatprep.subr.bf16.mxu0 %v1556
    %1965 = vmatpush1.bf16.msra.mxu0 %v1555
    %1966 = vmatprep.subr.bf16.mxu0 %v1548
    %1967 = vmatpush1.bf16.msra.mxu0 %v1547
    %1968 = vmatprep.subr.bf16.mxu0 %v1540
    %1969 = vmatpush1.bf16.msra.mxu0 %v1539
    %1970 = vmatprep.subr.bf16.mxu0 %v1532
    %1971 = vmatpush1.bf16.msra.mxu0 %v1531
    %1972 = vmatprep.subr.bf16.mxu0 %v1652
    %1973 = vmatpush2.bf16.msra.mxu0 %v1651
    %1974 = vmatprep.subr.bf16.mxu0 %v1644
    %1975 = vmatpush2.bf16.msra.mxu0 %v1643
    %1976 = vmatprep.subr.bf16.mxu0 %v1636
    %1977 = vmatpush2.bf16.msra.mxu0 %v1635
    %1978 = vmatprep.subr.bf16.mxu0 %v1628
    %1979 = vmatpush2.bf16.msra.mxu0 %v1627
    %1980 = vmatprep.subr.bf16.mxu0 %v1620
    %1981 = vmatpush2.bf16.msra.mxu0 %v1619
    %1982 = vmatprep.subr.bf16.mxu0 %v1612
    %1983 = vmatpush2.bf16.msra.mxu0 %v1611
    %1984 = vmatprep.subr.bf16.mxu0 %v1604
    %1985 = vmatpush2.bf16.msra.mxu0 %v1603
    %1986 = vmatprep.subr.bf16.mxu0 %v1596
    %1987 = vmatpush2.bf16.msra.mxu0 %v1595
    %1988 = vmatprep.mubr.bf16.mxu0 %v79
    %1989 = vmatmul.mubr.bf16.gmra.mxu0 %v78
    %v1990 = vpop.f32.mrf.mxu0
    %v1991 = vadd.f32 %v1950, %v1990
    %v1992 = vpop.f32.mrf.mxu0
    %v1993 = vadd.f32 %v1952, %v1992
    %v1994 = vpop.f32.mrf.mxu0
    %v1995 = vpop.f32.mrf.mxu0
    %1996 = vdwg.mxu0
    %1997 = vmatprep.subr.bf16.mxu0 %v1462
    %1998 = vmatpush1.bf16.msra.mxu0 %v1461
    %1999 = vmatprep.subr.bf16.mxu0 %v1454
    %2000 = vmatpush1.bf16.msra.mxu0 %v1453
    %2001 = vmatprep.subr.bf16.mxu0 %v1446
    %2002 = vmatpush1.bf16.msra.mxu0 %v1445
    %2003 = vmatprep.subr.bf16.mxu0 %v1438
    %2004 = vmatpush1.bf16.msra.mxu0 %v1437
    %2005 = vmatprep.subr.bf16.mxu0 %v1430
    %2006 = vmatpush1.bf16.msra.mxu0 %v1429
    %2007 = vmatprep.subr.bf16.mxu0 %v1422
    %2008 = vmatpush1.bf16.msra.mxu0 %v1421
    %2009 = vmatprep.subr.bf16.mxu0 %v1414
    %2010 = vmatpush1.bf16.msra.mxu0 %v1413
    %2011 = vmatprep.subr.bf16.mxu0 %v1406
    %2012 = vmatpush1.bf16.msra.mxu0 %v1405
    %2013 = vmatprep.subr.bf16.mxu0 %v1526
    %2014 = vmatpush2.bf16.msra.mxu0 %v1525
    %2015 = vmatprep.subr.bf16.mxu0 %v1518
    %2016 = vmatpush2.bf16.msra.mxu0 %v1517
    %2017 = vmatprep.subr.bf16.mxu0 %v1510
    %2018 = vmatpush2.bf16.msra.mxu0 %v1509
    %2019 = vmatprep.subr.bf16.mxu0 %v1502
    %2020 = vmatpush2.bf16.msra.mxu0 %v1501
    %2021 = vmatprep.subr.bf16.mxu0 %v1494
    %2022 = vmatpush2.bf16.msra.mxu0 %v1493
    %2023 = vmatprep.subr.bf16.mxu0 %v1486
    %2024 = vmatpush2.bf16.msra.mxu0 %v1485
    %2025 = vmatprep.subr.bf16.mxu0 %v1478
    %2026 = vmatpush2.bf16.msra.mxu0 %v1477
    %2027 = vmatprep.subr.bf16.mxu0 %v1470
    %2028 = vmatpush2.bf16.msra.mxu0 %v1469
    %2029 = vmatprep.mubr.bf16.mxu0 %v77
    %2030 = vmatmul.mubr.bf16.gmra.mxu0 %v76
    %v2031 = vpop.f32.mrf.mxu0
    %v2032 = vadd.f32 %v606, %v2031
    %v2033 = vpop.f32.mrf.mxu0
    %v2034 = vadd.f32 %v610, %v2033
    %v2035 = vpop.f32.mrf.mxu0
    %v2036 = vpop.f32.mrf.mxu0
    %2037 = vdwg.mxu0
    %2038 = vmatprep.subr.bf16.mxu0 %v1590
    %2039 = vmatpush1.bf16.msra.mxu0 %v1589
    %2040 = vmatprep.subr.bf16.mxu0 %v1582
    %2041 = vmatpush1.bf16.msra.mxu0 %v1581
    %2042 = vmatprep.subr.bf16.mxu0 %v1574
    %2043 = vmatpush1.bf16.msra.mxu0 %v1573
    %2044 = vmatprep.subr.bf16.mxu0 %v1566
    %2045 = vmatpush1.bf16.msra.mxu0 %v1565
    %2046 = vmatprep.subr.bf16.mxu0 %v1558
    %2047 = vmatpush1.bf16.msra.mxu0 %v1557
    %2048 = vmatprep.subr.bf16.mxu0 %v1550
    %2049 = vmatpush1.bf16.msra.mxu0 %v1549
    %2050 = vmatprep.subr.bf16.mxu0 %v1542
    %2051 = vmatpush1.bf16.msra.mxu0 %v1541
    %2052 = vmatprep.subr.bf16.mxu0 %v1534
    %2053 = vmatpush1.bf16.msra.mxu0 %v1533
    %2054 = vmatprep.subr.bf16.mxu0 %v1654
    %2055 = vmatpush2.bf16.msra.mxu0 %v1653
    %2056 = vmatprep.subr.bf16.mxu0 %v1646
    %2057 = vmatpush2.bf16.msra.mxu0 %v1645
    %2058 = vmatprep.subr.bf16.mxu0 %v1638
    %2059 = vmatpush2.bf16.msra.mxu0 %v1637
    %2060 = vmatprep.subr.bf16.mxu0 %v1630
    %2061 = vmatpush2.bf16.msra.mxu0 %v1629
    %2062 = vmatprep.subr.bf16.mxu0 %v1622
    %2063 = vmatpush2.bf16.msra.mxu0 %v1621
    %2064 = vmatprep.subr.bf16.mxu0 %v1614
    %2065 = vmatpush2.bf16.msra.mxu0 %v1613
    %2066 = vmatprep.subr.bf16.mxu0 %v1606
    %2067 = vmatpush2.bf16.msra.mxu0 %v1605
    %2068 = vmatprep.subr.bf16.mxu0 %v1598
    %2069 = vmatpush2.bf16.msra.mxu0 %v1597
    %2070 = vmatprep.mubr.bf16.mxu0 %v79
    %2071 = vmatmul.mubr.bf16.gmra.mxu0 %v78
    %v2072 = vpop.f32.mrf.mxu0
    %v2073 = vadd.f32 %v2032, %v2072
    %v2074 = vpop.f32.mrf.mxu0
    %v2075 = vadd.f32 %v2034, %v2074
    %v2076 = vpop.f32.mrf.mxu0
    %v2077 = vpop.f32.mrf.mxu0
    %2078 = vdwg.mxu0
    %2079 = vmatprep.subr.bf16.mxu0 %v1464
    %2080 = vmatpush1.bf16.msra.mxu0 %v1463
    %2081 = vmatprep.subr.bf16.mxu0 %v1456
    %2082 = vmatpush1.bf16.msra.mxu0 %v1455
    %2083 = vmatprep.subr.bf16.mxu0 %v1448
    %2084 = vmatpush1.bf16.msra.mxu0 %v1447
    %2085 = vmatprep.subr.bf16.mxu0 %v1440
    %2086 = vmatpush1.bf16.msra.mxu0 %v1439
    %2087 = vmatprep.subr.bf16.mxu0 %v1432
    %2088 = vmatpush1.bf16.msra.mxu0 %v1431
    %2089 = vmatprep.subr.bf16.mxu0 %v1424
    %2090 = vmatpush1.bf16.msra.mxu0 %v1423
    %2091 = vmatprep.subr.bf16.mxu0 %v1416
    %2092 = vmatpush1.bf16.msra.mxu0 %v1415
    %2093 = vmatprep.subr.bf16.mxu0 %v1408
    %2094 = vmatpush1.bf16.msra.mxu0 %v1407
    %2095 = vmatprep.subr.bf16.mxu0 %v1528
    %2096 = vmatpush2.bf16.msra.mxu0 %v1527
    %2097 = vmatprep.subr.bf16.mxu0 %v1520
    %2098 = vmatpush2.bf16.msra.mxu0 %v1519
    %2099 = vmatprep.subr.bf16.mxu0 %v1512
    %2100 = vmatpush2.bf16.msra.mxu0 %v1511
    %2101 = vmatprep.subr.bf16.mxu0 %v1504
    %2102 = vmatpush2.bf16.msra.mxu0 %v1503
    %2103 = vmatprep.subr.bf16.mxu0 %v1496
    %2104 = vmatpush2.bf16.msra.mxu0 %v1495
    %2105 = vmatprep.subr.bf16.mxu0 %v1488
    %2106 = vmatpush2.bf16.msra.mxu0 %v1487
    %2107 = vmatprep.subr.bf16.mxu0 %v1480
    %2108 = vmatpush2.bf16.msra.mxu0 %v1479
    %2109 = vmatprep.subr.bf16.mxu0 %v1472
    %2110 = vmatpush2.bf16.msra.mxu0 %v1471
    %2111 = vmatprep.mubr.bf16.mxu0 %v77
    %2112 = vmatmul.mubr.bf16.gmra.mxu0 %v76
    %v2113 = vpop.f32.mrf.mxu0
    %v2114 = vadd.f32 %v614, %v2113
    %v2115 = vpop.f32.mrf.mxu0
    %v2116 = vadd.f32 %v618, %v2115
    %v2117 = vpop.f32.mrf.mxu0
    %v2118 = vpop.f32.mrf.mxu0
    %2119 = vdwg.mxu0
    %2120 = vmatprep.subr.bf16.mxu0 %v1592
    %2121 = vmatpush1.bf16.msra.mxu0 %v1591
    %2122 = vmatprep.subr.bf16.mxu0 %v1584
    %2123 = vmatpush1.bf16.msra.mxu0 %v1583
    %2124 = vmatprep.subr.bf16.mxu0 %v1576
    %2125 = vmatpush1.bf16.msra.mxu0 %v1575
    %2126 = vmatprep.subr.bf16.mxu0 %v1568
    %2127 = vmatpush1.bf16.msra.mxu0 %v1567
    %2128 = vmatprep.subr.bf16.mxu0 %v1560
    %2129 = vmatpush1.bf16.msra.mxu0 %v1559
    %2130 = vmatprep.subr.bf16.mxu0 %v1552
    %2131 = vmatpush1.bf16.msra.mxu0 %v1551
    %2132 = vmatprep.subr.bf16.mxu0 %v1544
    %2133 = vmatpush1.bf16.msra.mxu0 %v1543
    %2134 = vmatprep.subr.bf16.mxu0 %v1536
    %2135 = vmatpush1.bf16.msra.mxu0 %v1535
    %2136 = vmatprep.subr.bf16.mxu0 %v1656
    %2137 = vmatpush2.bf16.msra.mxu0 %v1655
    %2138 = vmatprep.subr.bf16.mxu0 %v1648
    %2139 = vmatpush2.bf16.msra.mxu0 %v1647
    %2140 = vmatprep.subr.bf16.mxu0 %v1640
    %2141 = vmatpush2.bf16.msra.mxu0 %v1639
    %2142 = vmatprep.subr.bf16.mxu0 %v1632
    %2143 = vmatpush2.bf16.msra.mxu0 %v1631
    %2144 = vmatprep.subr.bf16.mxu0 %v1624
    %2145 = vmatpush2.bf16.msra.mxu0 %v1623
    %2146 = vmatprep.subr.bf16.mxu0 %v1616
    %2147 = vmatpush2.bf16.msra.mxu0 %v1615
    %2148 = vmatprep.subr.bf16.mxu0 %v1608
    %2149 = vmatpush2.bf16.msra.mxu0 %v1607
    %2150 = vmatprep.subr.bf16.mxu0 %v1600
    %2151 = vmatpush2.bf16.msra.mxu0 %v1599
    %2152 = vmatprep.mubr.bf16.mxu0 %v79
    %2153 = vmatmul.mubr.bf16.gmra.mxu0 %v78
    %v2154 = vpop.f32.mrf.mxu0
    %v2155 = vadd.f32 %v2114, %v2154
    %v2156 = vpop.f32.mrf.mxu0
    %v2157 = vadd.f32 %v2116, %v2156
    %v2158 = vpop.f32.mrf.mxu0
    %v2159 = vpop.f32.mrf.mxu0
    %2160 = vdwg.mxu0
    %2161 = vmatprep.subr.bf16.mxu0 %v1466
    %2162 = vmatpush1.bf16.msra.mxu0 %v1465
    %2163 = vmatprep.subr.bf16.mxu0 %v1458
    %2164 = vmatpush1.bf16.msra.mxu0 %v1457
    %2165 = vmatprep.subr.bf16.mxu0 %v1450
    %2166 = vmatpush1.bf16.msra.mxu0 %v1449
    %2167 = vmatprep.subr.bf16.mxu0 %v1442
    %2168 = vmatpush1.bf16.msra.mxu0 %v1441
    %2169 = vmatprep.subr.bf16.mxu0 %v1434
    %2170 = vmatpush1.bf16.msra.mxu0 %v1433
    %2171 = vmatprep.subr.bf16.mxu0 %v1426
    %2172 = vmatpush1.bf16.msra.mxu0 %v1425
    %2173 = vmatprep.subr.bf16.mxu0 %v1418
    %2174 = vmatpush1.bf16.msra.mxu0 %v1417
    %2175 = vmatprep.subr.bf16.mxu0 %v1410
    %2176 = vmatpush1.bf16.msra.mxu0 %v1409
    %2177 = vmatprep.subr.bf16.mxu0 %v1530
    %2178 = vmatpush2.bf16.msra.mxu0 %v1529
    %2179 = vmatprep.subr.bf16.mxu0 %v1522
    %2180 = vmatpush2.bf16.msra.mxu0 %v1521
    %2181 = vmatprep.subr.bf16.mxu0 %v1514
    %2182 = vmatpush2.bf16.msra.mxu0 %v1513
    %2183 = vmatprep.subr.bf16.mxu0 %v1506
    %2184 = vmatpush2.bf16.msra.mxu0 %v1505
    %2185 = vmatprep.subr.bf16.mxu0 %v1498
    %2186 = vmatpush2.bf16.msra.mxu0 %v1497
    %2187 = vmatprep.subr.bf16.mxu0 %v1490
    %2188 = vmatpush2.bf16.msra.mxu0 %v1489
    %2189 = vmatprep.subr.bf16.mxu0 %v1482
    %2190 = vmatpush2.bf16.msra.mxu0 %v1481
    %2191 = vmatprep.subr.bf16.mxu0 %v1474
    %2192 = vmatpush2.bf16.msra.mxu0 %v1473
    %2193 = vmatprep.mubr.bf16.mxu0 %v77
    %2194 = vmatmul.mubr.bf16.gmra.mxu0 %v76
    %v2195 = vpop.f32.mrf.mxu0
    %v2196 = vadd.f32 %v622, %v2195
    %v2197 = vpop.f32.mrf.mxu0
    %v2198 = vadd.f32 %v626, %v2197
    %v2199 = vpop.f32.mrf.mxu0
    %v2200 = vpop.f32.mrf.mxu0
    %2201 = vdwg.mxu0
    %2202 = vmatprep.subr.bf16.mxu0 %v1594
    %2203 = vmatpush1.bf16.msra.mxu0 %v1593
    %2204 = vmatprep.subr.bf16.mxu0 %v1586
    %2205 = vmatpush1.bf16.msra.mxu0 %v1585
    %2206 = vmatprep.subr.bf16.mxu0 %v1578
    %2207 = vmatpush1.bf16.msra.mxu0 %v1577
    %2208 = vmatprep.subr.bf16.mxu0 %v1570
    %2209 = vmatpush1.bf16.msra.mxu0 %v1569
    %2210 = vmatprep.subr.bf16.mxu0 %v1562
    %2211 = vmatpush1.bf16.msra.mxu0 %v1561
    %2212 = vmatprep.subr.bf16.mxu0 %v1554
    %2213 = vmatpush1.bf16.msra.mxu0 %v1553
    %2214 = vmatprep.subr.bf16.mxu0 %v1546
    %2215 = vmatpush1.bf16.msra.mxu0 %v1545
    %2216 = vmatprep.subr.bf16.mxu0 %v1538
    %2217 = vmatpush1.bf16.msra.mxu0 %v1537
    %2218 = vmatprep.subr.bf16.mxu0 %v1658
    %2219 = vmatpush2.bf16.msra.mxu0 %v1657
    %2220 = vmatprep.subr.bf16.mxu0 %v1650
    %2221 = vmatpush2.bf16.msra.mxu0 %v1649
    %2222 = vmatprep.subr.bf16.mxu0 %v1642
    %2223 = vmatpush2.bf16.msra.mxu0 %v1641
    %2224 = vmatprep.subr.bf16.mxu0 %v1634
    %2225 = vmatpush2.bf16.msra.mxu0 %v1633
    %2226 = vmatprep.subr.bf16.mxu0 %v1626
    %2227 = vmatpush2.bf16.msra.mxu0 %v1625
    %2228 = vmatprep.subr.bf16.mxu0 %v1618
    %2229 = vmatpush2.bf16.msra.mxu0 %v1617
    %2230 = vmatprep.subr.bf16.mxu0 %v1610
    %2231 = vmatpush2.bf16.msra.mxu0 %v1609
    %2232 = vmatprep.subr.bf16.mxu0 %v1602
    %2233 = vmatpush2.bf16.msra.mxu0 %v1601
    %2234 = vmatprep.mubr.bf16.mxu0 %v79
    %2235 = vmatmul.mubr.bf16.gmra.mxu0 %v78
    %v2236 = vpop.f32.mrf.mxu0
    %v2237 = vadd.f32 %v2196, %v2236
    %v2238 = vpop.f32.mrf.mxu0
    %v2239 = vadd.f32 %v2198, %v2238
    %v2240 = vpop.f32.mrf.mxu0
    %v2241 = vpop.f32.mrf.mxu0
    %2242 = vdwg.mxu0
    %v2243 = vpack.c.bf16 %v1991, %v1991
    %v2244 = vpack.c.bf16 %v1993, %v1993
    %v2245 = vpack.c.bf16 %v2073, %v2073
    %v2246 = vpack.c.bf16 %v2075, %v2075
    %v2247 = vpack.c.bf16 %v2155, %v2155
    %v2248 = vpack.c.bf16 %v2157, %v2157
    %v2249 = vpack.c.bf16 %v2237, %v2237
    %v2250 = vpack.c.bf16 %v2239, %v2239
    %v2252 = vlaneseq
    %v2253 = vshrl.u32 %v2252, 7
    %v2254 = vsub.s32 0, %v2253
    %v2255 = vrot.slane %v593, %v2254
    %v2256 = vlaneseq
    %v2257 = vshrl.u32 %v2256, 7
    %v2258 = vsub.s32 1, %v2257
    %v2259 = vrot.slane %v593, %v2258
    %v2260 = vlaneseq
    %v2261 = vshrl.u32 %v2260, 7
    %v2262 = vsub.s32 2, %v2261
    %v2263 = vrot.slane %v593, %v2262
    %v2264 = vlaneseq
    %v2265 = vshrl.u32 %v2264, 7
    %v2266 = vsub.s32 3, %v2265
    %v2267 = vrot.slane %v593, %v2266
    %v2528 = vunpack.c.l.b16 %v337
    %v2529 = vunpack.c.h.b16 %v337
    %v2530 = vunpack.c.l.b16 %v338
    %v2531 = vunpack.c.h.b16 %v338
    %v2532 = vunpack.c.l.b16 %v339
    %v2533 = vunpack.c.h.b16 %v339
    %v2534 = vunpack.c.l.b16 %v340
    %v2535 = vunpack.c.h.b16 %v340
    %v2536 = vunpack.c.l.b16 %v341
    %v2537 = vunpack.c.h.b16 %v341
    %v2538 = vunpack.c.l.b16 %v342
    %v2539 = vunpack.c.h.b16 %v342
    %v2540 = vunpack.c.l.b16 %v343
    %v2541 = vunpack.c.h.b16 %v343
    %v2542 = vunpack.c.l.b16 %v344
    %v2543 = vunpack.c.h.b16 %v344
    %v2544 = vunpack.c.l.b16 %v345
    %v2545 = vunpack.c.h.b16 %v345
    %v2546 = vunpack.c.l.b16 %v346
    %v2547 = vunpack.c.h.b16 %v346
    %v2548 = vunpack.c.l.b16 %v347
    %v2549 = vunpack.c.h.b16 %v347
    %v2550 = vunpack.c.l.b16 %v348
    %v2551 = vunpack.c.h.b16 %v348
    %v2552 = vunpack.c.l.b16 %v349
    %v2553 = vunpack.c.h.b16 %v349
    %v2554 = vunpack.c.l.b16 %v350
    %v2555 = vunpack.c.h.b16 %v350
    %v2556 = vunpack.c.l.b16 %v351
    %v2557 = vunpack.c.h.b16 %v351
    %v2558 = vunpack.c.l.b16 %v352
    %v2559 = vunpack.c.h.b16 %v352
    %v2560 = vunpack.c.l.b16 %v353
    %v2561 = vunpack.c.h.b16 %v353
    %v2562 = vunpack.c.l.b16 %v354
    %v2563 = vunpack.c.h.b16 %v354
    %v2564 = vunpack.c.l.b16 %v355
    %v2565 = vunpack.c.h.b16 %v355
    %v2566 = vunpack.c.l.b16 %v356
    %v2567 = vunpack.c.h.b16 %v356
    %v2568 = vunpack.c.l.b16 %v357
    %v2569 = vunpack.c.h.b16 %v357
    %v2570 = vunpack.c.l.b16 %v358
    %v2571 = vunpack.c.h.b16 %v358
    %v2572 = vunpack.c.l.b16 %v359
    %v2573 = vunpack.c.h.b16 %v359
    %v2574 = vunpack.c.l.b16 %v360
    %v2575 = vunpack.c.h.b16 %v360
    %v2576 = vunpack.c.l.b16 %v361
    %v2577 = vunpack.c.h.b16 %v361
    %v2578 = vunpack.c.l.b16 %v362
    %v2579 = vunpack.c.h.b16 %v362
    %v2580 = vunpack.c.l.b16 %v363
    %v2581 = vunpack.c.h.b16 %v363
    %v2582 = vunpack.c.l.b16 %v364
    %v2583 = vunpack.c.h.b16 %v364
    %v2584 = vunpack.c.l.b16 %v365
    %v2585 = vunpack.c.h.b16 %v365
    %v2586 = vunpack.c.l.b16 %v366
    %v2587 = vunpack.c.h.b16 %v366
    %v2588 = vunpack.c.l.b16 %v367
    %v2589 = vunpack.c.h.b16 %v367
    %v2590 = vunpack.c.l.b16 %v368
    %v2591 = vunpack.c.h.b16 %v368
    %v2592 = vunpack.c.l.b16 %v369
    %v2593 = vunpack.c.h.b16 %v369
    %v2594 = vunpack.c.l.b16 %v370
    %v2595 = vunpack.c.h.b16 %v370
    %v2596 = vunpack.c.l.b16 %v371
    %v2597 = vunpack.c.h.b16 %v371
    %v2598 = vunpack.c.l.b16 %v372
    %v2599 = vunpack.c.h.b16 %v372
    %v2600 = vunpack.c.l.b16 %v373
    %v2601 = vunpack.c.h.b16 %v373
    %v2602 = vunpack.c.l.b16 %v374
    %v2603 = vunpack.c.h.b16 %v374
    %v2604 = vunpack.c.l.b16 %v375
    %v2605 = vunpack.c.h.b16 %v375
    %v2606 = vunpack.c.l.b16 %v376
    %v2607 = vunpack.c.h.b16 %v376
    %v2608 = vunpack.c.l.b16 %v377
    %v2609 = vunpack.c.h.b16 %v377
    %v2610 = vunpack.c.l.b16 %v378
    %v2611 = vunpack.c.h.b16 %v378
    %v2612 = vunpack.c.l.b16 %v379
    %v2613 = vunpack.c.h.b16 %v379
    %v2614 = vunpack.c.l.b16 %v380
    %v2615 = vunpack.c.h.b16 %v380
    %v2616 = vunpack.c.l.b16 %v381
    %v2617 = vunpack.c.h.b16 %v381
    %v2618 = vunpack.c.l.b16 %v382
    %v2619 = vunpack.c.h.b16 %v382
    %v2620 = vunpack.c.l.b16 %v383
    %v2621 = vunpack.c.h.b16 %v383
    %v2622 = vunpack.c.l.b16 %v384
    %v2623 = vunpack.c.h.b16 %v384
    %v2624 = vunpack.c.l.b16 %v385
    %v2625 = vunpack.c.h.b16 %v385
    %v2626 = vunpack.c.l.b16 %v386
    %v2627 = vunpack.c.h.b16 %v386
    %v2628 = vunpack.c.l.b16 %v387
    %v2629 = vunpack.c.h.b16 %v387
    %v2630 = vunpack.c.l.b16 %v388
    %v2631 = vunpack.c.h.b16 %v388
    %v2632 = vunpack.c.l.b16 %v389
    %v2633 = vunpack.c.h.b16 %v389
    %v2634 = vunpack.c.l.b16 %v390
    %v2635 = vunpack.c.h.b16 %v390
    %v2636 = vunpack.c.l.b16 %v391
    %v2637 = vunpack.c.h.b16 %v391
    %v2638 = vunpack.c.l.b16 %v392
    %v2639 = vunpack.c.h.b16 %v392
    %v2640 = vunpack.c.l.b16 %v393
    %v2641 = vunpack.c.h.b16 %v393
    %v2642 = vunpack.c.l.b16 %v394
    %v2643 = vunpack.c.h.b16 %v394
    %v2644 = vunpack.c.l.b16 %v395
    %v2645 = vunpack.c.h.b16 %v395
    %v2646 = vunpack.c.l.b16 %v396
    %v2647 = vunpack.c.h.b16 %v396
    %v2648 = vunpack.c.l.b16 %v397
    %v2649 = vunpack.c.h.b16 %v397
    %v2650 = vunpack.c.l.b16 %v398
    %v2651 = vunpack.c.h.b16 %v398
    %v2652 = vunpack.c.l.b16 %v399
    %v2653 = vunpack.c.h.b16 %v399
    %v2654 = vunpack.c.l.b16 %v400
    %v2655 = vunpack.c.h.b16 %v400
    %v2656 = vunpack.c.l.b16 %v401
    %v2657 = vunpack.c.h.b16 %v401
    %v2658 = vunpack.c.l.b16 %v402
    %v2659 = vunpack.c.h.b16 %v402
    %v2660 = vunpack.c.l.b16 %v403
    %v2661 = vunpack.c.h.b16 %v403
    %v2662 = vunpack.c.l.b16 %v404
    %v2663 = vunpack.c.h.b16 %v404
    %v2664 = vunpack.c.l.b16 %v405
    %v2665 = vunpack.c.h.b16 %v405
    %v2666 = vunpack.c.l.b16 %v406
    %v2667 = vunpack.c.h.b16 %v406
    %v2668 = vunpack.c.l.b16 %v407
    %v2669 = vunpack.c.h.b16 %v407
    %v2670 = vunpack.c.l.b16 %v408
    %v2671 = vunpack.c.h.b16 %v408
    %v2672 = vunpack.c.l.b16 %v409
    %v2673 = vunpack.c.h.b16 %v409
    %v2674 = vunpack.c.l.b16 %v410
    %v2675 = vunpack.c.h.b16 %v410
    %v2676 = vunpack.c.l.b16 %v411
    %v2677 = vunpack.c.h.b16 %v411
    %v2678 = vunpack.c.l.b16 %v412
    %v2679 = vunpack.c.h.b16 %v412
    %v2680 = vunpack.c.l.b16 %v413
    %v2681 = vunpack.c.h.b16 %v413
    %v2682 = vunpack.c.l.b16 %v414
    %v2683 = vunpack.c.h.b16 %v414
    %v2684 = vunpack.c.l.b16 %v415
    %v2685 = vunpack.c.h.b16 %v415
    %v2686 = vunpack.c.l.b16 %v416
    %v2687 = vunpack.c.h.b16 %v416
    %v2688 = vunpack.c.l.b16 %v417
    %v2689 = vunpack.c.h.b16 %v417
    %v2690 = vunpack.c.l.b16 %v418
    %v2691 = vunpack.c.h.b16 %v418
    %v2692 = vunpack.c.l.b16 %v419
    %v2693 = vunpack.c.h.b16 %v419
    %v2694 = vunpack.c.l.b16 %v420
    %v2695 = vunpack.c.h.b16 %v420
    %v2696 = vunpack.c.l.b16 %v421
    %v2697 = vunpack.c.h.b16 %v421
    %v2698 = vunpack.c.l.b16 %v422
    %v2699 = vunpack.c.h.b16 %v422
    %v2700 = vunpack.c.l.b16 %v423
    %v2701 = vunpack.c.h.b16 %v423
    %v2702 = vunpack.c.l.b16 %v424
    %v2703 = vunpack.c.h.b16 %v424
    %v2704 = vunpack.c.l.b16 %v425
    %v2705 = vunpack.c.h.b16 %v425
    %v2706 = vunpack.c.l.b16 %v426
    %v2707 = vunpack.c.h.b16 %v426
    %v2708 = vunpack.c.l.b16 %v427
    %v2709 = vunpack.c.h.b16 %v427
    %v2710 = vunpack.c.l.b16 %v428
    %v2711 = vunpack.c.h.b16 %v428
    %v2712 = vunpack.c.l.b16 %v429
    %v2713 = vunpack.c.h.b16 %v429
    %v2714 = vunpack.c.l.b16 %v430
    %v2715 = vunpack.c.h.b16 %v430
    %v2716 = vunpack.c.l.b16 %v431
    %v2717 = vunpack.c.h.b16 %v431
    %v2718 = vunpack.c.l.b16 %v432
    %v2719 = vunpack.c.h.b16 %v432
    %v2720 = vunpack.c.l.b16 %v433
    %v2721 = vunpack.c.h.b16 %v433
    %v2722 = vunpack.c.l.b16 %v434
    %v2723 = vunpack.c.h.b16 %v434
    %v2724 = vunpack.c.l.b16 %v435
    %v2725 = vunpack.c.h.b16 %v435
    %v2726 = vunpack.c.l.b16 %v436
    %v2727 = vunpack.c.h.b16 %v436
    %v2728 = vunpack.c.l.b16 %v437
    %v2729 = vunpack.c.h.b16 %v437
    %v2730 = vunpack.c.l.b16 %v438
    %v2731 = vunpack.c.h.b16 %v438
    %v2732 = vunpack.c.l.b16 %v439
    %v2733 = vunpack.c.h.b16 %v439
    %v2734 = vunpack.c.l.b16 %v440
    %v2735 = vunpack.c.h.b16 %v440
    %v2736 = vunpack.c.l.b16 %v441
    %v2737 = vunpack.c.h.b16 %v441
    %v2738 = vunpack.c.l.b16 %v442
    %v2739 = vunpack.c.h.b16 %v442
    %v2740 = vunpack.c.l.b16 %v443
    %v2741 = vunpack.c.h.b16 %v443
    %v2742 = vunpack.c.l.b16 %v444
    %v2743 = vunpack.c.h.b16 %v444
    %v2744 = vunpack.c.l.b16 %v445
    %v2745 = vunpack.c.h.b16 %v445
    %v2746 = vunpack.c.l.b16 %v446
    %v2747 = vunpack.c.h.b16 %v446
    %v2748 = vunpack.c.l.b16 %v447
    %v2749 = vunpack.c.h.b16 %v447
    %v2750 = vunpack.c.l.b16 %v448
    %v2751 = vunpack.c.h.b16 %v448
    %v2752 = vunpack.c.l.b16 %v449
    %v2753 = vunpack.c.h.b16 %v449
    %v2754 = vunpack.c.l.b16 %v450
    %v2755 = vunpack.c.h.b16 %v450
    %v2756 = vunpack.c.l.b16 %v451
    %v2757 = vunpack.c.h.b16 %v451
    %v2758 = vunpack.c.l.b16 %v452
    %v2759 = vunpack.c.h.b16 %v452
    %v2760 = vunpack.c.l.b16 %v453
    %v2761 = vunpack.c.h.b16 %v453
    %v2762 = vunpack.c.l.b16 %v454
    %v2763 = vunpack.c.h.b16 %v454
    %v2764 = vunpack.c.l.b16 %v455
    %v2765 = vunpack.c.h.b16 %v455
    %v2766 = vunpack.c.l.b16 %v456
    %v2767 = vunpack.c.h.b16 %v456
    %v2768 = vunpack.c.l.b16 %v457
    %v2769 = vunpack.c.h.b16 %v457
    %v2770 = vunpack.c.l.b16 %v458
    %v2771 = vunpack.c.h.b16 %v458
    %v2772 = vunpack.c.l.b16 %v459
    %v2773 = vunpack.c.h.b16 %v459
    %v2774 = vunpack.c.l.b16 %v460
    %v2775 = vunpack.c.h.b16 %v460
    %v2776 = vunpack.c.l.b16 %v461
    %v2777 = vunpack.c.h.b16 %v461
    %v2778 = vunpack.c.l.b16 %v462
    %v2779 = vunpack.c.h.b16 %v462
    %v2780 = vunpack.c.l.b16 %v463
    %v2781 = vunpack.c.h.b16 %v463
    %v2782 = vunpack.c.l.b16 %v464
    %v2783 = vunpack.c.h.b16 %v464
    %v2784 = vunpack.c.l.b16 %v465
    %v2785 = vunpack.c.h.b16 %v465
    %v2786 = vunpack.c.l.b16 %v466
    %v2787 = vunpack.c.h.b16 %v466
    %v2788 = vunpack.c.l.b16 %v467
    %v2789 = vunpack.c.h.b16 %v467
    %v2790 = vunpack.c.l.b16 %v468
    %v2791 = vunpack.c.h.b16 %v468
    %v2792 = vunpack.c.l.b16 %v469
    %v2793 = vunpack.c.h.b16 %v469
    %v2794 = vunpack.c.l.b16 %v470
    %v2795 = vunpack.c.h.b16 %v470
    %v2796 = vunpack.c.l.b16 %v471
    %v2797 = vunpack.c.h.b16 %v471
    %v2798 = vunpack.c.l.b16 %v472
    %v2799 = vunpack.c.h.b16 %v472
    %v2800 = vunpack.c.l.b16 %v473
    %v2801 = vunpack.c.h.b16 %v473
    %v2802 = vunpack.c.l.b16 %v474
    %v2803 = vunpack.c.h.b16 %v474
    %v2804 = vunpack.c.l.b16 %v475
    %v2805 = vunpack.c.h.b16 %v475
    %v2806 = vunpack.c.l.b16 %v476
    %v2807 = vunpack.c.h.b16 %v476
    %v2808 = vunpack.c.l.b16 %v477
    %v2809 = vunpack.c.h.b16 %v477
    %v2810 = vunpack.c.l.b16 %v478
    %v2811 = vunpack.c.h.b16 %v478
    %v2812 = vunpack.c.l.b16 %v479
    %v2813 = vunpack.c.h.b16 %v479
    %v2814 = vunpack.c.l.b16 %v480
    %v2815 = vunpack.c.h.b16 %v480
    %v2816 = vunpack.c.l.b16 %v481
    %v2817 = vunpack.c.h.b16 %v481
    %v2818 = vunpack.c.l.b16 %v482
    %v2819 = vunpack.c.h.b16 %v482
    %v2820 = vunpack.c.l.b16 %v483
    %v2821 = vunpack.c.h.b16 %v483
    %v2822 = vunpack.c.l.b16 %v484
    %v2823 = vunpack.c.h.b16 %v484
    %v2824 = vunpack.c.l.b16 %v485
    %v2825 = vunpack.c.h.b16 %v485
    %v2826 = vunpack.c.l.b16 %v486
    %v2827 = vunpack.c.h.b16 %v486
    %v2828 = vunpack.c.l.b16 %v487
    %v2829 = vunpack.c.h.b16 %v487
    %v2830 = vunpack.c.l.b16 %v488
    %v2831 = vunpack.c.h.b16 %v488
    %v2832 = vunpack.c.l.b16 %v489
    %v2833 = vunpack.c.h.b16 %v489
    %v2834 = vunpack.c.l.b16 %v490
    %v2835 = vunpack.c.h.b16 %v490
    %v2836 = vunpack.c.l.b16 %v491
    %v2837 = vunpack.c.h.b16 %v491
    %v2838 = vunpack.c.l.b16 %v492
    %v2839 = vunpack.c.h.b16 %v492
    %v2840 = vunpack.c.l.b16 %v493
    %v2841 = vunpack.c.h.b16 %v493
    %v2842 = vunpack.c.l.b16 %v494
    %v2843 = vunpack.c.h.b16 %v494
    %v2844 = vunpack.c.l.b16 %v495
    %v2845 = vunpack.c.h.b16 %v495
    %v2846 = vunpack.c.l.b16 %v496
    %v2847 = vunpack.c.h.b16 %v496
    %v2848 = vunpack.c.l.b16 %v497
    %v2849 = vunpack.c.h.b16 %v497
    %v2850 = vunpack.c.l.b16 %v498
    %v2851 = vunpack.c.h.b16 %v498
    %v2852 = vunpack.c.l.b16 %v499
    %v2853 = vunpack.c.h.b16 %v499
    %v2854 = vunpack.c.l.b16 %v500
    %v2855 = vunpack.c.h.b16 %v500
    %v2856 = vunpack.c.l.b16 %v501
    %v2857 = vunpack.c.h.b16 %v501
    %v2858 = vunpack.c.l.b16 %v502
    %v2859 = vunpack.c.h.b16 %v502
    %v2860 = vunpack.c.l.b16 %v503
    %v2861 = vunpack.c.h.b16 %v503
    %v2862 = vunpack.c.l.b16 %v504
    %v2863 = vunpack.c.h.b16 %v504
    %v2864 = vunpack.c.l.b16 %v505
    %v2865 = vunpack.c.h.b16 %v505
    %v2866 = vunpack.c.l.b16 %v506
    %v2867 = vunpack.c.h.b16 %v506
    %v2868 = vunpack.c.l.b16 %v507
    %v2869 = vunpack.c.h.b16 %v507
    %v2870 = vunpack.c.l.b16 %v508
    %v2871 = vunpack.c.h.b16 %v508
    %v2872 = vunpack.c.l.b16 %v509
    %v2873 = vunpack.c.h.b16 %v509
    %v2874 = vunpack.c.l.b16 %v510
    %v2875 = vunpack.c.h.b16 %v510
    %v2876 = vunpack.c.l.b16 %v511
    %v2877 = vunpack.c.h.b16 %v511
    %v2878 = vunpack.c.l.b16 %v512
    %v2879 = vunpack.c.h.b16 %v512
    %v2880 = vunpack.c.l.b16 %v513
    %v2881 = vunpack.c.h.b16 %v513
    %v2882 = vunpack.c.l.b16 %v514
    %v2883 = vunpack.c.h.b16 %v514
    %v2884 = vunpack.c.l.b16 %v515
    %v2885 = vunpack.c.h.b16 %v515
    %v2886 = vunpack.c.l.b16 %v516
    %v2887 = vunpack.c.h.b16 %v516
    %v2888 = vunpack.c.l.b16 %v517
    %v2889 = vunpack.c.h.b16 %v517
    %v2890 = vunpack.c.l.b16 %v518
    %v2891 = vunpack.c.h.b16 %v518
    %v2892 = vunpack.c.l.b16 %v519
    %v2893 = vunpack.c.h.b16 %v519
    %v2894 = vunpack.c.l.b16 %v520
    %v2895 = vunpack.c.h.b16 %v520
    %v2896 = vunpack.c.l.b16 %v521
    %v2897 = vunpack.c.h.b16 %v521
    %v2898 = vunpack.c.l.b16 %v522
    %v2899 = vunpack.c.h.b16 %v522
    %v2900 = vunpack.c.l.b16 %v523
    %v2901 = vunpack.c.h.b16 %v523
    %v2902 = vunpack.c.l.b16 %v524
    %v2903 = vunpack.c.h.b16 %v524
    %v2904 = vunpack.c.l.b16 %v525
    %v2905 = vunpack.c.h.b16 %v525
    %v2906 = vunpack.c.l.b16 %v526
    %v2907 = vunpack.c.h.b16 %v526
    %v2908 = vunpack.c.l.b16 %v527
    %v2909 = vunpack.c.h.b16 %v527
    %v2910 = vunpack.c.l.b16 %v528
    %v2911 = vunpack.c.h.b16 %v528
    %v2912 = vunpack.c.l.b16 %v529
    %v2913 = vunpack.c.h.b16 %v529
    %v2914 = vunpack.c.l.b16 %v530
    %v2915 = vunpack.c.h.b16 %v530
    %v2916 = vunpack.c.l.b16 %v531
    %v2917 = vunpack.c.h.b16 %v531
    %v2918 = vunpack.c.l.b16 %v532
    %v2919 = vunpack.c.h.b16 %v532
    %v2920 = vunpack.c.l.b16 %v533
    %v2921 = vunpack.c.h.b16 %v533
    %v2922 = vunpack.c.l.b16 %v534
    %v2923 = vunpack.c.h.b16 %v534
    %v2924 = vunpack.c.l.b16 %v535
    %v2925 = vunpack.c.h.b16 %v535
    %v2926 = vunpack.c.l.b16 %v536
    %v2927 = vunpack.c.h.b16 %v536
    %v2928 = vunpack.c.l.b16 %v537
    %v2929 = vunpack.c.h.b16 %v537
    %v2930 = vunpack.c.l.b16 %v538
    %v2931 = vunpack.c.h.b16 %v538
    %v2932 = vunpack.c.l.b16 %v539
    %v2933 = vunpack.c.h.b16 %v539
    %v2934 = vunpack.c.l.b16 %v540
    %v2935 = vunpack.c.h.b16 %v540
    %v2936 = vunpack.c.l.b16 %v541
    %v2937 = vunpack.c.h.b16 %v541
    %v2938 = vunpack.c.l.b16 %v542
    %v2939 = vunpack.c.h.b16 %v542
    %v2940 = vunpack.c.l.b16 %v543
    %v2941 = vunpack.c.h.b16 %v543
    %v2942 = vunpack.c.l.b16 %v544
    %v2943 = vunpack.c.h.b16 %v544
    %v2944 = vunpack.c.l.b16 %v545
    %v2945 = vunpack.c.h.b16 %v545
    %v2946 = vunpack.c.l.b16 %v546
    %v2947 = vunpack.c.h.b16 %v546
    %v2948 = vunpack.c.l.b16 %v547
    %v2949 = vunpack.c.h.b16 %v547
    %v2950 = vunpack.c.l.b16 %v548
    %v2951 = vunpack.c.h.b16 %v548
    %v2952 = vunpack.c.l.b16 %v549
    %v2953 = vunpack.c.h.b16 %v549
    %v2954 = vunpack.c.l.b16 %v550
    %v2955 = vunpack.c.h.b16 %v550
    %v2956 = vunpack.c.l.b16 %v551
    %v2957 = vunpack.c.h.b16 %v551
    %v2958 = vunpack.c.l.b16 %v552
    %v2959 = vunpack.c.h.b16 %v552
    %v2960 = vunpack.c.l.b16 %v553
    %v2961 = vunpack.c.h.b16 %v553
    %v2962 = vunpack.c.l.b16 %v554
    %v2963 = vunpack.c.h.b16 %v554
    %v2964 = vunpack.c.l.b16 %v555
    %v2965 = vunpack.c.h.b16 %v555
    %v2966 = vunpack.c.l.b16 %v556
    %v2967 = vunpack.c.h.b16 %v556
    %v2968 = vunpack.c.l.b16 %v557
    %v2969 = vunpack.c.h.b16 %v557
    %v2970 = vunpack.c.l.b16 %v558
    %v2971 = vunpack.c.h.b16 %v558
    %v2972 = vunpack.c.l.b16 %v559
    %v2973 = vunpack.c.h.b16 %v559
    %v2974 = vunpack.c.l.b16 %v560
    %v2975 = vunpack.c.h.b16 %v560
    %v2976 = vunpack.c.l.b16 %v561
    %v2977 = vunpack.c.h.b16 %v561
    %v2978 = vunpack.c.l.b16 %v562
    %v2979 = vunpack.c.h.b16 %v562
    %v2980 = vunpack.c.l.b16 %v563
    %v2981 = vunpack.c.h.b16 %v563
    %v2982 = vunpack.c.l.b16 %v564
    %v2983 = vunpack.c.h.b16 %v564
    %v2984 = vunpack.c.l.b16 %v565
    %v2985 = vunpack.c.h.b16 %v565
    %v2986 = vunpack.c.l.b16 %v566
    %v2987 = vunpack.c.h.b16 %v566
    %v2988 = vunpack.c.l.b16 %v567
    %v2989 = vunpack.c.h.b16 %v567
    %v2990 = vunpack.c.l.b16 %v568
    %v2991 = vunpack.c.h.b16 %v568
    %v2992 = vunpack.c.l.b16 %v569
    %v2993 = vunpack.c.h.b16 %v569
    %v2994 = vunpack.c.l.b16 %v570
    %v2995 = vunpack.c.h.b16 %v570
    %v2996 = vunpack.c.l.b16 %v571
    %v2997 = vunpack.c.h.b16 %v571
    %v2998 = vunpack.c.l.b16 %v572
    %v2999 = vunpack.c.h.b16 %v572
    %v3000 = vunpack.c.l.b16 %v573
    %v3001 = vunpack.c.h.b16 %v573
    %v3002 = vunpack.c.l.b16 %v574
    %v3003 = vunpack.c.h.b16 %v574
    %v3004 = vunpack.c.l.b16 %v575
    %v3005 = vunpack.c.h.b16 %v575
    %v3006 = vunpack.c.l.b16 %v576
    %v3007 = vunpack.c.h.b16 %v576
    %v3008 = vunpack.c.l.b16 %v577
    %v3009 = vunpack.c.h.b16 %v577
    %v3010 = vunpack.c.l.b16 %v578
    %v3011 = vunpack.c.h.b16 %v578
    %v3012 = vunpack.c.l.b16 %v579
    %v3013 = vunpack.c.h.b16 %v579
    %v3014 = vunpack.c.l.b16 %v580
    %v3015 = vunpack.c.h.b16 %v580
    %v3016 = vunpack.c.l.b16 %v581
    %v3017 = vunpack.c.h.b16 %v581
    %v3018 = vunpack.c.l.b16 %v582
    %v3019 = vunpack.c.h.b16 %v582
    %v3020 = vunpack.c.l.b16 %v583
    %v3021 = vunpack.c.h.b16 %v583
    %v3022 = vunpack.c.l.b16 %v584
    %v3023 = vunpack.c.h.b16 %v584
    %v3024 = vunpack.c.l.b16 %v585
    %v3025 = vunpack.c.h.b16 %v585
    %v3026 = vunpack.c.l.b16 %v586
    %v3027 = vunpack.c.h.b16 %v586
    %v3028 = vunpack.c.l.b16 %v587
    %v3029 = vunpack.c.h.b16 %v587
    %v3030 = vunpack.c.l.b16 %v588
    %v3031 = vunpack.c.h.b16 %v588
    %v3032 = vunpack.c.l.b16 %v589
    %v3033 = vunpack.c.h.b16 %v589
    %v3034 = vunpack.c.l.b16 %v590
    %v3035 = vunpack.c.h.b16 %v590
    %v3036 = vunpack.c.l.b16 %v591
    %v3037 = vunpack.c.h.b16 %v591
    %v3038 = vunpack.c.l.b16 %v592
    %v3039 = vunpack.c.h.b16 %v592
    %v3040 = vpack.c.b16 %v2532, %v2528
    %v3041 = vpack.c.b16 %v2533, %v2529
    %v3042 = vpack.c.b16 %v2534, %v2530
    %v3043 = vpack.c.b16 %v2535, %v2531
    %v3044 = vpack.c.b16 %v2540, %v2536
    %v3045 = vpack.c.b16 %v2541, %v2537
    %v3046 = vpack.c.b16 %v2542, %v2538
    %v3047 = vpack.c.b16 %v2543, %v2539
    %v3048 = vpack.c.b16 %v2548, %v2544
    %v3049 = vpack.c.b16 %v2549, %v2545
    %v3050 = vpack.c.b16 %v2550, %v2546
    %v3051 = vpack.c.b16 %v2551, %v2547
    %v3052 = vpack.c.b16 %v2556, %v2552
    %v3053 = vpack.c.b16 %v2557, %v2553
    %v3054 = vpack.c.b16 %v2558, %v2554
    %v3055 = vpack.c.b16 %v2559, %v2555
    %v3056 = vpack.c.b16 %v2564, %v2560
    %v3057 = vpack.c.b16 %v2565, %v2561
    %v3058 = vpack.c.b16 %v2566, %v2562
    %v3059 = vpack.c.b16 %v2567, %v2563
    %v3060 = vpack.c.b16 %v2572, %v2568
    %v3061 = vpack.c.b16 %v2573, %v2569
    %v3062 = vpack.c.b16 %v2574, %v2570
    %v3063 = vpack.c.b16 %v2575, %v2571
    %v3064 = vpack.c.b16 %v2580, %v2576
    %v3065 = vpack.c.b16 %v2581, %v2577
    %v3066 = vpack.c.b16 %v2582, %v2578
    %v3067 = vpack.c.b16 %v2583, %v2579
    %v3068 = vpack.c.b16 %v2588, %v2584
    %v3069 = vpack.c.b16 %v2589, %v2585
    %v3070 = vpack.c.b16 %v2590, %v2586
    %v3071 = vpack.c.b16 %v2591, %v2587
    %v3072 = vpack.c.b16 %v2596, %v2592
    %v3073 = vpack.c.b16 %v2597, %v2593
    %v3074 = vpack.c.b16 %v2598, %v2594
    %v3075 = vpack.c.b16 %v2599, %v2595
    %v3076 = vpack.c.b16 %v2604, %v2600
    %v3077 = vpack.c.b16 %v2605, %v2601
    %v3078 = vpack.c.b16 %v2606, %v2602
    %v3079 = vpack.c.b16 %v2607, %v2603
    %v3080 = vpack.c.b16 %v2612, %v2608
    %v3081 = vpack.c.b16 %v2613, %v2609
    %v3082 = vpack.c.b16 %v2614, %v2610
    %v3083 = vpack.c.b16 %v2615, %v2611
    %v3084 = vpack.c.b16 %v2620, %v2616
    %v3085 = vpack.c.b16 %v2621, %v2617
    %v3086 = vpack.c.b16 %v2622, %v2618
    %v3087 = vpack.c.b16 %v2623, %v2619
    %v3088 = vpack.c.b16 %v2628, %v2624
    %v3089 = vpack.c.b16 %v2629, %v2625
    %v3090 = vpack.c.b16 %v2630, %v2626
    %v3091 = vpack.c.b16 %v2631, %v2627
    %v3092 = vpack.c.b16 %v2636, %v2632
    %v3093 = vpack.c.b16 %v2637, %v2633
    %v3094 = vpack.c.b16 %v2638, %v2634
    %v3095 = vpack.c.b16 %v2639, %v2635
    %v3096 = vpack.c.b16 %v2644, %v2640
    %v3097 = vpack.c.b16 %v2645, %v2641
    %v3098 = vpack.c.b16 %v2646, %v2642
    %v3099 = vpack.c.b16 %v2647, %v2643
    %v3100 = vpack.c.b16 %v2652, %v2648
    %v3101 = vpack.c.b16 %v2653, %v2649
    %v3102 = vpack.c.b16 %v2654, %v2650
    %v3103 = vpack.c.b16 %v2655, %v2651
    %v3104 = vpack.c.b16 %v2660, %v2656
    %v3105 = vpack.c.b16 %v2661, %v2657
    %v3106 = vpack.c.b16 %v2662, %v2658
    %v3107 = vpack.c.b16 %v2663, %v2659
    %v3108 = vpack.c.b16 %v2668, %v2664
    %v3109 = vpack.c.b16 %v2669, %v2665
    %v3110 = vpack.c.b16 %v2670, %v2666
    %v3111 = vpack.c.b16 %v2671, %v2667
    %v3112 = vpack.c.b16 %v2676, %v2672
    %v3113 = vpack.c.b16 %v2677, %v2673
    %v3114 = vpack.c.b16 %v2678, %v2674
    %v3115 = vpack.c.b16 %v2679, %v2675
    %v3116 = vpack.c.b16 %v2684, %v2680
    %v3117 = vpack.c.b16 %v2685, %v2681
    %v3118 = vpack.c.b16 %v2686, %v2682
    %v3119 = vpack.c.b16 %v2687, %v2683
    %v3120 = vpack.c.b16 %v2692, %v2688
    %v3121 = vpack.c.b16 %v2693, %v2689
    %v3122 = vpack.c.b16 %v2694, %v2690
    %v3123 = vpack.c.b16 %v2695, %v2691
    %v3124 = vpack.c.b16 %v2700, %v2696
    %v3125 = vpack.c.b16 %v2701, %v2697
    %v3126 = vpack.c.b16 %v2702, %v2698
    %v3127 = vpack.c.b16 %v2703, %v2699
    %v3128 = vpack.c.b16 %v2708, %v2704
    %v3129 = vpack.c.b16 %v2709, %v2705
    %v3130 = vpack.c.b16 %v2710, %v2706
    %v3131 = vpack.c.b16 %v2711, %v2707
    %v3132 = vpack.c.b16 %v2716, %v2712
    %v3133 = vpack.c.b16 %v2717, %v2713
    %v3134 = vpack.c.b16 %v2718, %v2714
    %v3135 = vpack.c.b16 %v2719, %v2715
    %v3136 = vpack.c.b16 %v2724, %v2720
    %v3137 = vpack.c.b16 %v2725, %v2721
    %v3138 = vpack.c.b16 %v2726, %v2722
    %v3139 = vpack.c.b16 %v2727, %v2723
    %v3140 = vpack.c.b16 %v2732, %v2728
    %v3141 = vpack.c.b16 %v2733, %v2729
    %v3142 = vpack.c.b16 %v2734, %v2730
    %v3143 = vpack.c.b16 %v2735, %v2731
    %v3144 = vpack.c.b16 %v2740, %v2736
    %v3145 = vpack.c.b16 %v2741, %v2737
    %v3146 = vpack.c.b16 %v2742, %v2738
    %v3147 = vpack.c.b16 %v2743, %v2739
    %v3148 = vpack.c.b16 %v2748, %v2744
    %v3149 = vpack.c.b16 %v2749, %v2745
    %v3150 = vpack.c.b16 %v2750, %v2746
    %v3151 = vpack.c.b16 %v2751, %v2747
    %v3152 = vpack.c.b16 %v2756, %v2752
    %v3153 = vpack.c.b16 %v2757, %v2753
    %v3154 = vpack.c.b16 %v2758, %v2754
    %v3155 = vpack.c.b16 %v2759, %v2755
    %v3156 = vpack.c.b16 %v2764, %v2760
    %v3157 = vpack.c.b16 %v2765, %v2761
    %v3158 = vpack.c.b16 %v2766, %v2762
    %v3159 = vpack.c.b16 %v2767, %v2763
    %v3160 = vpack.c.b16 %v2772, %v2768
    %v3161 = vpack.c.b16 %v2773, %v2769
    %v3162 = vpack.c.b16 %v2774, %v2770
    %v3163 = vpack.c.b16 %v2775, %v2771
    %v3164 = vpack.c.b16 %v2780, %v2776
    %v3165 = vpack.c.b16 %v2781, %v2777
    %v3166 = vpack.c.b16 %v2782, %v2778
    %v3167 = vpack.c.b16 %v2783, %v2779
    %v3168 = vpack.c.b16 %v2788, %v2784
    %v3169 = vpack.c.b16 %v2789, %v2785
    %v3170 = vpack.c.b16 %v2790, %v2786
    %v3171 = vpack.c.b16 %v2791, %v2787
    %v3172 = vpack.c.b16 %v2796, %v2792
    %v3173 = vpack.c.b16 %v2797, %v2793
    %v3174 = vpack.c.b16 %v2798, %v2794
    %v3175 = vpack.c.b16 %v2799, %v2795
    %v3176 = vpack.c.b16 %v2804, %v2800
    %v3177 = vpack.c.b16 %v2805, %v2801
    %v3178 = vpack.c.b16 %v2806, %v2802
    %v3179 = vpack.c.b16 %v2807, %v2803
    %v3180 = vpack.c.b16 %v2812, %v2808
    %v3181 = vpack.c.b16 %v2813, %v2809
    %v3182 = vpack.c.b16 %v2814, %v2810
    %v3183 = vpack.c.b16 %v2815, %v2811
    %v3184 = vpack.c.b16 %v2820, %v2816
    %v3185 = vpack.c.b16 %v2821, %v2817
    %v3186 = vpack.c.b16 %v2822, %v2818
    %v3187 = vpack.c.b16 %v2823, %v2819
    %v3188 = vpack.c.b16 %v2828, %v2824
    %v3189 = vpack.c.b16 %v2829, %v2825
    %v3190 = vpack.c.b16 %v2830, %v2826
    %v3191 = vpack.c.b16 %v2831, %v2827
    %v3192 = vpack.c.b16 %v2836, %v2832
    %v3193 = vpack.c.b16 %v2837, %v2833
    %v3194 = vpack.c.b16 %v2838, %v2834
    %v3195 = vpack.c.b16 %v2839, %v2835
    %v3196 = vpack.c.b16 %v2844, %v2840
    %v3197 = vpack.c.b16 %v2845, %v2841
    %v3198 = vpack.c.b16 %v2846, %v2842
    %v3199 = vpack.c.b16 %v2847, %v2843
    %v3200 = vpack.c.b16 %v2852, %v2848
    %v3201 = vpack.c.b16 %v2853, %v2849
    %v3202 = vpack.c.b16 %v2854, %v2850
    %v3203 = vpack.c.b16 %v2855, %v2851
    %v3204 = vpack.c.b16 %v2860, %v2856
    %v3205 = vpack.c.b16 %v2861, %v2857
    %v3206 = vpack.c.b16 %v2862, %v2858
    %v3207 = vpack.c.b16 %v2863, %v2859
    %v3208 = vpack.c.b16 %v2868, %v2864
    %v3209 = vpack.c.b16 %v2869, %v2865
    %v3210 = vpack.c.b16 %v2870, %v2866
    %v3211 = vpack.c.b16 %v2871, %v2867
    %v3212 = vpack.c.b16 %v2876, %v2872
    %v3213 = vpack.c.b16 %v2877, %v2873
    %v3214 = vpack.c.b16 %v2878, %v2874
    %v3215 = vpack.c.b16 %v2879, %v2875
    %v3216 = vpack.c.b16 %v2884, %v2880
    %v3217 = vpack.c.b16 %v2885, %v2881
    %v3218 = vpack.c.b16 %v2886, %v2882
    %v3219 = vpack.c.b16 %v2887, %v2883
    %v3220 = vpack.c.b16 %v2892, %v2888
    %v3221 = vpack.c.b16 %v2893, %v2889
    %v3222 = vpack.c.b16 %v2894, %v2890
    %v3223 = vpack.c.b16 %v2895, %v2891
    %v3224 = vpack.c.b16 %v2900, %v2896
    %v3225 = vpack.c.b16 %v2901, %v2897
    %v3226 = vpack.c.b16 %v2902, %v2898
    %v3227 = vpack.c.b16 %v2903, %v2899
    %v3228 = vpack.c.b16 %v2908, %v2904
    %v3229 = vpack.c.b16 %v2909, %v2905
    %v3230 = vpack.c.b16 %v2910, %v2906
    %v3231 = vpack.c.b16 %v2911, %v2907
    %v3232 = vpack.c.b16 %v2916, %v2912
    %v3233 = vpack.c.b16 %v2917, %v2913
    %v3234 = vpack.c.b16 %v2918, %v2914
    %v3235 = vpack.c.b16 %v2919, %v2915
    %v3236 = vpack.c.b16 %v2924, %v2920
    %v3237 = vpack.c.b16 %v2925, %v2921
    %v3238 = vpack.c.b16 %v2926, %v2922
    %v3239 = vpack.c.b16 %v2927, %v2923
    %v3240 = vpack.c.b16 %v2932, %v2928
    %v3241 = vpack.c.b16 %v2933, %v2929
    %v3242 = vpack.c.b16 %v2934, %v2930
    %v3243 = vpack.c.b16 %v2935, %v2931
    %v3244 = vpack.c.b16 %v2940, %v2936
    %v3245 = vpack.c.b16 %v2941, %v2937
    %v3246 = vpack.c.b16 %v2942, %v2938
    %v3247 = vpack.c.b16 %v2943, %v2939
    %v3248 = vpack.c.b16 %v2948, %v2944
    %v3249 = vpack.c.b16 %v2949, %v2945
    %v3250 = vpack.c.b16 %v2950, %v2946
    %v3251 = vpack.c.b16 %v2951, %v2947
    %v3252 = vpack.c.b16 %v2956, %v2952
    %v3253 = vpack.c.b16 %v2957, %v2953
    %v3254 = vpack.c.b16 %v2958, %v2954
    %v3255 = vpack.c.b16 %v2959, %v2955
    %v3256 = vpack.c.b16 %v2964, %v2960
    %v3257 = vpack.c.b16 %v2965, %v2961
    %v3258 = vpack.c.b16 %v2966, %v2962
    %v3259 = vpack.c.b16 %v2967, %v2963
    %v3260 = vpack.c.b16 %v2972, %v2968
    %v3261 = vpack.c.b16 %v2973, %v2969
    %v3262 = vpack.c.b16 %v2974, %v2970
    %v3263 = vpack.c.b16 %v2975, %v2971
    %v3264 = vpack.c.b16 %v2980, %v2976
    %v3265 = vpack.c.b16 %v2981, %v2977
    %v3266 = vpack.c.b16 %v2982, %v2978
    %v3267 = vpack.c.b16 %v2983, %v2979
    %v3268 = vpack.c.b16 %v2988, %v2984
    %v3269 = vpack.c.b16 %v2989, %v2985
    %v3270 = vpack.c.b16 %v2990, %v2986
    %v3271 = vpack.c.b16 %v2991, %v2987
    %v3272 = vpack.c.b16 %v2996, %v2992
    %v3273 = vpack.c.b16 %v2997, %v2993
    %v3274 = vpack.c.b16 %v2998, %v2994
    %v3275 = vpack.c.b16 %v2999, %v2995
    %v3276 = vpack.c.b16 %v3004, %v3000
    %v3277 = vpack.c.b16 %v3005, %v3001
    %v3278 = vpack.c.b16 %v3006, %v3002
    %v3279 = vpack.c.b16 %v3007, %v3003
    %v3280 = vpack.c.b16 %v3012, %v3008
    %v3281 = vpack.c.b16 %v3013, %v3009
    %v3282 = vpack.c.b16 %v3014, %v3010
    %v3283 = vpack.c.b16 %v3015, %v3011
    %v3284 = vpack.c.b16 %v3020, %v3016
    %v3285 = vpack.c.b16 %v3021, %v3017
    %v3286 = vpack.c.b16 %v3022, %v3018
    %v3287 = vpack.c.b16 %v3023, %v3019
    %v3288 = vpack.c.b16 %v3028, %v3024
    %v3289 = vpack.c.b16 %v3029, %v3025
    %v3290 = vpack.c.b16 %v3030, %v3026
    %v3291 = vpack.c.b16 %v3031, %v3027
    %v3292 = vpack.c.b16 %v3036, %v3032
    %v3293 = vpack.c.b16 %v3037, %v3033
    %v3294 = vpack.c.b16 %v3038, %v3034
    %v3295 = vpack.c.b16 %v3039, %v3035
    %3552 = vmatprep.subr.bf16.mxu0 %v3069
    %3553 = vmatpush1.bf16.msra.mxu0 %v3068
    %3554 = vmatprep.subr.bf16.mxu0 %v3065
    %3555 = vmatpush1.bf16.msra.mxu0 %v3064
    %3556 = vmatprep.subr.bf16.mxu0 %v3061
    %3557 = vmatpush1.bf16.msra.mxu0 %v3060
    %3558 = vmatprep.subr.bf16.mxu0 %v3057
    %3559 = vmatpush1.bf16.msra.mxu0 %v3056
    %3560 = vmatprep.subr.bf16.mxu0 %v3053
    %3561 = vmatpush1.bf16.msra.mxu0 %v3052
    %3562 = vmatprep.subr.bf16.mxu0 %v3049
    %3563 = vmatpush1.bf16.msra.mxu0 %v3048
    %3564 = vmatprep.subr.bf16.mxu0 %v3045
    %3565 = vmatpush1.bf16.msra.mxu0 %v3044
    %3566 = vmatprep.subr.bf16.mxu0 %v3041
    %3567 = vmatpush1.bf16.msra.mxu0 %v3040
    %3568 = vmatprep.subr.bf16.mxu0 %v3101
    %3569 = vmatpush2.bf16.msra.mxu0 %v3100
    %3570 = vmatprep.subr.bf16.mxu0 %v3097
    %3571 = vmatpush2.bf16.msra.mxu0 %v3096
    %3572 = vmatprep.subr.bf16.mxu0 %v3093
    %3573 = vmatpush2.bf16.msra.mxu0 %v3092
    %3574 = vmatprep.subr.bf16.mxu0 %v3089
    %3575 = vmatpush2.bf16.msra.mxu0 %v3088
    %3576 = vmatprep.subr.bf16.mxu0 %v3085
    %3577 = vmatpush2.bf16.msra.mxu0 %v3084
    %3578 = vmatprep.subr.bf16.mxu0 %v3081
    %3579 = vmatpush2.bf16.msra.mxu0 %v3080
    %3580 = vmatprep.subr.bf16.mxu0 %v3077
    %3581 = vmatpush2.bf16.msra.mxu0 %v3076
    %3582 = vmatprep.subr.bf16.mxu0 %v3073
    %3583 = vmatpush2.bf16.msra.mxu0 %v3072
    %3584 = vmatprep.mubr.bf16.mxu0 %v2244
    %3585 = vmatmul.mubr.bf16.gmra.mxu0 %v2243
    %v3586 = vpop.f32.mrf.mxu0
    %v3587 = vadd.f32 %v2255, %v3586
    %v3588 = vpop.f32.mrf.mxu0
    %v3589 = vadd.f32 %v2259, %v3588
    %v3590 = vpop.f32.mrf.mxu0
    %v3591 = vpop.f32.mrf.mxu0
    %3592 = vdwg.mxu0
    %3593 = vmatprep.subr.bf16.mxu0 %v3133
    %3594 = vmatpush1.bf16.msra.mxu0 %v3132
    %3595 = vmatprep.subr.bf16.mxu0 %v3129
    %3596 = vmatpush1.bf16.msra.mxu0 %v3128
    %3597 = vmatprep.subr.bf16.mxu0 %v3125
    %3598 = vmatpush1.bf16.msra.mxu0 %v3124
    %3599 = vmatprep.subr.bf16.mxu0 %v3121
    %3600 = vmatpush1.bf16.msra.mxu0 %v3120
    %3601 = vmatprep.subr.bf16.mxu0 %v3117
    %3602 = vmatpush1.bf16.msra.mxu0 %v3116
    %3603 = vmatprep.subr.bf16.mxu0 %v3113
    %3604 = vmatpush1.bf16.msra.mxu0 %v3112
    %3605 = vmatprep.subr.bf16.mxu0 %v3109
    %3606 = vmatpush1.bf16.msra.mxu0 %v3108
    %3607 = vmatprep.subr.bf16.mxu0 %v3105
    %3608 = vmatpush1.bf16.msra.mxu0 %v3104
    %3609 = vmatprep.subr.bf16.mxu0 %v3165
    %3610 = vmatpush2.bf16.msra.mxu0 %v3164
    %3611 = vmatprep.subr.bf16.mxu0 %v3161
    %3612 = vmatpush2.bf16.msra.mxu0 %v3160
    %3613 = vmatprep.subr.bf16.mxu0 %v3157
    %3614 = vmatpush2.bf16.msra.mxu0 %v3156
    %3615 = vmatprep.subr.bf16.mxu0 %v3153
    %3616 = vmatpush2.bf16.msra.mxu0 %v3152
    %3617 = vmatprep.subr.bf16.mxu0 %v3149
    %3618 = vmatpush2.bf16.msra.mxu0 %v3148
    %3619 = vmatprep.subr.bf16.mxu0 %v3145
    %3620 = vmatpush2.bf16.msra.mxu0 %v3144
    %3621 = vmatprep.subr.bf16.mxu0 %v3141
    %3622 = vmatpush2.bf16.msra.mxu0 %v3140
    %3623 = vmatprep.subr.bf16.mxu0 %v3137
    %3624 = vmatpush2.bf16.msra.mxu0 %v3136
    %3625 = vmatprep.mubr.bf16.mxu0 %v2246
    %3626 = vmatmul.mubr.bf16.gmra.mxu0 %v2245
    %v3627 = vpop.f32.mrf.mxu0
    %v3628 = vadd.f32 %v3587, %v3627
    %v3629 = vpop.f32.mrf.mxu0
    %v3630 = vadd.f32 %v3589, %v3629
    %v3631 = vpop.f32.mrf.mxu0
    %v3632 = vpop.f32.mrf.mxu0
    %3633 = vdwg.mxu0
    %3634 = vmatprep.subr.bf16.mxu0 %v3197
    %3635 = vmatpush1.bf16.msra.mxu0 %v3196
    %3636 = vmatprep.subr.bf16.mxu0 %v3193
    %3637 = vmatpush1.bf16.msra.mxu0 %v3192
    %3638 = vmatprep.subr.bf16.mxu0 %v3189
    %3639 = vmatpush1.bf16.msra.mxu0 %v3188
    %3640 = vmatprep.subr.bf16.mxu0 %v3185
    %3641 = vmatpush1.bf16.msra.mxu0 %v3184
    %3642 = vmatprep.subr.bf16.mxu0 %v3181
    %3643 = vmatpush1.bf16.msra.mxu0 %v3180
    %3644 = vmatprep.subr.bf16.mxu0 %v3177
    %3645 = vmatpush1.bf16.msra.mxu0 %v3176
    %3646 = vmatprep.subr.bf16.mxu0 %v3173
    %3647 = vmatpush1.bf16.msra.mxu0 %v3172
    %3648 = vmatprep.subr.bf16.mxu0 %v3169
    %3649 = vmatpush1.bf16.msra.mxu0 %v3168
    %3650 = vmatprep.subr.bf16.mxu0 %v3229
    %3651 = vmatpush2.bf16.msra.mxu0 %v3228
    %3652 = vmatprep.subr.bf16.mxu0 %v3225
    %3653 = vmatpush2.bf16.msra.mxu0 %v3224
    %3654 = vmatprep.subr.bf16.mxu0 %v3221
    %3655 = vmatpush2.bf16.msra.mxu0 %v3220
    %3656 = vmatprep.subr.bf16.mxu0 %v3217
    %3657 = vmatpush2.bf16.msra.mxu0 %v3216
    %3658 = vmatprep.subr.bf16.mxu0 %v3213
    %3659 = vmatpush2.bf16.msra.mxu0 %v3212
    %3660 = vmatprep.subr.bf16.mxu0 %v3209
    %3661 = vmatpush2.bf16.msra.mxu0 %v3208
    %3662 = vmatprep.subr.bf16.mxu0 %v3205
    %3663 = vmatpush2.bf16.msra.mxu0 %v3204
    %3664 = vmatprep.subr.bf16.mxu0 %v3201
    %3665 = vmatpush2.bf16.msra.mxu0 %v3200
    %3666 = vmatprep.mubr.bf16.mxu0 %v2248
    %3667 = vmatmul.mubr.bf16.gmra.mxu0 %v2247
    %v3668 = vpop.f32.mrf.mxu0
    %v3669 = vadd.f32 %v3628, %v3668
    %v3670 = vpop.f32.mrf.mxu0
    %v3671 = vadd.f32 %v3630, %v3670
    %v3672 = vpop.f32.mrf.mxu0
    %v3673 = vpop.f32.mrf.mxu0
    %3674 = vdwg.mxu0
    %3675 = vmatprep.subr.bf16.mxu0 %v3261
    %3676 = vmatpush1.bf16.msra.mxu0 %v3260
    %3677 = vmatprep.subr.bf16.mxu0 %v3257
    %3678 = vmatpush1.bf16.msra.mxu0 %v3256
    %3679 = vmatprep.subr.bf16.mxu0 %v3253
    %3680 = vmatpush1.bf16.msra.mxu0 %v3252
    %3681 = vmatprep.subr.bf16.mxu0 %v3249
    %3682 = vmatpush1.bf16.msra.mxu0 %v3248
    %3683 = vmatprep.subr.bf16.mxu0 %v3245
    %3684 = vmatpush1.bf16.msra.mxu0 %v3244
    %3685 = vmatprep.subr.bf16.mxu0 %v3241
    %3686 = vmatpush1.bf16.msra.mxu0 %v3240
    %3687 = vmatprep.subr.bf16.mxu0 %v3237
    %3688 = vmatpush1.bf16.msra.mxu0 %v3236
    %3689 = vmatprep.subr.bf16.mxu0 %v3233
    %3690 = vmatpush1.bf16.msra.mxu0 %v3232
    %3691 = vmatprep.subr.bf16.mxu0 %v3293
    %3692 = vmatpush2.bf16.msra.mxu0 %v3292
    %3693 = vmatprep.subr.bf16.mxu0 %v3289
    %3694 = vmatpush2.bf16.msra.mxu0 %v3288
    %3695 = vmatprep.subr.bf16.mxu0 %v3285
    %3696 = vmatpush2.bf16.msra.mxu0 %v3284
    %3697 = vmatprep.subr.bf16.mxu0 %v3281
    %3698 = vmatpush2.bf16.msra.mxu0 %v3280
    %3699 = vmatprep.subr.bf16.mxu0 %v3277
    %3700 = vmatpush2.bf16.msra.mxu0 %v3276
    %3701 = vmatprep.subr.bf16.mxu0 %v3273
    %3702 = vmatpush2.bf16.msra.mxu0 %v3272
    %3703 = vmatprep.subr.bf16.mxu0 %v3269
    %3704 = vmatpush2.bf16.msra.mxu0 %v3268
    %3705 = vmatprep.subr.bf16.mxu0 %v3265
    %3706 = vmatpush2.bf16.msra.mxu0 %v3264
    %3707 = vmatprep.mubr.bf16.mxu0 %v2250
    %3708 = vmatmul.mubr.bf16.gmra.mxu0 %v2249
    %v3709 = vpop.f32.mrf.mxu0
    %v3710 = vadd.f32 %v3669, %v3709
    %v3711 = vpop.f32.mrf.mxu0
    %v3712 = vadd.f32 %v3671, %v3711
    %v3713 = vpop.f32.mrf.mxu0
    %v3714 = vpop.f32.mrf.mxu0
    %3715 = vdwg.mxu0
    %3716 = vmatprep.subr.bf16.mxu0 %v3071
    %3717 = vmatpush1.bf16.msra.mxu0 %v3070
    %3718 = vmatprep.subr.bf16.mxu0 %v3067
    %3719 = vmatpush1.bf16.msra.mxu0 %v3066
    %3720 = vmatprep.subr.bf16.mxu0 %v3063
    %3721 = vmatpush1.bf16.msra.mxu0 %v3062
    %3722 = vmatprep.subr.bf16.mxu0 %v3059
    %3723 = vmatpush1.bf16.msra.mxu0 %v3058
    %3724 = vmatprep.subr.bf16.mxu0 %v3055
    %3725 = vmatpush1.bf16.msra.mxu0 %v3054
    %3726 = vmatprep.subr.bf16.mxu0 %v3051
    %3727 = vmatpush1.bf16.msra.mxu0 %v3050
    %3728 = vmatprep.subr.bf16.mxu0 %v3047
    %3729 = vmatpush1.bf16.msra.mxu0 %v3046
    %3730 = vmatprep.subr.bf16.mxu0 %v3043
    %3731 = vmatpush1.bf16.msra.mxu0 %v3042
    %3732 = vmatprep.subr.bf16.mxu0 %v3103
    %3733 = vmatpush2.bf16.msra.mxu0 %v3102
    %3734 = vmatprep.subr.bf16.mxu0 %v3099
    %3735 = vmatpush2.bf16.msra.mxu0 %v3098
    %3736 = vmatprep.subr.bf16.mxu0 %v3095
    %3737 = vmatpush2.bf16.msra.mxu0 %v3094
    %3738 = vmatprep.subr.bf16.mxu0 %v3091
    %3739 = vmatpush2.bf16.msra.mxu0 %v3090
    %3740 = vmatprep.subr.bf16.mxu0 %v3087
    %3741 = vmatpush2.bf16.msra.mxu0 %v3086
    %3742 = vmatprep.subr.bf16.mxu0 %v3083
    %3743 = vmatpush2.bf16.msra.mxu0 %v3082
    %3744 = vmatprep.subr.bf16.mxu0 %v3079
    %3745 = vmatpush2.bf16.msra.mxu0 %v3078
    %3746 = vmatprep.subr.bf16.mxu0 %v3075
    %3747 = vmatpush2.bf16.msra.mxu0 %v3074
    %3748 = vmatprep.mubr.bf16.mxu0 %v2244
    %3749 = vmatmul.mubr.bf16.gmra.mxu0 %v2243
    %v3750 = vpop.f32.mrf.mxu0
    %v3751 = vadd.f32 %v2263, %v3750
    %v3752 = vpop.f32.mrf.mxu0
    %v3753 = vadd.f32 %v2267, %v3752
    %v3754 = vpop.f32.mrf.mxu0
    %v3755 = vpop.f32.mrf.mxu0
    %3756 = vdwg.mxu0
    %3757 = vmatprep.subr.bf16.mxu0 %v3135
    %3758 = vmatpush1.bf16.msra.mxu0 %v3134
    %3759 = vmatprep.subr.bf16.mxu0 %v3131
    %3760 = vmatpush1.bf16.msra.mxu0 %v3130
    %3761 = vmatprep.subr.bf16.mxu0 %v3127
    %3762 = vmatpush1.bf16.msra.mxu0 %v3126
    %3763 = vmatprep.subr.bf16.mxu0 %v3123
    %3764 = vmatpush1.bf16.msra.mxu0 %v3122
    %3765 = vmatprep.subr.bf16.mxu0 %v3119
    %3766 = vmatpush1.bf16.msra.mxu0 %v3118
    %3767 = vmatprep.subr.bf16.mxu0 %v3115
    %3768 = vmatpush1.bf16.msra.mxu0 %v3114
    %3769 = vmatprep.subr.bf16.mxu0 %v3111
    %3770 = vmatpush1.bf16.msra.mxu0 %v3110
    %3771 = vmatprep.subr.bf16.mxu0 %v3107
    %3772 = vmatpush1.bf16.msra.mxu0 %v3106
    %3773 = vmatprep.subr.bf16.mxu0 %v3167
    %3774 = vmatpush2.bf16.msra.mxu0 %v3166
    %3775 = vmatprep.subr.bf16.mxu0 %v3163
    %3776 = vmatpush2.bf16.msra.mxu0 %v3162
    %3777 = vmatprep.subr.bf16.mxu0 %v3159
    %3778 = vmatpush2.bf16.msra.mxu0 %v3158
    %3779 = vmatprep.subr.bf16.mxu0 %v3155
    %3780 = vmatpush2.bf16.msra.mxu0 %v3154
    %3781 = vmatprep.subr.bf16.mxu0 %v3151
    %3782 = vmatpush2.bf16.msra.mxu0 %v3150
    %3783 = vmatprep.subr.bf16.mxu0 %v3147
    %3784 = vmatpush2.bf16.msra.mxu0 %v3146
    %3785 = vmatprep.subr.bf16.mxu0 %v3143
    %3786 = vmatpush2.bf16.msra.mxu0 %v3142
    %3787 = vmatprep.subr.bf16.mxu0 %v3139
    %3788 = vmatpush2.bf16.msra.mxu0 %v3138
    %3789 = vmatprep.mubr.bf16.mxu0 %v2246
    %3790 = vmatmul.mubr.bf16.gmra.mxu0 %v2245
    %v3791 = vpop.f32.mrf.mxu0
    %v3792 = vadd.f32 %v3751, %v3791
    %v3793 = vpop.f32.mrf.mxu0
    %v3794 = vadd.f32 %v3753, %v3793
    %v3795 = vpop.f32.mrf.mxu0
    %v3796 = vpop.f32.mrf.mxu0
    %3797 = vdwg.mxu0
    %3798 = vmatprep.subr.bf16.mxu0 %v3199
    %3799 = vmatpush1.bf16.msra.mxu0 %v3198
    %3800 = vmatprep.subr.bf16.mxu0 %v3195
    %3801 = vmatpush1.bf16.msra.mxu0 %v3194
    %3802 = vmatprep.subr.bf16.mxu0 %v3191
    %3803 = vmatpush1.bf16.msra.mxu0 %v3190
    %3804 = vmatprep.subr.bf16.mxu0 %v3187
    %3805 = vmatpush1.bf16.msra.mxu0 %v3186
    %3806 = vmatprep.subr.bf16.mxu0 %v3183
    %3807 = vmatpush1.bf16.msra.mxu0 %v3182
    %3808 = vmatprep.subr.bf16.mxu0 %v3179
    %3809 = vmatpush1.bf16.msra.mxu0 %v3178
    %3810 = vmatprep.subr.bf16.mxu0 %v3175
    %3811 = vmatpush1.bf16.msra.mxu0 %v3174
    %3812 = vmatprep.subr.bf16.mxu0 %v3171
    %3813 = vmatpush1.bf16.msra.mxu0 %v3170
    %3814 = vmatprep.subr.bf16.mxu0 %v3231
    %3815 = vmatpush2.bf16.msra.mxu0 %v3230
    %3816 = vmatprep.subr.bf16.mxu0 %v3227
    %3817 = vmatpush2.bf16.msra.mxu0 %v3226
    %3818 = vmatprep.subr.bf16.mxu0 %v3223
    %3819 = vmatpush2.bf16.msra.mxu0 %v3222
    %3820 = vmatprep.subr.bf16.mxu0 %v3219
    %3821 = vmatpush2.bf16.msra.mxu0 %v3218
    %3822 = vmatprep.subr.bf16.mxu0 %v3215
    %3823 = vmatpush2.bf16.msra.mxu0 %v3214
    %3824 = vmatprep.subr.bf16.mxu0 %v3211
    %3825 = vmatpush2.bf16.msra.mxu0 %v3210
    %3826 = vmatprep.subr.bf16.mxu0 %v3207
    %3827 = vmatpush2.bf16.msra.mxu0 %v3206
    %3828 = vmatprep.subr.bf16.mxu0 %v3203
    %3829 = vmatpush2.bf16.msra.mxu0 %v3202
    %3830 = vmatprep.mubr.bf16.mxu0 %v2248
    %3831 = vmatmul.mubr.bf16.gmra.mxu0 %v2247
    %v3832 = vpop.f32.mrf.mxu0
    %v3833 = vadd.f32 %v3792, %v3832
    %v3834 = vpop.f32.mrf.mxu0
    %v3835 = vadd.f32 %v3794, %v3834
    %v3836 = vpop.f32.mrf.mxu0
    %v3837 = vpop.f32.mrf.mxu0
    %3838 = vdwg.mxu0
    %3839 = vmatprep.subr.bf16.mxu0 %v3263
    %3840 = vmatpush1.bf16.msra.mxu0 %v3262
    %3841 = vmatprep.subr.bf16.mxu0 %v3259
    %3842 = vmatpush1.bf16.msra.mxu0 %v3258
    %3843 = vmatprep.subr.bf16.mxu0 %v3255
    %3844 = vmatpush1.bf16.msra.mxu0 %v3254
    %3845 = vmatprep.subr.bf16.mxu0 %v3251
    %3846 = vmatpush1.bf16.msra.mxu0 %v3250
    %3847 = vmatprep.subr.bf16.mxu0 %v3247
    %3848 = vmatpush1.bf16.msra.mxu0 %v3246
    %3849 = vmatprep.subr.bf16.mxu0 %v3243
    %3850 = vmatpush1.bf16.msra.mxu0 %v3242
    %3851 = vmatprep.subr.bf16.mxu0 %v3239
    %3852 = vmatpush1.bf16.msra.mxu0 %v3238
    %3853 = vmatprep.subr.bf16.mxu0 %v3235
    %3854 = vmatpush1.bf16.msra.mxu0 %v3234
    %3855 = vmatprep.subr.bf16.mxu0 %v3295
    %3856 = vmatpush2.bf16.msra.mxu0 %v3294
    %3857 = vmatprep.subr.bf16.mxu0 %v3291
    %3858 = vmatpush2.bf16.msra.mxu0 %v3290
    %3859 = vmatprep.subr.bf16.mxu0 %v3287
    %3860 = vmatpush2.bf16.msra.mxu0 %v3286
    %3861 = vmatprep.subr.bf16.mxu0 %v3283
    %3862 = vmatpush2.bf16.msra.mxu0 %v3282
    %3863 = vmatprep.subr.bf16.mxu0 %v3279
    %3864 = vmatpush2.bf16.msra.mxu0 %v3278
    %3865 = vmatprep.subr.bf16.mxu0 %v3275
    %3866 = vmatpush2.bf16.msra.mxu0 %v3274
    %3867 = vmatprep.subr.bf16.mxu0 %v3271
    %3868 = vmatpush2.bf16.msra.mxu0 %v3270
    %3869 = vmatprep.subr.bf16.mxu0 %v3267
    %3870 = vmatpush2.bf16.msra.mxu0 %v3266
    %3871 = vmatprep.mubr.bf16.mxu0 %v2250
    %3872 = vmatmul.mubr.bf16.gmra.mxu0 %v2249
    %v3873 = vpop.f32.mrf.mxu0
    %v3874 = vadd.f32 %v3833, %v3873
    %v3875 = vpop.f32.mrf.mxu0
    %v3876 = vadd.f32 %v3835, %v3875
    %v3877 = vpop.f32.mrf.mxu0
    %v3878 = vpop.f32.mrf.mxu0
    %3879 = vdwg.mxu0
    %v3880 = vpack.c.bf16 %v3710, %v3710
    %v3881 = vpack.c.bf16 %v3712, %v3712
    %v3882 = vpack.c.bf16 %v3874, %v3874
    %v3883 = vpack.c.bf16 %v3876, %v3876
    %3884 = vmatprep.subr.bf16.mxu0 %v1460
    %3885 = vmatpush1.bf16.msra.mxu0 %v1459
    %3886 = vmatprep.subr.bf16.mxu0 %v1452
    %3887 = vmatpush1.bf16.msra.mxu0 %v1451
    %3888 = vmatprep.subr.bf16.mxu0 %v1444
    %3889 = vmatpush1.bf16.msra.mxu0 %v1443
    %3890 = vmatprep.subr.bf16.mxu0 %v1436
    %3891 = vmatpush1.bf16.msra.mxu0 %v1435
    %3892 = vmatprep.subr.bf16.mxu0 %v1428
    %3893 = vmatpush1.bf16.msra.mxu0 %v1427
    %3894 = vmatprep.subr.bf16.mxu0 %v1420
    %3895 = vmatpush1.bf16.msra.mxu0 %v1419
    %3896 = vmatprep.subr.bf16.mxu0 %v1412
    %3897 = vmatpush1.bf16.msra.mxu0 %v1411
    %3898 = vmatprep.subr.bf16.mxu0 %v1404
    %3899 = vmatpush1.bf16.msra.mxu0 %v1403
    %3900 = vmatprep.subr.bf16.mxu0 %v1524
    %3901 = vmatpush2.bf16.msra.mxu0 %v1523
    %3902 = vmatprep.subr.bf16.mxu0 %v1516
    %3903 = vmatpush2.bf16.msra.mxu0 %v1515
    %3904 = vmatprep.subr.bf16.mxu0 %v1508
    %3905 = vmatpush2.bf16.msra.mxu0 %v1507
    %3906 = vmatprep.subr.bf16.mxu0 %v1500
    %3907 = vmatpush2.bf16.msra.mxu0 %v1499
    %3908 = vmatprep.subr.bf16.mxu0 %v1492
    %3909 = vmatpush2.bf16.msra.mxu0 %v1491
    %3910 = vmatprep.subr.bf16.mxu0 %v1484
    %3911 = vmatpush2.bf16.msra.mxu0 %v1483
    %3912 = vmatprep.subr.bf16.mxu0 %v1476
    %3913 = vmatpush2.bf16.msra.mxu0 %v1475
    %3914 = vmatprep.subr.bf16.mxu0 %v1468
    %3915 = vmatpush2.bf16.msra.mxu0 %v1467
    %3916 = vmatprep.mubr.bf16.mxu0 %v3881
    %3917 = vmatmul.mubr.bf16.gmra.mxu0 %v3880
    %v3918 = vpop.f32.mrf.mxu0
    %v3919 = vadd.f32 %v598, %v3918
    %v3920 = vpop.f32.mrf.mxu0
    %v3921 = vadd.f32 %v602, %v3920
    %v3922 = vpop.f32.mrf.mxu0
    %v3923 = vpop.f32.mrf.mxu0
    %3924 = vdwg.mxu0
    %3925 = vmatprep.subr.bf16.mxu0 %v1588
    %3926 = vmatpush1.bf16.msra.mxu0 %v1587
    %3927 = vmatprep.subr.bf16.mxu0 %v1580
    %3928 = vmatpush1.bf16.msra.mxu0 %v1579
    %3929 = vmatprep.subr.bf16.mxu0 %v1572
    %3930 = vmatpush1.bf16.msra.mxu0 %v1571
    %3931 = vmatprep.subr.bf16.mxu0 %v1564
    %3932 = vmatpush1.bf16.msra.mxu0 %v1563
    %3933 = vmatprep.subr.bf16.mxu0 %v1556
    %3934 = vmatpush1.bf16.msra.mxu0 %v1555
    %3935 = vmatprep.subr.bf16.mxu0 %v1548
    %3936 = vmatpush1.bf16.msra.mxu0 %v1547
    %3937 = vmatprep.subr.bf16.mxu0 %v1540
    %3938 = vmatpush1.bf16.msra.mxu0 %v1539
    %3939 = vmatprep.subr.bf16.mxu0 %v1532
    %3940 = vmatpush1.bf16.msra.mxu0 %v1531
    %3941 = vmatprep.subr.bf16.mxu0 %v1652
    %3942 = vmatpush2.bf16.msra.mxu0 %v1651
    %3943 = vmatprep.subr.bf16.mxu0 %v1644
    %3944 = vmatpush2.bf16.msra.mxu0 %v1643
    %3945 = vmatprep.subr.bf16.mxu0 %v1636
    %3946 = vmatpush2.bf16.msra.mxu0 %v1635
    %3947 = vmatprep.subr.bf16.mxu0 %v1628
    %3948 = vmatpush2.bf16.msra.mxu0 %v1627
    %3949 = vmatprep.subr.bf16.mxu0 %v1620
    %3950 = vmatpush2.bf16.msra.mxu0 %v1619
    %3951 = vmatprep.subr.bf16.mxu0 %v1612
    %3952 = vmatpush2.bf16.msra.mxu0 %v1611
    %3953 = vmatprep.subr.bf16.mxu0 %v1604
    %3954 = vmatpush2.bf16.msra.mxu0 %v1603
    %3955 = vmatprep.subr.bf16.mxu0 %v1596
    %3956 = vmatpush2.bf16.msra.mxu0 %v1595
    %3957 = vmatprep.mubr.bf16.mxu0 %v3883
    %3958 = vmatmul.mubr.bf16.gmra.mxu0 %v3882
    %v3959 = vpop.f32.mrf.mxu0
    %v3960 = vadd.f32 %v3919, %v3959
    %v3961 = vpop.f32.mrf.mxu0
    %v3962 = vadd.f32 %v3921, %v3961
    %v3963 = vpop.f32.mrf.mxu0
    %v3964 = vpop.f32.mrf.mxu0
    %3965 = vdwg.mxu0
    %3966 = vmatprep.subr.bf16.mxu0 %v1462
    %3967 = vmatpush1.bf16.msra.mxu0 %v1461
    %3968 = vmatprep.subr.bf16.mxu0 %v1454
    %3969 = vmatpush1.bf16.msra.mxu0 %v1453
    %3970 = vmatprep.subr.bf16.mxu0 %v1446
    %3971 = vmatpush1.bf16.msra.mxu0 %v1445
    %3972 = vmatprep.subr.bf16.mxu0 %v1438
    %3973 = vmatpush1.bf16.msra.mxu0 %v1437
    %3974 = vmatprep.subr.bf16.mxu0 %v1430
    %3975 = vmatpush1.bf16.msra.mxu0 %v1429
    %3976 = vmatprep.subr.bf16.mxu0 %v1422
    %3977 = vmatpush1.bf16.msra.mxu0 %v1421
    %3978 = vmatprep.subr.bf16.mxu0 %v1414
    %3979 = vmatpush1.bf16.msra.mxu0 %v1413
    %3980 = vmatprep.subr.bf16.mxu0 %v1406
    %3981 = vmatpush1.bf16.msra.mxu0 %v1405
    %3982 = vmatprep.subr.bf16.mxu0 %v1526
    %3983 = vmatpush2.bf16.msra.mxu0 %v1525
    %3984 = vmatprep.subr.bf16.mxu0 %v1518
    %3985 = vmatpush2.bf16.msra.mxu0 %v1517
    %3986 = vmatprep.subr.bf16.mxu0 %v1510
    %3987 = vmatpush2.bf16.msra.mxu0 %v1509
    %3988 = vmatprep.subr.bf16.mxu0 %v1502
    %3989 = vmatpush2.bf16.msra.mxu0 %v1501
    %3990 = vmatprep.subr.bf16.mxu0 %v1494
    %3991 = vmatpush2.bf16.msra.mxu0 %v1493
    %3992 = vmatprep.subr.bf16.mxu0 %v1486
    %3993 = vmatpush2.bf16.msra.mxu0 %v1485
    %3994 = vmatprep.subr.bf16.mxu0 %v1478
    %3995 = vmatpush2.bf16.msra.mxu0 %v1477
    %3996 = vmatprep.subr.bf16.mxu0 %v1470
    %3997 = vmatpush2.bf16.msra.mxu0 %v1469
    %3998 = vmatprep.mubr.bf16.mxu0 %v3881
    %3999 = vmatmul.mubr.bf16.gmra.mxu0 %v3880
    %v4000 = vpop.f32.mrf.mxu0
    %v4001 = vadd.f32 %v606, %v4000
    %v4002 = vpop.f32.mrf.mxu0
    %v4003 = vadd.f32 %v610, %v4002
    %v4004 = vpop.f32.mrf.mxu0
    %v4005 = vpop.f32.mrf.mxu0
    %4006 = vdwg.mxu0
    %4007 = vmatprep.subr.bf16.mxu0 %v1590
    %4008 = vmatpush1.bf16.msra.mxu0 %v1589
    %4009 = vmatprep.subr.bf16.mxu0 %v1582
    %4010 = vmatpush1.bf16.msra.mxu0 %v1581
    %4011 = vmatprep.subr.bf16.mxu0 %v1574
    %4012 = vmatpush1.bf16.msra.mxu0 %v1573
    %4013 = vmatprep.subr.bf16.mxu0 %v1566
    %4014 = vmatpush1.bf16.msra.mxu0 %v1565
    %4015 = vmatprep.subr.bf16.mxu0 %v1558
    %4016 = vmatpush1.bf16.msra.mxu0 %v1557
    %4017 = vmatprep.subr.bf16.mxu0 %v1550
    %4018 = vmatpush1.bf16.msra.mxu0 %v1549
    %4019 = vmatprep.subr.bf16.mxu0 %v1542
    %4020 = vmatpush1.bf16.msra.mxu0 %v1541
    %4021 = vmatprep.subr.bf16.mxu0 %v1534
    %4022 = vmatpush1.bf16.msra.mxu0 %v1533
    %4023 = vmatprep.subr.bf16.mxu0 %v1654
    %4024 = vmatpush2.bf16.msra.mxu0 %v1653
    %4025 = vmatprep.subr.bf16.mxu0 %v1646
    %4026 = vmatpush2.bf16.msra.mxu0 %v1645
    %4027 = vmatprep.subr.bf16.mxu0 %v1638
    %4028 = vmatpush2.bf16.msra.mxu0 %v1637
    %4029 = vmatprep.subr.bf16.mxu0 %v1630
    %4030 = vmatpush2.bf16.msra.mxu0 %v1629
    %4031 = vmatprep.subr.bf16.mxu0 %v1622
    %4032 = vmatpush2.bf16.msra.mxu0 %v1621
    %4033 = vmatprep.subr.bf16.mxu0 %v1614
    %4034 = vmatpush2.bf16.msra.mxu0 %v1613
    %4035 = vmatprep.subr.bf16.mxu0 %v1606
    %4036 = vmatpush2.bf16.msra.mxu0 %v1605
    %4037 = vmatprep.subr.bf16.mxu0 %v1598
    %4038 = vmatpush2.bf16.msra.mxu0 %v1597
    %4039 = vmatprep.mubr.bf16.mxu0 %v3883
    %4040 = vmatmul.mubr.bf16.gmra.mxu0 %v3882
    %v4041 = vpop.f32.mrf.mxu0
    %v4042 = vadd.f32 %v4001, %v4041
    %v4043 = vpop.f32.mrf.mxu0
    %v4044 = vadd.f32 %v4003, %v4043
    %v4045 = vpop.f32.mrf.mxu0
    %v4046 = vpop.f32.mrf.mxu0
    %4047 = vdwg.mxu0
    %4048 = vmatprep.subr.bf16.mxu0 %v1464
    %4049 = vmatpush1.bf16.msra.mxu0 %v1463
    %4050 = vmatprep.subr.bf16.mxu0 %v1456
    %4051 = vmatpush1.bf16.msra.mxu0 %v1455
    %4052 = vmatprep.subr.bf16.mxu0 %v1448
    %4053 = vmatpush1.bf16.msra.mxu0 %v1447
    %4054 = vmatprep.subr.bf16.mxu0 %v1440
    %4055 = vmatpush1.bf16.msra.mxu0 %v1439
    %4056 = vmatprep.subr.bf16.mxu0 %v1432
    %4057 = vmatpush1.bf16.msra.mxu0 %v1431
    %4058 = vmatprep.subr.bf16.mxu0 %v1424
    %4059 = vmatpush1.bf16.msra.mxu0 %v1423
    %4060 = vmatprep.subr.bf16.mxu0 %v1416
    %4061 = vmatpush1.bf16.msra.mxu0 %v1415
    %4062 = vmatprep.subr.bf16.mxu0 %v1408
    %4063 = vmatpush1.bf16.msra.mxu0 %v1407
    %4064 = vmatprep.subr.bf16.mxu0 %v1528
    %4065 = vmatpush2.bf16.msra.mxu0 %v1527
    %4066 = vmatprep.subr.bf16.mxu0 %v1520
    %4067 = vmatpush2.bf16.msra.mxu0 %v1519
    %4068 = vmatprep.subr.bf16.mxu0 %v1512
    %4069 = vmatpush2.bf16.msra.mxu0 %v1511
    %4070 = vmatprep.subr.bf16.mxu0 %v1504
    %4071 = vmatpush2.bf16.msra.mxu0 %v1503
    %4072 = vmatprep.subr.bf16.mxu0 %v1496
    %4073 = vmatpush2.bf16.msra.mxu0 %v1495
    %4074 = vmatprep.subr.bf16.mxu0 %v1488
    %4075 = vmatpush2.bf16.msra.mxu0 %v1487
    %4076 = vmatprep.subr.bf16.mxu0 %v1480
    %4077 = vmatpush2.bf16.msra.mxu0 %v1479
    %4078 = vmatprep.subr.bf16.mxu0 %v1472
    %4079 = vmatpush2.bf16.msra.mxu0 %v1471
    %4080 = vmatprep.mubr.bf16.mxu0 %v3881
    %4081 = vmatmul.mubr.bf16.gmra.mxu0 %v3880
    %v4082 = vpop.f32.mrf.mxu0
    %v4083 = vadd.f32 %v614, %v4082
    %v4084 = vpop.f32.mrf.mxu0
    %v4085 = vadd.f32 %v618, %v4084
    %v4086 = vpop.f32.mrf.mxu0
    %v4087 = vpop.f32.mrf.mxu0
    %4088 = vdwg.mxu0
    %4089 = vmatprep.subr.bf16.mxu0 %v1592
    %4090 = vmatpush1.bf16.msra.mxu0 %v1591
    %4091 = vmatprep.subr.bf16.mxu0 %v1584
    %4092 = vmatpush1.bf16.msra.mxu0 %v1583
    %4093 = vmatprep.subr.bf16.mxu0 %v1576
    %4094 = vmatpush1.bf16.msra.mxu0 %v1575
    %4095 = vmatprep.subr.bf16.mxu0 %v1568
    %4096 = vmatpush1.bf16.msra.mxu0 %v1567
    %4097 = vmatprep.subr.bf16.mxu0 %v1560
    %4098 = vmatpush1.bf16.msra.mxu0 %v1559
    %4099 = vmatprep.subr.bf16.mxu0 %v1552
    %4100 = vmatpush1.bf16.msra.mxu0 %v1551
    %4101 = vmatprep.subr.bf16.mxu0 %v1544
    %4102 = vmatpush1.bf16.msra.mxu0 %v1543
    %4103 = vmatprep.subr.bf16.mxu0 %v1536
    %4104 = vmatpush1.bf16.msra.mxu0 %v1535
    %4105 = vmatprep.subr.bf16.mxu0 %v1656
    %4106 = vmatpush2.bf16.msra.mxu0 %v1655
    %4107 = vmatprep.subr.bf16.mxu0 %v1648
    %4108 = vmatpush2.bf16.msra.mxu0 %v1647
    %4109 = vmatprep.subr.bf16.mxu0 %v1640
    %4110 = vmatpush2.bf16.msra.mxu0 %v1639
    %4111 = vmatprep.subr.bf16.mxu0 %v1632
    %4112 = vmatpush2.bf16.msra.mxu0 %v1631
    %4113 = vmatprep.subr.bf16.mxu0 %v1624
    %4114 = vmatpush2.bf16.msra.mxu0 %v1623
    %4115 = vmatprep.subr.bf16.mxu0 %v1616
    %4116 = vmatpush2.bf16.msra.mxu0 %v1615
    %4117 = vmatprep.subr.bf16.mxu0 %v1608
    %4118 = vmatpush2.bf16.msra.mxu0 %v1607
    %4119 = vmatprep.subr.bf16.mxu0 %v1600
    %4120 = vmatpush2.bf16.msra.mxu0 %v1599
    %4121 = vmatprep.mubr.bf16.mxu0 %v3883
    %4122 = vmatmul.mubr.bf16.gmra.mxu0 %v3882
    %v4123 = vpop.f32.mrf.mxu0
    %v4124 = vadd.f32 %v4083, %v4123
    %v4125 = vpop.f32.mrf.mxu0
    %v4126 = vadd.f32 %v4085, %v4125
    %v4127 = vpop.f32.mrf.mxu0
    %v4128 = vpop.f32.mrf.mxu0
    %4129 = vdwg.mxu0
    %4130 = vmatprep.subr.bf16.mxu0 %v1466
    %4131 = vmatpush1.bf16.msra.mxu0 %v1465
    %4132 = vmatprep.subr.bf16.mxu0 %v1458
    %4133 = vmatpush1.bf16.msra.mxu0 %v1457
    %4134 = vmatprep.subr.bf16.mxu0 %v1450
    %4135 = vmatpush1.bf16.msra.mxu0 %v1449
    %4136 = vmatprep.subr.bf16.mxu0 %v1442
    %4137 = vmatpush1.bf16.msra.mxu0 %v1441
    %4138 = vmatprep.subr.bf16.mxu0 %v1434
    %4139 = vmatpush1.bf16.msra.mxu0 %v1433
    %4140 = vmatprep.subr.bf16.mxu0 %v1426
    %4141 = vmatpush1.bf16.msra.mxu0 %v1425
    %4142 = vmatprep.subr.bf16.mxu0 %v1418
    %4143 = vmatpush1.bf16.msra.mxu0 %v1417
    %4144 = vmatprep.subr.bf16.mxu0 %v1410
    %4145 = vmatpush1.bf16.msra.mxu0 %v1409
    %4146 = vmatprep.subr.bf16.mxu0 %v1530
    %4147 = vmatpush2.bf16.msra.mxu0 %v1529
    %4148 = vmatprep.subr.bf16.mxu0 %v1522
    %4149 = vmatpush2.bf16.msra.mxu0 %v1521
    %4150 = vmatprep.subr.bf16.mxu0 %v1514
    %4151 = vmatpush2.bf16.msra.mxu0 %v1513
    %4152 = vmatprep.subr.bf16.mxu0 %v1506
    %4153 = vmatpush2.bf16.msra.mxu0 %v1505
    %4154 = vmatprep.subr.bf16.mxu0 %v1498
    %4155 = vmatpush2.bf16.msra.mxu0 %v1497
    %4156 = vmatprep.subr.bf16.mxu0 %v1490
    %4157 = vmatpush2.bf16.msra.mxu0 %v1489
    %4158 = vmatprep.subr.bf16.mxu0 %v1482
    %4159 = vmatpush2.bf16.msra.mxu0 %v1481
    %4160 = vmatprep.subr.bf16.mxu0 %v1474
    %4161 = vmatpush2.bf16.msra.mxu0 %v1473
    %4162 = vmatprep.mubr.bf16.mxu0 %v3881
    %4163 = vmatmul.mubr.bf16.gmra.mxu0 %v3880
    %v4164 = vpop.f32.mrf.mxu0
    %v4165 = vadd.f32 %v622, %v4164
    %v4166 = vpop.f32.mrf.mxu0
    %v4167 = vadd.f32 %v626, %v4166
    %v4168 = vpop.f32.mrf.mxu0
    %v4169 = vpop.f32.mrf.mxu0
    %4170 = vdwg.mxu0
    %4171 = vmatprep.subr.bf16.mxu0 %v1594
    %4172 = vmatpush1.bf16.msra.mxu0 %v1593
    %4173 = vmatprep.subr.bf16.mxu0 %v1586
    %4174 = vmatpush1.bf16.msra.mxu0 %v1585
    %4175 = vmatprep.subr.bf16.mxu0 %v1578
    %4176 = vmatpush1.bf16.msra.mxu0 %v1577
    %4177 = vmatprep.subr.bf16.mxu0 %v1570
    %4178 = vmatpush1.bf16.msra.mxu0 %v1569
    %4179 = vmatprep.subr.bf16.mxu0 %v1562
    %4180 = vmatpush1.bf16.msra.mxu0 %v1561
    %4181 = vmatprep.subr.bf16.mxu0 %v1554
    %4182 = vmatpush1.bf16.msra.mxu0 %v1553
    %4183 = vmatprep.subr.bf16.mxu0 %v1546
    %4184 = vmatpush1.bf16.msra.mxu0 %v1545
    %4185 = vmatprep.subr.bf16.mxu0 %v1538
    %4186 = vmatpush1.bf16.msra.mxu0 %v1537
    %4187 = vmatprep.subr.bf16.mxu0 %v1658
    %4188 = vmatpush2.bf16.msra.mxu0 %v1657
    %4189 = vmatprep.subr.bf16.mxu0 %v1650
    %4190 = vmatpush2.bf16.msra.mxu0 %v1649
    %4191 = vmatprep.subr.bf16.mxu0 %v1642
    %4192 = vmatpush2.bf16.msra.mxu0 %v1641
    %4193 = vmatprep.subr.bf16.mxu0 %v1634
    %4194 = vmatpush2.bf16.msra.mxu0 %v1633
    %4195 = vmatprep.subr.bf16.mxu0 %v1626
    %4196 = vmatpush2.bf16.msra.mxu0 %v1625
    %4197 = vmatprep.subr.bf16.mxu0 %v1618
    %4198 = vmatpush2.bf16.msra.mxu0 %v1617
    %4199 = vmatprep.subr.bf16.mxu0 %v1610
    %4200 = vmatpush2.bf16.msra.mxu0 %v1609
    %4201 = vmatprep.subr.bf16.mxu0 %v1602
    %4202 = vmatpush2.bf16.msra.mxu0 %v1601
    %4203 = vmatprep.mubr.bf16.mxu0 %v3883
    %4204 = vmatmul.mubr.bf16.gmra.mxu0 %v3882
    %v4205 = vpop.f32.mrf.mxu0
    %v4206 = vadd.f32 %v4165, %v4205
    %v4207 = vpop.f32.mrf.mxu0
    %v4208 = vadd.f32 %v4167, %v4207
    %v4209 = vpop.f32.mrf.mxu0
    %v4210 = vpop.f32.mrf.mxu0
    %4211 = vdwg.mxu0
    %v4212 = vpack.c.bf16 %v3960, %v3960
    %v4213 = vpack.c.bf16 %v3962, %v3962
    %v4214 = vpack.c.bf16 %v4042, %v4042
    %v4215 = vpack.c.bf16 %v4044, %v4044
    %v4216 = vpack.c.bf16 %v4124, %v4124
    %v4217 = vpack.c.bf16 %v4126, %v4126
    %v4218 = vpack.c.bf16 %v4206, %v4206
    %v4219 = vpack.c.bf16 %v4208, %v4208
    %4220 = vmatprep.subr.bf16.mxu0 %v3069
    %4221 = vmatpush1.bf16.msra.mxu0 %v3068
    %4222 = vmatprep.subr.bf16.mxu0 %v3065
    %4223 = vmatpush1.bf16.msra.mxu0 %v3064
    %4224 = vmatprep.subr.bf16.mxu0 %v3061
    %4225 = vmatpush1.bf16.msra.mxu0 %v3060
    %4226 = vmatprep.subr.bf16.mxu0 %v3057
    %4227 = vmatpush1.bf16.msra.mxu0 %v3056
    %4228 = vmatprep.subr.bf16.mxu0 %v3053
    %4229 = vmatpush1.bf16.msra.mxu0 %v3052
    %4230 = vmatprep.subr.bf16.mxu0 %v3049
    %4231 = vmatpush1.bf16.msra.mxu0 %v3048
    %4232 = vmatprep.subr.bf16.mxu0 %v3045
    %4233 = vmatpush1.bf16.msra.mxu0 %v3044
    %4234 = vmatprep.subr.bf16.mxu0 %v3041
    %4235 = vmatpush1.bf16.msra.mxu0 %v3040
    %4236 = vmatprep.subr.bf16.mxu0 %v3101
    %4237 = vmatpush2.bf16.msra.mxu0 %v3100
    %4238 = vmatprep.subr.bf16.mxu0 %v3097
    %4239 = vmatpush2.bf16.msra.mxu0 %v3096
    %4240 = vmatprep.subr.bf16.mxu0 %v3093
    %4241 = vmatpush2.bf16.msra.mxu0 %v3092
    %4242 = vmatprep.subr.bf16.mxu0 %v3089
    %4243 = vmatpush2.bf16.msra.mxu0 %v3088
    %4244 = vmatprep.subr.bf16.mxu0 %v3085
    %4245 = vmatpush2.bf16.msra.mxu0 %v3084
    %4246 = vmatprep.subr.bf16.mxu0 %v3081
    %4247 = vmatpush2.bf16.msra.mxu0 %v3080
    %4248 = vmatprep.subr.bf16.mxu0 %v3077
    %4249 = vmatpush2.bf16.msra.mxu0 %v3076
    %4250 = vmatprep.subr.bf16.mxu0 %v3073
    %4251 = vmatpush2.bf16.msra.mxu0 %v3072
    %4252 = vmatprep.mubr.bf16.mxu0 %v4213
    %4253 = vmatmul.mubr.bf16.gmra.mxu0 %v4212
    %v4254 = vpop.f32.mrf.mxu0
    %v4255 = vadd.f32 %v2255, %v4254
    %v4256 = vpop.f32.mrf.mxu0
    %v4257 = vadd.f32 %v2259, %v4256
    %v4258 = vpop.f32.mrf.mxu0
    %v4259 = vpop.f32.mrf.mxu0
    %4260 = vdwg.mxu0
    %4261 = vmatprep.subr.bf16.mxu0 %v3133
    %4262 = vmatpush1.bf16.msra.mxu0 %v3132
    %4263 = vmatprep.subr.bf16.mxu0 %v3129
    %4264 = vmatpush1.bf16.msra.mxu0 %v3128
    %4265 = vmatprep.subr.bf16.mxu0 %v3125
    %4266 = vmatpush1.bf16.msra.mxu0 %v3124
    %4267 = vmatprep.subr.bf16.mxu0 %v3121
    %4268 = vmatpush1.bf16.msra.mxu0 %v3120
    %4269 = vmatprep.subr.bf16.mxu0 %v3117
    %4270 = vmatpush1.bf16.msra.mxu0 %v3116
    %4271 = vmatprep.subr.bf16.mxu0 %v3113
    %4272 = vmatpush1.bf16.msra.mxu0 %v3112
    %4273 = vmatprep.subr.bf16.mxu0 %v3109
    %4274 = vmatpush1.bf16.msra.mxu0 %v3108
    %4275 = vmatprep.subr.bf16.mxu0 %v3105
    %4276 = vmatpush1.bf16.msra.mxu0 %v3104
    %4277 = vmatprep.subr.bf16.mxu0 %v3165
    %4278 = vmatpush2.bf16.msra.mxu0 %v3164
    %4279 = vmatprep.subr.bf16.mxu0 %v3161
    %4280 = vmatpush2.bf16.msra.mxu0 %v3160
    %4281 = vmatprep.subr.bf16.mxu0 %v3157
    %4282 = vmatpush2.bf16.msra.mxu0 %v3156
    %4283 = vmatprep.subr.bf16.mxu0 %v3153
    %4284 = vmatpush2.bf16.msra.mxu0 %v3152
    %4285 = vmatprep.subr.bf16.mxu0 %v3149
    %4286 = vmatpush2.bf16.msra.mxu0 %v3148
    %4287 = vmatprep.subr.bf16.mxu0 %v3145
    %4288 = vmatpush2.bf16.msra.mxu0 %v3144
    %4289 = vmatprep.subr.bf16.mxu0 %v3141
    %4290 = vmatpush2.bf16.msra.mxu0 %v3140
    %4291 = vmatprep.subr.bf16.mxu0 %v3137
    %4292 = vmatpush2.bf16.msra.mxu0 %v3136
    %4293 = vmatprep.mubr.bf16.mxu0 %v4215
    %4294 = vmatmul.mubr.bf16.gmra.mxu0 %v4214
    %v4295 = vpop.f32.mrf.mxu0
    %v4296 = vadd.f32 %v4255, %v4295
    %v4297 = vpop.f32.mrf.mxu0
    %v4298 = vadd.f32 %v4257, %v4297
    %v4299 = vpop.f32.mrf.mxu0
    %v4300 = vpop.f32.mrf.mxu0
    %4301 = vdwg.mxu0
    %4302 = vmatprep.subr.bf16.mxu0 %v3197
    %4303 = vmatpush1.bf16.msra.mxu0 %v3196
    %4304 = vmatprep.subr.bf16.mxu0 %v3193
    %4305 = vmatpush1.bf16.msra.mxu0 %v3192
    %4306 = vmatprep.subr.bf16.mxu0 %v3189
    %4307 = vmatpush1.bf16.msra.mxu0 %v3188
    %4308 = vmatprep.subr.bf16.mxu0 %v3185
    %4309 = vmatpush1.bf16.msra.mxu0 %v3184
    %4310 = vmatprep.subr.bf16.mxu0 %v3181
    %4311 = vmatpush1.bf16.msra.mxu0 %v3180
    %4312 = vmatprep.subr.bf16.mxu0 %v3177
    %4313 = vmatpush1.bf16.msra.mxu0 %v3176
    %4314 = vmatprep.subr.bf16.mxu0 %v3173
    %4315 = vmatpush1.bf16.msra.mxu0 %v3172
    %4316 = vmatprep.subr.bf16.mxu0 %v3169
    %4317 = vmatpush1.bf16.msra.mxu0 %v3168
    %4318 = vmatprep.subr.bf16.mxu0 %v3229
    %4319 = vmatpush2.bf16.msra.mxu0 %v3228
    %4320 = vmatprep.subr.bf16.mxu0 %v3225
    %4321 = vmatpush2.bf16.msra.mxu0 %v3224
    %4322 = vmatprep.subr.bf16.mxu0 %v3221
    %4323 = vmatpush2.bf16.msra.mxu0 %v3220
    %4324 = vmatprep.subr.bf16.mxu0 %v3217
    %4325 = vmatpush2.bf16.msra.mxu0 %v3216
    %4326 = vmatprep.subr.bf16.mxu0 %v3213
    %4327 = vmatpush2.bf16.msra.mxu0 %v3212
    %4328 = vmatprep.subr.bf16.mxu0 %v3209
    %4329 = vmatpush2.bf16.msra.mxu0 %v3208
    %4330 = vmatprep.subr.bf16.mxu0 %v3205
    %4331 = vmatpush2.bf16.msra.mxu0 %v3204
    %4332 = vmatprep.subr.bf16.mxu0 %v3201
    %4333 = vmatpush2.bf16.msra.mxu0 %v3200
    %4334 = vmatprep.mubr.bf16.mxu0 %v4217
    %4335 = vmatmul.mubr.bf16.gmra.mxu0 %v4216
    %v4336 = vpop.f32.mrf.mxu0
    %v4337 = vadd.f32 %v4296, %v4336
    %v4338 = vpop.f32.mrf.mxu0
    %v4339 = vadd.f32 %v4298, %v4338
    %v4340 = vpop.f32.mrf.mxu0
    %v4341 = vpop.f32.mrf.mxu0
    %4342 = vdwg.mxu0
    %4343 = vmatprep.subr.bf16.mxu0 %v3261
    %4344 = vmatpush1.bf16.msra.mxu0 %v3260
    %4345 = vmatprep.subr.bf16.mxu0 %v3257
    %4346 = vmatpush1.bf16.msra.mxu0 %v3256
    %4347 = vmatprep.subr.bf16.mxu0 %v3253
    %4348 = vmatpush1.bf16.msra.mxu0 %v3252
    %4349 = vmatprep.subr.bf16.mxu0 %v3249
    %4350 = vmatpush1.bf16.msra.mxu0 %v3248
    %4351 = vmatprep.subr.bf16.mxu0 %v3245
    %4352 = vmatpush1.bf16.msra.mxu0 %v3244
    %4353 = vmatprep.subr.bf16.mxu0 %v3241
    %4354 = vmatpush1.bf16.msra.mxu0 %v3240
    %4355 = vmatprep.subr.bf16.mxu0 %v3237
    %4356 = vmatpush1.bf16.msra.mxu0 %v3236
    %4357 = vmatprep.subr.bf16.mxu0 %v3233
    %4358 = vmatpush1.bf16.msra.mxu0 %v3232
    %4359 = vmatprep.subr.bf16.mxu0 %v3293
    %4360 = vmatpush2.bf16.msra.mxu0 %v3292
    %4361 = vmatprep.subr.bf16.mxu0 %v3289
    %4362 = vmatpush2.bf16.msra.mxu0 %v3288
    %4363 = vmatprep.subr.bf16.mxu0 %v3285
    %4364 = vmatpush2.bf16.msra.mxu0 %v3284
    %4365 = vmatprep.subr.bf16.mxu0 %v3281
    %4366 = vmatpush2.bf16.msra.mxu0 %v3280
    %4367 = vmatprep.subr.bf16.mxu0 %v3277
    %4368 = vmatpush2.bf16.msra.mxu0 %v3276
    %4369 = vmatprep.subr.bf16.mxu0 %v3273
    %4370 = vmatpush2.bf16.msra.mxu0 %v3272
    %4371 = vmatprep.subr.bf16.mxu0 %v3269
    %4372 = vmatpush2.bf16.msra.mxu0 %v3268
    %4373 = vmatprep.subr.bf16.mxu0 %v3265
    %4374 = vmatpush2.bf16.msra.mxu0 %v3264
    %4375 = vmatprep.mubr.bf16.mxu0 %v4219
    %4376 = vmatmul.mubr.bf16.gmra.mxu0 %v4218
    %v4377 = vpop.f32.mrf.mxu0
    %v4378 = vadd.f32 %v4337, %v4377
    %v4379 = vpop.f32.mrf.mxu0
    %v4380 = vadd.f32 %v4339, %v4379
    %v4381 = vpop.f32.mrf.mxu0
    %v4382 = vpop.f32.mrf.mxu0
    %4383 = vdwg.mxu0
    %4384 = vmatprep.subr.bf16.mxu0 %v3071
    %4385 = vmatpush1.bf16.msra.mxu0 %v3070
    %4386 = vmatprep.subr.bf16.mxu0 %v3067
    %4387 = vmatpush1.bf16.msra.mxu0 %v3066
    %4388 = vmatprep.subr.bf16.mxu0 %v3063
    %4389 = vmatpush1.bf16.msra.mxu0 %v3062
    %4390 = vmatprep.subr.bf16.mxu0 %v3059
    %4391 = vmatpush1.bf16.msra.mxu0 %v3058
    %4392 = vmatprep.subr.bf16.mxu0 %v3055
    %4393 = vmatpush1.bf16.msra.mxu0 %v3054
    %4394 = vmatprep.subr.bf16.mxu0 %v3051
    %4395 = vmatpush1.bf16.msra.mxu0 %v3050
    %4396 = vmatprep.subr.bf16.mxu0 %v3047
    %4397 = vmatpush1.bf16.msra.mxu0 %v3046
    %4398 = vmatprep.subr.bf16.mxu0 %v3043
    %4399 = vmatpush1.bf16.msra.mxu0 %v3042
    %4400 = vmatprep.subr.bf16.mxu0 %v3103
    %4401 = vmatpush2.bf16.msra.mxu0 %v3102
    %4402 = vmatprep.subr.bf16.mxu0 %v3099
    %4403 = vmatpush2.bf16.msra.mxu0 %v3098
    %4404 = vmatprep.subr.bf16.mxu0 %v3095
    %4405 = vmatpush2.bf16.msra.mxu0 %v3094
    %4406 = vmatprep.subr.bf16.mxu0 %v3091
    %4407 = vmatpush2.bf16.msra.mxu0 %v3090
    %4408 = vmatprep.subr.bf16.mxu0 %v3087
    %4409 = vmatpush2.bf16.msra.mxu0 %v3086
    %4410 = vmatprep.subr.bf16.mxu0 %v3083
    %4411 = vmatpush2.bf16.msra.mxu0 %v3082
    %4412 = vmatprep.subr.bf16.mxu0 %v3079
    %4413 = vmatpush2.bf16.msra.mxu0 %v3078
    %4414 = vmatprep.subr.bf16.mxu0 %v3075
    %4415 = vmatpush2.bf16.msra.mxu0 %v3074
    %4416 = vmatprep.mubr.bf16.mxu0 %v4213
    %4417 = vmatmul.mubr.bf16.gmra.mxu0 %v4212
    %v4418 = vpop.f32.mrf.mxu0
    %v4419 = vadd.f32 %v2263, %v4418
    %v4420 = vpop.f32.mrf.mxu0
    %v4421 = vadd.f32 %v2267, %v4420
    %v4422 = vpop.f32.mrf.mxu0
    %v4423 = vpop.f32.mrf.mxu0
    %4424 = vdwg.mxu0
    %4425 = vmatprep.subr.bf16.mxu0 %v3135
    %4426 = vmatpush1.bf16.msra.mxu0 %v3134
    %4427 = vmatprep.subr.bf16.mxu0 %v3131
    %4428 = vmatpush1.bf16.msra.mxu0 %v3130
    %4429 = vmatprep.subr.bf16.mxu0 %v3127
    %4430 = vmatpush1.bf16.msra.mxu0 %v3126
    %4431 = vmatprep.subr.bf16.mxu0 %v3123
    %4432 = vmatpush1.bf16.msra.mxu0 %v3122
    %4433 = vmatprep.subr.bf16.mxu0 %v3119
    %4434 = vmatpush1.bf16.msra.mxu0 %v3118
    %4435 = vmatprep.subr.bf16.mxu0 %v3115
    %4436 = vmatpush1.bf16.msra.mxu0 %v3114
    %4437 = vmatprep.subr.bf16.mxu0 %v3111
    %4438 = vmatpush1.bf16.msra.mxu0 %v3110
    %4439 = vmatprep.subr.bf16.mxu0 %v3107
    %4440 = vmatpush1.bf16.msra.mxu0 %v3106
    %4441 = vmatprep.subr.bf16.mxu0 %v3167
    %4442 = vmatpush2.bf16.msra.mxu0 %v3166
    %4443 = vmatprep.subr.bf16.mxu0 %v3163
    %4444 = vmatpush2.bf16.msra.mxu0 %v3162
    %4445 = vmatprep.subr.bf16.mxu0 %v3159
    %4446 = vmatpush2.bf16.msra.mxu0 %v3158
    %4447 = vmatprep.subr.bf16.mxu0 %v3155
    %4448 = vmatpush2.bf16.msra.mxu0 %v3154
    %4449 = vmatprep.subr.bf16.mxu0 %v3151
    %4450 = vmatpush2.bf16.msra.mxu0 %v3150
    %4451 = vmatprep.subr.bf16.mxu0 %v3147
    %4452 = vmatpush2.bf16.msra.mxu0 %v3146
    %4453 = vmatprep.subr.bf16.mxu0 %v3143
    %4454 = vmatpush2.bf16.msra.mxu0 %v3142
    %4455 = vmatprep.subr.bf16.mxu0 %v3139
    %4456 = vmatpush2.bf16.msra.mxu0 %v3138
    %4457 = vmatprep.mubr.bf16.mxu0 %v4215
    %4458 = vmatmul.mubr.bf16.gmra.mxu0 %v4214
    %v4459 = vpop.f32.mrf.mxu0
    %v4460 = vadd.f32 %v4419, %v4459
    %v4461 = vpop.f32.mrf.mxu0
    %v4462 = vadd.f32 %v4421, %v4461
    %v4463 = vpop.f32.mrf.mxu0
    %v4464 = vpop.f32.mrf.mxu0
    %4465 = vdwg.mxu0
    %4466 = vmatprep.subr.bf16.mxu0 %v3199
    %4467 = vmatpush1.bf16.msra.mxu0 %v3198
    %4468 = vmatprep.subr.bf16.mxu0 %v3195
    %4469 = vmatpush1.bf16.msra.mxu0 %v3194
    %4470 = vmatprep.subr.bf16.mxu0 %v3191
    %4471 = vmatpush1.bf16.msra.mxu0 %v3190
    %4472 = vmatprep.subr.bf16.mxu0 %v3187
    %4473 = vmatpush1.bf16.msra.mxu0 %v3186
    %4474 = vmatprep.subr.bf16.mxu0 %v3183
    %4475 = vmatpush1.bf16.msra.mxu0 %v3182
    %4476 = vmatprep.subr.bf16.mxu0 %v3179
    %4477 = vmatpush1.bf16.msra.mxu0 %v3178
    %4478 = vmatprep.subr.bf16.mxu0 %v3175
    %4479 = vmatpush1.bf16.msra.mxu0 %v3174
    %4480 = vmatprep.subr.bf16.mxu0 %v3171
    %4481 = vmatpush1.bf16.msra.mxu0 %v3170
    %4482 = vmatprep.subr.bf16.mxu0 %v3231
    %4483 = vmatpush2.bf16.msra.mxu0 %v3230
    %4484 = vmatprep.subr.bf16.mxu0 %v3227
    %4485 = vmatpush2.bf16.msra.mxu0 %v3226
    %4486 = vmatprep.subr.bf16.mxu0 %v3223
    %4487 = vmatpush2.bf16.msra.mxu0 %v3222
    %4488 = vmatprep.subr.bf16.mxu0 %v3219
    %4489 = vmatpush2.bf16.msra.mxu0 %v3218
    %4490 = vmatprep.subr.bf16.mxu0 %v3215
    %4491 = vmatpush2.bf16.msra.mxu0 %v3214
    %4492 = vmatprep.subr.bf16.mxu0 %v3211
    %4493 = vmatpush2.bf16.msra.mxu0 %v3210
    %4494 = vmatprep.subr.bf16.mxu0 %v3207
    %4495 = vmatpush2.bf16.msra.mxu0 %v3206
    %4496 = vmatprep.subr.bf16.mxu0 %v3203
    %4497 = vmatpush2.bf16.msra.mxu0 %v3202
    %4498 = vmatprep.mubr.bf16.mxu0 %v4217
    %4499 = vmatmul.mubr.bf16.gmra.mxu0 %v4216
    %v4500 = vpop.f32.mrf.mxu0
    %v4501 = vadd.f32 %v4460, %v4500
    %v4502 = vpop.f32.mrf.mxu0
    %v4503 = vadd.f32 %v4462, %v4502
    %v4504 = vpop.f32.mrf.mxu0
    %v4505 = vpop.f32.mrf.mxu0
    %4506 = vdwg.mxu0
    %4507 = vmatprep.subr.bf16.mxu0 %v3263
    %4508 = vmatpush1.bf16.msra.mxu0 %v3262
    %4509 = vmatprep.subr.bf16.mxu0 %v3259
    %4510 = vmatpush1.bf16.msra.mxu0 %v3258
    %4511 = vmatprep.subr.bf16.mxu0 %v3255
    %4512 = vmatpush1.bf16.msra.mxu0 %v3254
    %4513 = vmatprep.subr.bf16.mxu0 %v3251
    %4514 = vmatpush1.bf16.msra.mxu0 %v3250
    %4515 = vmatprep.subr.bf16.mxu0 %v3247
    %4516 = vmatpush1.bf16.msra.mxu0 %v3246
    %4517 = vmatprep.subr.bf16.mxu0 %v3243
    %4518 = vmatpush1.bf16.msra.mxu0 %v3242
    %4519 = vmatprep.subr.bf16.mxu0 %v3239
    %4520 = vmatpush1.bf16.msra.mxu0 %v3238
    %4521 = vmatprep.subr.bf16.mxu0 %v3235
    %4522 = vmatpush1.bf16.msra.mxu0 %v3234
    %4523 = vmatprep.subr.bf16.mxu0 %v3295
    %4524 = vmatpush2.bf16.msra.mxu0 %v3294
    %4525 = vmatprep.subr.bf16.mxu0 %v3291
    %4526 = vmatpush2.bf16.msra.mxu0 %v3290
    %4527 = vmatprep.subr.bf16.mxu0 %v3287
    %4528 = vmatpush2.bf16.msra.mxu0 %v3286
    %4529 = vmatprep.subr.bf16.mxu0 %v3283
    %4530 = vmatpush2.bf16.msra.mxu0 %v3282
    %4531 = vmatprep.subr.bf16.mxu0 %v3279
    %4532 = vmatpush2.bf16.msra.mxu0 %v3278
    %4533 = vmatprep.subr.bf16.mxu0 %v3275
    %4534 = vmatpush2.bf16.msra.mxu0 %v3274
    %4535 = vmatprep.subr.bf16.mxu0 %v3271
    %4536 = vmatpush2.bf16.msra.mxu0 %v3270
    %4537 = vmatprep.subr.bf16.mxu0 %v3267
    %4538 = vmatpush2.bf16.msra.mxu0 %v3266
    %4539 = vmatprep.mubr.bf16.mxu0 %v4219
    %4540 = vmatmul.mubr.bf16.gmra.mxu0 %v4218
    %v4541 = vpop.f32.mrf.mxu0
    %v4542 = vadd.f32 %v4501, %v4541
    %v4543 = vpop.f32.mrf.mxu0
    %v4544 = vadd.f32 %v4503, %v4543
    %v4545 = vpop.f32.mrf.mxu0
    %v4546 = vpop.f32.mrf.mxu0
    %4547 = vdwg.mxu0
    %4548 = vst [vmem:[#allocation10] sm:$0xff] %v4378
    %4549 = vst [vmem:[#allocation10 + $0x8] sm:$0xff] %v4380
    %4550 = vst [vmem:[#allocation10 + $0x10] sm:$0xff] %v4542
    %4551 = vst [vmem:[#allocation10 + $0x18] sm:$0xff] %v4544
    // Predicated region
    $region38: #{tpu_custom_call.1} parent=1 // pred_check
      _
    $region39: #{tpu_custom_call.1} parent=1 // pred_check_branch
      %4553 = sbr.rel (0) target = $region41
    $region40: #{tpu_custom_call.1} parent=1 // pred_region
      %s4555 = ssub.s32 512, 512
      %4556 = vsyncadd [#allocation4], %s4555
      %s4558 = sshll.u32 [#allocation10], 4
      %s4559 = int_to_ptr.vmem [resolvable:$true] %s4558
      %4561 = dma.vmem_to_hbm [thread:$0]  %s4559, 512, %s5, [#allocation4]
    $region41: #{tpu_custom_call.1} parent=1 // pred_fallthru
      _
    // Predicated region
    $region42: #{tpu_custom_call.1} parent=1 // pred_check
      _
    $region43: #{tpu_custom_call.1} parent=1 // pred_check_branch
      %4563 = sbr.rel (0) target = $region45
    $region44: #{tpu_custom_call.1} parent=1 // pred_region
      %4564 = dma.done [#allocation4], 512
    $region45: #{tpu_custom_call.1} parent=1 // pred_fallthru
      _
    %4565 = vsyncpa [#allocation3], 1
    %4566 = vsyncpa [#allocation6], 1
    %4567 = vsyncpa [#allocation9], 1
    %4568 = vsyncpa [#allocation4], 1

// kernel: tpu_custom_call.1
$region0: #{tpu_custom_call.1}
  #allocation0 [shape = 'u32[]', space=smem, size = 0x4, offset = 0x4, fixed_abs, tag = 'smem constant byte address 0x4 - core index']
  #allocation1 [shape = 'u32[144,128]{1,0:T(1,128)}', space=vmem, size = 0x12000, scoped, tag = 'internal scratch']
  %s0 = inlined_call_operand.hbm [shape: f32[8,512], index: 0, kind: input, shape index: {}]
  %s1 = inlined_call_operand.hbm [shape: bf16[512,1024], index: 1, kind: input, shape index: {}]
  %s2 = inlined_call_operand.hbm [shape: f32[1,1024], index: 2, kind: input, shape index: {}]
  %s3 = inlined_call_operand.hbm [shape: bf16[1024,512], index: 3, kind: input, shape index: {}]
  %s4 = inlined_call_operand.vmem [shape: f32[1,512], index: 4, kind: input, shape index: {}]
  %s5 = inlined_call_operand.hbm [shape: f32[8,512], index: 5, kind: output, shape index: {}]
  %s6 = sld [smem:[#allocation0]]
  $region46: #{tpu_custom_call.1} parent=0
    _
  %s8 = ssub.s32 1, %s6
  %s9 = scalar_select 0, %s8, %s6
  $region1: #{tpu_custom_call.1} parent=0
    #allocation2 [shape = 'u8[16384]{0}', space=vmem, size = 0x4000, scoped, tag = 'input window, operand 0, single buffered']
    #allocation3 [shape = 's32[1]{0}', space=sflag, size = 0x4, scoped, tag = 'scoped memory for tpu_custom_call.1']
    #allocation4 [shape = 's32[1]{0}', space=sflag, size = 0x4, scoped, tag = 'scoped memory for tpu_custom_call.1']
    #allocation5 [shape = 'u8[1048576]{0}', space=vmem, size = 0x100000, scoped, tag = 'input window, operand 1, single buffered']
    #allocation6 [shape = 's32[1]{0}', space=sflag, size = 0x4, scoped, tag = 'scoped memory for tpu_custom_call.1']
    #allocation7 [shape = 'u8[4096]{0}', space=vmem, size = 0x1000, scoped, tag = 'input window, operand 2, single buffered']
    #allocation8 [shape = 'u8[1048576]{0}', space=vmem, size = 0x100000, scoped, tag = 'input window, operand 3, single buffered']
    #allocation9 [shape = 's32[1]{0}', space=sflag, size = 0x4, scoped, tag = 'scoped memory for tpu_custom_call.1']
    #allocation10 [shape = 'u8[16384]{0}', space=vmem, size = 0x4000, scoped, tag = 'output window, operand 0, single buffered']
    %10 = vsyncpa [#allocation3], 0
    %11 = vsyncpa [#allocation6], 0
    %12 = vsyncpa [#allocation9], 0
    %13 = vsyncpa [#allocation4], 0
    // Predicated region
    $region2: #{tpu_custom_call.1} parent=1 // pred_check
      _
    $region3: #{tpu_custom_call.1} parent=1 // pred_check_branch
      %15 = sbr.rel (0) target = $region5
    $region4: #{tpu_custom_call.1} parent=1 // pred_region
      %s17 = ssub.s32 512, 512
      %18 = vsyncadd [#allocation3], %s17
      %s20 = sshll.u32 [#allocation2], 4
      %s21 = int_to_ptr.vmem [resolvable:$true] %s20
      %23 = dma.hbm_to_vmem [thread:$0]  %s0, 512, %s21, [#allocation3]
    $region5: #{tpu_custom_call.1} parent=1 // pred_fallthru
      _
    // Predicated region
    $region6: #{tpu_custom_call.1} parent=1 // pred_check
      _
    $region7: #{tpu_custom_call.1} parent=1 // pred_check_branch
      %25 = sbr.rel (0) target = $region9
    $region8: #{tpu_custom_call.1} parent=1 // pred_region
      %s27 = ssub.s32 32768, 32768
      %28 = vsyncadd [#allocation6], %s27
      %s29 = sshll.u32 [#allocation5], 4
      %s30 = int_to_ptr.vmem [resolvable:$true] %s29
      %35 = dma.hbm_to_vmem [thread:$0]  %s1, 32768, %s30, [#allocation6], 512, 512, 32
    $region9: #{tpu_custom_call.1} parent=1 // pred_fallthru
      _
    // Predicated region
    $region10: #{tpu_custom_call.1} parent=1 // pred_check
      _
    $region11: #{tpu_custom_call.1} parent=1 // pred_check_branch
      %37 = sbr.rel (0) target = $region13
    $region12: #{tpu_custom_call.1} parent=1 // pred_region
      %s39 = ssub.s32 128, 128
      %40 = vsyncadd [#allocation6], %s39
      %s42 = sshll.u32 [#allocation7], 4
      %s43 = int_to_ptr.vmem [resolvable:$true] %s42
      %45 = dma.hbm_to_vmem [thread:$0]  %s2, 128, %s43, [#allocation6]
    $region13: #{tpu_custom_call.1} parent=1 // pred_fallthru
      _
    // Predicated region
    $region14: #{tpu_custom_call.1} parent=1 // pred_check
      _
    $region15: #{tpu_custom_call.1} parent=1 // pred_check_branch
      %47 = sbr.rel (0) target = $region17
    $region16: #{tpu_custom_call.1} parent=1 // pred_region
      %s49 = ssub.s32 32768, 32768
      %50 = vsyncadd [#allocation9], %s49
      %s51 = sshll.u32 [#allocation8], 4
      %s52 = int_to_ptr.vmem [resolvable:$true] %s51
      %57 = dma.hbm_to_vmem [thread:$0]  %s3, 32768, %s52, [#allocation9], 256, 256, 16
    $region17: #{tpu_custom_call.1} parent=1 // pred_fallthru
      _
    // Predicated region
    $region18: #{tpu_custom_call.1} parent=1 // pred_check
      _
    $region19: #{tpu_custom_call.1} parent=1 // pred_check_branch
      %59 = sbr.rel (0) target = $region21
    $region20: #{tpu_custom_call.1} parent=1 // pred_region
      _
    $region21: #{tpu_custom_call.1} parent=1 // pred_fallthru
      _
    // Predicated region
    $region22: #{tpu_custom_call.1} parent=1 // pred_check
      _
    $region23: #{tpu_custom_call.1} parent=1 // pred_check_branch
      %61 = sbr.rel (0) target = $region25
    $region24: #{tpu_custom_call.1} parent=1 // pred_region
      %62 = dma.done [#allocation3], 512
    $region25: #{tpu_custom_call.1} parent=1 // pred_fallthru
      _
    // Predicated region
    $region26: #{tpu_custom_call.1} parent=1 // pred_check
      _
    $region27: #{tpu_custom_call.1} parent=1 // pred_check_branch
      %64 = sbr.rel (0) target = $region29
    $region28: #{tpu_custom_call.1} parent=1 // pred_region
      %65 = dma.done [#allocation6], 32768
    $region29: #{tpu_custom_call.1} parent=1 // pred_fallthru
      _
    // Predicated region
    $region30: #{tpu_custom_call.1} parent=1 // pred_check
      _
    $region31: #{tpu_custom_call.1} parent=1 // pred_check_branch
      %67 = sbr.rel (0) target = $region33
    $region32: #{tpu_custom_call.1} parent=1 // pred_region
      %68 = dma.done [#allocation6], 128
    $region33: #{tpu_custom_call.1} parent=1 // pred_fallthru
      _
    // Predicated region
    $region34: #{tpu_custom_call.1} parent=1 // pred_check
      _
    $region35: #{tpu_custom_call.1} parent=1 // pred_check_branch
      %70 = sbr.rel (0) target = $region37
    $region36: #{tpu_custom_call.1} parent=1 // pred_region
      %71 = dma.done [#allocation9], 32768
    $region37: #{tpu_custom_call.1} parent=1 // pred_fallthru
      _
    %v72 = vld [vmem:[#allocation2] sm:$0xff]
    %v73 = vld [vmem:[#allocation2 + $0x8] sm:$0xff]
    %v74 = vld [vmem:[#allocation2 + $0x10] sm:$0xff]
    %v75 = vld [vmem:[#allocation2 + $0x18] sm:$0xff]
    %v76 = vpack.c.bf16 %v72, %v72
    %v77 = vpack.c.bf16 %v73, %v73
    %v78 = vpack.c.bf16 %v74, %v74
    %v79 = vpack.c.bf16 %v75, %v75
    %v80 = vld [vmem:[#allocation5] sm:$0xff]
    %v81 = vld [vmem:[#allocation5 + $0x8] sm:$0xff]
    %v82 = vld [vmem:[#allocation5 + $0x10] sm:$0xff]
    %v83 = vld [vmem:[#allocation5 + $0x18] sm:$0xff]
    %v84 = vld [vmem:[#allocation5 + $0x20] sm:$0xff]
    %v85 = vld [vmem:[#allocation5 + $0x28] sm:$0xff]
    %v86 = vld [vmem:[#allocation5 + $0x30] sm:$0xff]
    %v87 = vld [vmem:[#allocation5 + $0x38] sm:$0xff]
    %v88 = vld [vmem:[#allocation5 + $0x40] sm:$0xff]
    %v89 = vld [vmem:[#allocation5 + $0x48] sm:$0xff]
    %v90 = vld [vmem:[#allocation5 + $0x50] sm:$0xff]
    %v91 = vld [vmem:[#allocation5 + $0x58] sm:$0xff]
    %v92 = vld [vmem:[#allocation5 + $0x60] sm:$0xff]
    %v93 = vld [vmem:[#allocation5 + $0x68] sm:$0xff]
    %v94 = vld [vmem:[#allocation5 + $0x70] sm:$0xff]
    %v95 = vld [vmem:[#allocation5 + $0x78] sm:$0xff]
    %v96 = vld [vmem:[#allocation5 + $0x80] sm:$0xff]
    %v97 = vld [vmem:[#allocation5 + $0x88] sm:$0xff]
    %v98 = vld [vmem:[#allocation5 + $0x90] sm:$0xff]
    %v99 = vld [vmem:[#allocation5 + $0x98] sm:$0xff]
    %v100 = vld [vmem:[#allocation5 + $0xa0] sm:$0xff]
    %v101 = vld [vmem:[#allocation5 + $0xa8] sm:$0xff]
    %v102 = vld [vmem:[#allocation5 + $0xb0] sm:$0xff]
    %v103 = vld [vmem:[#allocation5 + $0xb8] sm:$0xff]
    %v104 = vld [vmem:[#allocation5 + $0xc0] sm:$0xff]
    %v105 = vld [vmem:[#allocation5 + $0xc8] sm:$0xff]
    %v106 = vld [vmem:[#allocation5 + $0xd0] sm:$0xff]
    %v107 = vld [vmem:[#allocation5 + $0xd8] sm:$0xff]
    %v108 = vld [vmem:[#allocation5 + $0xe0] sm:$0xff]
    %v109 = vld [vmem:[#allocation5 + $0xe8] sm:$0xff]
    %v110 = vld [vmem:[#allocation5 + $0xf0] sm:$0xff]
    %v111 = vld [vmem:[#allocation5 + $0xf8] sm:$0xff]
    %v112 = vld [vmem:[#allocation5 + $0x100] sm:$0xff]
    %v113 = vld [vmem:[#allocation5 + $0x108] sm:$0xff]
    %v114 = vld [vmem:[#allocation5 + $0x110] sm:$0xff]
    %v115 = vld [vmem:[#allocation5 + $0x118] sm:$0xff]
    %v116 = vld [vmem:[#allocation5 + $0x120] sm:$0xff]
    %v117 = vld [vmem:[#allocation5 + $0x128] sm:$0xff]
    %v118 = vld [vmem:[#allocation5 + $0x130] sm:$0xff]
    %v119 = vld [vmem:[#allocation5 + $0x138] sm:$0xff]
    %v120 = vld [vmem:[#allocation5 + $0x140] sm:$0xff]
    %v121 = vld [vmem:[#allocation5 + $0x148] sm:$0xff]
    %v122 = vld [vmem:[#allocation5 + $0x150] sm:$0xff]
    %v123 = vld [vmem:[#allocation5 + $0x158] sm:$0xff]
    %v124 = vld [vmem:[#allocation5 + $0x160] sm:$0xff]
    %v125 = vld [vmem:[#allocation5 + $0x168] sm:$0xff]
    %v126 = vld [vmem:[#allocation5 + $0x170] sm:$0xff]
    %v127 = vld [vmem:[#allocation5 + $0x178] sm:$0xff]
    %v128 = vld [vmem:[#allocation5 + $0x180] sm:$0xff]
    %v129 = vld [vmem:[#allocation5 + $0x188] sm:$0xff]
    %v130 = vld [vmem:[#allocation5 + $0x190] sm:$0xff]
    %v131 = vld [vmem:[#allocation5 + $0x198] sm:$0xff]
    %v132 = vld [vmem:[#allocation5 + $0x1a0] sm:$0xff]
    %v133 = vld [vmem:[#allocation5 + $0x1a8] sm:$0xff]
    %v134 = vld [vmem:[#allocation5 + $0x1b0] sm:$0xff]
    %v135 = vld [vmem:[#allocation5 + $0x1b8] sm:$0xff]
    %v136 = vld [vmem:[#allocation5 + $0x1c0] sm:$0xff]
    %v137 = vld [vmem:[#allocation5 + $0x1c8] sm:$0xff]
    %v138 = vld [vmem:[#allocation5 + $0x1d0] sm:$0xff]
    %v139 = vld [vmem:[#allocation5 + $0x1d8] sm:$0xff]
    %v140 = vld [vmem:[#allocation5 + $0x1e0] sm:$0xff]
    %v141 = vld [vmem:[#allocation5 + $0x1e8] sm:$0xff]
    %v142 = vld [vmem:[#allocation5 + $0x1f0] sm:$0xff]
    %v143 = vld [vmem:[#allocation5 + $0x1f8] sm:$0xff]
    %v144 = vld [vmem:[#allocation5 + $0x200] sm:$0xff]
    %v145 = vld [vmem:[#allocation5 + $0x208] sm:$0xff]
    %v146 = vld [vmem:[#allocation5 + $0x210] sm:$0xff]
    %v147 = vld [vmem:[#allocation5 + $0x218] sm:$0xff]
    %v148 = vld [vmem:[#allocation5 + $0x220] sm:$0xff]
    %v149 = vld [vmem:[#allocation5 + $0x228] sm:$0xff]
    %v150 = vld [vmem:[#allocation5 + $0x230] sm:$0xff]
    %v151 = vld [vmem:[#allocation5 + $0x238] sm:$0xff]
    %v152 = vld [vmem:[#allocation5 + $0x240] sm:$0xff]
    %v153 = vld [vmem:[#allocation5 + $0x248] sm:$0xff]
    %v154 = vld [vmem:[#allocation5 + $0x250] sm:$0xff]
    %v155 = vld [vmem:[#allocation5 + $0x258] sm:$0xff]
    %v156 = vld [vmem:[#allocation5 + $0x260] sm:$0xff]
    %v157 = vld [vmem:[#allocation5 + $0x268] sm:$0xff]
    %v158 = vld [vmem:[#allocation5 + $0x270] sm:$0xff]
    %v159 = vld [vmem:[#allocation5 + $0x278] sm:$0xff]
    %v160 = vld [vmem:[#allocation5 + $0x280] sm:$0xff]
    %v161 = vld [vmem:[#allocation5 + $0x288] sm:$0xff]
    %v162 = vld [vmem:[#allocation5 + $0x290] sm:$0xff]
    %v163 = vld [vmem:[#allocation5 + $0x298] sm:$0xff]
    %v164 = vld [vmem:[#allocation5 + $0x2a0] sm:$0xff]
    %v165 = vld [vmem:[#allocation5 + $0x2a8] sm:$0xff]
    %v166 = vld [vmem:[#allocation5 + $0x2b0] sm:$0xff]
    %v167 = vld [vmem:[#allocation5 + $0x2b8] sm:$0xff]
    %v168 = vld [vmem:[#allocation5 + $0x2c0] sm:$0xff]
    %v169 = vld [vmem:[#allocation5 + $0x2c8] sm:$0xff]
    %v170 = vld [vmem:[#allocation5 + $0x2d0] sm:$0xff]
    %v171 = vld [vmem:[#allocation5 + $0x2d8] sm:$0xff]
    %v172 = vld [vmem:[#allocation5 + $0x2e0] sm:$0xff]
    %v173 = vld [vmem:[#allocation5 + $0x2e8] sm:$0xff]
    %v174 = vld [vmem:[#allocation5 + $0x2f0] sm:$0xff]
    %v175 = vld [vmem:[#allocation5 + $0x2f8] sm:$0xff]
    %v176 = vld [vmem:[#allocation5 + $0x300] sm:$0xff]
    %v177 = vld [vmem:[#allocation5 + $0x308] sm:$0xff]
    %v178 = vld [vmem:[#allocation5 + $0x310] sm:$0xff]
    %v179 = vld [vmem:[#allocation5 + $0x318] sm:$0xff]
    %v180 = vld [vmem:[#allocation5 + $0x320] sm:$0xff]
    %v181 = vld [vmem:[#allocation5 + $0x328] sm:$0xff]
    %v182 = vld [vmem:[#allocation5 + $0x330] sm:$0xff]
    %v183 = vld [vmem:[#allocation5 + $0x338] sm:$0xff]
    %v184 = vld [vmem:[#allocation5 + $0x340] sm:$0xff]
    %v185 = vld [vmem:[#allocation5 + $0x348] sm:$0xff]
    %v186 = vld [vmem:[#allocation5 + $0x350] sm:$0xff]
    %v187 = vld [vmem:[#allocation5 + $0x358] sm:$0xff]
    %v188 = vld [vmem:[#allocation5 + $0x360] sm:$0xff]
    %v189 = vld [vmem:[#allocation5 + $0x368] sm:$0xff]
    %v190 = vld [vmem:[#allocation5 + $0x370] sm:$0xff]
    %v191 = vld [vmem:[#allocation5 + $0x378] sm:$0xff]
    %v192 = vld [vmem:[#allocation5 + $0x380] sm:$0xff]
    %v193 = vld [vmem:[#allocation5 + $0x388] sm:$0xff]
    %v194 = vld [vmem:[#allocation5 + $0x390] sm:$0xff]
    %v195 = vld [vmem:[#allocation5 + $0x398] sm:$0xff]
    %v196 = vld [vmem:[#allocation5 + $0x3a0] sm:$0xff]
    %v197 = vld [vmem:[#allocation5 + $0x3a8] sm:$0xff]
    %v198 = vld [vmem:[#allocation5 + $0x3b0] sm:$0xff]
    %v199 = vld [vmem:[#allocation5 + $0x3b8] sm:$0xff]
    %v200 = vld [vmem:[#allocation5 + $0x3c0] sm:$0xff]
    %v201 = vld [vmem:[#allocation5 + $0x3c8] sm:$0xff]
    %v202 = vld [vmem:[#allocation5 + $0x3d0] sm:$0xff]
    %v203 = vld [vmem:[#allocation5 + $0x3d8] sm:$0xff]
    %v204 = vld [vmem:[#allocation5 + $0x3e0] sm:$0xff]
    %v205 = vld [vmem:[#allocation5 + $0x3e8] sm:$0xff]
    %v206 = vld [vmem:[#allocation5 + $0x3f0] sm:$0xff]
    %v207 = vld [vmem:[#allocation5 + $0x3f8] sm:$0xff]
    %v208 = vld [vmem:[#allocation5 + $0x400] sm:$0xff]
    %v209 = vld [vmem:[#allocation5 + $0x408] sm:$0xff]
    %v210 = vld [vmem:[#allocation5 + $0x410] sm:$0xff]
    %v211 = vld [vmem:[#allocation5 + $0x418] sm:$0xff]
    %v212 = vld [vmem:[#allocation5 + $0x420] sm:$0xff]
    %v213 = vld [vmem:[#allocation5 + $0x428] sm:$0xff]
    %v214 = vld [vmem:[#allocation5 + $0x430] sm:$0xff]
    %v215 = vld [vmem:[#allocation5 + $0x438] sm:$0xff]
    %v216 = vld [vmem:[#allocation5 + $0x440] sm:$0xff]
    %v217 = vld [vmem:[#allocation5 + $0x448] sm:$0xff]
    %v218 = vld [vmem:[#allocation5 + $0x450] sm:$0xff]
    %v219 = vld [vmem:[#allocation5 + $0x458] sm:$0xff]
    %v220 = vld [vmem:[#allocation5 + $0x460] sm:$0xff]
    %v221 = vld [vmem:[#allocation5 + $0x468] sm:$0xff]
    %v222 = vld [vmem:[#allocation5 + $0x470] sm:$0xff]
    %v223 = vld [vmem:[#allocation5 + $0x478] sm:$0xff]
    %v224 = vld [vmem:[#allocation5 + $0x480] sm:$0xff]
    %v225 = vld [vmem:[#allocation5 + $0x488] sm:$0xff]
    %v226 = vld [vmem:[#allocation5 + $0x490] sm:$0xff]
    %v227 = vld [vmem:[#allocation5 + $0x498] sm:$0xff]
    %v228 = vld [vmem:[#allocation5 + $0x4a0] sm:$0xff]
    %v229 = vld [vmem:[#allocation5 + $0x4a8] sm:$0xff]
    %v230 = vld [vmem:[#allocation5 + $0x4b0] sm:$0xff]
    %v231 = vld [vmem:[#allocation5 + $0x4b8] sm:$0xff]
    %v232 = vld [vmem:[#allocation5 + $0x4c0] sm:$0xff]
    %v233 = vld [vmem:[#allocation5 + $0x4c8] sm:$0xff]
    %v234 = vld [vmem:[#allocation5 + $0x4d0] sm:$0xff]
    %v235 = vld [vmem:[#allocation5 + $0x4d8] sm:$0xff]
    %v236 = vld [vmem:[#allocation5 + $0x4e0] sm:$0xff]
    %v237 = vld [vmem:[#allocation5 + $0x4e8] sm:$0xff]
    %v238 = vld [vmem:[#allocation5 + $0x4f0] sm:$0xff]
    %v239 = vld [vmem:[#allocation5 + $0x4f8] sm:$0xff]
    %v240 = vld [vmem:[#allocation5 + $0x500] sm:$0xff]
    %v241 = vld [vmem:[#allocation5 + $0x508] sm:$0xff]
    %v242 = vld [vmem:[#allocation5 + $0x510] sm:$0xff]
    %v243 = vld [vmem:[#allocation5 + $0x518] sm:$0xff]
    %v244 = vld [vmem:[#allocation5 + $0x520] sm:$0xff]
    %v245 = vld [vmem:[#allocation5 + $0x528] sm:$0xff]
    %v246 = vld [vmem:[#allocation5 + $0x530] sm:$0xff]
    %v247 = vld [vmem:[#allocation5 + $0x538] sm:$0xff]
    %v248 = vld [vmem:[#allocation5 + $0x540] sm:$0xff]
    %v249 = vld [vmem:[#allocation5 + $0x548] sm:$0xff]
    %v250 = vld [vmem:[#allocation5 + $0x550] sm:$0xff]
    %v251 = vld [vmem:[#allocation5 + $0x558] sm:$0xff]
    %v252 = vld [vmem:[#allocation5 + $0x560] sm:$0xff]
    %v253 = vld [vmem:[#allocation5 + $0x568] sm:$0xff]
    %v254 = vld [vmem:[#allocation5 + $0x570] sm:$0xff]
    %v255 = vld [vmem:[#allocation5 + $0x578] sm:$0xff]
    %v256 = vld [vmem:[#allocation5 + $0x580] sm:$0xff]
    %v257 = vld [vmem:[#allocation5 + $0x588] sm:$0xff]
    %v258 = vld [vmem:[#allocation5 + $0x590] sm:$0xff]
    %v259 = vld [vmem:[#allocation5 + $0x598] sm:$0xff]
    %v260 = vld [vmem:[#allocation5 + $0x5a0] sm:$0xff]
    %v261 = vld [vmem:[#allocation5 + $0x5a8] sm:$0xff]
    %v262 = vld [vmem:[#allocation5 + $0x5b0] sm:$0xff]
    %v263 = vld [vmem:[#allocation5 + $0x5b8] sm:$0xff]
    %v264 = vld [vmem:[#allocation5 + $0x5c0] sm:$0xff]
    %v265 = vld [vmem:[#allocation5 + $0x5c8] sm:$0xff]
    %v266 = vld [vmem:[#allocation5 + $0x5d0] sm:$0xff]
    %v267 = vld [vmem:[#allocation5 + $0x5d8] sm:$0xff]
    %v268 = vld [vmem:[#allocation5 + $0x5e0] sm:$0xff]
    %v269 = vld [vmem:[#allocation5 + $0x5e8] sm:$0xff]
    %v270 = vld [vmem:[#allocation5 + $0x5f0] sm:$0xff]
    %v271 = vld [vmem:[#allocation5 + $0x5f8] sm:$0xff]
    %v272 = vld [vmem:[#allocation5 + $0x600] sm:$0xff]
    %v273 = vld [vmem:[#allocation5 + $0x608] sm:$0xff]
    %v274 = vld [vmem:[#allocation5 + $0x610] sm:$0xff]
    %v275 = vld [vmem:[#allocation5 + $0x618] sm:$0xff]
    %v276 = vld [vmem:[#allocation5 + $0x620] sm:$0xff]
    %v277 = vld [vmem:[#allocation5 + $0x628] sm:$0xff]
    %v278 = vld [vmem:[#allocation5 + $0x630] sm:$0xff]
    %v279 = vld [vmem:[#allocation5 + $0x638] sm:$0xff]
    %v280 = vld [vmem:[#allocation5 + $0x640] sm:$0xff]
    %v281 = vld [vmem:[#allocation5 + $0x648] sm:$0xff]
    %v282 = vld [vmem:[#allocation5 + $0x650] sm:$0xff]
    %v283 = vld [vmem:[#allocation5 + $0x658] sm:$0xff]
    %v284 = vld [vmem:[#allocation5 + $0x660] sm:$0xff]
    %v285 = vld [vmem:[#allocation5 + $0x668] sm:$0xff]
    %v286 = vld [vmem:[#allocation5 + $0x670] sm:$0xff]
    %v287 = vld [vmem:[#allocation5 + $0x678] sm:$0xff]
    %v288 = vld [vmem:[#allocation5 + $0x680] sm:$0xff]
    %v289 = vld [vmem:[#allocation5 + $0x688] sm:$0xff]
    %v290 = vld [vmem:[#allocation5 + $0x690] sm:$0xff]
    %v291 = vld [vmem:[#allocation5 + $0x698] sm:$0xff]
    %v292 = vld [vmem:[#allocation5 + $0x6a0] sm:$0xff]
    %v293 = vld [vmem:[#allocation5 + $0x6a8] sm:$0xff]
    %v294 = vld [vmem:[#allocation5 + $0x6b0] sm:$0xff]
    %v295 = vld [vmem:[#allocation5 + $0x6b8] sm:$0xff]
    %v296 = vld [vmem:[#allocation5 + $0x6c0] sm:$0xff]
    %v297 = vld [vmem:[#allocation5 + $0x6c8] sm:$0xff]
    %v298 = vld [vmem:[#allocation5 + $0x6d0] sm:$0xff]
    %v299 = vld [vmem:[#allocation5 + $0x6d8] sm:$0xff]
    %v300 = vld [vmem:[#allocation5 + $0x6e0] sm:$0xff]
    %v301 = vld [vmem:[#allocation5 + $0x6e8] sm:$0xff]
    %v302 = vld [vmem:[#allocation5 + $0x6f0] sm:$0xff]
    %v303 = vld [vmem:[#allocation5 + $0x6f8] sm:$0xff]
    %v304 = vld [vmem:[#allocation5 + $0x700] sm:$0xff]
    %v305 = vld [vmem:[#allocation5 + $0x708] sm:$0xff]
    %v306 = vld [vmem:[#allocation5 + $0x710] sm:$0xff]
    %v307 = vld [vmem:[#allocation5 + $0x718] sm:$0xff]
    %v308 = vld [vmem:[#allocation5 + $0x720] sm:$0xff]
    %v309 = vld [vmem:[#allocation5 + $0x728] sm:$0xff]
    %v310 = vld [vmem:[#allocation5 + $0x730] sm:$0xff]
    %v311 = vld [vmem:[#allocation5 + $0x738] sm:$0xff]
    %v312 = vld [vmem:[#allocation5 + $0x740] sm:$0xff]
    %v313 = vld [vmem:[#allocation5 + $0x748] sm:$0xff]
    %v314 = vld [vmem:[#allocation5 + $0x750] sm:$0xff]
    %v315 = vld [vmem:[#allocation5 + $0x758] sm:$0xff]
    %v316 = vld [vmem:[#allocation5 + $0x760] sm:$0xff]
    %v317 = vld [vmem:[#allocation5 + $0x768] sm:$0xff]
    %v318 = vld [vmem:[#allocation5 + $0x770] sm:$0xff]
    %v319 = vld [vmem:[#allocation5 + $0x778] sm:$0xff]
    %v320 = vld [vmem:[#allocation5 + $0x780] sm:$0xff]
    %v321 = vld [vmem:[#allocation5 + $0x788] sm:$0xff]
    %v322 = vld [vmem:[#allocation5 + $0x790] sm:$0xff]
    %v323 = vld [vmem:[#allocation5 + $0x798] sm:$0xff]
    %v324 = vld [vmem:[#allocation5 + $0x7a0] sm:$0xff]
    %v325 = vld [vmem:[#allocation5 + $0x7a8] sm:$0xff]
    %v326 = vld [vmem:[#allocation5 + $0x7b0] sm:$0xff]
    %v327 = vld [vmem:[#allocation5 + $0x7b8] sm:$0xff]
    %v328 = vld [vmem:[#allocation5 + $0x7c0] sm:$0xff]
    %v329 = vld [vmem:[#allocation5 + $0x7c8] sm:$0xff]
    %v330 = vld [vmem:[#allocation5 + $0x7d0] sm:$0xff]
    %v331 = vld [vmem:[#allocation5 + $0x7d8] sm:$0xff]
    %v332 = vld [vmem:[#allocation5 + $0x7e0] sm:$0xff]
    %v333 = vld [vmem:[#allocation5 + $0x7e8] sm:$0xff]
    %v334 = vld [vmem:[#allocation5 + $0x7f0] sm:$0xff]
    %v335 = vld [vmem:[#allocation5 + $0x7f8] sm:$0xff]
    %v336 = vld [vmem:[#allocation7] sm:$0xff]
    %v337 = vld [vmem:[#allocation8] sm:$0xff]
    %v338 = vld [vmem:[#allocation8 + $0x8] sm:$0xff]
    %v339 = vld [vmem:[#allocation8 + $0x10] sm:$0xff]
    %v340 = vld [vmem:[#allocation8 + $0x18] sm:$0xff]
    %v341 = vld [vmem:[#allocation8 + $0x20] sm:$0xff]
    %v342 = vld [vmem:[#allocation8 + $0x28] sm:$0xff]
    %v343 = vld [vmem:[#allocation8 + $0x30] sm:$0xff]
    %v344 = vld [vmem:[#allocation8 + $0x38] sm:$0xff]
    %v345 = vld [vmem:[#allocation8 + $0x40] sm:$0xff]
    %v346 = vld [vmem:[#allocation8 + $0x48] sm:$0xff]
    %v347 = vld [vmem:[#allocation8 + $0x50] sm:$0xff]
    %v348 = vld [vmem:[#allocation8 + $0x58] sm:$0xff]
    %v349 = vld [vmem:[#allocation8 + $0x60] sm:$0xff]
    %v350 = vld [vmem:[#allocation8 + $0x68] sm:$0xff]
    %v351 = vld [vmem:[#allocation8 + $0x70] sm:$0xff]
    %v352 = vld [vmem:[#allocation8 + $0x78] sm:$0xff]
    %v353 = vld [vmem:[#allocation8 + $0x80] sm:$0xff]
    %v354 = vld [vmem:[#allocation8 + $0x88] sm:$0xff]
    %v355 = vld [vmem:[#allocation8 + $0x90] sm:$0xff]
    %v356 = vld [vmem:[#allocation8 + $0x98] sm:$0xff]
    %v357 = vld [vmem:[#allocation8 + $0xa0] sm:$0xff]
    %v358 = vld [vmem:[#allocation8 + $0xa8] sm:$0xff]
    %v359 = vld [vmem:[#allocation8 + $0xb0] sm:$0xff]
    %v360 = vld [vmem:[#allocation8 + $0xb8] sm:$0xff]
    %v361 = vld [vmem:[#allocation8 + $0xc0] sm:$0xff]
    %v362 = vld [vmem:[#allocation8 + $0xc8] sm:$0xff]
    %v363 = vld [vmem:[#allocation8 + $0xd0] sm:$0xff]
    %v364 = vld [vmem:[#allocation8 + $0xd8] sm:$0xff]
    %v365 = vld [vmem:[#allocation8 + $0xe0] sm:$0xff]
    %v366 = vld [vmem:[#allocation8 + $0xe8] sm:$0xff]
    %v367 = vld [vmem:[#allocation8 + $0xf0] sm:$0xff]
    %v368 = vld [vmem:[#allocation8 + $0xf8] sm:$0xff]
    %v369 = vld [vmem:[#allocation8 + $0x100] sm:$0xff]
    %v370 = vld [vmem:[#allocation8 + $0x108] sm:$0xff]
    %v371 = vld [vmem:[#allocation8 + $0x110] sm:$0xff]
    %v372 = vld [vmem:[#allocation8 + $0x118] sm:$0xff]
    %v373 = vld [vmem:[#allocation8 + $0x120] sm:$0xff]
    %v374 = vld [vmem:[#allocation8 + $0x128] sm:$0xff]
    %v375 = vld [vmem:[#allocation8 + $0x130] sm:$0xff]
    %v376 = vld [vmem:[#allocation8 + $0x138] sm:$0xff]
    %v377 = vld [vmem:[#allocation8 + $0x140] sm:$0xff]
    %v378 = vld [vmem:[#allocation8 + $0x148] sm:$0xff]
    %v379 = vld [vmem:[#allocation8 + $0x150] sm:$0xff]
    %v380 = vld [vmem:[#allocation8 + $0x158] sm:$0xff]
    %v381 = vld [vmem:[#allocation8 + $0x160] sm:$0xff]
    %v382 = vld [vmem:[#allocation8 + $0x168] sm:$0xff]
    %v383 = vld [vmem:[#allocation8 + $0x170] sm:$0xff]
    %v384 = vld [vmem:[#allocation8 + $0x178] sm:$0xff]
    %v385 = vld [vmem:[#allocation8 + $0x180] sm:$0xff]
    %v386 = vld [vmem:[#allocation8 + $0x188] sm:$0xff]
    %v387 = vld [vmem:[#allocation8 + $0x190] sm:$0xff]
    %v388 = vld [vmem:[#allocation8 + $0x198] sm:$0xff]
    %v389 = vld [vmem:[#allocation8 + $0x1a0] sm:$0xff]
    %v390 = vld [vmem:[#allocation8 + $0x1a8] sm:$0xff]
    %v391 = vld [vmem:[#allocation8 + $0x1b0] sm:$0xff]
    %v392 = vld [vmem:[#allocation8 + $0x1b8] sm:$0xff]
    %v393 = vld [vmem:[#allocation8 + $0x1c0] sm:$0xff]
    %v394 = vld [vmem:[#allocation8 + $0x1c8] sm:$0xff]
    %v395 = vld [vmem:[#allocation8 + $0x1d0] sm:$0xff]
    %v396 = vld [vmem:[#allocation8 + $0x1d8] sm:$0xff]
    %v397 = vld [vmem:[#allocation8 + $0x1e0] sm:$0xff]
    %v398 = vld [vmem:[#allocation8 + $0x1e8] sm:$0xff]
    %v399 = vld [vmem:[#allocation8 + $0x1f0] sm:$0xff]
    %v400 = vld [vmem:[#allocation8 + $0x1f8] sm:$0xff]
    %v401 = vld [vmem:[#allocation8 + $0x200] sm:$0xff]
    %v402 = vld [vmem:[#allocation8 + $0x208] sm:$0xff]
    %v403 = vld [vmem:[#allocation8 + $0x210] sm:$0xff]
    %v404 = vld [vmem:[#allocation8 + $0x218] sm:$0xff]
    %v405 = vld [vmem:[#allocation8 + $0x220] sm:$0xff]
    %v406 = vld [vmem:[#allocation8 + $0x228] sm:$0xff]
    %v407 = vld [vmem:[#allocation8 + $0x230] sm:$0xff]
    %v408 = vld [vmem:[#allocation8 + $0x238] sm:$0xff]
    %v409 = vld [vmem:[#allocation8 + $0x240] sm:$0xff]
    %v410 = vld [vmem:[#allocation8 + $0x248] sm:$0xff]
    %v411 = vld [vmem:[#allocation8 + $0x250] sm:$0xff]
    %v412 = vld [vmem:[#allocation8 + $0x258] sm:$0xff]
    %v413 = vld [vmem:[#allocation8 + $0x260] sm:$0xff]
    %v414 = vld [vmem:[#allocation8 + $0x268] sm:$0xff]
    %v415 = vld [vmem:[#allocation8 + $0x270] sm:$0xff]
    %v416 = vld [vmem:[#allocation8 + $0x278] sm:$0xff]
    %v417 = vld [vmem:[#allocation8 + $0x280] sm:$0xff]
    %v418 = vld [vmem:[#allocation8 + $0x288] sm:$0xff]
    %v419 = vld [vmem:[#allocation8 + $0x290] sm:$0xff]
    %v420 = vld [vmem:[#allocation8 + $0x298] sm:$0xff]
    %v421 = vld [vmem:[#allocation8 + $0x2a0] sm:$0xff]
    %v422 = vld [vmem:[#allocation8 + $0x2a8] sm:$0xff]
    %v423 = vld [vmem:[#allocation8 + $0x2b0] sm:$0xff]
    %v424 = vld [vmem:[#allocation8 + $0x2b8] sm:$0xff]
    %v425 = vld [vmem:[#allocation8 + $0x2c0] sm:$0xff]
    %v426 = vld [vmem:[#allocation8 + $0x2c8] sm:$0xff]
    %v427 = vld [vmem:[#allocation8 + $0x2d0] sm:$0xff]
    %v428 = vld [vmem:[#allocation8 + $0x2d8] sm:$0xff]
    %v429 = vld [vmem:[#allocation8 + $0x2e0] sm:$0xff]
    %v430 = vld [vmem:[#allocation8 + $0x2e8] sm:$0xff]
    %v431 = vld [vmem:[#allocation8 + $0x2f0] sm:$0xff]
    %v432 = vld [vmem:[#allocation8 + $0x2f8] sm:$0xff]
    %v433 = vld [vmem:[#allocation8 + $0x300] sm:$0xff]
    %v434 = vld [vmem:[#allocation8 + $0x308] sm:$0xff]
    %v435 = vld [vmem:[#allocation8 + $0x310] sm:$0xff]
    %v436 = vld [vmem:[#allocation8 + $0x318] sm:$0xff]
    %v437 = vld [vmem:[#allocation8 + $0x320] sm:$0xff]
    %v438 = vld [vmem:[#allocation8 + $0x328] sm:$0xff]
    %v439 = vld [vmem:[#allocation8 + $0x330] sm:$0xff]
    %v440 = vld [vmem:[#allocation8 + $0x338] sm:$0xff]
    %v441 = vld [vmem:[#allocation8 + $0x340] sm:$0xff]
    %v442 = vld [vmem:[#allocation8 + $0x348] sm:$0xff]
    %v443 = vld [vmem:[#allocation8 + $0x350] sm:$0xff]
    %v444 = vld [vmem:[#allocation8 + $0x358] sm:$0xff]
    %v445 = vld [vmem:[#allocation8 + $0x360] sm:$0xff]
    %v446 = vld [vmem:[#allocation8 + $0x368] sm:$0xff]
    %v447 = vld [vmem:[#allocation8 + $0x370] sm:$0xff]
    %v448 = vld [vmem:[#allocation8 + $0x378] sm:$0xff]
    %v449 = vld [vmem:[#allocation8 + $0x380] sm:$0xff]
    %v450 = vld [vmem:[#allocation8 + $0x388] sm:$0xff]
    %v451 = vld [vmem:[#allocation8 + $0x390] sm:$0xff]
    %v452 = vld [vmem:[#allocation8 + $0x398] sm:$0xff]
    %v453 = vld [vmem:[#allocation8 + $0x3a0] sm:$0xff]
    %v454 = vld [vmem:[#allocation8 + $0x3a8] sm:$0xff]
    %v455 = vld [vmem:[#allocation8 + $0x3b0] sm:$0xff]
    %v456 = vld [vmem:[#allocation8 + $0x3b8] sm:$0xff]
    %v457 = vld [vmem:[#allocation8 + $0x3c0] sm:$0xff]
    %v458 = vld [vmem:[#allocation8 + $0x3c8] sm:$0xff]
    %v459 = vld [vmem:[#allocation8 + $0x3d0] sm:$0xff]
    %v460 = vld [vmem:[#allocation8 + $0x3d8] sm:$0xff]
    %v461 = vld [vmem:[#allocation8 + $0x3e0] sm:$0xff]
    %v462 = vld [vmem:[#allocation8 + $0x3e8] sm:$0xff]
    %v463 = vld [vmem:[#allocation8 + $0x3f0] sm:$0xff]
    %v464 = vld [vmem:[#allocation8 + $0x3f8] sm:$0xff]
    %v465 = vld [vmem:[#allocation8 + $0x400] sm:$0xff]
    %v466 = vld [vmem:[#allocation8 + $0x408] sm:$0xff]
    %v467 = vld [vmem:[#allocation8 + $0x410] sm:$0xff]
    %v468 = vld [vmem:[#allocation8 + $0x418] sm:$0xff]
    %v469 = vld [vmem:[#allocation8 + $0x420] sm:$0xff]
    %v470 = vld [vmem:[#allocation8 + $0x428] sm:$0xff]
    %v471 = vld [vmem:[#allocation8 + $0x430] sm:$0xff]
    %v472 = vld [vmem:[#allocation8 + $0x438] sm:$0xff]
    %v473 = vld [vmem:[#allocation8 + $0x440] sm:$0xff]
    %v474 = vld [vmem:[#allocation8 + $0x448] sm:$0xff]
    %v475 = vld [vmem:[#allocation8 + $0x450] sm:$0xff]
    %v476 = vld [vmem:[#allocation8 + $0x458] sm:$0xff]
    %v477 = vld [vmem:[#allocation8 + $0x460] sm:$0xff]
    %v478 = vld [vmem:[#allocation8 + $0x468] sm:$0xff]
    %v479 = vld [vmem:[#allocation8 + $0x470] sm:$0xff]
    %v480 = vld [vmem:[#allocation8 + $0x478] sm:$0xff]
    %v481 = vld [vmem:[#allocation8 + $0x480] sm:$0xff]
    %v482 = vld [vmem:[#allocation8 + $0x488] sm:$0xff]
    %v483 = vld [vmem:[#allocation8 + $0x490] sm:$0xff]
    %v484 = vld [vmem:[#allocation8 + $0x498] sm:$0xff]
    %v485 = vld [vmem:[#allocation8 + $0x4a0] sm:$0xff]
    %v486 = vld [vmem:[#allocation8 + $0x4a8] sm:$0xff]
    %v487 = vld [vmem:[#allocation8 + $0x4b0] sm:$0xff]
    %v488 = vld [vmem:[#allocation8 + $0x4b8] sm:$0xff]
    %v489 = vld [vmem:[#allocation8 + $0x4c0] sm:$0xff]
    %v490 = vld [vmem:[#allocation8 + $0x4c8] sm:$0xff]
    %v491 = vld [vmem:[#allocation8 + $0x4d0] sm:$0xff]
    %v492 = vld [vmem:[#allocation8 + $0x4d8] sm:$0xff]
    %v493 = vld [vmem:[#allocation8 + $0x4e0] sm:$0xff]
    %v494 = vld [vmem:[#allocation8 + $0x4e8] sm:$0xff]
    %v495 = vld [vmem:[#allocation8 + $0x4f0] sm:$0xff]
    %v496 = vld [vmem:[#allocation8 + $0x4f8] sm:$0xff]
    %v497 = vld [vmem:[#allocation8 + $0x500] sm:$0xff]
    %v498 = vld [vmem:[#allocation8 + $0x508] sm:$0xff]
    %v499 = vld [vmem:[#allocation8 + $0x510] sm:$0xff]
    %v500 = vld [vmem:[#allocation8 + $0x518] sm:$0xff]
    %v501 = vld [vmem:[#allocation8 + $0x520] sm:$0xff]
    %v502 = vld [vmem:[#allocation8 + $0x528] sm:$0xff]
    %v503 = vld [vmem:[#allocation8 + $0x530] sm:$0xff]
    %v504 = vld [vmem:[#allocation8 + $0x538] sm:$0xff]
    %v505 = vld [vmem:[#allocation8 + $0x540] sm:$0xff]
    %v506 = vld [vmem:[#allocation8 + $0x548] sm:$0xff]
    %v507 = vld [vmem:[#allocation8 + $0x550] sm:$0xff]
    %v508 = vld [vmem:[#allocation8 + $0x558] sm:$0xff]
    %v509 = vld [vmem:[#allocation8 + $0x560] sm:$0xff]
    %v510 = vld [vmem:[#allocation8 + $0x568] sm:$0xff]
    %v511 = vld [vmem:[#allocation8 + $0x570] sm:$0xff]
    %v512 = vld [vmem:[#allocation8 + $0x578] sm:$0xff]
    %v513 = vld [vmem:[#allocation8 + $0x580] sm:$0xff]
    %v514 = vld [vmem:[#allocation8 + $0x588] sm:$0xff]
    %v515 = vld [vmem:[#allocation8 + $0x590] sm:$0xff]
    %v516 = vld [vmem:[#allocation8 + $0x598] sm:$0xff]
    %v517 = vld [vmem:[#allocation8 + $0x5a0] sm:$0xff]
    %v518 = vld [vmem:[#allocation8 + $0x5a8] sm:$0xff]
    %v519 = vld [vmem:[#allocation8 + $0x5b0] sm:$0xff]
    %v520 = vld [vmem:[#allocation8 + $0x5b8] sm:$0xff]
    %v521 = vld [vmem:[#allocation8 + $0x5c0] sm:$0xff]
    %v522 = vld [vmem:[#allocation8 + $0x5c8] sm:$0xff]
    %v523 = vld [vmem:[#allocation8 + $0x5d0] sm:$0xff]
    %v524 = vld [vmem:[#allocation8 + $0x5d8] sm:$0xff]
    %v525 = vld [vmem:[#allocation8 + $0x5e0] sm:$0xff]
    %v526 = vld [vmem:[#allocation8 + $0x5e8] sm:$0xff]
    %v527 = vld [vmem:[#allocation8 + $0x5f0] sm:$0xff]
    %v528 = vld [vmem:[#allocation8 + $0x5f8] sm:$0xff]
    %v529 = vld [vmem:[#allocation8 + $0x600] sm:$0xff]
    %v530 = vld [vmem:[#allocation8 + $0x608] sm:$0xff]
    %v531 = vld [vmem:[#allocation8 + $0x610] sm:$0xff]
    %v532 = vld [vmem:[#allocation8 + $0x618] sm:$0xff]
    %v533 = vld [vmem:[#allocation8 + $0x620] sm:$0xff]
    %v534 = vld [vmem:[#allocation8 + $0x628] sm:$0xff]
    %v535 = vld [vmem:[#allocation8 + $0x630] sm:$0xff]
    %v536 = vld [vmem:[#allocation8 + $0x638] sm:$0xff]
    %v537 = vld [vmem:[#allocation8 + $0x640] sm:$0xff]
    %v538 = vld [vmem:[#allocation8 + $0x648] sm:$0xff]
    %v539 = vld [vmem:[#allocation8 + $0x650] sm:$0xff]
    %v540 = vld [vmem:[#allocation8 + $0x658] sm:$0xff]
    %v541 = vld [vmem:[#allocation8 + $0x660] sm:$0xff]
    %v542 = vld [vmem:[#allocation8 + $0x668] sm:$0xff]
    %v543 = vld [vmem:[#allocation8 + $0x670] sm:$0xff]
    %v544 = vld [vmem:[#allocation8 + $0x678] sm:$0xff]
    %v545 = vld [vmem:[#allocation8 + $0x680] sm:$0xff]
    %v546 = vld [vmem:[#allocation8 + $0x688] sm:$0xff]
    %v547 = vld [vmem:[#allocation8 + $0x690] sm:$0xff]
    %v548 = vld [vmem:[#allocation8 + $0x698] sm:$0xff]
    %v549 = vld [vmem:[#allocation8 + $0x6a0] sm:$0xff]
    %v550 = vld [vmem:[#allocation8 + $0x6a8] sm:$0xff]
    %v551 = vld [vmem:[#allocation8 + $0x6b0] sm:$0xff]
    %v552 = vld [vmem:[#allocation8 + $0x6b8] sm:$0xff]
    %v553 = vld [vmem:[#allocation8 + $0x6c0] sm:$0xff]
    %v554 = vld [vmem:[#allocation8 + $0x6c8] sm:$0xff]
    %v555 = vld [vmem:[#allocation8 + $0x6d0] sm:$0xff]
    %v556 = vld [vmem:[#allocation8 + $0x6d8] sm:$0xff]
    %v557 = vld [vmem:[#allocation8 + $0x6e0] sm:$0xff]
    %v558 = vld [vmem:[#allocation8 + $0x6e8] sm:$0xff]
    %v559 = vld [vmem:[#allocation8 + $0x6f0] sm:$0xff]
    %v560 = vld [vmem:[#allocation8 + $0x6f8] sm:$0xff]
    %v561 = vld [vmem:[#allocation8 + $0x700] sm:$0xff]
    %v562 = vld [vmem:[#allocation8 + $0x708] sm:$0xff]
    %v563 = vld [vmem:[#allocation8 + $0x710] sm:$0xff]
    %v564 = vld [vmem:[#allocation8 + $0x718] sm:$0xff]
    %v565 = vld [vmem:[#allocation8 + $0x720] sm:$0xff]
    %v566 = vld [vmem:[#allocation8 + $0x728] sm:$0xff]
    %v567 = vld [vmem:[#allocation8 + $0x730] sm:$0xff]
    %v568 = vld [vmem:[#allocation8 + $0x738] sm:$0xff]
    %v569 = vld [vmem:[#allocation8 + $0x740] sm:$0xff]
    %v570 = vld [vmem:[#allocation8 + $0x748] sm:$0xff]
    %v571 = vld [vmem:[#allocation8 + $0x750] sm:$0xff]
    %v572 = vld [vmem:[#allocation8 + $0x758] sm:$0xff]
    %v573 = vld [vmem:[#allocation8 + $0x760] sm:$0xff]
    %v574 = vld [vmem:[#allocation8 + $0x768] sm:$0xff]
    %v575 = vld [vmem:[#allocation8 + $0x770] sm:$0xff]
    %v576 = vld [vmem:[#allocation8 + $0x778] sm:$0xff]
    %v577 = vld [vmem:[#allocation8 + $0x780] sm:$0xff]
    %v578 = vld [vmem:[#allocation8 + $0x788] sm:$0xff]
    %v579 = vld [vmem:[#allocation8 + $0x790] sm:$0xff]
    %v580 = vld [vmem:[#allocation8 + $0x798] sm:$0xff]
    %v581 = vld [vmem:[#allocation8 + $0x7a0] sm:$0xff]
    %v582 = vld [vmem:[#allocation8 + $0x7a8] sm:$0xff]
    %v583 = vld [vmem:[#allocation8 + $0x7b0] sm:$0xff]
    %v584 = vld [vmem:[#allocation8 + $0x7b8] sm:$0xff]
    %v585 = vld [vmem:[#allocation8 + $0x7c0] sm:$0xff]
    %v586 = vld [vmem:[#allocation8 + $0x7c8] sm:$0xff]
    %v587 = vld [vmem:[#allocation8 + $0x7d0] sm:$0xff]
    %v588 = vld [vmem:[#allocation8 + $0x7d8] sm:$0xff]
    %v589 = vld [vmem:[#allocation8 + $0x7e0] sm:$0xff]
    %v590 = vld [vmem:[#allocation8 + $0x7e8] sm:$0xff]
    %v591 = vld [vmem:[#allocation8 + $0x7f0] sm:$0xff]
    %v592 = vld [vmem:[#allocation8 + $0x7f8] sm:$0xff]
    %v593 = vld [vmem:[%s4] sm:$0xf]
    %v595 = vlaneseq
    %v596 = vshrl.u32 %v595, 7
    %v597 = vsub.s32 0, %v596
    %v598 = vrot.slane %v336, %v597
    %v599 = vlaneseq
    %v600 = vshrl.u32 %v599, 7
    %v601 = vsub.s32 1, %v600
    %v602 = vrot.slane %v336, %v601
    %v603 = vlaneseq
    %v604 = vshrl.u32 %v603, 7
    %v605 = vsub.s32 2, %v604
    %v606 = vrot.slane %v336, %v605
    %v607 = vlaneseq
    %v608 = vshrl.u32 %v607, 7
    %v609 = vsub.s32 3, %v608
    %v610 = vrot.slane %v336, %v609
    %v611 = vlaneseq
    %v612 = vshrl.u32 %v611, 7
    %v613 = vsub.s32 4, %v612
    %v614 = vrot.slane %v336, %v613
    %v615 = vlaneseq
    %v616 = vshrl.u32 %v615, 7
    %v617 = vsub.s32 5, %v616
    %v618 = vrot.slane %v336, %v617
    %v619 = vlaneseq
    %v620 = vshrl.u32 %v619, 7
    %v621 = vsub.s32 6, %v620
    %v622 = vrot.slane %v336, %v621
    %v623 = vlaneseq
    %v624 = vshrl.u32 %v623, 7
    %v625 = vsub.s32 7, %v624
    %v626 = vrot.slane %v336, %v625
    %v891 = vunpack.c.l.b16 %v80
    %v892 = vunpack.c.h.b16 %v80
    %v893 = vunpack.c.l.b16 %v81
    %v894 = vunpack.c.h.b16 %v81
    %v895 = vunpack.c.l.b16 %v82
    %v896 = vunpack.c.h.b16 %v82
    %v897 = vunpack.c.l.b16 %v83
    %v898 = vunpack.c.h.b16 %v83
    %v899 = vunpack.c.l.b16 %v84
    %v900 = vunpack.c.h.b16 %v84
    %v901 = vunpack.c.l.b16 %v85
    %v902 = vunpack.c.h.b16 %v85
    %v903 = vunpack.c.l.b16 %v86
    %v904 = vunpack.c.h.b16 %v86
    %v905 = vunpack.c.l.b16 %v87
    %v906 = vunpack.c.h.b16 %v87
    %v907 = vunpack.c.l.b16 %v88
    %v908 = vunpack.c.h.b16 %v88
    %v909 = vunpack.c.l.b16 %v89
    %v910 = vunpack.c.h.b16 %v89
    %v911 = vunpack.c.l.b16 %v90
    %v912 = vunpack.c.h.b16 %v90
    %v913 = vunpack.c.l.b16 %v91
    %v914 = vunpack.c.h.b16 %v91
    %v915 = vunpack.c.l.b16 %v92
    %v916 = vunpack.c.h.b16 %v92
    %v917 = vunpack.c.l.b16 %v93
    %v918 = vunpack.c.h.b16 %v93
    %v919 = vunpack.c.l.b16 %v94
    %v920 = vunpack.c.h.b16 %v94
    %v921 = vunpack.c.l.b16 %v95
    %v922 = vunpack.c.h.b16 %v95
    %v923 = vunpack.c.l.b16 %v96
    %v924 = vunpack.c.h.b16 %v96
    %v925 = vunpack.c.l.b16 %v97
    %v926 = vunpack.c.h.b16 %v97
    %v927 = vunpack.c.l.b16 %v98
    %v928 = vunpack.c.h.b16 %v98
    %v929 = vunpack.c.l.b16 %v99
    %v930 = vunpack.c.h.b16 %v99
    %v931 = vunpack.c.l.b16 %v100
    %v932 = vunpack.c.h.b16 %v100
    %v933 = vunpack.c.l.b16 %v101
    %v934 = vunpack.c.h.b16 %v101
    %v935 = vunpack.c.l.b16 %v102
    %v936 = vunpack.c.h.b16 %v102
    %v937 = vunpack.c.l.b16 %v103
    %v938 = vunpack.c.h.b16 %v103
    %v939 = vunpack.c.l.b16 %v104
    %v940 = vunpack.c.h.b16 %v104
    %v941 = vunpack.c.l.b16 %v105
    %v942 = vunpack.c.h.b16 %v105
    %v943 = vunpack.c.l.b16 %v106
    %v944 = vunpack.c.h.b16 %v106
    %v945 = vunpack.c.l.b16 %v107
    %v946 = vunpack.c.h.b16 %v107
    %v947 = vunpack.c.l.b16 %v108
    %v948 = vunpack.c.h.b16 %v108
    %v949 = vunpack.c.l.b16 %v109
    %v950 = vunpack.c.h.b16 %v109
    %v951 = vunpack.c.l.b16 %v110
    %v952 = vunpack.c.h.b16 %v110
    %v953 = vunpack.c.l.b16 %v111
    %v954 = vunpack.c.h.b16 %v111
    %v955 = vunpack.c.l.b16 %v112
    %v956 = vunpack.c.h.b16 %v112
    %v957 = vunpack.c.l.b16 %v113
    %v958 = vunpack.c.h.b16 %v113
    %v959 = vunpack.c.l.b16 %v114
    %v960 = vunpack.c.h.b16 %v114
    %v961 = vunpack.c.l.b16 %v115
    %v962 = vunpack.c.h.b16 %v115
    %v963 = vunpack.c.l.b16 %v116
    %v964 = vunpack.c.h.b16 %v116
    %v965 = vunpack.c.l.b16 %v117
    %v966 = vunpack.c.h.b16 %v117
    %v967 = vunpack.c.l.b16 %v118
    %v968 = vunpack.c.h.b16 %v118
    %v969 = vunpack.c.l.b16 %v119
    %v970 = vunpack.c.h.b16 %v119
    %v971 = vunpack.c.l.b16 %v120
    %v972 = vunpack.c.h.b16 %v120
    %v973 = vunpack.c.l.b16 %v121
    %v974 = vunpack.c.h.b16 %v121
    %v975 = vunpack.c.l.b16 %v122
    %v976 = vunpack.c.h.b16 %v122
    %v977 = vunpack.c.l.b16 %v123
    %v978 = vunpack.c.h.b16 %v123
    %v979 = vunpack.c.l.b16 %v124
    %v980 = vunpack.c.h.b16 %v124
    %v981 = vunpack.c.l.b16 %v125
    %v982 = vunpack.c.h.b16 %v125
    %v983 = vunpack.c.l.b16 %v126
    %v984 = vunpack.c.h.b16 %v126
    %v985 = vunpack.c.l.b16 %v127
    %v986 = vunpack.c.h.b16 %v127
    %v987 = vunpack.c.l.b16 %v128
    %v988 = vunpack.c.h.b16 %v128
    %v989 = vunpack.c.l.b16 %v129
    %v990 = vunpack.c.h.b16 %v129
    %v991 = vunpack.c.l.b16 %v130
    %v992 = vunpack.c.h.b16 %v130
    %v993 = vunpack.c.l.b16 %v131
    %v994 = vunpack.c.h.b16 %v131
    %v995 = vunpack.c.l.b16 %v132
    %v996 = vunpack.c.h.b16 %v132
    %v997 = vunpack.c.l.b16 %v133
    %v998 = vunpack.c.h.b16 %v133
    %v999 = vunpack.c.l.b16 %v134
    %v1000 = vunpack.c.h.b16 %v134
    %v1001 = vunpack.c.l.b16 %v135
    %v1002 = vunpack.c.h.b16 %v135
    %v1003 = vunpack.c.l.b16 %v136
    %v1004 = vunpack.c.h.b16 %v136
    %v1005 = vunpack.c.l.b16 %v137
    %v1006 = vunpack.c.h.b16 %v137
    %v1007 = vunpack.c.l.b16 %v138
    %v1008 = vunpack.c.h.b16 %v138
    %v1009 = vunpack.c.l.b16 %v139
    %v1010 = vunpack.c.h.b16 %v139
    %v1011 = vunpack.c.l.b16 %v140
    %v1012 = vunpack.c.h.b16 %v140
    %v1013 = vunpack.c.l.b16 %v141
    %v1014 = vunpack.c.h.b16 %v141
    %v1015 = vunpack.c.l.b16 %v142
    %v1016 = vunpack.c.h.b16 %v142
    %v1017 = vunpack.c.l.b16 %v143
    %v1018 = vunpack.c.h.b16 %v143
    %v1019 = vunpack.c.l.b16 %v144
    %v1020 = vunpack.c.h.b16 %v144
    %v1021 = vunpack.c.l.b16 %v145
    %v1022 = vunpack.c.h.b16 %v145
    %v1023 = vunpack.c.l.b16 %v146
    %v1024 = vunpack.c.h.b16 %v146
    %v1025 = vunpack.c.l.b16 %v147
    %v1026 = vunpack.c.h.b16 %v147
    %v1027 = vunpack.c.l.b16 %v148
    %v1028 = vunpack.c.h.b16 %v148
    %v1029 = vunpack.c.l.b16 %v149
    %v1030 = vunpack.c.h.b16 %v149
    %v1031 = vunpack.c.l.b16 %v150
    %v1032 = vunpack.c.h.b16 %v150
    %v1033 = vunpack.c.l.b16 %v151
    %v1034 = vunpack.c.h.b16 %v151
    %v1035 = vunpack.c.l.b16 %v152
    %v1036 = vunpack.c.h.b16 %v152
    %v1037 = vunpack.c.l.b16 %v153
    %v1038 = vunpack.c.h.b16 %v153
    %v1039 = vunpack.c.l.b16 %v154
    %v1040 = vunpack.c.h.b16 %v154
    %v1041 = vunpack.c.l.b16 %v155
    %v1042 = vunpack.c.h.b16 %v155
    %v1043 = vunpack.c.l.b16 %v156
    %v1044 = vunpack.c.h.b16 %v156
    %v1045 = vunpack.c.l.b16 %v157
    %v1046 = vunpack.c.h.b16 %v157
    %v1047 = vunpack.c.l.b16 %v158
    %v1048 = vunpack.c.h.b16 %v158
    %v1049 = vunpack.c.l.b16 %v159
    %v1050 = vunpack.c.h.b16 %v159
    %v1051 = vunpack.c.l.b16 %v160
    %v1052 = vunpack.c.h.b16 %v160
    %v1053 = vunpack.c.l.b16 %v161
    %v1054 = vunpack.c.h.b16 %v161
    %v1055 = vunpack.c.l.b16 %v162
    %v1056 = vunpack.c.h.b16 %v162
    %v1057 = vunpack.c.l.b16 %v163
    %v1058 = vunpack.c.h.b16 %v163
    %v1059 = vunpack.c.l.b16 %v164
    %v1060 = vunpack.c.h.b16 %v164
    %v1061 = vunpack.c.l.b16 %v165
    %v1062 = vunpack.c.h.b16 %v165
    %v1063 = vunpack.c.l.b16 %v166
    %v1064 = vunpack.c.h.b16 %v166
    %v1065 = vunpack.c.l.b16 %v167
    %v1066 = vunpack.c.h.b16 %v167
    %v1067 = vunpack.c.l.b16 %v168
    %v1068 = vunpack.c.h.b16 %v168
    %v1069 = vunpack.c.l.b16 %v169
    %v1070 = vunpack.c.h.b16 %v169
    %v1071 = vunpack.c.l.b16 %v170
    %v1072 = vunpack.c.h.b16 %v170
    %v1073 = vunpack.c.l.b16 %v171
    %v1074 = vunpack.c.h.b16 %v171
    %v1075 = vunpack.c.l.b16 %v172
    %v1076 = vunpack.c.h.b16 %v172
    %v1077 = vunpack.c.l.b16 %v173
    %v1078 = vunpack.c.h.b16 %v173
    %v1079 = vunpack.c.l.b16 %v174
    %v1080 = vunpack.c.h.b16 %v174
    %v1081 = vunpack.c.l.b16 %v175
    %v1082 = vunpack.c.h.b16 %v175
    %v1083 = vunpack.c.l.b16 %v176
    %v1084 = vunpack.c.h.b16 %v176
    %v1085 = vunpack.c.l.b16 %v177
    %v1086 = vunpack.c.h.b16 %v177
    %v1087 = vunpack.c.l.b16 %v178
    %v1088 = vunpack.c.h.b16 %v178
    %v1089 = vunpack.c.l.b16 %v179
    %v1090 = vunpack.c.h.b16 %v179
    %v1091 = vunpack.c.l.b16 %v180
    %v1092 = vunpack.c.h.b16 %v180
    %v1093 = vunpack.c.l.b16 %v181
    %v1094 = vunpack.c.h.b16 %v181
    %v1095 = vunpack.c.l.b16 %v182
    %v1096 = vunpack.c.h.b16 %v182
    %v1097 = vunpack.c.l.b16 %v183
    %v1098 = vunpack.c.h.b16 %v183
    %v1099 = vunpack.c.l.b16 %v184
    %v1100 = vunpack.c.h.b16 %v184
    %v1101 = vunpack.c.l.b16 %v185
    %v1102 = vunpack.c.h.b16 %v185
    %v1103 = vunpack.c.l.b16 %v186
    %v1104 = vunpack.c.h.b16 %v186
    %v1105 = vunpack.c.l.b16 %v187
    %v1106 = vunpack.c.h.b16 %v187
    %v1107 = vunpack.c.l.b16 %v188
    %v1108 = vunpack.c.h.b16 %v188
    %v1109 = vunpack.c.l.b16 %v189
    %v1110 = vunpack.c.h.b16 %v189
    %v1111 = vunpack.c.l.b16 %v190
    %v1112 = vunpack.c.h.b16 %v190
    %v1113 = vunpack.c.l.b16 %v191
    %v1114 = vunpack.c.h.b16 %v191
    %v1115 = vunpack.c.l.b16 %v192
    %v1116 = vunpack.c.h.b16 %v192
    %v1117 = vunpack.c.l.b16 %v193
    %v1118 = vunpack.c.h.b16 %v193
    %v1119 = vunpack.c.l.b16 %v194
    %v1120 = vunpack.c.h.b16 %v194
    %v1121 = vunpack.c.l.b16 %v195
    %v1122 = vunpack.c.h.b16 %v195
    %v1123 = vunpack.c.l.b16 %v196
    %v1124 = vunpack.c.h.b16 %v196
    %v1125 = vunpack.c.l.b16 %v197
    %v1126 = vunpack.c.h.b16 %v197
    %v1127 = vunpack.c.l.b16 %v198
    %v1128 = vunpack.c.h.b16 %v198
    %v1129 = vunpack.c.l.b16 %v199
    %v1130 = vunpack.c.h.b16 %v199
    %v1131 = vunpack.c.l.b16 %v200
    %v1132 = vunpack.c.h.b16 %v200
    %v1133 = vunpack.c.l.b16 %v201
    %v1134 = vunpack.c.h.b16 %v201
    %v1135 = vunpack.c.l.b16 %v202
    %v1136 = vunpack.c.h.b16 %v202
    %v1137 = vunpack.c.l.b16 %v203
    %v1138 = vunpack.c.h.b16 %v203
    %v1139 = vunpack.c.l.b16 %v204
    %v1140 = vunpack.c.h.b16 %v204
    %v1141 = vunpack.c.l.b16 %v205
    %v1142 = vunpack.c.h.b16 %v205
    %v1143 = vunpack.c.l.b16 %v206
    %v1144 = vunpack.c.h.b16 %v206
    %v1145 = vunpack.c.l.b16 %v207
    %v1146 = vunpack.c.h.b16 %v207
    %v1147 = vunpack.c.l.b16 %v208
    %v1148 = vunpack.c.h.b16 %v208
    %v1149 = vunpack.c.l.b16 %v209
    %v1150 = vunpack.c.h.b16 %v209
    %v1151 = vunpack.c.l.b16 %v210
    %v1152 = vunpack.c.h.b16 %v210
    %v1153 = vunpack.c.l.b16 %v211
    %v1154 = vunpack.c.h.b16 %v211
    %v1155 = vunpack.c.l.b16 %v212
    %v1156 = vunpack.c.h.b16 %v212
    %v1157 = vunpack.c.l.b16 %v213
    %v1158 = vunpack.c.h.b16 %v213
    %v1159 = vunpack.c.l.b16 %v214
    %v1160 = vunpack.c.h.b16 %v214
    %v1161 = vunpack.c.l.b16 %v215
    %v1162 = vunpack.c.h.b16 %v215
    %v1163 = vunpack.c.l.b16 %v216
    %v1164 = vunpack.c.h.b16 %v216
    %v1165 = vunpack.c.l.b16 %v217
    %v1166 = vunpack.c.h.b16 %v217
    %v1167 = vunpack.c.l.b16 %v218
    %v1168 = vunpack.c.h.b16 %v218
    %v1169 = vunpack.c.l.b16 %v219
    %v1170 = vunpack.c.h.b16 %v219
    %v1171 = vunpack.c.l.b16 %v220
    %v1172 = vunpack.c.h.b16 %v220
    %v1173 = vunpack.c.l.b16 %v221
    %v1174 = vunpack.c.h.b16 %v221
    %v1175 = vunpack.c.l.b16 %v222
    %v1176 = vunpack.c.h.b16 %v222
    %v1177 = vunpack.c.l.b16 %v223
    %v1178 = vunpack.c.h.b16 %v223
    %v1179 = vunpack.c.l.b16 %v224
    %v1180 = vunpack.c.h.b16 %v224
    %v1181 = vunpack.c.l.b16 %v225
    %v1182 = vunpack.c.h.b16 %v225
    %v1183 = vunpack.c.l.b16 %v226
    %v1184 = vunpack.c.h.b16 %v226
    %v1185 = vunpack.c.l.b16 %v227
    %v1186 = vunpack.c.h.b16 %v227
    %v1187 = vunpack.c.l.b16 %v228
    %v1188 = vunpack.c.h.b16 %v228
    %v1189 = vunpack.c.l.b16 %v229
    %v1190 = vunpack.c.h.b16 %v229
    %v1191 = vunpack.c.l.b16 %v230
    %v1192 = vunpack.c.h.b16 %v230
    %v1193 = vunpack.c.l.b16 %v231
    %v1194 = vunpack.c.h.b16 %v231
    %v1195 = vunpack.c.l.b16 %v232
    %v1196 = vunpack.c.h.b16 %v232
    %v1197 = vunpack.c.l.b16 %v233
    %v1198 = vunpack.c.h.b16 %v233
    %v1199 = vunpack.c.l.b16 %v234
    %v1200 = vunpack.c.h.b16 %v234
    %v1201 = vunpack.c.l.b16 %v235
    %v1202 = vunpack.c.h.b16 %v235
    %v1203 = vunpack.c.l.b16 %v236
    %v1204 = vunpack.c.h.b16 %v236
    %v1205 = vunpack.c.l.b16 %v237
    %v1206 = vunpack.c.h.b16 %v237
    %v1207 = vunpack.c.l.b16 %v238
    %v1208 = vunpack.c.h.b16 %v238
    %v1209 = vunpack.c.l.b16 %v239
    %v1210 = vunpack.c.h.b16 %v239
    %v1211 = vunpack.c.l.b16 %v240
    %v1212 = vunpack.c.h.b16 %v240
    %v1213 = vunpack.c.l.b16 %v241
    %v1214 = vunpack.c.h.b16 %v241
    %v1215 = vunpack.c.l.b16 %v242
    %v1216 = vunpack.c.h.b16 %v242
    %v1217 = vunpack.c.l.b16 %v243
    %v1218 = vunpack.c.h.b16 %v243
    %v1219 = vunpack.c.l.b16 %v244
    %v1220 = vunpack.c.h.b16 %v244
    %v1221 = vunpack.c.l.b16 %v245
    %v1222 = vunpack.c.h.b16 %v245
    %v1223 = vunpack.c.l.b16 %v246
    %v1224 = vunpack.c.h.b16 %v246
    %v1225 = vunpack.c.l.b16 %v247
    %v1226 = vunpack.c.h.b16 %v247
    %v1227 = vunpack.c.l.b16 %v248
    %v1228 = vunpack.c.h.b16 %v248
    %v1229 = vunpack.c.l.b16 %v249
    %v1230 = vunpack.c.h.b16 %v249
    %v1231 = vunpack.c.l.b16 %v250
    %v1232 = vunpack.c.h.b16 %v250
    %v1233 = vunpack.c.l.b16 %v251
    %v1234 = vunpack.c.h.b16 %v251
    %v1235 = vunpack.c.l.b16 %v252
    %v1236 = vunpack.c.h.b16 %v252
    %v1237 = vunpack.c.l.b16 %v253
    %v1238 = vunpack.c.h.b16 %v253
    %v1239 = vunpack.c.l.b16 %v254
    %v1240 = vunpack.c.h.b16 %v254
    %v1241 = vunpack.c.l.b16 %v255
    %v1242 = vunpack.c.h.b16 %v255
    %v1243 = vunpack.c.l.b16 %v256
    %v1244 = vunpack.c.h.b16 %v256
    %v1245 = vunpack.c.l.b16 %v257
    %v1246 = vunpack.c.h.b16 %v257
    %v1247 = vunpack.c.l.b16 %v258
    %v1248 = vunpack.c.h.b16 %v258
    %v1249 = vunpack.c.l.b16 %v259
    %v1250 = vunpack.c.h.b16 %v259
    %v1251 = vunpack.c.l.b16 %v260
    %v1252 = vunpack.c.h.b16 %v260
    %v1253 = vunpack.c.l.b16 %v261
    %v1254 = vunpack.c.h.b16 %v261
    %v1255 = vunpack.c.l.b16 %v262
    %v1256 = vunpack.c.h.b16 %v262
    %v1257 = vunpack.c.l.b16 %v263
    %v1258 = vunpack.c.h.b16 %v263
    %v1259 = vunpack.c.l.b16 %v264
    %v1260 = vunpack.c.h.b16 %v264
    %v1261 = vunpack.c.l.b16 %v265
    %v1262 = vunpack.c.h.b16 %v265
    %v1263 = vunpack.c.l.b16 %v266
    %v1264 = vunpack.c.h.b16 %v266
    %v1265 = vunpack.c.l.b16 %v267
    %v1266 = vunpack.c.h.b16 %v267
    %v1267 = vunpack.c.l.b16 %v268
    %v1268 = vunpack.c.h.b16 %v268
    %v1269 = vunpack.c.l.b16 %v269
    %v1270 = vunpack.c.h.b16 %v269
    %v1271 = vunpack.c.l.b16 %v270
    %v1272 = vunpack.c.h.b16 %v270
    %v1273 = vunpack.c.l.b16 %v271
    %v1274 = vunpack.c.h.b16 %v271
    %v1275 = vunpack.c.l.b16 %v272
    %v1276 = vunpack.c.h.b16 %v272
    %v1277 = vunpack.c.l.b16 %v273
    %v1278 = vunpack.c.h.b16 %v273
    %v1279 = vunpack.c.l.b16 %v274
    %v1280 = vunpack.c.h.b16 %v274
    %v1281 = vunpack.c.l.b16 %v275
    %v1282 = vunpack.c.h.b16 %v275
    %v1283 = vunpack.c.l.b16 %v276
    %v1284 = vunpack.c.h.b16 %v276
    %v1285 = vunpack.c.l.b16 %v277
    %v1286 = vunpack.c.h.b16 %v277
    %v1287 = vunpack.c.l.b16 %v278
    %v1288 = vunpack.c.h.b16 %v278
    %v1289 = vunpack.c.l.b16 %v279
    %v1290 = vunpack.c.h.b16 %v279
    %v1291 = vunpack.c.l.b16 %v280
    %v1292 = vunpack.c.h.b16 %v280
    %v1293 = vunpack.c.l.b16 %v281
    %v1294 = vunpack.c.h.b16 %v281
    %v1295 = vunpack.c.l.b16 %v282
    %v1296 = vunpack.c.h.b16 %v282
    %v1297 = vunpack.c.l.b16 %v283
    %v1298 = vunpack.c.h.b16 %v283
    %v1299 = vunpack.c.l.b16 %v284
    %v1300 = vunpack.c.h.b16 %v284
    %v1301 = vunpack.c.l.b16 %v285
    %v1302 = vunpack.c.h.b16 %v285
    %v1303 = vunpack.c.l.b16 %v286
    %v1304 = vunpack.c.h.b16 %v286
    %v1305 = vunpack.c.l.b16 %v287
    %v1306 = vunpack.c.h.b16 %v287
    %v1307 = vunpack.c.l.b16 %v288
    %v1308 = vunpack.c.h.b16 %v288
    %v1309 = vunpack.c.l.b16 %v289
    %v1310 = vunpack.c.h.b16 %v289
    %v1311 = vunpack.c.l.b16 %v290
    %v1312 = vunpack.c.h.b16 %v290
    %v1313 = vunpack.c.l.b16 %v291
    %v1314 = vunpack.c.h.b16 %v291
    %v1315 = vunpack.c.l.b16 %v292
    %v1316 = vunpack.c.h.b16 %v292
    %v1317 = vunpack.c.l.b16 %v293
    %v1318 = vunpack.c.h.b16 %v293
    %v1319 = vunpack.c.l.b16 %v294
    %v1320 = vunpack.c.h.b16 %v294
    %v1321 = vunpack.c.l.b16 %v295
    %v1322 = vunpack.c.h.b16 %v295
    %v1323 = vunpack.c.l.b16 %v296
    %v1324 = vunpack.c.h.b16 %v296
    %v1325 = vunpack.c.l.b16 %v297
    %v1326 = vunpack.c.h.b16 %v297
    %v1327 = vunpack.c.l.b16 %v298
    %v1328 = vunpack.c.h.b16 %v298
    %v1329 = vunpack.c.l.b16 %v299
    %v1330 = vunpack.c.h.b16 %v299
    %v1331 = vunpack.c.l.b16 %v300
    %v1332 = vunpack.c.h.b16 %v300
    %v1333 = vunpack.c.l.b16 %v301
    %v1334 = vunpack.c.h.b16 %v301
    %v1335 = vunpack.c.l.b16 %v302
    %v1336 = vunpack.c.h.b16 %v302
    %v1337 = vunpack.c.l.b16 %v303
    %v1338 = vunpack.c.h.b16 %v303
    %v1339 = vunpack.c.l.b16 %v304
    %v1340 = vunpack.c.h.b16 %v304
    %v1341 = vunpack.c.l.b16 %v305
    %v1342 = vunpack.c.h.b16 %v305
    %v1343 = vunpack.c.l.b16 %v306
    %v1344 = vunpack.c.h.b16 %v306
    %v1345 = vunpack.c.l.b16 %v307
    %v1346 = vunpack.c.h.b16 %v307
    %v1347 = vunpack.c.l.b16 %v308
    %v1348 = vunpack.c.h.b16 %v308
    %v1349 = vunpack.c.l.b16 %v309
    %v1350 = vunpack.c.h.b16 %v309
    %v1351 = vunpack.c.l.b16 %v310
    %v1352 = vunpack.c.h.b16 %v310
    %v1353 = vunpack.c.l.b16 %v311
    %v1354 = vunpack.c.h.b16 %v311
    %v1355 = vunpack.c.l.b16 %v312
    %v1356 = vunpack.c.h.b16 %v312
    %v1357 = vunpack.c.l.b16 %v313
    %v1358 = vunpack.c.h.b16 %v313
    %v1359 = vunpack.c.l.b16 %v314
    %v1360 = vunpack.c.h.b16 %v314
    %v1361 = vunpack.c.l.b16 %v315
    %v1362 = vunpack.c.h.b16 %v315
    %v1363 = vunpack.c.l.b16 %v316
    %v1364 = vunpack.c.h.b16 %v316
    %v1365 = vunpack.c.l.b16 %v317
    %v1366 = vunpack.c.h.b16 %v317
    %v1367 = vunpack.c.l.b16 %v318
    %v1368 = vunpack.c.h.b16 %v318
    %v1369 = vunpack.c.l.b16 %v319
    %v1370 = vunpack.c.h.b16 %v319
    %v1371 = vunpack.c.l.b16 %v320
    %v1372 = vunpack.c.h.b16 %v320
    %v1373 = vunpack.c.l.b16 %v321
    %v1374 = vunpack.c.h.b16 %v321
    %v1375 = vunpack.c.l.b16 %v322
    %v1376 = vunpack.c.h.b16 %v322
    %v1377 = vunpack.c.l.b16 %v323
    %v1378 = vunpack.c.h.b16 %v323
    %v1379 = vunpack.c.l.b16 %v324
    %v1380 = vunpack.c.h.b16 %v324
    %v1381 = vunpack.c.l.b16 %v325
    %v1382 = vunpack.c.h.b16 %v325
    %v1383 = vunpack.c.l.b16 %v326
    %v1384 = vunpack.c.h.b16 %v326
    %v1385 = vunpack.c.l.b16 %v327
    %v1386 = vunpack.c.h.b16 %v327
    %v1387 = vunpack.c.l.b16 %v328
    %v1388 = vunpack.c.h.b16 %v328
    %v1389 = vunpack.c.l.b16 %v329
    %v1390 = vunpack.c.h.b16 %v329
    %v1391 = vunpack.c.l.b16 %v330
    %v1392 = vunpack.c.h.b16 %v330
    %v1393 = vunpack.c.l.b16 %v331
    %v1394 = vunpack.c.h.b16 %v331
    %v1395 = vunpack.c.l.b16 %v332
    %v1396 = vunpack.c.h.b16 %v332
    %v1397 = vunpack.c.l.b16 %v333
    %v1398 = vunpack.c.h.b16 %v333
    %v1399 = vunpack.c.l.b16 %v334
    %v1400 = vunpack.c.h.b16 %v334
    %v1401 = vunpack.c.l.b16 %v335
    %v1402 = vunpack.c.h.b16 %v335
    %v1403 = vpack.c.b16 %v899, %v891
    %v1404 = vpack.c.b16 %v900, %v892
    %v1405 = vpack.c.b16 %v901, %v893
    %v1406 = vpack.c.b16 %v902, %v894
    %v1407 = vpack.c.b16 %v903, %v895
    %v1408 = vpack.c.b16 %v904, %v896
    %v1409 = vpack.c.b16 %v905, %v897
    %v1410 = vpack.c.b16 %v906, %v898
    %v1411 = vpack.c.b16 %v915, %v907
    %v1412 = vpack.c.b16 %v916, %v908
    %v1413 = vpack.c.b16 %v917, %v909
    %v1414 = vpack.c.b16 %v918, %v910
    %v1415 = vpack.c.b16 %v919, %v911
    %v1416 = vpack.c.b16 %v920, %v912
    %v1417 = vpack.c.b16 %v921, %v913
    %v1418 = vpack.c.b16 %v922, %v914
    %v1419 = vpack.c.b16 %v931, %v923
    %v1420 = vpack.c.b16 %v932, %v924
    %v1421 = vpack.c.b16 %v933, %v925
    %v1422 = vpack.c.b16 %v934, %v926
    %v1423 = vpack.c.b16 %v935, %v927
    %v1424 = vpack.c.b16 %v936, %v928
    %v1425 = vpack.c.b16 %v937, %v929
    %v1426 = vpack.c.b16 %v938, %v930
    %v1427 = vpack.c.b16 %v947, %v939
    %v1428 = vpack.c.b16 %v948, %v940
    %v1429 = vpack.c.b16 %v949, %v941
    %v1430 = vpack.c.b16 %v950, %v942
    %v1431 = vpack.c.b16 %v951, %v943
    %v1432 = vpack.c.b16 %v952, %v944
    %v1433 = vpack.c.b16 %v953, %v945
    %v1434 = vpack.c.b16 %v954, %v946
    %v1435 = vpack.c.b16 %v963, %v955
    %v1436 = vpack.c.b16 %v964, %v956
    %v1437 = vpack.c.b16 %v965, %v957
    %v1438 = vpack.c.b16 %v966, %v958
    %v1439 = vpack.c.b16 %v967, %v959
    %v1440 = vpack.c.b16 %v968, %v960
    %v1441 = vpack.c.b16 %v969, %v961
    %v1442 = vpack.c.b16 %v970, %v962
    %v1443 = vpack.c.b16 %v979, %v971
    %v1444 = vpack.c.b16 %v980, %v972
    %v1445 = vpack.c.b16 %v981, %v973
    %v1446 = vpack.c.b16 %v982, %v974
    %v1447 = vpack.c.b16 %v983, %v975
    %v1448 = vpack.c.b16 %v984, %v976
    %v1449 = vpack.c.b16 %v985, %v977
    %v1450 = vpack.c.b16 %v986, %v978
    %v1451 = vpack.c.b16 %v995, %v987
    %v1452 = vpack.c.b16 %v996, %v988
    %v1453 = vpack.c.b16 %v997, %v989
    %v1454 = vpack.c.b16 %v998, %v990
    %v1455 = vpack.c.b16 %v999, %v991
    %v1456 = vpack.c.b16 %v1000, %v992
    %v1457 = vpack.c.b16 %v1001, %v993
    %v1458 = vpack.c.b16 %v1002, %v994
    %v1459 = vpack.c.b16 %v1011, %v1003
    %v1460 = vpack.c.b16 %v1012, %v1004
    %v1461 = vpack.c.b16 %v1013, %v1005
    %v1462 = vpack.c.b16 %v1014, %v1006
    %v1463 = vpack.c.b16 %v1015, %v1007
    %v1464 = vpack.c.b16 %v1016, %v1008
    %v1465 = vpack.c.b16 %v1017, %v1009
    %v1466 = vpack.c.b16 %v1018, %v1010
    %v1467 = vpack.c.b16 %v1027, %v1019
    %v1468 = vpack.c.b16 %v1028, %v1020
    %v1469 = vpack.c.b16 %v1029, %v1021
    %v1470 = vpack.c.b16 %v1030, %v1022
    %v1471 = vpack.c.b16 %v1031, %v1023
    %v1472 = vpack.c.b16 %v1032, %v1024
    %v1473 = vpack.c.b16 %v1033, %v1025
    %v1474 = vpack.c.b16 %v1034, %v1026
    %v1475 = vpack.c.b16 %v1043, %v1035
    %v1476 = vpack.c.b16 %v1044, %v1036
    %v1477 = vpack.c.b16 %v1045, %v1037
    %v1478 = vpack.c.b16 %v1046, %v1038
    %v1479 = vpack.c.b16 %v1047, %v1039
    %v1480 = vpack.c.b16 %v1048, %v1040
    %v1481 = vpack.c.b16 %v1049, %v1041
    %v1482 = vpack.c.b16 %v1050, %v1042
    %v1483 = vpack.c.b16 %v1059, %v1051
    %v1484 = vpack.c.b16 %v1060, %v1052
    %v1485 = vpack.c.b16 %v1061, %v1053
    %v1486 = vpack.c.b16 %v1062, %v1054
    %v1487 = vpack.c.b16 %v1063, %v1055
    %v1488 = vpack.c.b16 %v1064, %v1056
    %v1489 = vpack.c.b16 %v1065, %v1057
    %v1490 = vpack.c.b16 %v1066, %v1058
    %v1491 = vpack.c.b16 %v1075, %v1067
    %v1492 = vpack.c.b16 %v1076, %v1068
    %v1493 = vpack.c.b16 %v1077, %v1069
    %v1494 = vpack.c.b16 %v1078, %v1070
    %v1495 = vpack.c.b16 %v1079, %v1071
    %v1496 = vpack.c.b16 %v1080, %v1072
    %v1497 = vpack.c.b16 %v1081, %v1073
    %v1498 = vpack.c.b16 %v1082, %v1074
    %v1499 = vpack.c.b16 %v1091, %v1083
    %v1500 = vpack.c.b16 %v1092, %v1084
    %v1501 = vpack.c.b16 %v1093, %v1085
    %v1502 = vpack.c.b16 %v1094, %v1086
    %v1503 = vpack.c.b16 %v1095, %v1087
    %v1504 = vpack.c.b16 %v1096, %v1088
    %v1505 = vpack.c.b16 %v1097, %v1089
    %v1506 = vpack.c.b16 %v1098, %v1090
    %v1507 = vpack.c.b16 %v1107, %v1099
    %v1508 = vpack.c.b16 %v1108, %v1100
    %v1509 = vpack.c.b16 %v1109, %v1101
    %v1510 = vpack.c.b16 %v1110, %v1102
    %v1511 = vpack.c.b16 %v1111, %v1103
    %v1512 = vpack.c.b16 %v1112, %v1104
    %v1513 = vpack.c.b16 %v1113, %v1105
    %v1514 = vpack.c.b16 %v1114, %v1106
    %v1515 = vpack.c.b16 %v1123, %v1115
    %v1516 = vpack.c.b16 %v1124, %v1116
    %v1517 = vpack.c.b16 %v1125, %v1117
    %v1518 = vpack.c.b16 %v1126, %v1118
    %v1519 = vpack.c.b16 %v1127, %v1119
    %v1520 = vpack.c.b16 %v1128, %v1120
    %v1521 = vpack.c.b16 %v1129, %v1121
    %v1522 = vpack.c.b16 %v1130, %v1122
    %v1523 = vpack.c.b16 %v1139, %v1131
    %v1524 = vpack.c.b16 %v1140, %v1132
    %v1525 = vpack.c.b16 %v1141, %v1133
    %v1526 = vpack.c.b16 %v1142, %v1134
    %v1527 = vpack.c.b16 %v1143, %v1135
    %v1528 = vpack.c.b16 %v1144, %v1136
    %v1529 = vpack.c.b16 %v1145, %v1137
    %v1530 = vpack.c.b16 %v1146, %v1138
    %v1531 = vpack.c.b16 %v1155, %v1147
    %v1532 = vpack.c.b16 %v1156, %v1148
    %v1533 = vpack.c.b16 %v1157, %v1149
    %v1534 = vpack.c.b16 %v1158, %v1150
    %v1535 = vpack.c.b16 %v1159, %v1151
    %v1536 = vpack.c.b16 %v1160, %v1152
    %v1537 = vpack.c.b16 %v1161, %v1153
    %v1538 = vpack.c.b16 %v1162, %v1154
    %v1539 = vpack.c.b16 %v1171, %v1163
    %v1540 = vpack.c.b16 %v1172, %v1164
    %v1541 = vpack.c.b16 %v1173, %v1165
    %v1542 = vpack.c.b16 %v1174, %v1166
    %v1543 = vpack.c.b16 %v1175, %v1167
    %v1544 = vpack.c.b16 %v1176, %v1168
    %v1545 = vpack.c.b16 %v1177, %v1169
    %v1546 = vpack.c.b16 %v1178, %v1170
    %v1547 = vpack.c.b16 %v1187, %v1179
    %v1548 = vpack.c.b16 %v1188, %v1180
    %v1549 = vpack.c.b16 %v1189, %v1181
    %v1550 = vpack.c.b16 %v1190, %v1182
    %v1551 = vpack.c.b16 %v1191, %v1183
    %v1552 = vpack.c.b16 %v1192, %v1184
    %v1553 = vpack.c.b16 %v1193, %v1185
    %v1554 = vpack.c.b16 %v1194, %v1186
    %v1555 = vpack.c.b16 %v1203, %v1195
    %v1556 = vpack.c.b16 %v1204, %v1196
    %v1557 = vpack.c.b16 %v1205, %v1197
    %v1558 = vpack.c.b16 %v1206, %v1198
    %v1559 = vpack.c.b16 %v1207, %v1199
    %v1560 = vpack.c.b16 %v1208, %v1200
    %v1561 = vpack.c.b16 %v1209, %v1201
    %v1562 = vpack.c.b16 %v1210, %v1202
    %v1563 = vpack.c.b16 %v1219, %v1211
    %v1564 = vpack.c.b16 %v1220, %v1212
    %v1565 = vpack.c.b16 %v1221, %v1213
    %v1566 = vpack.c.b16 %v1222, %v1214
    %v1567 = vpack.c.b16 %v1223, %v1215
    %v1568 = vpack.c.b16 %v1224, %v1216
    %v1569 = vpack.c.b16 %v1225, %v1217
    %v1570 = vpack.c.b16 %v1226, %v1218
    %v1571 = vpack.c.b16 %v1235, %v1227
    %v1572 = vpack.c.b16 %v1236, %v1228
    %v1573 = vpack.c.b16 %v1237, %v1229
    %v1574 = vpack.c.b16 %v1238, %v1230
    %v1575 = vpack.c.b16 %v1239, %v1231
    %v1576 = vpack.c.b16 %v1240, %v1232
    %v1577 = vpack.c.b16 %v1241, %v1233
    %v1578 = vpack.c.b16 %v1242, %v1234
    %v1579 = vpack.c.b16 %v1251, %v1243
    %v1580 = vpack.c.b16 %v1252, %v1244
    %v1581 = vpack.c.b16 %v1253, %v1245
    %v1582 = vpack.c.b16 %v1254, %v1246
    %v1583 = vpack.c.b16 %v1255, %v1247
    %v1584 = vpack.c.b16 %v1256, %v1248
    %v1585 = vpack.c.b16 %v1257, %v1249
    %v1586 = vpack.c.b16 %v1258, %v1250
    %v1587 = vpack.c.b16 %v1267, %v1259
    %v1588 = vpack.c.b16 %v1268, %v1260
    %v1589 = vpack.c.b16 %v1269, %v1261
    %v1590 = vpack.c.b16 %v1270, %v1262
    %v1591 = vpack.c.b16 %v1271, %v1263
    %v1592 = vpack.c.b16 %v1272, %v1264
    %v1593 = vpack.c.b16 %v1273, %v1265
    %v1594 = vpack.c.b16 %v1274, %v1266
    %v1595 = vpack.c.b16 %v1283, %v1275
    %v1596 = vpack.c.b16 %v1284, %v1276
    %v1597 = vpack.c.b16 %v1285, %v1277
    %v1598 = vpack.c.b16 %v1286, %v1278
    %v1599 = vpack.c.b16 %v1287, %v1279
    %v1600 = vpack.c.b16 %v1288, %v1280
    %v1601 = vpack.c.b16 %v1289, %v1281
    %v1602 = vpack.c.b16 %v1290, %v1282
    %v1603 = vpack.c.b16 %v1299, %v1291
    %v1604 = vpack.c.b16 %v1300, %v1292
    %v1605 = vpack.c.b16 %v1301, %v1293
    %v1606 = vpack.c.b16 %v1302, %v1294
    %v1607 = vpack.c.b16 %v1303, %v1295
    %v1608 = vpack.c.b16 %v1304, %v1296
    %v1609 = vpack.c.b16 %v1305, %v1297
    %v1610 = vpack.c.b16 %v1306, %v1298
    %v1611 = vpack.c.b16 %v1315, %v1307
    %v1612 = vpack.c.b16 %v1316, %v1308
    %v1613 = vpack.c.b16 %v1317, %v1309
    %v1614 = vpack.c.b16 %v1318, %v1310
    %v1615 = vpack.c.b16 %v1319, %v1311
    %v1616 = vpack.c.b16 %v1320, %v1312
    %v1617 = vpack.c.b16 %v1321, %v1313
    %v1618 = vpack.c.b16 %v1322, %v1314
    %v1619 = vpack.c.b16 %v1331, %v1323
    %v1620 = vpack.c.b16 %v1332, %v1324
    %v1621 = vpack.c.b16 %v1333, %v1325
    %v1622 = vpack.c.b16 %v1334, %v1326
    %v1623 = vpack.c.b16 %v1335, %v1327
    %v1624 = vpack.c.b16 %v1336, %v1328
    %v1625 = vpack.c.b16 %v1337, %v1329
    %v1626 = vpack.c.b16 %v1338, %v1330
    %v1627 = vpack.c.b16 %v1347, %v1339
    %v1628 = vpack.c.b16 %v1348, %v1340
    %v1629 = vpack.c.b16 %v1349, %v1341
    %v1630 = vpack.c.b16 %v1350, %v1342
    %v1631 = vpack.c.b16 %v1351, %v1343
    %v1632 = vpack.c.b16 %v1352, %v1344
    %v1633 = vpack.c.b16 %v1353, %v1345
    %v1634 = vpack.c.b16 %v1354, %v1346
    %v1635 = vpack.c.b16 %v1363, %v1355
    %v1636 = vpack.c.b16 %v1364, %v1356
    %v1637 = vpack.c.b16 %v1365, %v1357
    %v1638 = vpack.c.b16 %v1366, %v1358
    %v1639 = vpack.c.b16 %v1367, %v1359
    %v1640 = vpack.c.b16 %v1368, %v1360
    %v1641 = vpack.c.b16 %v1369, %v1361
    %v1642 = vpack.c.b16 %v1370, %v1362
    %v1643 = vpack.c.b16 %v1379, %v1371
    %v1644 = vpack.c.b16 %v1380, %v1372
    %v1645 = vpack.c.b16 %v1381, %v1373
    %v1646 = vpack.c.b16 %v1382, %v1374
    %v1647 = vpack.c.b16 %v1383, %v1375
    %v1648 = vpack.c.b16 %v1384, %v1376
    %v1649 = vpack.c.b16 %v1385, %v1377
    %v1650 = vpack.c.b16 %v1386, %v1378
    %v1651 = vpack.c.b16 %v1395, %v1387
    %v1652 = vpack.c.b16 %v1396, %v1388
    %v1653 = vpack.c.b16 %v1397, %v1389
    %v1654 = vpack.c.b16 %v1398, %v1390
    %v1655 = vpack.c.b16 %v1399, %v1391
    %v1656 = vpack.c.b16 %v1400, %v1392
    %v1657 = vpack.c.b16 %v1401, %v1393
    %v1658 = vpack.c.b16 %v1402, %v1394
    %1915 = vmatprep.subr.bf16.mxu0 %v1460
    %1916 = vmatpush1.bf16.msra.mxu0 %v1459
    %1917 = vmatprep.subr.bf16.mxu0 %v1452
    %1918 = vmatpush1.bf16.msra.mxu0 %v1451
    %1919 = vmatprep.subr.bf16.mxu0 %v1444
    %1920 = vmatpush1.bf16.msra.mxu0 %v1443
    %1921 = vmatprep.subr.bf16.mxu0 %v1436
    %1922 = vmatpush1.bf16.msra.mxu0 %v1435
    %1923 = vmatprep.subr.bf16.mxu0 %v1428
    %1924 = vmatpush1.bf16.msra.mxu0 %v1427
    %1925 = vmatprep.subr.bf16.mxu0 %v1420
    %1926 = vmatpush1.bf16.msra.mxu0 %v1419
    %1927 = vmatprep.subr.bf16.mxu0 %v1412
    %1928 = vmatpush1.bf16.msra.mxu0 %v1411
    %1929 = vmatprep.subr.bf16.mxu0 %v1404
    %1930 = vmatpush1.bf16.msra.mxu0 %v1403
    %1931 = vmatprep.subr.bf16.mxu0 %v1524
    %1932 = vmatpush2.bf16.msra.mxu0 %v1523
    %1933 = vmatprep.subr.bf16.mxu0 %v1516
    %1934 = vmatpush2.bf16.msra.mxu0 %v1515
    %1935 = vmatprep.subr.bf16.mxu0 %v1508
    %1936 = vmatpush2.bf16.msra.mxu0 %v1507
    %1937 = vmatprep.subr.bf16.mxu0 %v1500
    %1938 = vmatpush2.bf16.msra.mxu0 %v1499
    %1939 = vmatprep.subr.bf16.mxu0 %v1492
    %1940 = vmatpush2.bf16.msra.mxu0 %v1491
    %1941 = vmatprep.subr.bf16.mxu0 %v1484
    %1942 = vmatpush2.bf16.msra.mxu0 %v1483
    %1943 = vmatprep.subr.bf16.mxu0 %v1476
    %1944 = vmatpush2.bf16.msra.mxu0 %v1475
    %1945 = vmatprep.subr.bf16.mxu0 %v1468
    %1946 = vmatpush2.bf16.msra.mxu0 %v1467
    %1947 = vmatprep.mubr.bf16.mxu0 %v77
    %1948 = vmatmul.mubr.bf16.gmra.mxu0 %v76
    %v1949 = vpop.f32.mrf.mxu0
    %v1950 = vadd.f32 %v598, %v1949
    %v1951 = vpop.f32.mrf.mxu0
    %v1952 = vadd.f32 %v602, %v1951
    %v1953 = vpop.f32.mrf.mxu0
    %v1954 = vpop.f32.mrf.mxu0
    %1955 = vdwg.mxu0
    %1956 = vmatprep.subr.bf16.mxu0 %v1588
    %1957 = vmatpush1.bf16.msra.mxu0 %v1587
    %1958 = vmatprep.subr.bf16.mxu0 %v1580
    %1959 = vmatpush1.bf16.msra.mxu0 %v1579
    %1960 = vmatprep.subr.bf16.mxu0 %v1572
    %1961 = vmatpush1.bf16.msra.mxu0 %v1571
    %1962 = vmatprep.subr.bf16.mxu0 %v1564
    %1963 = vmatpush1.bf16.msra.mxu0 %v1563
    %1964 = vmatprep.subr.bf16.mxu0 %v1556
    %1965 = vmatpush1.bf16.msra.mxu0 %v1555
    %1966 = vmatprep.subr.bf16.mxu0 %v1548
    %1967 = vmatpush1.bf16.msra.mxu0 %v1547
    %1968 = vmatprep.subr.bf16.mxu0 %v1540
    %1969 = vmatpush1.bf16.msra.mxu0 %v1539
    %1970 = vmatprep.subr.bf16.mxu0 %v1532
    %1971 = vmatpush1.bf16.msra.mxu0 %v1531
    %1972 = vmatprep.subr.bf16.mxu0 %v1652
    %1973 = vmatpush2.bf16.msra.mxu0 %v1651
    %1974 = vmatprep.subr.bf16.mxu0 %v1644
    %1975 = vmatpush2.bf16.msra.mxu0 %v1643
    %1976 = vmatprep.subr.bf16.mxu0 %v1636
    %1977 = vmatpush2.bf16.msra.mxu0 %v1635
    %1978 = vmatprep.subr.bf16.mxu0 %v1628
    %1979 = vmatpush2.bf16.msra.mxu0 %v1627
    %1980 = vmatprep.subr.bf16.mxu0 %v1620
    %1981 = vmatpush2.bf16.msra.mxu0 %v1619
    %1982 = vmatprep.subr.bf16.mxu0 %v1612
    %1983 = vmatpush2.bf16.msra.mxu0 %v1611
    %1984 = vmatprep.subr.bf16.mxu0 %v1604
    %1985 = vmatpush2.bf16.msra.mxu0 %v1603
    %1986 = vmatprep.subr.bf16.mxu0 %v1596
    %1987 = vmatpush2.bf16.msra.mxu0 %v1595
    %1988 = vmatprep.mubr.bf16.mxu0 %v79
    %1989 = vmatmul.mubr.bf16.gmra.mxu0 %v78
    %v1990 = vpop.f32.mrf.mxu0
    %v1991 = vadd.f32 %v1950, %v1990
    %v1992 = vpop.f32.mrf.mxu0
    %v1993 = vadd.f32 %v1952, %v1992
    %v1994 = vpop.f32.mrf.mxu0
    %v1995 = vpop.f32.mrf.mxu0
    %1996 = vdwg.mxu0
    %1997 = vmatprep.subr.bf16.mxu0 %v1462
    %1998 = vmatpush1.bf16.msra.mxu0 %v1461
    %1999 = vmatprep.subr.bf16.mxu0 %v1454
    %2000 = vmatpush1.bf16.msra.mxu0 %v1453
    %2001 = vmatprep.subr.bf16.mxu0 %v1446
    %2002 = vmatpush1.bf16.msra.mxu0 %v1445
    %2003 = vmatprep.subr.bf16.mxu0 %v1438
    %2004 = vmatpush1.bf16.msra.mxu0 %v1437
    %2005 = vmatprep.subr.bf16.mxu0 %v1430
    %2006 = vmatpush1.bf16.msra.mxu0 %v1429
    %2007 = vmatprep.subr.bf16.mxu0 %v1422
    %2008 = vmatpush1.bf16.msra.mxu0 %v1421
    %2009 = vmatprep.subr.bf16.mxu0 %v1414
    %2010 = vmatpush1.bf16.msra.mxu0 %v1413
    %2011 = vmatprep.subr.bf16.mxu0 %v1406
    %2012 = vmatpush1.bf16.msra.mxu0 %v1405
    %2013 = vmatprep.subr.bf16.mxu0 %v1526
    %2014 = vmatpush2.bf16.msra.mxu0 %v1525
    %2015 = vmatprep.subr.bf16.mxu0 %v1518
    %2016 = vmatpush2.bf16.msra.mxu0 %v1517
    %2017 = vmatprep.subr.bf16.mxu0 %v1510
    %2018 = vmatpush2.bf16.msra.mxu0 %v1509
    %2019 = vmatprep.subr.bf16.mxu0 %v1502
    %2020 = vmatpush2.bf16.msra.mxu0 %v1501
    %2021 = vmatprep.subr.bf16.mxu0 %v1494
    %2022 = vmatpush2.bf16.msra.mxu0 %v1493
    %2023 = vmatprep.subr.bf16.mxu0 %v1486
    %2024 = vmatpush2.bf16.msra.mxu0 %v1485
    %2025 = vmatprep.subr.bf16.mxu0 %v1478
    %2026 = vmatpush2.bf16.msra.mxu0 %v1477
    %2027 = vmatprep.subr.bf16.mxu0 %v1470
    %2028 = vmatpush2.bf16.msra.mxu0 %v1469
    %2029 = vmatprep.mubr.bf16.mxu0 %v77
    %2030 = vmatmul.mubr.bf16.gmra.mxu0 %v76
    %v2031 = vpop.f32.mrf.mxu0
    %v2032 = vadd.f32 %v606, %v2031
    %v2033 = vpop.f32.mrf.mxu0
    %v2034 = vadd.f32 %v610, %v2033
    %v2035 = vpop.f32.mrf.mxu0
    %v2036 = vpop.f32.mrf.mxu0
    %2037 = vdwg.mxu0
    %2038 = vmatprep.subr.bf16.mxu0 %v1590
    %2039 = vmatpush1.bf16.msra.mxu0 %v1589
    %2040 = vmatprep.subr.bf16.mxu0 %v1582
    %2041 = vmatpush1.bf16.msra.mxu0 %v1581
    %2042 = vmatprep.subr.bf16.mxu0 %v1574
    %2043 = vmatpush1.bf16.msra.mxu0 %v1573
    %2044 = vmatprep.subr.bf16.mxu0 %v1566
    %2045 = vmatpush1.bf16.msra.mxu0 %v1565
    %2046 = vmatprep.subr.bf16.mxu0 %v1558
    %2047 = vmatpush1.bf16.msra.mxu0 %v1557
    %2048 = vmatprep.subr.bf16.mxu0 %v1550
    %2049 = vmatpush1.bf16.msra.mxu0 %v1549
    %2050 = vmatprep.subr.bf16.mxu0 %v1542
    %2051 = vmatpush1.bf16.msra.mxu0 %v1541
    %2052 = vmatprep.subr.bf16.mxu0 %v1534
    %2053 = vmatpush1.bf16.msra.mxu0 %v1533
    %2054 = vmatprep.subr.bf16.mxu0 %v1654
    %2055 = vmatpush2.bf16.msra.mxu0 %v1653
    %2056 = vmatprep.subr.bf16.mxu0 %v1646
    %2057 = vmatpush2.bf16.msra.mxu0 %v1645
    %2058 = vmatprep.subr.bf16.mxu0 %v1638
    %2059 = vmatpush2.bf16.msra.mxu0 %v1637
    %2060 = vmatprep.subr.bf16.mxu0 %v1630
    %2061 = vmatpush2.bf16.msra.mxu0 %v1629
    %2062 = vmatprep.subr.bf16.mxu0 %v1622
    %2063 = vmatpush2.bf16.msra.mxu0 %v1621
    %2064 = vmatprep.subr.bf16.mxu0 %v1614
    %2065 = vmatpush2.bf16.msra.mxu0 %v1613
    %2066 = vmatprep.subr.bf16.mxu0 %v1606
    %2067 = vmatpush2.bf16.msra.mxu0 %v1605
    %2068 = vmatprep.subr.bf16.mxu0 %v1598
    %2069 = vmatpush2.bf16.msra.mxu0 %v1597
    %2070 = vmatprep.mubr.bf16.mxu0 %v79
    %2071 = vmatmul.mubr.bf16.gmra.mxu0 %v78
    %v2072 = vpop.f32.mrf.mxu0
    %v2073 = vadd.f32 %v2032, %v2072
    %v2074 = vpop.f32.mrf.mxu0
    %v2075 = vadd.f32 %v2034, %v2074
    %v2076 = vpop.f32.mrf.mxu0
    %v2077 = vpop.f32.mrf.mxu0
    %2078 = vdwg.mxu0
    %2079 = vmatprep.subr.bf16.mxu0 %v1464
    %2080 = vmatpush1.bf16.msra.mxu0 %v1463
    %2081 = vmatprep.subr.bf16.mxu0 %v1456
    %2082 = vmatpush1.bf16.msra.mxu0 %v1455
    %2083 = vmatprep.subr.bf16.mxu0 %v1448
    %2084 = vmatpush1.bf16.msra.mxu0 %v1447
    %2085 = vmatprep.subr.bf16.mxu0 %v1440
    %2086 = vmatpush1.bf16.msra.mxu0 %v1439
    %2087 = vmatprep.subr.bf16.mxu0 %v1432
    %2088 = vmatpush1.bf16.msra.mxu0 %v1431
    %2089 = vmatprep.subr.bf16.mxu0 %v1424
    %2090 = vmatpush1.bf16.msra.mxu0 %v1423
    %2091 = vmatprep.subr.bf16.mxu0 %v1416
    %2092 = vmatpush1.bf16.msra.mxu0 %v1415
    %2093 = vmatprep.subr.bf16.mxu0 %v1408
    %2094 = vmatpush1.bf16.msra.mxu0 %v1407
    %2095 = vmatprep.subr.bf16.mxu0 %v1528
    %2096 = vmatpush2.bf16.msra.mxu0 %v1527
    %2097 = vmatprep.subr.bf16.mxu0 %v1520
    %2098 = vmatpush2.bf16.msra.mxu0 %v1519
    %2099 = vmatprep.subr.bf16.mxu0 %v1512
    %2100 = vmatpush2.bf16.msra.mxu0 %v1511
    %2101 = vmatprep.subr.bf16.mxu0 %v1504
    %2102 = vmatpush2.bf16.msra.mxu0 %v1503
    %2103 = vmatprep.subr.bf16.mxu0 %v1496
    %2104 = vmatpush2.bf16.msra.mxu0 %v1495
    %2105 = vmatprep.subr.bf16.mxu0 %v1488
    %2106 = vmatpush2.bf16.msra.mxu0 %v1487
    %2107 = vmatprep.subr.bf16.mxu0 %v1480
    %2108 = vmatpush2.bf16.msra.mxu0 %v1479
    %2109 = vmatprep.subr.bf16.mxu0 %v1472
    %2110 = vmatpush2.bf16.msra.mxu0 %v1471
    %2111 = vmatprep.mubr.bf16.mxu0 %v77
    %2112 = vmatmul.mubr.bf16.gmra.mxu0 %v76
    %v2113 = vpop.f32.mrf.mxu0
    %v2114 = vadd.f32 %v614, %v2113
    %v2115 = vpop.f32.mrf.mxu0
    %v2116 = vadd.f32 %v618, %v2115
    %v2117 = vpop.f32.mrf.mxu0
    %v2118 = vpop.f32.mrf.mxu0
    %2119 = vdwg.mxu0
    %2120 = vmatprep.subr.bf16.mxu0 %v1592
    %2121 = vmatpush1.bf16.msra.mxu0 %v1591
    %2122 = vmatprep.subr.bf16.mxu0 %v1584
    %2123 = vmatpush1.bf16.msra.mxu0 %v1583
    %2124 = vmatprep.subr.bf16.mxu0 %v1576
    %2125 = vmatpush1.bf16.msra.mxu0 %v1575
    %2126 = vmatprep.subr.bf16.mxu0 %v1568
    %2127 = vmatpush1.bf16.msra.mxu0 %v1567
    %2128 = vmatprep.subr.bf16.mxu0 %v1560
    %2129 = vmatpush1.bf16.msra.mxu0 %v1559
    %2130 = vmatprep.subr.bf16.mxu0 %v1552
    %2131 = vmatpush1.bf16.msra.mxu0 %v1551
    %2132 = vmatprep.subr.bf16.mxu0 %v1544
    %2133 = vmatpush1.bf16.msra.mxu0 %v1543
    %2134 = vmatprep.subr.bf16.mxu0 %v1536
    %2135 = vmatpush1.bf16.msra.mxu0 %v1535
    %2136 = vmatprep.subr.bf16.mxu0 %v1656
    %2137 = vmatpush2.bf16.msra.mxu0 %v1655
    %2138 = vmatprep.subr.bf16.mxu0 %v1648
    %2139 = vmatpush2.bf16.msra.mxu0 %v1647
    %2140 = vmatprep.subr.bf16.mxu0 %v1640
    %2141 = vmatpush2.bf16.msra.mxu0 %v1639
    %2142 = vmatprep.subr.bf16.mxu0 %v1632
    %2143 = vmatpush2.bf16.msra.mxu0 %v1631
    %2144 = vmatprep.subr.bf16.mxu0 %v1624
    %2145 = vmatpush2.bf16.msra.mxu0 %v1623
    %2146 = vmatprep.subr.bf16.mxu0 %v1616
    %2147 = vmatpush2.bf16.msra.mxu0 %v1615
    %2148 = vmatprep.subr.bf16.mxu0 %v1608
    %2149 = vmatpush2.bf16.msra.mxu0 %v1607
    %2150 = vmatprep.subr.bf16.mxu0 %v1600
    %2151 = vmatpush2.bf16.msra.mxu0 %v1599
    %2152 = vmatprep.mubr.bf16.mxu0 %v79
    %2153 = vmatmul.mubr.bf16.gmra.mxu0 %v78
    %v2154 = vpop.f32.mrf.mxu0
    %v2155 = vadd.f32 %v2114, %v2154
    %v2156 = vpop.f32.mrf.mxu0
    %v2157 = vadd.f32 %v2116, %v2156
    %v2158 = vpop.f32.mrf.mxu0
    %v2159 = vpop.f32.mrf.mxu0
    %2160 = vdwg.mxu0
    %2161 = vmatprep.subr.bf16.mxu0 %v1466
    %2162 = vmatpush1.bf16.msra.mxu0 %v1465
    %2163 = vmatprep.subr.bf16.mxu0 %v1458
    %2164 = vmatpush1.bf16.msra.mxu0 %v1457
    %2165 = vmatprep.subr.bf16.mxu0 %v1450
    %2166 = vmatpush1.bf16.msra.mxu0 %v1449
    %2167 = vmatprep.subr.bf16.mxu0 %v1442
    %2168 = vmatpush1.bf16.msra.mxu0 %v1441
    %2169 = vmatprep.subr.bf16.mxu0 %v1434
    %2170 = vmatpush1.bf16.msra.mxu0 %v1433
    %2171 = vmatprep.subr.bf16.mxu0 %v1426
    %2172 = vmatpush1.bf16.msra.mxu0 %v1425
    %2173 = vmatprep.subr.bf16.mxu0 %v1418
    %2174 = vmatpush1.bf16.msra.mxu0 %v1417
    %2175 = vmatprep.subr.bf16.mxu0 %v1410
    %2176 = vmatpush1.bf16.msra.mxu0 %v1409
    %2177 = vmatprep.subr.bf16.mxu0 %v1530
    %2178 = vmatpush2.bf16.msra.mxu0 %v1529
    %2179 = vmatprep.subr.bf16.mxu0 %v1522
    %2180 = vmatpush2.bf16.msra.mxu0 %v1521
    %2181 = vmatprep.subr.bf16.mxu0 %v1514
    %2182 = vmatpush2.bf16.msra.mxu0 %v1513
    %2183 = vmatprep.subr.bf16.mxu0 %v1506
    %2184 = vmatpush2.bf16.msra.mxu0 %v1505
    %2185 = vmatprep.subr.bf16.mxu0 %v1498
    %2186 = vmatpush2.bf16.msra.mxu0 %v1497
    %2187 = vmatprep.subr.bf16.mxu0 %v1490
    %2188 = vmatpush2.bf16.msra.mxu0 %v1489
    %2189 = vmatprep.subr.bf16.mxu0 %v1482
    %2190 = vmatpush2.bf16.msra.mxu0 %v1481
    %2191 = vmatprep.subr.bf16.mxu0 %v1474
    %2192 = vmatpush2.bf16.msra.mxu0 %v1473
    %2193 = vmatprep.mubr.bf16.mxu0 %v77
    %2194 = vmatmul.mubr.bf16.gmra.mxu0 %v76
    %v2195 = vpop.f32.mrf.mxu0
    %v2196 = vadd.f32 %v622, %v2195
    %v2197 = vpop.f32.mrf.mxu0
    %v2198 = vadd.f32 %v626, %v2197
    %v2199 = vpop.f32.mrf.mxu0
    %v2200 = vpop.f32.mrf.mxu0
    %2201 = vdwg.mxu0
    %2202 = vmatprep.subr.bf16.mxu0 %v1594
    %2203 = vmatpush1.bf16.msra.mxu0 %v1593
    %2204 = vmatprep.subr.bf16.mxu0 %v1586
    %2205 = vmatpush1.bf16.msra.mxu0 %v1585
    %2206 = vmatprep.subr.bf16.mxu0 %v1578
    %2207 = vmatpush1.bf16.msra.mxu0 %v1577
    %2208 = vmatprep.subr.bf16.mxu0 %v1570
    %2209 = vmatpush1.bf16.msra.mxu0 %v1569
    %2210 = vmatprep.subr.bf16.mxu0 %v1562
    %2211 = vmatpush1.bf16.msra.mxu0 %v1561
    %2212 = vmatprep.subr.bf16.mxu0 %v1554
    %2213 = vmatpush1.bf16.msra.mxu0 %v1553
    %2214 = vmatprep.subr.bf16.mxu0 %v1546
    %2215 = vmatpush1.bf16.msra.mxu0 %v1545
    %2216 = vmatprep.subr.bf16.mxu0 %v1538
    %2217 = vmatpush1.bf16.msra.mxu0 %v1537
    %2218 = vmatprep.subr.bf16.mxu0 %v1658
    %2219 = vmatpush2.bf16.msra.mxu0 %v1657
    %2220 = vmatprep.subr.bf16.mxu0 %v1650
    %2221 = vmatpush2.bf16.msra.mxu0 %v1649
    %2222 = vmatprep.subr.bf16.mxu0 %v1642
    %2223 = vmatpush2.bf16.msra.mxu0 %v1641
    %2224 = vmatprep.subr.bf16.mxu0 %v1634
    %2225 = vmatpush2.bf16.msra.mxu0 %v1633
    %2226 = vmatprep.subr.bf16.mxu0 %v1626
    %2227 = vmatpush2.bf16.msra.mxu0 %v1625
    %2228 = vmatprep.subr.bf16.mxu0 %v1618
    %2229 = vmatpush2.bf16.msra.mxu0 %v1617
    %2230 = vmatprep.subr.bf16.mxu0 %v1610
    %2231 = vmatpush2.bf16.msra.mxu0 %v1609
    %2232 = vmatprep.subr.bf16.mxu0 %v1602
    %2233 = vmatpush2.bf16.msra.mxu0 %v1601
    %2234 = vmatprep.mubr.bf16.mxu0 %v79
    %2235 = vmatmul.mubr.bf16.gmra.mxu0 %v78
    %v2236 = vpop.f32.mrf.mxu0
    %v2237 = vadd.f32 %v2196, %v2236
    %v2238 = vpop.f32.mrf.mxu0
    %v2239 = vadd.f32 %v2198, %v2238
    %v2240 = vpop.f32.mrf.mxu0
    %v2241 = vpop.f32.mrf.mxu0
    %2242 = vdwg.mxu0
    %v2243 = vpack.c.bf16 %v1991, %v1991
    %v2244 = vpack.c.bf16 %v1993, %v1993
    %v2245 = vpack.c.bf16 %v2073, %v2073
    %v2246 = vpack.c.bf16 %v2075, %v2075
    %v2247 = vpack.c.bf16 %v2155, %v2155
    %v2248 = vpack.c.bf16 %v2157, %v2157
    %v2249 = vpack.c.bf16 %v2237, %v2237
    %v2250 = vpack.c.bf16 %v2239, %v2239
    %v2252 = vlaneseq
    %v2253 = vshrl.u32 %v2252, 7
    %v2254 = vsub.s32 0, %v2253
    %v2255 = vrot.slane %v593, %v2254
    %v2256 = vlaneseq
    %v2257 = vshrl.u32 %v2256, 7
    %v2258 = vsub.s32 1, %v2257
    %v2259 = vrot.slane %v593, %v2258
    %v2260 = vlaneseq
    %v2261 = vshrl.u32 %v2260, 7
    %v2262 = vsub.s32 2, %v2261
    %v2263 = vrot.slane %v593, %v2262
    %v2264 = vlaneseq
    %v2265 = vshrl.u32 %v2264, 7
    %v2266 = vsub.s32 3, %v2265
    %v2267 = vrot.slane %v593, %v2266
    %v2528 = vunpack.c.l.b16 %v337
    %v2529 = vunpack.c.h.b16 %v337
    %v2530 = vunpack.c.l.b16 %v338
    %v2531 = vunpack.c.h.b16 %v338
    %v2532 = vunpack.c.l.b16 %v339
    %v2533 = vunpack.c.h.b16 %v339
    %v2534 = vunpack.c.l.b16 %v340
    %v2535 = vunpack.c.h.b16 %v340
    %v2536 = vunpack.c.l.b16 %v341
    %v2537 = vunpack.c.h.b16 %v341
    %v2538 = vunpack.c.l.b16 %v342
    %v2539 = vunpack.c.h.b16 %v342
    %v2540 = vunpack.c.l.b16 %v343
    %v2541 = vunpack.c.h.b16 %v343
    %v2542 = vunpack.c.l.b16 %v344
    %v2543 = vunpack.c.h.b16 %v344
    %v2544 = vunpack.c.l.b16 %v345
    %v2545 = vunpack.c.h.b16 %v345
    %v2546 = vunpack.c.l.b16 %v346
    %v2547 = vunpack.c.h.b16 %v346
    %v2548 = vunpack.c.l.b16 %v347
    %v2549 = vunpack.c.h.b16 %v347
    %v2550 = vunpack.c.l.b16 %v348
    %v2551 = vunpack.c.h.b16 %v348
    %v2552 = vunpack.c.l.b16 %v349
    %v2553 = vunpack.c.h.b16 %v349
    %v2554 = vunpack.c.l.b16 %v350
    %v2555 = vunpack.c.h.b16 %v350
    %v2556 = vunpack.c.l.b16 %v351
    %v2557 = vunpack.c.h.b16 %v351
    %v2558 = vunpack.c.l.b16 %v352
    %v2559 = vunpack.c.h.b16 %v352
    %v2560 = vunpack.c.l.b16 %v353
    %v2561 = vunpack.c.h.b16 %v353
    %v2562 = vunpack.c.l.b16 %v354
    %v2563 = vunpack.c.h.b16 %v354
    %v2564 = vunpack.c.l.b16 %v355
    %v2565 = vunpack.c.h.b16 %v355
    %v2566 = vunpack.c.l.b16 %v356
    %v2567 = vunpack.c.h.b16 %v356
    %v2568 = vunpack.c.l.b16 %v357
    %v2569 = vunpack.c.h.b16 %v357
    %v2570 = vunpack.c.l.b16 %v358
    %v2571 = vunpack.c.h.b16 %v358
    %v2572 = vunpack.c.l.b16 %v359
    %v2573 = vunpack.c.h.b16 %v359
    %v2574 = vunpack.c.l.b16 %v360
    %v2575 = vunpack.c.h.b16 %v360
    %v2576 = vunpack.c.l.b16 %v361
    %v2577 = vunpack.c.h.b16 %v361
    %v2578 = vunpack.c.l.b16 %v362
    %v2579 = vunpack.c.h.b16 %v362
    %v2580 = vunpack.c.l.b16 %v363
    %v2581 = vunpack.c.h.b16 %v363
    %v2582 = vunpack.c.l.b16 %v364
    %v2583 = vunpack.c.h.b16 %v364
    %v2584 = vunpack.c.l.b16 %v365
    %v2585 = vunpack.c.h.b16 %v365
    %v2586 = vunpack.c.l.b16 %v366
    %v2587 = vunpack.c.h.b16 %v366
    %v2588 = vunpack.c.l.b16 %v367
    %v2589 = vunpack.c.h.b16 %v367
    %v2590 = vunpack.c.l.b16 %v368
    %v2591 = vunpack.c.h.b16 %v368
    %v2592 = vunpack.c.l.b16 %v369
    %v2593 = vunpack.c.h.b16 %v369
    %v2594 = vunpack.c.l.b16 %v370
    %v2595 = vunpack.c.h.b16 %v370
    %v2596 = vunpack.c.l.b16 %v371
    %v2597 = vunpack.c.h.b16 %v371
    %v2598 = vunpack.c.l.b16 %v372
    %v2599 = vunpack.c.h.b16 %v372
    %v2600 = vunpack.c.l.b16 %v373
    %v2601 = vunpack.c.h.b16 %v373
    %v2602 = vunpack.c.l.b16 %v374
    %v2603 = vunpack.c.h.b16 %v374
    %v2604 = vunpack.c.l.b16 %v375
    %v2605 = vunpack.c.h.b16 %v375
    %v2606 = vunpack.c.l.b16 %v376
    %v2607 = vunpack.c.h.b16 %v376
    %v2608 = vunpack.c.l.b16 %v377
    %v2609 = vunpack.c.h.b16 %v377
    %v2610 = vunpack.c.l.b16 %v378
    %v2611 = vunpack.c.h.b16 %v378
    %v2612 = vunpack.c.l.b16 %v379
    %v2613 = vunpack.c.h.b16 %v379
    %v2614 = vunpack.c.l.b16 %v380
    %v2615 = vunpack.c.h.b16 %v380
    %v2616 = vunpack.c.l.b16 %v381
    %v2617 = vunpack.c.h.b16 %v381
    %v2618 = vunpack.c.l.b16 %v382
    %v2619 = vunpack.c.h.b16 %v382
    %v2620 = vunpack.c.l.b16 %v383
    %v2621 = vunpack.c.h.b16 %v383
    %v2622 = vunpack.c.l.b16 %v384
    %v2623 = vunpack.c.h.b16 %v384
    %v2624 = vunpack.c.l.b16 %v385
    %v2625 = vunpack.c.h.b16 %v385
    %v2626 = vunpack.c.l.b16 %v386
    %v2627 = vunpack.c.h.b16 %v386
    %v2628 = vunpack.c.l.b16 %v387
    %v2629 = vunpack.c.h.b16 %v387
    %v2630 = vunpack.c.l.b16 %v388
    %v2631 = vunpack.c.h.b16 %v388
    %v2632 = vunpack.c.l.b16 %v389
    %v2633 = vunpack.c.h.b16 %v389
    %v2634 = vunpack.c.l.b16 %v390
    %v2635 = vunpack.c.h.b16 %v390
    %v2636 = vunpack.c.l.b16 %v391
    %v2637 = vunpack.c.h.b16 %v391
    %v2638 = vunpack.c.l.b16 %v392
    %v2639 = vunpack.c.h.b16 %v392
    %v2640 = vunpack.c.l.b16 %v393
    %v2641 = vunpack.c.h.b16 %v393
    %v2642 = vunpack.c.l.b16 %v394
    %v2643 = vunpack.c.h.b16 %v394
    %v2644 = vunpack.c.l.b16 %v395
    %v2645 = vunpack.c.h.b16 %v395
    %v2646 = vunpack.c.l.b16 %v396
    %v2647 = vunpack.c.h.b16 %v396
    %v2648 = vunpack.c.l.b16 %v397
    %v2649 = vunpack.c.h.b16 %v397
    %v2650 = vunpack.c.l.b16 %v398
    %v2651 = vunpack.c.h.b16 %v398
    %v2652 = vunpack.c.l.b16 %v399
    %v2653 = vunpack.c.h.b16 %v399
    %v2654 = vunpack.c.l.b16 %v400
    %v2655 = vunpack.c.h.b16 %v400
    %v2656 = vunpack.c.l.b16 %v401
    %v2657 = vunpack.c.h.b16 %v401
    %v2658 = vunpack.c.l.b16 %v402
    %v2659 = vunpack.c.h.b16 %v402
    %v2660 = vunpack.c.l.b16 %v403
    %v2661 = vunpack.c.h.b16 %v403
    %v2662 = vunpack.c.l.b16 %v404
    %v2663 = vunpack.c.h.b16 %v404
    %v2664 = vunpack.c.l.b16 %v405
    %v2665 = vunpack.c.h.b16 %v405
    %v2666 = vunpack.c.l.b16 %v406
    %v2667 = vunpack.c.h.b16 %v406
    %v2668 = vunpack.c.l.b16 %v407
    %v2669 = vunpack.c.h.b16 %v407
    %v2670 = vunpack.c.l.b16 %v408
    %v2671 = vunpack.c.h.b16 %v408
    %v2672 = vunpack.c.l.b16 %v409
    %v2673 = vunpack.c.h.b16 %v409
    %v2674 = vunpack.c.l.b16 %v410
    %v2675 = vunpack.c.h.b16 %v410
    %v2676 = vunpack.c.l.b16 %v411
    %v2677 = vunpack.c.h.b16 %v411
    %v2678 = vunpack.c.l.b16 %v412
    %v2679 = vunpack.c.h.b16 %v412
    %v2680 = vunpack.c.l.b16 %v413
    %v2681 = vunpack.c.h.b16 %v413
    %v2682 = vunpack.c.l.b16 %v414
    %v2683 = vunpack.c.h.b16 %v414
    %v2684 = vunpack.c.l.b16 %v415
    %v2685 = vunpack.c.h.b16 %v415
    %v2686 = vunpack.c.l.b16 %v416
    %v2687 = vunpack.c.h.b16 %v416
    %v2688 = vunpack.c.l.b16 %v417
    %v2689 = vunpack.c.h.b16 %v417
    %v2690 = vunpack.c.l.b16 %v418
    %v2691 = vunpack.c.h.b16 %v418
    %v2692 = vunpack.c.l.b16 %v419
    %v2693 = vunpack.c.h.b16 %v419
    %v2694 = vunpack.c.l.b16 %v420
    %v2695 = vunpack.c.h.b16 %v420
    %v2696 = vunpack.c.l.b16 %v421
    %v2697 = vunpack.c.h.b16 %v421
    %v2698 = vunpack.c.l.b16 %v422
    %v2699 = vunpack.c.h.b16 %v422
    %v2700 = vunpack.c.l.b16 %v423
    %v2701 = vunpack.c.h.b16 %v423
    %v2702 = vunpack.c.l.b16 %v424
    %v2703 = vunpack.c.h.b16 %v424
    %v2704 = vunpack.c.l.b16 %v425
    %v2705 = vunpack.c.h.b16 %v425
    %v2706 = vunpack.c.l.b16 %v426
    %v2707 = vunpack.c.h.b16 %v426
    %v2708 = vunpack.c.l.b16 %v427
    %v2709 = vunpack.c.h.b16 %v427
    %v2710 = vunpack.c.l.b16 %v428
    %v2711 = vunpack.c.h.b16 %v428
    %v2712 = vunpack.c.l.b16 %v429
    %v2713 = vunpack.c.h.b16 %v429
    %v2714 = vunpack.c.l.b16 %v430
    %v2715 = vunpack.c.h.b16 %v430
    %v2716 = vunpack.c.l.b16 %v431
    %v2717 = vunpack.c.h.b16 %v431
    %v2718 = vunpack.c.l.b16 %v432
    %v2719 = vunpack.c.h.b16 %v432
    %v2720 = vunpack.c.l.b16 %v433
    %v2721 = vunpack.c.h.b16 %v433
    %v2722 = vunpack.c.l.b16 %v434
    %v2723 = vunpack.c.h.b16 %v434
    %v2724 = vunpack.c.l.b16 %v435
    %v2725 = vunpack.c.h.b16 %v435
    %v2726 = vunpack.c.l.b16 %v436
    %v2727 = vunpack.c.h.b16 %v436
    %v2728 = vunpack.c.l.b16 %v437
    %v2729 = vunpack.c.h.b16 %v437
    %v2730 = vunpack.c.l.b16 %v438
    %v2731 = vunpack.c.h.b16 %v438
    %v2732 = vunpack.c.l.b16 %v439
    %v2733 = vunpack.c.h.b16 %v439
    %v2734 = vunpack.c.l.b16 %v440
    %v2735 = vunpack.c.h.b16 %v440
    %v2736 = vunpack.c.l.b16 %v441
    %v2737 = vunpack.c.h.b16 %v441
    %v2738 = vunpack.c.l.b16 %v442
    %v2739 = vunpack.c.h.b16 %v442
    %v2740 = vunpack.c.l.b16 %v443
    %v2741 = vunpack.c.h.b16 %v443
    %v2742 = vunpack.c.l.b16 %v444
    %v2743 = vunpack.c.h.b16 %v444
    %v2744 = vunpack.c.l.b16 %v445
    %v2745 = vunpack.c.h.b16 %v445
    %v2746 = vunpack.c.l.b16 %v446
    %v2747 = vunpack.c.h.b16 %v446
    %v2748 = vunpack.c.l.b16 %v447
    %v2749 = vunpack.c.h.b16 %v447
    %v2750 = vunpack.c.l.b16 %v448
    %v2751 = vunpack.c.h.b16 %v448
    %v2752 = vunpack.c.l.b16 %v449
    %v2753 = vunpack.c.h.b16 %v449
    %v2754 = vunpack.c.l.b16 %v450
    %v2755 = vunpack.c.h.b16 %v450
    %v2756 = vunpack.c.l.b16 %v451
    %v2757 = vunpack.c.h.b16 %v451
    %v2758 = vunpack.c.l.b16 %v452
    %v2759 = vunpack.c.h.b16 %v452
    %v2760 = vunpack.c.l.b16 %v453
    %v2761 = vunpack.c.h.b16 %v453
    %v2762 = vunpack.c.l.b16 %v454
    %v2763 = vunpack.c.h.b16 %v454
    %v2764 = vunpack.c.l.b16 %v455
    %v2765 = vunpack.c.h.b16 %v455
    %v2766 = vunpack.c.l.b16 %v456
    %v2767 = vunpack.c.h.b16 %v456
    %v2768 = vunpack.c.l.b16 %v457
    %v2769 = vunpack.c.h.b16 %v457
    %v2770 = vunpack.c.l.b16 %v458
    %v2771 = vunpack.c.h.b16 %v458
    %v2772 = vunpack.c.l.b16 %v459
    %v2773 = vunpack.c.h.b16 %v459
    %v2774 = vunpack.c.l.b16 %v460
    %v2775 = vunpack.c.h.b16 %v460
    %v2776 = vunpack.c.l.b16 %v461
    %v2777 = vunpack.c.h.b16 %v461
    %v2778 = vunpack.c.l.b16 %v462
    %v2779 = vunpack.c.h.b16 %v462
    %v2780 = vunpack.c.l.b16 %v463
    %v2781 = vunpack.c.h.b16 %v463
    %v2782 = vunpack.c.l.b16 %v464
    %v2783 = vunpack.c.h.b16 %v464
    %v2784 = vunpack.c.l.b16 %v465
    %v2785 = vunpack.c.h.b16 %v465
    %v2786 = vunpack.c.l.b16 %v466
    %v2787 = vunpack.c.h.b16 %v466
    %v2788 = vunpack.c.l.b16 %v467
    %v2789 = vunpack.c.h.b16 %v467
    %v2790 = vunpack.c.l.b16 %v468
    %v2791 = vunpack.c.h.b16 %v468
    %v2792 = vunpack.c.l.b16 %v469
    %v2793 = vunpack.c.h.b16 %v469
    %v2794 = vunpack.c.l.b16 %v470
    %v2795 = vunpack.c.h.b16 %v470
    %v2796 = vunpack.c.l.b16 %v471
    %v2797 = vunpack.c.h.b16 %v471
    %v2798 = vunpack.c.l.b16 %v472
    %v2799 = vunpack.c.h.b16 %v472
    %v2800 = vunpack.c.l.b16 %v473
    %v2801 = vunpack.c.h.b16 %v473
    %v2802 = vunpack.c.l.b16 %v474
    %v2803 = vunpack.c.h.b16 %v474
    %v2804 = vunpack.c.l.b16 %v475
    %v2805 = vunpack.c.h.b16 %v475
    %v2806 = vunpack.c.l.b16 %v476
    %v2807 = vunpack.c.h.b16 %v476
    %v2808 = vunpack.c.l.b16 %v477
    %v2809 = vunpack.c.h.b16 %v477
    %v2810 = vunpack.c.l.b16 %v478
    %v2811 = vunpack.c.h.b16 %v478
    %v2812 = vunpack.c.l.b16 %v479
    %v2813 = vunpack.c.h.b16 %v479
    %v2814 = vunpack.c.l.b16 %v480
    %v2815 = vunpack.c.h.b16 %v480
    %v2816 = vunpack.c.l.b16 %v481
    %v2817 = vunpack.c.h.b16 %v481
    %v2818 = vunpack.c.l.b16 %v482
    %v2819 = vunpack.c.h.b16 %v482
    %v2820 = vunpack.c.l.b16 %v483
    %v2821 = vunpack.c.h.b16 %v483
    %v2822 = vunpack.c.l.b16 %v484
    %v2823 = vunpack.c.h.b16 %v484
    %v2824 = vunpack.c.l.b16 %v485
    %v2825 = vunpack.c.h.b16 %v485
    %v2826 = vunpack.c.l.b16 %v486
    %v2827 = vunpack.c.h.b16 %v486
    %v2828 = vunpack.c.l.b16 %v487
    %v2829 = vunpack.c.h.b16 %v487
    %v2830 = vunpack.c.l.b16 %v488
    %v2831 = vunpack.c.h.b16 %v488
    %v2832 = vunpack.c.l.b16 %v489
    %v2833 = vunpack.c.h.b16 %v489
    %v2834 = vunpack.c.l.b16 %v490
    %v2835 = vunpack.c.h.b16 %v490
    %v2836 = vunpack.c.l.b16 %v491
    %v2837 = vunpack.c.h.b16 %v491
    %v2838 = vunpack.c.l.b16 %v492
    %v2839 = vunpack.c.h.b16 %v492
    %v2840 = vunpack.c.l.b16 %v493
    %v2841 = vunpack.c.h.b16 %v493
    %v2842 = vunpack.c.l.b16 %v494
    %v2843 = vunpack.c.h.b16 %v494
    %v2844 = vunpack.c.l.b16 %v495
    %v2845 = vunpack.c.h.b16 %v495
    %v2846 = vunpack.c.l.b16 %v496
    %v2847 = vunpack.c.h.b16 %v496
    %v2848 = vunpack.c.l.b16 %v497
    %v2849 = vunpack.c.h.b16 %v497
    %v2850 = vunpack.c.l.b16 %v498
    %v2851 = vunpack.c.h.b16 %v498
    %v2852 = vunpack.c.l.b16 %v499
    %v2853 = vunpack.c.h.b16 %v499
    %v2854 = vunpack.c.l.b16 %v500
    %v2855 = vunpack.c.h.b16 %v500
    %v2856 = vunpack.c.l.b16 %v501
    %v2857 = vunpack.c.h.b16 %v501
    %v2858 = vunpack.c.l.b16 %v502
    %v2859 = vunpack.c.h.b16 %v502
    %v2860 = vunpack.c.l.b16 %v503
    %v2861 = vunpack.c.h.b16 %v503
    %v2862 = vunpack.c.l.b16 %v504
    %v2863 = vunpack.c.h.b16 %v504
    %v2864 = vunpack.c.l.b16 %v505
    %v2865 = vunpack.c.h.b16 %v505
    %v2866 = vunpack.c.l.b16 %v506
    %v2867 = vunpack.c.h.b16 %v506
    %v2868 = vunpack.c.l.b16 %v507
    %v2869 = vunpack.c.h.b16 %v507
    %v2870 = vunpack.c.l.b16 %v508
    %v2871 = vunpack.c.h.b16 %v508
    %v2872 = vunpack.c.l.b16 %v509
    %v2873 = vunpack.c.h.b16 %v509
    %v2874 = vunpack.c.l.b16 %v510
    %v2875 = vunpack.c.h.b16 %v510
    %v2876 = vunpack.c.l.b16 %v511
    %v2877 = vunpack.c.h.b16 %v511
    %v2878 = vunpack.c.l.b16 %v512
    %v2879 = vunpack.c.h.b16 %v512
    %v2880 = vunpack.c.l.b16 %v513
    %v2881 = vunpack.c.h.b16 %v513
    %v2882 = vunpack.c.l.b16 %v514
    %v2883 = vunpack.c.h.b16 %v514
    %v2884 = vunpack.c.l.b16 %v515
    %v2885 = vunpack.c.h.b16 %v515
    %v2886 = vunpack.c.l.b16 %v516
    %v2887 = vunpack.c.h.b16 %v516
    %v2888 = vunpack.c.l.b16 %v517
    %v2889 = vunpack.c.h.b16 %v517
    %v2890 = vunpack.c.l.b16 %v518
    %v2891 = vunpack.c.h.b16 %v518
    %v2892 = vunpack.c.l.b16 %v519
    %v2893 = vunpack.c.h.b16 %v519
    %v2894 = vunpack.c.l.b16 %v520
    %v2895 = vunpack.c.h.b16 %v520
    %v2896 = vunpack.c.l.b16 %v521
    %v2897 = vunpack.c.h.b16 %v521
    %v2898 = vunpack.c.l.b16 %v522
    %v2899 = vunpack.c.h.b16 %v522
    %v2900 = vunpack.c.l.b16 %v523
    %v2901 = vunpack.c.h.b16 %v523
    %v2902 = vunpack.c.l.b16 %v524
    %v2903 = vunpack.c.h.b16 %v524
    %v2904 = vunpack.c.l.b16 %v525
    %v2905 = vunpack.c.h.b16 %v525
    %v2906 = vunpack.c.l.b16 %v526
    %v2907 = vunpack.c.h.b16 %v526
    %v2908 = vunpack.c.l.b16 %v527
    %v2909 = vunpack.c.h.b16 %v527
    %v2910 = vunpack.c.l.b16 %v528
    %v2911 = vunpack.c.h.b16 %v528
    %v2912 = vunpack.c.l.b16 %v529
    %v2913 = vunpack.c.h.b16 %v529
    %v2914 = vunpack.c.l.b16 %v530
    %v2915 = vunpack.c.h.b16 %v530
    %v2916 = vunpack.c.l.b16 %v531
    %v2917 = vunpack.c.h.b16 %v531
    %v2918 = vunpack.c.l.b16 %v532
    %v2919 = vunpack.c.h.b16 %v532
    %v2920 = vunpack.c.l.b16 %v533
    %v2921 = vunpack.c.h.b16 %v533
    %v2922 = vunpack.c.l.b16 %v534
    %v2923 = vunpack.c.h.b16 %v534
    %v2924 = vunpack.c.l.b16 %v535
    %v2925 = vunpack.c.h.b16 %v535
    %v2926 = vunpack.c.l.b16 %v536
    %v2927 = vunpack.c.h.b16 %v536
    %v2928 = vunpack.c.l.b16 %v537
    %v2929 = vunpack.c.h.b16 %v537
    %v2930 = vunpack.c.l.b16 %v538
    %v2931 = vunpack.c.h.b16 %v538
    %v2932 = vunpack.c.l.b16 %v539
    %v2933 = vunpack.c.h.b16 %v539
    %v2934 = vunpack.c.l.b16 %v540
    %v2935 = vunpack.c.h.b16 %v540
    %v2936 = vunpack.c.l.b16 %v541
    %v2937 = vunpack.c.h.b16 %v541
    %v2938 = vunpack.c.l.b16 %v542
    %v2939 = vunpack.c.h.b16 %v542
    %v2940 = vunpack.c.l.b16 %v543
    %v2941 = vunpack.c.h.b16 %v543
    %v2942 = vunpack.c.l.b16 %v544
    %v2943 = vunpack.c.h.b16 %v544
    %v2944 = vunpack.c.l.b16 %v545
    %v2945 = vunpack.c.h.b16 %v545
    %v2946 = vunpack.c.l.b16 %v546
    %v2947 = vunpack.c.h.b16 %v546
    %v2948 = vunpack.c.l.b16 %v547
    %v2949 = vunpack.c.h.b16 %v547
    %v2950 = vunpack.c.l.b16 %v548
    %v2951 = vunpack.c.h.b16 %v548
    %v2952 = vunpack.c.l.b16 %v549
    %v2953 = vunpack.c.h.b16 %v549
    %v2954 = vunpack.c.l.b16 %v550
    %v2955 = vunpack.c.h.b16 %v550
    %v2956 = vunpack.c.l.b16 %v551
    %v2957 = vunpack.c.h.b16 %v551
    %v2958 = vunpack.c.l.b16 %v552
    %v2959 = vunpack.c.h.b16 %v552
    %v2960 = vunpack.c.l.b16 %v553
    %v2961 = vunpack.c.h.b16 %v553
    %v2962 = vunpack.c.l.b16 %v554
    %v2963 = vunpack.c.h.b16 %v554
    %v2964 = vunpack.c.l.b16 %v555
    %v2965 = vunpack.c.h.b16 %v555
    %v2966 = vunpack.c.l.b16 %v556
    %v2967 = vunpack.c.h.b16 %v556
    %v2968 = vunpack.c.l.b16 %v557
    %v2969 = vunpack.c.h.b16 %v557
    %v2970 = vunpack.c.l.b16 %v558
    %v2971 = vunpack.c.h.b16 %v558
    %v2972 = vunpack.c.l.b16 %v559
    %v2973 = vunpack.c.h.b16 %v559
    %v2974 = vunpack.c.l.b16 %v560
    %v2975 = vunpack.c.h.b16 %v560
    %v2976 = vunpack.c.l.b16 %v561
    %v2977 = vunpack.c.h.b16 %v561
    %v2978 = vunpack.c.l.b16 %v562
    %v2979 = vunpack.c.h.b16 %v562
    %v2980 = vunpack.c.l.b16 %v563
    %v2981 = vunpack.c.h.b16 %v563
    %v2982 = vunpack.c.l.b16 %v564
    %v2983 = vunpack.c.h.b16 %v564
    %v2984 = vunpack.c.l.b16 %v565
    %v2985 = vunpack.c.h.b16 %v565
    %v2986 = vunpack.c.l.b16 %v566
    %v2987 = vunpack.c.h.b16 %v566
    %v2988 = vunpack.c.l.b16 %v567
    %v2989 = vunpack.c.h.b16 %v567
    %v2990 = vunpack.c.l.b16 %v568
    %v2991 = vunpack.c.h.b16 %v568
    %v2992 = vunpack.c.l.b16 %v569
    %v2993 = vunpack.c.h.b16 %v569
    %v2994 = vunpack.c.l.b16 %v570
    %v2995 = vunpack.c.h.b16 %v570
    %v2996 = vunpack.c.l.b16 %v571
    %v2997 = vunpack.c.h.b16 %v571
    %v2998 = vunpack.c.l.b16 %v572
    %v2999 = vunpack.c.h.b16 %v572
    %v3000 = vunpack.c.l.b16 %v573
    %v3001 = vunpack.c.h.b16 %v573
    %v3002 = vunpack.c.l.b16 %v574
    %v3003 = vunpack.c.h.b16 %v574
    %v3004 = vunpack.c.l.b16 %v575
    %v3005 = vunpack.c.h.b16 %v575
    %v3006 = vunpack.c.l.b16 %v576
    %v3007 = vunpack.c.h.b16 %v576
    %v3008 = vunpack.c.l.b16 %v577
    %v3009 = vunpack.c.h.b16 %v577
    %v3010 = vunpack.c.l.b16 %v578
    %v3011 = vunpack.c.h.b16 %v578
    %v3012 = vunpack.c.l.b16 %v579
    %v3013 = vunpack.c.h.b16 %v579
    %v3014 = vunpack.c.l.b16 %v580
    %v3015 = vunpack.c.h.b16 %v580
    %v3016 = vunpack.c.l.b16 %v581
    %v3017 = vunpack.c.h.b16 %v581
    %v3018 = vunpack.c.l.b16 %v582
    %v3019 = vunpack.c.h.b16 %v582
    %v3020 = vunpack.c.l.b16 %v583
    %v3021 = vunpack.c.h.b16 %v583
    %v3022 = vunpack.c.l.b16 %v584
    %v3023 = vunpack.c.h.b16 %v584
    %v3024 = vunpack.c.l.b16 %v585
    %v3025 = vunpack.c.h.b16 %v585
    %v3026 = vunpack.c.l.b16 %v586
    %v3027 = vunpack.c.h.b16 %v586
    %v3028 = vunpack.c.l.b16 %v587
    %v3029 = vunpack.c.h.b16 %v587
    %v3030 = vunpack.c.l.b16 %v588
    %v3031 = vunpack.c.h.b16 %v588
    %v3032 = vunpack.c.l.b16 %v589
    %v3033 = vunpack.c.h.b16 %v589
    %v3034 = vunpack.c.l.b16 %v590
    %v3035 = vunpack.c.h.b16 %v590
    %v3036 = vunpack.c.l.b16 %v591
    %v3037 = vunpack.c.h.b16 %v591
    %v3038 = vunpack.c.l.b16 %v592
    %v3039 = vunpack.c.h.b16 %v592
    %v3040 = vpack.c.b16 %v2532, %v2528
    %v3041 = vpack.c.b16 %v2533, %v2529
    %v3042 = vpack.c.b16 %v2534, %v2530
    %v3043 = vpack.c.b16 %v2535, %v2531
    %v3044 = vpack.c.b16 %v2540, %v2536
    %v3045 = vpack.c.b16 %v2541, %v2537
    %v3046 = vpack.c.b16 %v2542, %v2538
    %v3047 = vpack.c.b16 %v2543, %v2539
    %v3048 = vpack.c.b16 %v2548, %v2544
    %v3049 = vpack.c.b16 %v2549, %v2545
    %v3050 = vpack.c.b16 %v2550, %v2546
    %v3051 = vpack.c.b16 %v2551, %v2547
    %v3052 = vpack.c.b16 %v2556, %v2552
    %v3053 = vpack.c.b16 %v2557, %v2553
    %v3054 = vpack.c.b16 %v2558, %v2554
    %v3055 = vpack.c.b16 %v2559, %v2555
    %v3056 = vpack.c.b16 %v2564, %v2560
    %v3057 = vpack.c.b16 %v2565, %v2561
    %v3058 = vpack.c.b16 %v2566, %v2562
    %v3059 = vpack.c.b16 %v2567, %v2563
    %v3060 = vpack.c.b16 %v2572, %v2568
    %v3061 = vpack.c.b16 %v2573, %v2569
    %v3062 = vpack.c.b16 %v2574, %v2570
    %v3063 = vpack.c.b16 %v2575, %v2571
    %v3064 = vpack.c.b16 %v2580, %v2576
    %v3065 = vpack.c.b16 %v2581, %v2577
    %v3066 = vpack.c.b16 %v2582, %v2578
    %v3067 = vpack.c.b16 %v2583, %v2579
    %v3068 = vpack.c.b16 %v2588, %v2584
    %v3069 = vpack.c.b16 %v2589, %v2585
    %v3070 = vpack.c.b16 %v2590, %v2586
    %v3071 = vpack.c.b16 %v2591, %v2587
    %v3072 = vpack.c.b16 %v2596, %v2592
    %v3073 = vpack.c.b16 %v2597, %v2593
    %v3074 = vpack.c.b16 %v2598, %v2594
    %v3075 = vpack.c.b16 %v2599, %v2595
    %v3076 = vpack.c.b16 %v2604, %v2600
    %v3077 = vpack.c.b16 %v2605, %v2601
    %v3078 = vpack.c.b16 %v2606, %v2602
    %v3079 = vpack.c.b16 %v2607, %v2603
    %v3080 = vpack.c.b16 %v2612, %v2608
    %v3081 = vpack.c.b16 %v2613, %v2609
    %v3082 = vpack.c.b16 %v2614, %v2610
    %v3083 = vpack.c.b16 %v2615, %v2611
    %v3084 = vpack.c.b16 %v2620, %v2616
    %v3085 = vpack.c.b16 %v2621, %v2617
    %v3086 = vpack.c.b16 %v2622, %v2618
    %v3087 = vpack.c.b16 %v2623, %v2619
    %v3088 = vpack.c.b16 %v2628, %v2624
    %v3089 = vpack.c.b16 %v2629, %v2625
    %v3090 = vpack.c.b16 %v2630, %v2626
    %v3091 = vpack.c.b16 %v2631, %v2627
    %v3092 = vpack.c.b16 %v2636, %v2632
    %v3093 = vpack.c.b16 %v2637, %v2633
    %v3094 = vpack.c.b16 %v2638, %v2634
    %v3095 = vpack.c.b16 %v2639, %v2635
    %v3096 = vpack.c.b16 %v2644, %v2640
    %v3097 = vpack.c.b16 %v2645, %v2641
    %v3098 = vpack.c.b16 %v2646, %v2642
    %v3099 = vpack.c.b16 %v2647, %v2643
    %v3100 = vpack.c.b16 %v2652, %v2648
    %v3101 = vpack.c.b16 %v2653, %v2649
    %v3102 = vpack.c.b16 %v2654, %v2650
    %v3103 = vpack.c.b16 %v2655, %v2651
    %v3104 = vpack.c.b16 %v2660, %v2656
    %v3105 = vpack.c.b16 %v2661, %v2657
    %v3106 = vpack.c.b16 %v2662, %v2658
    %v3107 = vpack.c.b16 %v2663, %v2659
    %v3108 = vpack.c.b16 %v2668, %v2664
    %v3109 = vpack.c.b16 %v2669, %v2665
    %v3110 = vpack.c.b16 %v2670, %v2666
    %v3111 = vpack.c.b16 %v2671, %v2667
    %v3112 = vpack.c.b16 %v2676, %v2672
    %v3113 = vpack.c.b16 %v2677, %v2673
    %v3114 = vpack.c.b16 %v2678, %v2674
    %v3115 = vpack.c.b16 %v2679, %v2675
    %v3116 = vpack.c.b16 %v2684, %v2680
    %v3117 = vpack.c.b16 %v2685, %v2681
    %v3118 = vpack.c.b16 %v2686, %v2682
    %v3119 = vpack.c.b16 %v2687, %v2683
    %v3120 = vpack.c.b16 %v2692, %v2688
    %v3121 = vpack.c.b16 %v2693, %v2689
    %v3122 = vpack.c.b16 %v2694, %v2690
    %v3123 = vpack.c.b16 %v2695, %v2691
    %v3124 = vpack.c.b16 %v2700, %v2696
    %v3125 = vpack.c.b16 %v2701, %v2697
    %v3126 = vpack.c.b16 %v2702, %v2698
    %v3127 = vpack.c.b16 %v2703, %v2699
    %v3128 = vpack.c.b16 %v2708, %v2704
    %v3129 = vpack.c.b16 %v2709, %v2705
    %v3130 = vpack.c.b16 %v2710, %v2706
    %v3131 = vpack.c.b16 %v2711, %v2707
    %v3132 = vpack.c.b16 %v2716, %v2712
    %v3133 = vpack.c.b16 %v2717, %v2713
    %v3134 = vpack.c.b16 %v2718, %v2714
    %v3135 = vpack.c.b16 %v2719, %v2715
    %v3136 = vpack.c.b16 %v2724, %v2720
    %v3137 = vpack.c.b16 %v2725, %v2721
    %v3138 = vpack.c.b16 %v2726, %v2722
    %v3139 = vpack.c.b16 %v2727, %v2723
    %v3140 = vpack.c.b16 %v2732, %v2728
    %v3141 = vpack.c.b16 %v2733, %v2729
    %v3142 = vpack.c.b16 %v2734, %v2730
    %v3143 = vpack.c.b16 %v2735, %v2731
    %v3144 = vpack.c.b16 %v2740, %v2736
    %v3145 = vpack.c.b16 %v2741, %v2737
    %v3146 = vpack.c.b16 %v2742, %v2738
    %v3147 = vpack.c.b16 %v2743, %v2739
    %v3148 = vpack.c.b16 %v2748, %v2744
    %v3149 = vpack.c.b16 %v2749, %v2745
    %v3150 = vpack.c.b16 %v2750, %v2746
    %v3151 = vpack.c.b16 %v2751, %v2747
    %v3152 = vpack.c.b16 %v2756, %v2752
    %v3153 = vpack.c.b16 %v2757, %v2753
    %v3154 = vpack.c.b16 %v2758, %v2754
    %v3155 = vpack.c.b16 %v2759, %v2755
    %v3156 = vpack.c.b16 %v2764, %v2760
    %v3157 = vpack.c.b16 %v2765, %v2761
    %v3158 = vpack.c.b16 %v2766, %v2762
    %v3159 = vpack.c.b16 %v2767, %v2763
    %v3160 = vpack.c.b16 %v2772, %v2768
    %v3161 = vpack.c.b16 %v2773, %v2769
    %v3162 = vpack.c.b16 %v2774, %v2770
    %v3163 = vpack.c.b16 %v2775, %v2771
    %v3164 = vpack.c.b16 %v2780, %v2776
    %v3165 = vpack.c.b16 %v2781, %v2777
    %v3166 = vpack.c.b16 %v2782, %v2778
    %v3167 = vpack.c.b16 %v2783, %v2779
    %v3168 = vpack.c.b16 %v2788, %v2784
    %v3169 = vpack.c.b16 %v2789, %v2785
    %v3170 = vpack.c.b16 %v2790, %v2786
    %v3171 = vpack.c.b16 %v2791, %v2787
    %v3172 = vpack.c.b16 %v2796, %v2792
    %v3173 = vpack.c.b16 %v2797, %v2793
    %v3174 = vpack.c.b16 %v2798, %v2794
    %v3175 = vpack.c.b16 %v2799, %v2795
    %v3176 = vpack.c.b16 %v2804, %v2800
    %v3177 = vpack.c.b16 %v2805, %v2801
    %v3178 = vpack.c.b16 %v2806, %v2802
    %v3179 = vpack.c.b16 %v2807, %v2803
    %v3180 = vpack.c.b16 %v2812, %v2808
    %v3181 = vpack.c.b16 %v2813, %v2809
    %v3182 = vpack.c.b16 %v2814, %v2810
    %v3183 = vpack.c.b16 %v2815, %v2811
    %v3184 = vpack.c.b16 %v2820, %v2816
    %v3185 = vpack.c.b16 %v2821, %v2817
    %v3186 = vpack.c.b16 %v2822, %v2818
    %v3187 = vpack.c.b16 %v2823, %v2819
    %v3188 = vpack.c.b16 %v2828, %v2824
    %v3189 = vpack.c.b16 %v2829, %v2825
    %v3190 = vpack.c.b16 %v2830, %v2826
    %v3191 = vpack.c.b16 %v2831, %v2827
    %v3192 = vpack.c.b16 %v2836, %v2832
    %v3193 = vpack.c.b16 %v2837, %v2833
    %v3194 = vpack.c.b16 %v2838, %v2834
    %v3195 = vpack.c.b16 %v2839, %v2835
    %v3196 = vpack.c.b16 %v2844, %v2840
    %v3197 = vpack.c.b16 %v2845, %v2841
    %v3198 = vpack.c.b16 %v2846, %v2842
    %v3199 = vpack.c.b16 %v2847, %v2843
    %v3200 = vpack.c.b16 %v2852, %v2848
    %v3201 = vpack.c.b16 %v2853, %v2849
    %v3202 = vpack.c.b16 %v2854, %v2850
    %v3203 = vpack.c.b16 %v2855, %v2851
    %v3204 = vpack.c.b16 %v2860, %v2856
    %v3205 = vpack.c.b16 %v2861, %v2857
    %v3206 = vpack.c.b16 %v2862, %v2858
    %v3207 = vpack.c.b16 %v2863, %v2859
    %v3208 = vpack.c.b16 %v2868, %v2864
    %v3209 = vpack.c.b16 %v2869, %v2865
    %v3210 = vpack.c.b16 %v2870, %v2866
    %v3211 = vpack.c.b16 %v2871, %v2867
    %v3212 = vpack.c.b16 %v2876, %v2872
    %v3213 = vpack.c.b16 %v2877, %v2873
    %v3214 = vpack.c.b16 %v2878, %v2874
    %v3215 = vpack.c.b16 %v2879, %v2875
    %v3216 = vpack.c.b16 %v2884, %v2880
    %v3217 = vpack.c.b16 %v2885, %v2881
    %v3218 = vpack.c.b16 %v2886, %v2882
    %v3219 = vpack.c.b16 %v2887, %v2883
    %v3220 = vpack.c.b16 %v2892, %v2888
    %v3221 = vpack.c.b16 %v2893, %v2889
    %v3222 = vpack.c.b16 %v2894, %v2890
    %v3223 = vpack.c.b16 %v2895, %v2891
    %v3224 = vpack.c.b16 %v2900, %v2896
    %v3225 = vpack.c.b16 %v2901, %v2897
    %v3226 = vpack.c.b16 %v2902, %v2898
    %v3227 = vpack.c.b16 %v2903, %v2899
    %v3228 = vpack.c.b16 %v2908, %v2904
    %v3229 = vpack.c.b16 %v2909, %v2905
    %v3230 = vpack.c.b16 %v2910, %v2906
    %v3231 = vpack.c.b16 %v2911, %v2907
    %v3232 = vpack.c.b16 %v2916, %v2912
    %v3233 = vpack.c.b16 %v2917, %v2913
    %v3234 = vpack.c.b16 %v2918, %v2914
    %v3235 = vpack.c.b16 %v2919, %v2915
    %v3236 = vpack.c.b16 %v2924, %v2920
    %v3237 = vpack.c.b16 %v2925, %v2921
    %v3238 = vpack.c.b16 %v2926, %v2922
    %v3239 = vpack.c.b16 %v2927, %v2923
    %v3240 = vpack.c.b16 %v2932, %v2928
    %v3241 = vpack.c.b16 %v2933, %v2929
    %v3242 = vpack.c.b16 %v2934, %v2930
    %v3243 = vpack.c.b16 %v2935, %v2931
    %v3244 = vpack.c.b16 %v2940, %v2936
    %v3245 = vpack.c.b16 %v2941, %v2937
    %v3246 = vpack.c.b16 %v2942, %v2938
    %v3247 = vpack.c.b16 %v2943, %v2939
    %v3248 = vpack.c.b16 %v2948, %v2944
    %v3249 = vpack.c.b16 %v2949, %v2945
    %v3250 = vpack.c.b16 %v2950, %v2946
    %v3251 = vpack.c.b16 %v2951, %v2947
    %v3252 = vpack.c.b16 %v2956, %v2952
    %v3253 = vpack.c.b16 %v2957, %v2953
    %v3254 = vpack.c.b16 %v2958, %v2954
    %v3255 = vpack.c.b16 %v2959, %v2955
    %v3256 = vpack.c.b16 %v2964, %v2960
    %v3257 = vpack.c.b16 %v2965, %v2961
    %v3258 = vpack.c.b16 %v2966, %v2962
    %v3259 = vpack.c.b16 %v2967, %v2963
    %v3260 = vpack.c.b16 %v2972, %v2968
    %v3261 = vpack.c.b16 %v2973, %v2969
    %v3262 = vpack.c.b16 %v2974, %v2970
    %v3263 = vpack.c.b16 %v2975, %v2971
    %v3264 = vpack.c.b16 %v2980, %v2976
    %v3265 = vpack.c.b16 %v2981, %v2977
    %v3266 = vpack.c.b16 %v2982, %v2978
    %v3267 = vpack.c.b16 %v2983, %v2979
    %v3268 = vpack.c.b16 %v2988, %v2984
    %v3269 = vpack.c.b16 %v2989, %v2985
    %v3270 = vpack.c.b16 %v2990, %v2986
    %v3271 = vpack.c.b16 %v2991, %v2987
    %v3272 = vpack.c.b16 %v2996, %v2992
    %v3273 = vpack.c.b16 %v2997, %v2993
    %v3274 = vpack.c.b16 %v2998, %v2994
    %v3275 = vpack.c.b16 %v2999, %v2995
    %v3276 = vpack.c.b16 %v3004, %v3000
    %v3277 = vpack.c.b16 %v3005, %v3001
    %v3278 = vpack.c.b16 %v3006, %v3002
    %v3279 = vpack.c.b16 %v3007, %v3003
    %v3280 = vpack.c.b16 %v3012, %v3008
    %v3281 = vpack.c.b16 %v3013, %v3009
    %v3282 = vpack.c.b16 %v3014, %v3010
    %v3283 = vpack.c.b16 %v3015, %v3011
    %v3284 = vpack.c.b16 %v3020, %v3016
    %v3285 = vpack.c.b16 %v3021, %v3017
    %v3286 = vpack.c.b16 %v3022, %v3018
    %v3287 = vpack.c.b16 %v3023, %v3019
    %v3288 = vpack.c.b16 %v3028, %v3024
    %v3289 = vpack.c.b16 %v3029, %v3025
    %v3290 = vpack.c.b16 %v3030, %v3026
    %v3291 = vpack.c.b16 %v3031, %v3027
    %v3292 = vpack.c.b16 %v3036, %v3032
    %v3293 = vpack.c.b16 %v3037, %v3033
    %v3294 = vpack.c.b16 %v3038, %v3034
    %v3295 = vpack.c.b16 %v3039, %v3035
    %3552 = vmatprep.subr.bf16.mxu0 %v3069
    %3553 = vmatpush1.bf16.msra.mxu0 %v3068
    %3554 = vmatprep.subr.bf16.mxu0 %v3065
    %3555 = vmatpush1.bf16.msra.mxu0 %v3064
    %3556 = vmatprep.subr.bf16.mxu0 %v3061
    %3557 = vmatpush1.bf16.msra.mxu0 %v3060
    %3558 = vmatprep.subr.bf16.mxu0 %v3057
    %3559 = vmatpush1.bf16.msra.mxu0 %v3056
    %3560 = vmatprep.subr.bf16.mxu0 %v3053
    %3561 = vmatpush1.bf16.msra.mxu0 %v3052
    %3562 = vmatprep.subr.bf16.mxu0 %v3049
    %3563 = vmatpush1.bf16.msra.mxu0 %v3048
    %3564 = vmatprep.subr.bf16.mxu0 %v3045
    %3565 = vmatpush1.bf16.msra.mxu0 %v3044
    %3566 = vmatprep.subr.bf16.mxu0 %v3041
    %3567 = vmatpush1.bf16.msra.mxu0 %v3040
    %3568 = vmatprep.subr.bf16.mxu0 %v3101
    %3569 = vmatpush2.bf16.msra.mxu0 %v3100
    %3570 = vmatprep.subr.bf16.mxu0 %v3097
    %3571 = vmatpush2.bf16.msra.mxu0 %v3096
    %3572 = vmatprep.subr.bf16.mxu0 %v3093
    %3573 = vmatpush2.bf16.msra.mxu0 %v3092
    %3574 = vmatprep.subr.bf16.mxu0 %v3089
    %3575 = vmatpush2.bf16.msra.mxu0 %v3088
    %3576 = vmatprep.subr.bf16.mxu0 %v3085
    %3577 = vmatpush2.bf16.msra.mxu0 %v3084
    %3578 = vmatprep.subr.bf16.mxu0 %v3081
    %3579 = vmatpush2.bf16.msra.mxu0 %v3080
    %3580 = vmatprep.subr.bf16.mxu0 %v3077
    %3581 = vmatpush2.bf16.msra.mxu0 %v3076
    %3582 = vmatprep.subr.bf16.mxu0 %v3073
    %3583 = vmatpush2.bf16.msra.mxu0 %v3072
    %3584 = vmatprep.mubr.bf16.mxu0 %v2244
    %3585 = vmatmul.mubr.bf16.gmra.mxu0 %v2243
    %v3586 = vpop.f32.mrf.mxu0
    %v3587 = vadd.f32 %v2255, %v3586
    %v3588 = vpop.f32.mrf.mxu0
    %v3589 = vadd.f32 %v2259, %v3588
    %v3590 = vpop.f32.mrf.mxu0
    %v3591 = vpop.f32.mrf.mxu0
    %3592 = vdwg.mxu0
    %3593 = vmatprep.subr.bf16.mxu0 %v3133
    %3594 = vmatpush1.bf16.msra.mxu0 %v3132
    %3595 = vmatprep.subr.bf16.mxu0 %v3129
    %3596 = vmatpush1.bf16.msra.mxu0 %v3128
    %3597 = vmatprep.subr.bf16.mxu0 %v3125
    %3598 = vmatpush1.bf16.msra.mxu0 %v3124
    %3599 = vmatprep.subr.bf16.mxu0 %v3121
    %3600 = vmatpush1.bf16.msra.mxu0 %v3120
    %3601 = vmatprep.subr.bf16.mxu0 %v3117
    %3602 = vmatpush1.bf16.msra.mxu0 %v3116
    %3603 = vmatprep.subr.bf16.mxu0 %v3113
    %3604 = vmatpush1.bf16.msra.mxu0 %v3112
    %3605 = vmatprep.subr.bf16.mxu0 %v3109
    %3606 = vmatpush1.bf16.msra.mxu0 %v3108
    %3607 = vmatprep.subr.bf16.mxu0 %v3105
    %3608 = vmatpush1.bf16.msra.mxu0 %v3104
    %3609 = vmatprep.subr.bf16.mxu0 %v3165
    %3610 = vmatpush2.bf16.msra.mxu0 %v3164
    %3611 = vmatprep.subr.bf16.mxu0 %v3161
    %3612 = vmatpush2.bf16.msra.mxu0 %v3160
    %3613 = vmatprep.subr.bf16.mxu0 %v3157
    %3614 = vmatpush2.bf16.msra.mxu0 %v3156
    %3615 = vmatprep.subr.bf16.mxu0 %v3153
    %3616 = vmatpush2.bf16.msra.mxu0 %v3152
    %3617 = vmatprep.subr.bf16.mxu0 %v3149
    %3618 = vmatpush2.bf16.msra.mxu0 %v3148
    %3619 = vmatprep.subr.bf16.mxu0 %v3145
    %3620 = vmatpush2.bf16.msra.mxu0 %v3144
    %3621 = vmatprep.subr.bf16.mxu0 %v3141
    %3622 = vmatpush2.bf16.msra.mxu0 %v3140
    %3623 = vmatprep.subr.bf16.mxu0 %v3137
    %3624 = vmatpush2.bf16.msra.mxu0 %v3136
    %3625 = vmatprep.mubr.bf16.mxu0 %v2246
    %3626 = vmatmul.mubr.bf16.gmra.mxu0 %v2245
    %v3627 = vpop.f32.mrf.mxu0
    %v3628 = vadd.f32 %v3587, %v3627
    %v3629 = vpop.f32.mrf.mxu0
    %v3630 = vadd.f32 %v3589, %v3629
    %v3631 = vpop.f32.mrf.mxu0
    %v3632 = vpop.f32.mrf.mxu0
    %3633 = vdwg.mxu0
    %3634 = vmatprep.subr.bf16.mxu0 %v3197
    %3635 = vmatpush1.bf16.msra.mxu0 %v3196
    %3636 = vmatprep.subr.bf16.mxu0 %v3193
    %3637 = vmatpush1.bf16.msra.mxu0 %v3192
    %3638 = vmatprep.subr.bf16.mxu0 %v3189
    %3639 = vmatpush1.bf16.msra.mxu0 %v3188
    %3640 = vmatprep.subr.bf16.mxu0 %v3185
    %3641 = vmatpush1.bf16.msra.mxu0 %v3184
    %3642 = vmatprep.subr.bf16.mxu0 %v3181
    %3643 = vmatpush1.bf16.msra.mxu0 %v3180
    %3644 = vmatprep.subr.bf16.mxu0 %v3177
    %3645 = vmatpush1.bf16.msra.mxu0 %v3176
    %3646 = vmatprep.subr.bf16.mxu0 %v3173
    %3647 = vmatpush1.bf16.msra.mxu0 %v3172
    %3648 = vmatprep.subr.bf16.mxu0 %v3169
    %3649 = vmatpush1.bf16.msra.mxu0 %v3168
    %3650 = vmatprep.subr.bf16.mxu0 %v3229
    %3651 = vmatpush2.bf16.msra.mxu0 %v3228
    %3652 = vmatprep.subr.bf16.mxu0 %v3225
    %3653 = vmatpush2.bf16.msra.mxu0 %v3224
    %3654 = vmatprep.subr.bf16.mxu0 %v3221
    %3655 = vmatpush2.bf16.msra.mxu0 %v3220
    %3656 = vmatprep.subr.bf16.mxu0 %v3217
    %3657 = vmatpush2.bf16.msra.mxu0 %v3216
    %3658 = vmatprep.subr.bf16.mxu0 %v3213
    %3659 = vmatpush2.bf16.msra.mxu0 %v3212
    %3660 = vmatprep.subr.bf16.mxu0 %v3209
    %3661 = vmatpush2.bf16.msra.mxu0 %v3208
    %3662 = vmatprep.subr.bf16.mxu0 %v3205
    %3663 = vmatpush2.bf16.msra.mxu0 %v3204
    %3664 = vmatprep.subr.bf16.mxu0 %v3201
    %3665 = vmatpush2.bf16.msra.mxu0 %v3200
    %3666 = vmatprep.mubr.bf16.mxu0 %v2248
    %3667 = vmatmul.mubr.bf16.gmra.mxu0 %v2247
    %v3668 = vpop.f32.mrf.mxu0
    %v3669 = vadd.f32 %v3628, %v3668
    %v3670 = vpop.f32.mrf.mxu0
    %v3671 = vadd.f32 %v3630, %v3670
    %v3672 = vpop.f32.mrf.mxu0
    %v3673 = vpop.f32.mrf.mxu0
    %3674 = vdwg.mxu0
    %3675 = vmatprep.subr.bf16.mxu0 %v3261
    %3676 = vmatpush1.bf16.msra.mxu0 %v3260
    %3677 = vmatprep.subr.bf16.mxu0 %v3257
    %3678 = vmatpush1.bf16.msra.mxu0 %v3256
    %3679 = vmatprep.subr.bf16.mxu0 %v3253
    %3680 = vmatpush1.bf16.msra.mxu0 %v3252
    %3681 = vmatprep.subr.bf16.mxu0 %v3249
    %3682 = vmatpush1.bf16.msra.mxu0 %v3248
    %3683 = vmatprep.subr.bf16.mxu0 %v3245
    %3684 = vmatpush1.bf16.msra.mxu0 %v3244
    %3685 = vmatprep.subr.bf16.mxu0 %v3241
    %3686 = vmatpush1.bf16.msra.mxu0 %v3240
    %3687 = vmatprep.subr.bf16.mxu0 %v3237
    %3688 = vmatpush1.bf16.msra.mxu0 %v3236
    %3689 = vmatprep.subr.bf16.mxu0 %v3233
    %3690 = vmatpush1.bf16.msra.mxu0 %v3232
    %3691 = vmatprep.subr.bf16.mxu0 %v3293
    %3692 = vmatpush2.bf16.msra.mxu0 %v3292
    %3693 = vmatprep.subr.bf16.mxu0 %v3289
    %3694 = vmatpush2.bf16.msra.mxu0 %v3288
    %3695 = vmatprep.subr.bf16.mxu0 %v3285
    %3696 = vmatpush2.bf16.msra.mxu0 %v3284
    %3697 = vmatprep.subr.bf16.mxu0 %v3281
    %3698 = vmatpush2.bf16.msra.mxu0 %v3280
    %3699 = vmatprep.subr.bf16.mxu0 %v3277
    %3700 = vmatpush2.bf16.msra.mxu0 %v3276
    %3701 = vmatprep.subr.bf16.mxu0 %v3273
    %3702 = vmatpush2.bf16.msra.mxu0 %v3272
    %3703 = vmatprep.subr.bf16.mxu0 %v3269
    %3704 = vmatpush2.bf16.msra.mxu0 %v3268
    %3705 = vmatprep.subr.bf16.mxu0 %v3265
    %3706 = vmatpush2.bf16.msra.mxu0 %v3264
    %3707 = vmatprep.mubr.bf16.mxu0 %v2250
    %3708 = vmatmul.mubr.bf16.gmra.mxu0 %v2249
    %v3709 = vpop.f32.mrf.mxu0
    %v3710 = vadd.f32 %v3669, %v3709
    %v3711 = vpop.f32.mrf.mxu0
    %v3712 = vadd.f32 %v3671, %v3711
    %v3713 = vpop.f32.mrf.mxu0
    %v3714 = vpop.f32.mrf.mxu0
    %3715 = vdwg.mxu0
    %3716 = vmatprep.subr.bf16.mxu0 %v3071
    %3717 = vmatpush1.bf16.msra.mxu0 %v3070
    %3718 = vmatprep.subr.bf16.mxu0 %v3067
    %3719 = vmatpush1.bf16.msra.mxu0 %v3066
    %3720 = vmatprep.subr.bf16.mxu0 %v3063
    %3721 = vmatpush1.bf16.msra.mxu0 %v3062
    %3722 = vmatprep.subr.bf16.mxu0 %v3059
    %3723 = vmatpush1.bf16.msra.mxu0 %v3058
    %3724 = vmatprep.subr.bf16.mxu0 %v3055
    %3725 = vmatpush1.bf16.msra.mxu0 %v3054
    %3726 = vmatprep.subr.bf16.mxu0 %v3051
    %3727 = vmatpush1.bf16.msra.mxu0 %v3050
    %3728 = vmatprep.subr.bf16.mxu0 %v3047
    %3729 = vmatpush1.bf16.msra.mxu0 %v3046
    %3730 = vmatprep.subr.bf16.mxu0 %v3043
    %3731 = vmatpush1.bf16.msra.mxu0 %v3042
    %3732 = vmatprep.subr.bf16.mxu0 %v3103
    %3733 = vmatpush2.bf16.msra.mxu0 %v3102
    %3734 = vmatprep.subr.bf16.mxu0 %v3099
    %3735 = vmatpush2.bf16.msra.mxu0 %v3098
    %3736 = vmatprep.subr.bf16.mxu0 %v3095
    %3737 = vmatpush2.bf16.msra.mxu0 %v3094
    %3738 = vmatprep.subr.bf16.mxu0 %v3091
    %3739 = vmatpush2.bf16.msra.mxu0 %v3090
    %3740 = vmatprep.subr.bf16.mxu0 %v3087
    %3741 = vmatpush2.bf16.msra.mxu0 %v3086
    %3742 = vmatprep.subr.bf16.mxu0 %v3083
    %3743 = vmatpush2.bf16.msra.mxu0 %v3082
    %3744 = vmatprep.subr.bf16.mxu0 %v3079
    %3745 = vmatpush2.bf16.msra.mxu0 %v3078
    %3746 = vmatprep.subr.bf16.mxu0 %v3075
    %3747 = vmatpush2.bf16.msra.mxu0 %v3074
    %3748 = vmatprep.mubr.bf16.mxu0 %v2244
    %3749 = vmatmul.mubr.bf16.gmra.mxu0 %v2243
    %v3750 = vpop.f32.mrf.mxu0
    %v3751 = vadd.f32 %v2263, %v3750
    %v3752 = vpop.f32.mrf.mxu0
    %v3753 = vadd.f32 %v2267, %v3752
    %v3754 = vpop.f32.mrf.mxu0
    %v3755 = vpop.f32.mrf.mxu0
    %3756 = vdwg.mxu0
    %3757 = vmatprep.subr.bf16.mxu0 %v3135
    %3758 = vmatpush1.bf16.msra.mxu0 %v3134
    %3759 = vmatprep.subr.bf16.mxu0 %v3131
    %3760 = vmatpush1.bf16.msra.mxu0 %v3130
    %3761 = vmatprep.subr.bf16.mxu0 %v3127
    %3762 = vmatpush1.bf16.msra.mxu0 %v3126
    %3763 = vmatprep.subr.bf16.mxu0 %v3123
    %3764 = vmatpush1.bf16.msra.mxu0 %v3122
    %3765 = vmatprep.subr.bf16.mxu0 %v3119
    %3766 = vmatpush1.bf16.msra.mxu0 %v3118
    %3767 = vmatprep.subr.bf16.mxu0 %v3115
    %3768 = vmatpush1.bf16.msra.mxu0 %v3114
    %3769 = vmatprep.subr.bf16.mxu0 %v3111
    %3770 = vmatpush1.bf16.msra.mxu0 %v3110
    %3771 = vmatprep.subr.bf16.mxu0 %v3107
    %3772 = vmatpush1.bf16.msra.mxu0 %v3106
    %3773 = vmatprep.subr.bf16.mxu0 %v3167
    %3774 = vmatpush2.bf16.msra.mxu0 %v3166
    %3775 = vmatprep.subr.bf16.mxu0 %v3163
    %3776 = vmatpush2.bf16.msra.mxu0 %v3162
    %3777 = vmatprep.subr.bf16.mxu0 %v3159
    %3778 = vmatpush2.bf16.msra.mxu0 %v3158
    %3779 = vmatprep.subr.bf16.mxu0 %v3155
    %3780 = vmatpush2.bf16.msra.mxu0 %v3154
    %3781 = vmatprep.subr.bf16.mxu0 %v3151
    %3782 = vmatpush2.bf16.msra.mxu0 %v3150
    %3783 = vmatprep.subr.bf16.mxu0 %v3147
    %3784 = vmatpush2.bf16.msra.mxu0 %v3146
    %3785 = vmatprep.subr.bf16.mxu0 %v3143
    %3786 = vmatpush2.bf16.msra.mxu0 %v3142
    %3787 = vmatprep.subr.bf16.mxu0 %v3139
    %3788 = vmatpush2.bf16.msra.mxu0 %v3138
    %3789 = vmatprep.mubr.bf16.mxu0 %v2246
    %3790 = vmatmul.mubr.bf16.gmra.mxu0 %v2245
    %v3791 = vpop.f32.mrf.mxu0
    %v3792 = vadd.f32 %v3751, %v3791
    %v3793 = vpop.f32.mrf.mxu0
    %v3794 = vadd.f32 %v3753, %v3793
    %v3795 = vpop.f32.mrf.mxu0
    %v3796 = vpop.f32.mrf.mxu0
    %3797 = vdwg.mxu0
    %3798 = vmatprep.subr.bf16.mxu0 %v3199
    %3799 = vmatpush1.bf16.msra.mxu0 %v3198
    %3800 = vmatprep.subr.bf16.mxu0 %v3195
    %3801 = vmatpush1.bf16.msra.mxu0 %v3194
    %3802 = vmatprep.subr.bf16.mxu0 %v3191
    %3803 = vmatpush1.bf16.msra.mxu0 %v3190
    %3804 = vmatprep.subr.bf16.mxu0 %v3187
    %3805 = vmatpush1.bf16.msra.mxu0 %v3186
    %3806 = vmatprep.subr.bf16.mxu0 %v3183
    %3807 = vmatpush1.bf16.msra.mxu0 %v3182
    %3808 = vmatprep.subr.bf16.mxu0 %v3179
    %3809 = vmatpush1.bf16.msra.mxu0 %v3178
    %3810 = vmatprep.subr.bf16.mxu0 %v3175
    %3811 = vmatpush1.bf16.msra.mxu0 %v3174
    %3812 = vmatprep.subr.bf16.mxu0 %v3171
    %3813 = vmatpush1.bf16.msra.mxu0 %v3170
    %3814 = vmatprep.subr.bf16.mxu0 %v3231
    %3815 = vmatpush2.bf16.msra.mxu0 %v3230
    %3816 = vmatprep.subr.bf16.mxu0 %v3227
    %3817 = vmatpush2.bf16.msra.mxu0 %v3226
    %3818 = vmatprep.subr.bf16.mxu0 %v3223
    %3819 = vmatpush2.bf16.msra.mxu0 %v3222
    %3820 = vmatprep.subr.bf16.mxu0 %v3219
    %3821 = vmatpush2.bf16.msra.mxu0 %v3218
    %3822 = vmatprep.subr.bf16.mxu0 %v3215
    %3823 = vmatpush2.bf16.msra.mxu0 %v3214
    %3824 = vmatprep.subr.bf16.mxu0 %v3211
    %3825 = vmatpush2.bf16.msra.mxu0 %v3210
    %3826 = vmatprep.subr.bf16.mxu0 %v3207
    %3827 = vmatpush2.bf16.msra.mxu0 %v3206
    %3828 = vmatprep.subr.bf16.mxu0 %v3203
    %3829 = vmatpush2.bf16.msra.mxu0 %v3202
    %3830 = vmatprep.mubr.bf16.mxu0 %v2248
    %3831 = vmatmul.mubr.bf16.gmra.mxu0 %v2247
    %v3832 = vpop.f32.mrf.mxu0
    %v3833 = vadd.f32 %v3792, %v3832
    %v3834 = vpop.f32.mrf.mxu0
    %v3835 = vadd.f32 %v3794, %v3834
    %v3836 = vpop.f32.mrf.mxu0
    %v3837 = vpop.f32.mrf.mxu0
    %3838 = vdwg.mxu0
    %3839 = vmatprep.subr.bf16.mxu0 %v3263
    %3840 = vmatpush1.bf16.msra.mxu0 %v3262
    %3841 = vmatprep.subr.bf16.mxu0 %v3259
    %3842 = vmatpush1.bf16.msra.mxu0 %v3258
    %3843 = vmatprep.subr.bf16.mxu0 %v3255
    %3844 = vmatpush1.bf16.msra.mxu0 %v3254
    %3845 = vmatprep.subr.bf16.mxu0 %v3251
    %3846 = vmatpush1.bf16.msra.mxu0 %v3250
    %3847 = vmatprep.subr.bf16.mxu0 %v3247
    %3848 = vmatpush1.bf16.msra.mxu0 %v3246
    %3849 = vmatprep.subr.bf16.mxu0 %v3243
    %3850 = vmatpush1.bf16.msra.mxu0 %v3242
    %3851 = vmatprep.subr.bf16.mxu0 %v3239
    %3852 = vmatpush1.bf16.msra.mxu0 %v3238
    %3853 = vmatprep.subr.bf16.mxu0 %v3235
    %3854 = vmatpush1.bf16.msra.mxu0 %v3234
    %3855 = vmatprep.subr.bf16.mxu0 %v3295
    %3856 = vmatpush2.bf16.msra.mxu0 %v3294
    %3857 = vmatprep.subr.bf16.mxu0 %v3291
    %3858 = vmatpush2.bf16.msra.mxu0 %v3290
    %3859 = vmatprep.subr.bf16.mxu0 %v3287
    %3860 = vmatpush2.bf16.msra.mxu0 %v3286
    %3861 = vmatprep.subr.bf16.mxu0 %v3283
    %3862 = vmatpush2.bf16.msra.mxu0 %v3282
    %3863 = vmatprep.subr.bf16.mxu0 %v3279
    %3864 = vmatpush2.bf16.msra.mxu0 %v3278
    %3865 = vmatprep.subr.bf16.mxu0 %v3275
    %3866 = vmatpush2.bf16.msra.mxu0 %v3274
    %3867 = vmatprep.subr.bf16.mxu0 %v3271
    %3868 = vmatpush2.bf16.msra.mxu0 %v3270
    %3869 = vmatprep.subr.bf16.mxu0 %v3267
    %3870 = vmatpush2.bf16.msra.mxu0 %v3266
    %3871 = vmatprep.mubr.bf16.mxu0 %v2250
    %3872 = vmatmul.mubr.bf16.gmra.mxu0 %v2249
    %v3873 = vpop.f32.mrf.mxu0
    %v3874 = vadd.f32 %v3833, %v3873
    %v3875 = vpop.f32.mrf.mxu0
    %v3876 = vadd.f32 %v3835, %v3875
    %v3877 = vpop.f32.mrf.mxu0
    %v3878 = vpop.f32.mrf.mxu0
    %3879 = vdwg.mxu0
    %v3880 = vpack.c.bf16 %v3710, %v3710
    %v3881 = vpack.c.bf16 %v3712, %v3712
    %v3882 = vpack.c.bf16 %v3874, %v3874
    %v3883 = vpack.c.bf16 %v3876, %v3876
    %3884 = vmatprep.subr.bf16.mxu0 %v1460
    %3885 = vmatpush1.bf16.msra.mxu0 %v1459
    %3886 = vmatprep.subr.bf16.mxu0 %v1452
    %3887 = vmatpush1.bf16.msra.mxu0 %v1451
    %3888 = vmatprep.subr.bf16.mxu0 %v1444
    %3889 = vmatpush1.bf16.msra.mxu0 %v1443
    %3890 = vmatprep.subr.bf16.mxu0 %v1436
    %3891 = vmatpush1.bf16.msra.mxu0 %v1435
    %3892 = vmatprep.subr.bf16.mxu0 %v1428
    %3893 = vmatpush1.bf16.msra.mxu0 %v1427
    %3894 = vmatprep.subr.bf16.mxu0 %v1420
    %3895 = vmatpush1.bf16.msra.mxu0 %v1419
    %3896 = vmatprep.subr.bf16.mxu0 %v1412
    %3897 = vmatpush1.bf16.msra.mxu0 %v1411
    %3898 = vmatprep.subr.bf16.mxu0 %v1404
    %3899 = vmatpush1.bf16.msra.mxu0 %v1403
    %3900 = vmatprep.subr.bf16.mxu0 %v1524
    %3901 = vmatpush2.bf16.msra.mxu0 %v1523
    %3902 = vmatprep.subr.bf16.mxu0 %v1516
    %3903 = vmatpush2.bf16.msra.mxu0 %v1515
    %3904 = vmatprep.subr.bf16.mxu0 %v1508
    %3905 = vmatpush2.bf16.msra.mxu0 %v1507
    %3906 = vmatprep.subr.bf16.mxu0 %v1500
    %3907 = vmatpush2.bf16.msra.mxu0 %v1499
    %3908 = vmatprep.subr.bf16.mxu0 %v1492
    %3909 = vmatpush2.bf16.msra.mxu0 %v1491
    %3910 = vmatprep.subr.bf16.mxu0 %v1484
    %3911 = vmatpush2.bf16.msra.mxu0 %v1483
    %3912 = vmatprep.subr.bf16.mxu0 %v1476
    %3913 = vmatpush2.bf16.msra.mxu0 %v1475
    %3914 = vmatprep.subr.bf16.mxu0 %v1468
    %3915 = vmatpush2.bf16.msra.mxu0 %v1467
    %3916 = vmatprep.mubr.bf16.mxu0 %v3881
    %3917 = vmatmul.mubr.bf16.gmra.mxu0 %v3880
    %v3918 = vpop.f32.mrf.mxu0
    %v3919 = vadd.f32 %v598, %v3918
    %v3920 = vpop.f32.mrf.mxu0
    %v3921 = vadd.f32 %v602, %v3920
    %v3922 = vpop.f32.mrf.mxu0
    %v3923 = vpop.f32.mrf.mxu0
    %3924 = vdwg.mxu0
    %3925 = vmatprep.subr.bf16.mxu0 %v1588
    %3926 = vmatpush1.bf16.msra.mxu0 %v1587
    %3927 = vmatprep.subr.bf16.mxu0 %v1580
    %3928 = vmatpush1.bf16.msra.mxu0 %v1579
    %3929 = vmatprep.subr.bf16.mxu0 %v1572
    %3930 = vmatpush1.bf16.msra.mxu0 %v1571
    %3931 = vmatprep.subr.bf16.mxu0 %v1564
    %3932 = vmatpush1.bf16.msra.mxu0 %v1563
    %3933 = vmatprep.subr.bf16.mxu0 %v1556
    %3934 = vmatpush1.bf16.msra.mxu0 %v1555
    %3935 = vmatprep.subr.bf16.mxu0 %v1548
    %3936 = vmatpush1.bf16.msra.mxu0 %v1547
    %3937 = vmatprep.subr.bf16.mxu0 %v1540
    %3938 = vmatpush1.bf16.msra.mxu0 %v1539
    %3939 = vmatprep.subr.bf16.mxu0 %v1532
    %3940 = vmatpush1.bf16.msra.mxu0 %v1531
    %3941 = vmatprep.subr.bf16.mxu0 %v1652
    %3942 = vmatpush2.bf16.msra.mxu0 %v1651
    %3943 = vmatprep.subr.bf16.mxu0 %v1644
    %3944 = vmatpush2.bf16.msra.mxu0 %v1643
    %3945 = vmatprep.subr.bf16.mxu0 %v1636
    %3946 = vmatpush2.bf16.msra.mxu0 %v1635
    %3947 = vmatprep.subr.bf16.mxu0 %v1628
    %3948 = vmatpush2.bf16.msra.mxu0 %v1627
    %3949 = vmatprep.subr.bf16.mxu0 %v1620
    %3950 = vmatpush2.bf16.msra.mxu0 %v1619
    %3951 = vmatprep.subr.bf16.mxu0 %v1612
    %3952 = vmatpush2.bf16.msra.mxu0 %v1611
    %3953 = vmatprep.subr.bf16.mxu0 %v1604
    %3954 = vmatpush2.bf16.msra.mxu0 %v1603
    %3955 = vmatprep.subr.bf16.mxu0 %v1596
    %3956 = vmatpush2.bf16.msra.mxu0 %v1595
    %3957 = vmatprep.mubr.bf16.mxu0 %v3883
    %3958 = vmatmul.mubr.bf16.gmra.mxu0 %v3882
    %v3959 = vpop.f32.mrf.mxu0
    %v3960 = vadd.f32 %v3919, %v3959
    %v3961 = vpop.f32.mrf.mxu0
    %v3962 = vadd.f32 %v3921, %v3961
    %v3963 = vpop.f32.mrf.mxu0
    %v3964 = vpop.f32.mrf.mxu0
    %3965 = vdwg.mxu0
    %3966 = vmatprep.subr.bf16.mxu0 %v1462
    %3967 = vmatpush1.bf16.msra.mxu0 %v1461
    %3968 = vmatprep.subr.bf16.mxu0 %v1454
    %3969 = vmatpush1.bf16.msra.mxu0 %v1453
    %3970 = vmatprep.subr.bf16.mxu0 %v1446
    %3971 = vmatpush1.bf16.msra.mxu0 %v1445
    %3972 = vmatprep.subr.bf16.mxu0 %v1438
    %3973 = vmatpush1.bf16.msra.mxu0 %v1437
    %3974 = vmatprep.subr.bf16.mxu0 %v1430
    %3975 = vmatpush1.bf16.msra.mxu0 %v1429
    %3976 = vmatprep.subr.bf16.mxu0 %v1422
    %3977 = vmatpush1.bf16.msra.mxu0 %v1421
    %3978 = vmatprep.subr.bf16.mxu0 %v1414
    %3979 = vmatpush1.bf16.msra.mxu0 %v1413
    %3980 = vmatprep.subr.bf16.mxu0 %v1406
    %3981 = vmatpush1.bf16.msra.mxu0 %v1405
    %3982 = vmatprep.subr.bf16.mxu0 %v1526
    %3983 = vmatpush2.bf16.msra.mxu0 %v1525
    %3984 = vmatprep.subr.bf16.mxu0 %v1518
    %3985 = vmatpush2.bf16.msra.mxu0 %v1517
    %3986 = vmatprep.subr.bf16.mxu0 %v1510
    %3987 = vmatpush2.bf16.msra.mxu0 %v1509
    %3988 = vmatprep.subr.bf16.mxu0 %v1502
    %3989 = vmatpush2.bf16.msra.mxu0 %v1501
    %3990 = vmatprep.subr.bf16.mxu0 %v1494
    %3991 = vmatpush2.bf16.msra.mxu0 %v1493
    %3992 = vmatprep.subr.bf16.mxu0 %v1486
    %3993 = vmatpush2.bf16.msra.mxu0 %v1485
    %3994 = vmatprep.subr.bf16.mxu0 %v1478
    %3995 = vmatpush2.bf16.msra.mxu0 %v1477
    %3996 = vmatprep.subr.bf16.mxu0 %v1470
    %3997 = vmatpush2.bf16.msra.mxu0 %v1469
    %3998 = vmatprep.mubr.bf16.mxu0 %v3881
    %3999 = vmatmul.mubr.bf16.gmra.mxu0 %v3880
    %v4000 = vpop.f32.mrf.mxu0
    %v4001 = vadd.f32 %v606, %v4000
    %v4002 = vpop.f32.mrf.mxu0
    %v4003 = vadd.f32 %v610, %v4002
    %v4004 = vpop.f32.mrf.mxu0
    %v4005 = vpop.f32.mrf.mxu0
    %4006 = vdwg.mxu0
    %4007 = vmatprep.subr.bf16.mxu0 %v1590
    %4008 = vmatpush1.bf16.msra.mxu0 %v1589
    %4009 = vmatprep.subr.bf16.mxu0 %v1582
    %4010 = vmatpush1.bf16.msra.mxu0 %v1581
    %4011 = vmatprep.subr.bf16.mxu0 %v1574
    %4012 = vmatpush1.bf16.msra.mxu0 %v1573
    %4013 = vmatprep.subr.bf16.mxu0 %v1566
    %4014 = vmatpush1.bf16.msra.mxu0 %v1565
    %4015 = vmatprep.subr.bf16.mxu0 %v1558
    %4016 = vmatpush1.bf16.msra.mxu0 %v1557
    %4017 = vmatprep.subr.bf16.mxu0 %v1550
    %4018 = vmatpush1.bf16.msra.mxu0 %v1549
    %4019 = vmatprep.subr.bf16.mxu0 %v1542
    %4020 = vmatpush1.bf16.msra.mxu0 %v1541
    %4021 = vmatprep.subr.bf16.mxu0 %v1534
    %4022 = vmatpush1.bf16.msra.mxu0 %v1533
    %4023 = vmatprep.subr.bf16.mxu0 %v1654
    %4024 = vmatpush2.bf16.msra.mxu0 %v1653
    %4025 = vmatprep.subr.bf16.mxu0 %v1646
    %4026 = vmatpush2.bf16.msra.mxu0 %v1645
    %4027 = vmatprep.subr.bf16.mxu0 %v1638
    %4028 = vmatpush2.bf16.msra.mxu0 %v1637
    %4029 = vmatprep.subr.bf16.mxu0 %v1630
    %4030 = vmatpush2.bf16.msra.mxu0 %v1629
    %4031 = vmatprep.subr.bf16.mxu0 %v1622
    %4032 = vmatpush2.bf16.msra.mxu0 %v1621
    %4033 = vmatprep.subr.bf16.mxu0 %v1614
    %4034 = vmatpush2.bf16.msra.mxu0 %v1613
    %4035 = vmatprep.subr.bf16.mxu0 %v1606
    %4036 = vmatpush2.bf16.msra.mxu0 %v1605
    %4037 = vmatprep.subr.bf16.mxu0 %v1598
    %4038 = vmatpush2.bf16.msra.mxu0 %v1597
    %4039 = vmatprep.mubr.bf16.mxu0 %v3883
    %4040 = vmatmul.mubr.bf16.gmra.mxu0 %v3882
    %v4041 = vpop.f32.mrf.mxu0
    %v4042 = vadd.f32 %v4001, %v4041
    %v4043 = vpop.f32.mrf.mxu0
    %v4044 = vadd.f32 %v4003, %v4043
    %v4045 = vpop.f32.mrf.mxu0
    %v4046 = vpop.f32.mrf.mxu0
    %4047 = vdwg.mxu0
    %4048 = vmatprep.subr.bf16.mxu0 %v1464
    %4049 = vmatpush1.bf16.msra.mxu0 %v1463
    %4050 = vmatprep.subr.bf16.mxu0 %v1456
    %4051 = vmatpush1.bf16.msra.mxu0 %v1455
    %4052 = vmatprep.subr.bf16.mxu0 %v1448
    %4053 = vmatpush1.bf16.msra.mxu0 %v1447
    %4054 = vmatprep.subr.bf16.mxu0 %v1440
    %4055 = vmatpush1.bf16.msra.mxu0 %v1439
    %4056 = vmatprep.subr.bf16.mxu0 %v1432
    %4057 = vmatpush1.bf16.msra.mxu0 %v1431
    %4058 = vmatprep.subr.bf16.mxu0 %v1424
    %4059 = vmatpush1.bf16.msra.mxu0 %v1423
    %4060 = vmatprep.subr.bf16.mxu0 %v1416
    %4061 = vmatpush1.bf16.msra.mxu0 %v1415
    %4062 = vmatprep.subr.bf16.mxu0 %v1408
    %4063 = vmatpush1.bf16.msra.mxu0 %v1407
    %4064 = vmatprep.subr.bf16.mxu0 %v1528
    %4065 = vmatpush2.bf16.msra.mxu0 %v1527
    %4066 = vmatprep.subr.bf16.mxu0 %v1520
    %4067 = vmatpush2.bf16.msra.mxu0 %v1519
    %4068 = vmatprep.subr.bf16.mxu0 %v1512
    %4069 = vmatpush2.bf16.msra.mxu0 %v1511
    %4070 = vmatprep.subr.bf16.mxu0 %v1504
    %4071 = vmatpush2.bf16.msra.mxu0 %v1503
    %4072 = vmatprep.subr.bf16.mxu0 %v1496
    %4073 = vmatpush2.bf16.msra.mxu0 %v1495
    %4074 = vmatprep.subr.bf16.mxu0 %v1488
    %4075 = vmatpush2.bf16.msra.mxu0 %v1487
    %4076 = vmatprep.subr.bf16.mxu0 %v1480
    %4077 = vmatpush2.bf16.msra.mxu0 %v1479
    %4078 = vmatprep.subr.bf16.mxu0 %v1472
    %4079 = vmatpush2.bf16.msra.mxu0 %v1471
    %4080 = vmatprep.mubr.bf16.mxu0 %v3881
    %4081 = vmatmul.mubr.bf16.gmra.mxu0 %v3880
    %v4082 = vpop.f32.mrf.mxu0
    %v4083 = vadd.f32 %v614, %v4082
    %v4084 = vpop.f32.mrf.mxu0
    %v4085 = vadd.f32 %v618, %v4084
    %v4086 = vpop.f32.mrf.mxu0
    %v4087 = vpop.f32.mrf.mxu0
    %4088 = vdwg.mxu0
    %4089 = vmatprep.subr.bf16.mxu0 %v1592
    %4090 = vmatpush1.bf16.msra.mxu0 %v1591
    %4091 = vmatprep.subr.bf16.mxu0 %v1584
    %4092 = vmatpush1.bf16.msra.mxu0 %v1583
    %4093 = vmatprep.subr.bf16.mxu0 %v1576
    %4094 = vmatpush1.bf16.msra.mxu0 %v1575
    %4095 = vmatprep.subr.bf16.mxu0 %v1568
    %4096 = vmatpush1.bf16.msra.mxu0 %v1567
    %4097 = vmatprep.subr.bf16.mxu0 %v1560
    %4098 = vmatpush1.bf16.msra.mxu0 %v1559
    %4099 = vmatprep.subr.bf16.mxu0 %v1552
    %4100 = vmatpush1.bf16.msra.mxu0 %v1551
    %4101 = vmatprep.subr.bf16.mxu0 %v1544
    %4102 = vmatpush1.bf16.msra.mxu0 %v1543
    %4103 = vmatprep.subr.bf16.mxu0 %v1536
    %4104 = vmatpush1.bf16.msra.mxu0 %v1535
    %4105 = vmatprep.subr.bf16.mxu0 %v1656
    %4106 = vmatpush2.bf16.msra.mxu0 %v1655
    %4107 = vmatprep.subr.bf16.mxu0 %v1648
    %4108 = vmatpush2.bf16.msra.mxu0 %v1647
    %4109 = vmatprep.subr.bf16.mxu0 %v1640
    %4110 = vmatpush2.bf16.msra.mxu0 %v1639
    %4111 = vmatprep.subr.bf16.mxu0 %v1632
    %4112 = vmatpush2.bf16.msra.mxu0 %v1631
    %4113 = vmatprep.subr.bf16.mxu0 %v1624
    %4114 = vmatpush2.bf16.msra.mxu0 %v1623
    %4115 = vmatprep.subr.bf16.mxu0 %v1616
    %4116 = vmatpush2.bf16.msra.mxu0 %v1615
    %4117 = vmatprep.subr.bf16.mxu0 %v1608
    %4118 = vmatpush2.bf16.msra.mxu0 %v1607
    %4119 = vmatprep.subr.bf16.mxu0 %v1600
    %4120 = vmatpush2.bf16.msra.mxu0 %v1599
    %4121 = vmatprep.mubr.bf16.mxu0 %v3883
    %4122 = vmatmul.mubr.bf16.gmra.mxu0 %v3882
    %v4123 = vpop.f32.mrf.mxu0
    %v4124 = vadd.f32 %v4083, %v4123
    %v4125 = vpop.f32.mrf.mxu0
    %v4126 = vadd.f32 %v4085, %v4125
    %v4127 = vpop.f32.mrf.mxu0
    %v4128 = vpop.f32.mrf.mxu0
    %4129 = vdwg.mxu0
    %4130 = vmatprep.subr.bf16.mxu0 %v1466
    %4131 = vmatpush1.bf16.msra.mxu0 %v1465
    %4132 = vmatprep.subr.bf16.mxu0 %v1458
    %4133 = vmatpush1.bf16.msra.mxu0 %v1457
    %4134 = vmatprep.subr.bf16.mxu0 %v1450
    %4135 = vmatpush1.bf16.msra.mxu0 %v1449
    %4136 = vmatprep.subr.bf16.mxu0 %v1442
    %4137 = vmatpush1.bf16.msra.mxu0 %v1441
    %4138 = vmatprep.subr.bf16.mxu0 %v1434
    %4139 = vmatpush1.bf16.msra.mxu0 %v1433
    %4140 = vmatprep.subr.bf16.mxu0 %v1426
    %4141 = vmatpush1.bf16.msra.mxu0 %v1425
    %4142 = vmatprep.subr.bf16.mxu0 %v1418
    %4143 = vmatpush1.bf16.msra.mxu0 %v1417
    %4144 = vmatprep.subr.bf16.mxu0 %v1410
    %4145 = vmatpush1.bf16.msra.mxu0 %v1409
    %4146 = vmatprep.subr.bf16.mxu0 %v1530
    %4147 = vmatpush2.bf16.msra.mxu0 %v1529
    %4148 = vmatprep.subr.bf16.mxu0 %v1522
    %4149 = vmatpush2.bf16.msra.mxu0 %v1521
    %4150 = vmatprep.subr.bf16.mxu0 %v1514
    %4151 = vmatpush2.bf16.msra.mxu0 %v1513
    %4152 = vmatprep.subr.bf16.mxu0 %v1506
    %4153 = vmatpush2.bf16.msra.mxu0 %v1505
    %4154 = vmatprep.subr.bf16.mxu0 %v1498
    %4155 = vmatpush2.bf16.msra.mxu0 %v1497
    %4156 = vmatprep.subr.bf16.mxu0 %v1490
    %4157 = vmatpush2.bf16.msra.mxu0 %v1489
    %4158 = vmatprep.subr.bf16.mxu0 %v1482
    %4159 = vmatpush2.bf16.msra.mxu0 %v1481
    %4160 = vmatprep.subr.bf16.mxu0 %v1474
    %4161 = vmatpush2.bf16.msra.mxu0 %v1473
    %4162 = vmatprep.mubr.bf16.mxu0 %v3881
    %4163 = vmatmul.mubr.bf16.gmra.mxu0 %v3880
    %v4164 = vpop.f32.mrf.mxu0
    %v4165 = vadd.f32 %v622, %v4164
    %v4166 = vpop.f32.mrf.mxu0
    %v4167 = vadd.f32 %v626, %v4166
    %v4168 = vpop.f32.mrf.mxu0
    %v4169 = vpop.f32.mrf.mxu0
    %4170 = vdwg.mxu0
    %4171 = vmatprep.subr.bf16.mxu0 %v1594
    %4172 = vmatpush1.bf16.msra.mxu0 %v1593
    %4173 = vmatprep.subr.bf16.mxu0 %v1586
    %4174 = vmatpush1.bf16.msra.mxu0 %v1585
    %4175 = vmatprep.subr.bf16.mxu0 %v1578
    %4176 = vmatpush1.bf16.msra.mxu0 %v1577
    %4177 = vmatprep.subr.bf16.mxu0 %v1570
    %4178 = vmatpush1.bf16.msra.mxu0 %v1569
    %4179 = vmatprep.subr.bf16.mxu0 %v1562
    %4180 = vmatpush1.bf16.msra.mxu0 %v1561
    %4181 = vmatprep.subr.bf16.mxu0 %v1554
    %4182 = vmatpush1.bf16.msra.mxu0 %v1553
    %4183 = vmatprep.subr.bf16.mxu0 %v1546
    %4184 = vmatpush1.bf16.msra.mxu0 %v1545
    %4185 = vmatprep.subr.bf16.mxu0 %v1538
    %4186 = vmatpush1.bf16.msra.mxu0 %v1537
    %4187 = vmatprep.subr.bf16.mxu0 %v1658
    %4188 = vmatpush2.bf16.msra.mxu0 %v1657
    %4189 = vmatprep.subr.bf16.mxu0 %v1650
    %4190 = vmatpush2.bf16.msra.mxu0 %v1649
    %4191 = vmatprep.subr.bf16.mxu0 %v1642
    %4192 = vmatpush2.bf16.msra.mxu0 %v1641
    %4193 = vmatprep.subr.bf16.mxu0 %v1634
    %4194 = vmatpush2.bf16.msra.mxu0 %v1633
    %4195 = vmatprep.subr.bf16.mxu0 %v1626
    %4196 = vmatpush2.bf16.msra.mxu0 %v1625
    %4197 = vmatprep.subr.bf16.mxu0 %v1618
    %4198 = vmatpush2.bf16.msra.mxu0 %v1617
    %4199 = vmatprep.subr.bf16.mxu0 %v1610
    %4200 = vmatpush2.bf16.msra.mxu0 %v1609
    %4201 = vmatprep.subr.bf16.mxu0 %v1602
    %4202 = vmatpush2.bf16.msra.mxu0 %v1601
    %4203 = vmatprep.mubr.bf16.mxu0 %v3883
    %4204 = vmatmul.mubr.bf16.gmra.mxu0 %v3882
    %v4205 = vpop.f32.mrf.mxu0
    %v4206 = vadd.f32 %v4165, %v4205
    %v4207 = vpop.f32.mrf.mxu0
    %v4208 = vadd.f32 %v4167, %v4207
    %v4209 = vpop.f32.mrf.mxu0
    %v4210 = vpop.f32.mrf.mxu0
    %4211 = vdwg.mxu0
    %v4212 = vpack.c.bf16 %v3960, %v3960
    %v4213 = vpack.c.bf16 %v3962, %v3962
    %v4214 = vpack.c.bf16 %v4042, %v4042
    %v4215 = vpack.c.bf16 %v4044, %v4044
    %v4216 = vpack.c.bf16 %v4124, %v4124
    %v4217 = vpack.c.bf16 %v4126, %v4126
    %v4218 = vpack.c.bf16 %v4206, %v4206
    %v4219 = vpack.c.bf16 %v4208, %v4208
    %4220 = vmatprep.subr.bf16.mxu0 %v3069
    %4221 = vmatpush1.bf16.msra.mxu0 %v3068
    %4222 = vmatprep.subr.bf16.mxu0 %v3065
    %4223 = vmatpush1.bf16.msra.mxu0 %v3064
    %4224 = vmatprep.subr.bf16.mxu0 %v3061
    %4225 = vmatpush1.bf16.msra.mxu0 %v3060
    %4226 = vmatprep.subr.bf16.mxu0 %v3057
    %4227 = vmatpush1.bf16.msra.mxu0 %v3056
    %4228 = vmatprep.subr.bf16.mxu0 %v3053
    %4229 = vmatpush1.bf16.msra.mxu0 %v3052
    %4230 = vmatprep.subr.bf16.mxu0 %v3049
    %4231 = vmatpush1.bf16.msra.mxu0 %v3048
    %4232 = vmatprep.subr.bf16.mxu0 %v3045
    %4233 = vmatpush1.bf16.msra.mxu0 %v3044
    %4234 = vmatprep.subr.bf16.mxu0 %v3041
    %4235 = vmatpush1.bf16.msra.mxu0 %v3040
    %4236 = vmatprep.subr.bf16.mxu0 %v3101
    %4237 = vmatpush2.bf16.msra.mxu0 %v3100
    %4238 = vmatprep.subr.bf16.mxu0 %v3097
    %4239 = vmatpush2.bf16.msra.mxu0 %v3096
    %4240 = vmatprep.subr.bf16.mxu0 %v3093
    %4241 = vmatpush2.bf16.msra.mxu0 %v3092
    %4242 = vmatprep.subr.bf16.mxu0 %v3089
    %4243 = vmatpush2.bf16.msra.mxu0 %v3088
    %4244 = vmatprep.subr.bf16.mxu0 %v3085
    %4245 = vmatpush2.bf16.msra.mxu0 %v3084
    %4246 = vmatprep.subr.bf16.mxu0 %v3081
    %4247 = vmatpush2.bf16.msra.mxu0 %v3080
    %4248 = vmatprep.subr.bf16.mxu0 %v3077
    %4249 = vmatpush2.bf16.msra.mxu0 %v3076
    %4250 = vmatprep.subr.bf16.mxu0 %v3073
    %4251 = vmatpush2.bf16.msra.mxu0 %v3072
    %4252 = vmatprep.mubr.bf16.mxu0 %v4213
    %4253 = vmatmul.mubr.bf16.gmra.mxu0 %v4212
    %v4254 = vpop.f32.mrf.mxu0
    %v4255 = vadd.f32 %v2255, %v4254
    %v4256 = vpop.f32.mrf.mxu0
    %v4257 = vadd.f32 %v2259, %v4256
    %v4258 = vpop.f32.mrf.mxu0
    %v4259 = vpop.f32.mrf.mxu0
    %4260 = vdwg.mxu0
    %4261 = vmatprep.subr.bf16.mxu0 %v3133
    %4262 = vmatpush1.bf16.msra.mxu0 %v3132
    %4263 = vmatprep.subr.bf16.mxu0 %v3129
    %4264 = vmatpush1.bf16.msra.mxu0 %v3128
    %4265 = vmatprep.subr.bf16.mxu0 %v3125
    %4266 = vmatpush1.bf16.msra.mxu0 %v3124
    %4267 = vmatprep.subr.bf16.mxu0 %v3121
    %4268 = vmatpush1.bf16.msra.mxu0 %v3120
    %4269 = vmatprep.subr.bf16.mxu0 %v3117
    %4270 = vmatpush1.bf16.msra.mxu0 %v3116
    %4271 = vmatprep.subr.bf16.mxu0 %v3113
    %4272 = vmatpush1.bf16.msra.mxu0 %v3112
    %4273 = vmatprep.subr.bf16.mxu0 %v3109
    %4274 = vmatpush1.bf16.msra.mxu0 %v3108
    %4275 = vmatprep.subr.bf16.mxu0 %v3105
    %4276 = vmatpush1.bf16.msra.mxu0 %v3104
    %4277 = vmatprep.subr.bf16.mxu0 %v3165
    %4278 = vmatpush2.bf16.msra.mxu0 %v3164
    %4279 = vmatprep.subr.bf16.mxu0 %v3161
    %4280 = vmatpush2.bf16.msra.mxu0 %v3160
    %4281 = vmatprep.subr.bf16.mxu0 %v3157
    %4282 = vmatpush2.bf16.msra.mxu0 %v3156
    %4283 = vmatprep.subr.bf16.mxu0 %v3153
    %4284 = vmatpush2.bf16.msra.mxu0 %v3152
    %4285 = vmatprep.subr.bf16.mxu0 %v3149
    %4286 = vmatpush2.bf16.msra.mxu0 %v3148
    %4287 = vmatprep.subr.bf16.mxu0 %v3145
    %4288 = vmatpush2.bf16.msra.mxu0 %v3144
    %4289 = vmatprep.subr.bf16.mxu0 %v3141
    %4290 = vmatpush2.bf16.msra.mxu0 %v3140
    %4291 = vmatprep.subr.bf16.mxu0 %v3137
    %4292 = vmatpush2.bf16.msra.mxu0 %v3136
    %4293 = vmatprep.mubr.bf16.mxu0 %v4215
    %4294 = vmatmul.mubr.bf16.gmra.mxu0 %v4214
    %v4295 = vpop.f32.mrf.mxu0
    %v4296 = vadd.f32 %v4255, %v4295
    %v4297 = vpop.f32.mrf.mxu0
    %v4298 = vadd.f32 %v4257, %v4297
    %v4299 = vpop.f32.mrf.mxu0
    %v4300 = vpop.f32.mrf.mxu0
    %4301 = vdwg.mxu0
    %4302 = vmatprep.subr.bf16.mxu0 %v3197
    %4303 = vmatpush1.bf16.msra.mxu0 %v3196
    %4304 = vmatprep.subr.bf16.mxu0 %v3193
    %4305 = vmatpush1.bf16.msra.mxu0 %v3192
    %4306 = vmatprep.subr.bf16.mxu0 %v3189
    %4307 = vmatpush1.bf16.msra.mxu0 %v3188
    %4308 = vmatprep.subr.bf16.mxu0 %v3185
    %4309 = vmatpush1.bf16.msra.mxu0 %v3184
    %4310 = vmatprep.subr.bf16.mxu0 %v3181
    %4311 = vmatpush1.bf16.msra.mxu0 %v3180
    %4312 = vmatprep.subr.bf16.mxu0 %v3177
    %4313 = vmatpush1.bf16.msra.mxu0 %v3176
    %4314 = vmatprep.subr.bf16.mxu0 %v3173
    %4315 = vmatpush1.bf16.msra.mxu0 %v3172
    %4316 = vmatprep.subr.bf16.mxu0 %v3169
    %4317 = vmatpush1.bf16.msra.mxu0 %v3168
    %4318 = vmatprep.subr.bf16.mxu0 %v3229
    %4319 = vmatpush2.bf16.msra.mxu0 %v3228
    %4320 = vmatprep.subr.bf16.mxu0 %v3225
    %4321 = vmatpush2.bf16.msra.mxu0 %v3224
    %4322 = vmatprep.subr.bf16.mxu0 %v3221
    %4323 = vmatpush2.bf16.msra.mxu0 %v3220
    %4324 = vmatprep.subr.bf16.mxu0 %v3217
    %4325 = vmatpush2.bf16.msra.mxu0 %v3216
    %4326 = vmatprep.subr.bf16.mxu0 %v3213
    %4327 = vmatpush2.bf16.msra.mxu0 %v3212
    %4328 = vmatprep.subr.bf16.mxu0 %v3209
    %4329 = vmatpush2.bf16.msra.mxu0 %v3208
    %4330 = vmatprep.subr.bf16.mxu0 %v3205
    %4331 = vmatpush2.bf16.msra.mxu0 %v3204
    %4332 = vmatprep.subr.bf16.mxu0 %v3201
    %4333 = vmatpush2.bf16.msra.mxu0 %v3200
    %4334 = vmatprep.mubr.bf16.mxu0 %v4217
    %4335 = vmatmul.mubr.bf16.gmra.mxu0 %v4216
    %v4336 = vpop.f32.mrf.mxu0
    %v4337 = vadd.f32 %v4296, %v4336
    %v4338 = vpop.f32.mrf.mxu0
    %v4339 = vadd.f32 %v4298, %v4338
    %v4340 = vpop.f32.mrf.mxu0
    %v4341 = vpop.f32.mrf.mxu0
    %4342 = vdwg.mxu0
    %4343 = vmatprep.subr.bf16.mxu0 %v3261
    %4344 = vmatpush1.bf16.msra.mxu0 %v3260
    %4345 = vmatprep.subr.bf16.mxu0 %v3257
    %4346 = vmatpush1.bf16.msra.mxu0 %v3256
    %4347 = vmatprep.subr.bf16.mxu0 %v3253
    %4348 = vmatpush1.bf16.msra.mxu0 %v3252
    %4349 = vmatprep.subr.bf16.mxu0 %v3249
    %4350 = vmatpush1.bf16.msra.mxu0 %v3248
    %4351 = vmatprep.subr.bf16.mxu0 %v3245
    %4352 = vmatpush1.bf16.msra.mxu0 %v3244
    %4353 = vmatprep.subr.bf16.mxu0 %v3241
    %4354 = vmatpush1.bf16.msra.mxu0 %v3240
    %4355 = vmatprep.subr.bf16.mxu0 %v3237
    %4356 = vmatpush1.bf16.msra.mxu0 %v3236
    %4357 = vmatprep.subr.bf16.mxu0 %v3233
    %4358 = vmatpush1.bf16.msra.mxu0 %v3232
    %4359 = vmatprep.subr.bf16.mxu0 %v3293
    %4360 = vmatpush2.bf16.msra.mxu0 %v3292
    %4361 = vmatprep.subr.bf16.mxu0 %v3289
    %4362 = vmatpush2.bf16.msra.mxu0 %v3288
    %4363 = vmatprep.subr.bf16.mxu0 %v3285
    %4364 = vmatpush2.bf16.msra.mxu0 %v3284
    %4365 = vmatprep.subr.bf16.mxu0 %v3281
    %4366 = vmatpush2.bf16.msra.mxu0 %v3280
    %4367 = vmatprep.subr.bf16.mxu0 %v3277
    %4368 = vmatpush2.bf16.msra.mxu0 %v3276
    %4369 = vmatprep.subr.bf16.mxu0 %v3273
    %4370 = vmatpush2.bf16.msra.mxu0 %v3272
    %4371 = vmatprep.subr.bf16.mxu0 %v3269
    %4372 = vmatpush2.bf16.msra.mxu0 %v3268
    %4373 = vmatprep.subr.bf16.mxu0 %v3265
    %4374 = vmatpush2.bf16.msra.mxu0 %v3264
    %4375 = vmatprep.mubr.bf16.mxu0 %v4219
    %4376 = vmatmul.mubr.bf16.gmra.mxu0 %v4218
    %v4377 = vpop.f32.mrf.mxu0
    %v4378 = vadd.f32 %v4337, %v4377
    %v4379 = vpop.f32.mrf.mxu0
    %v4380 = vadd.f32 %v4339, %v4379
    %v4381 = vpop.f32.mrf.mxu0
    %v4382 = vpop.f32.mrf.mxu0
    %4383 = vdwg.mxu0
    %4384 = vmatprep.subr.bf16.mxu0 %v3071
    %4385 = vmatpush1.bf16.msra.mxu0 %v3070
    %4386 = vmatprep.subr.bf16.mxu0 %v3067
    %4387 = vmatpush1.bf16.msra.mxu0 %v3066
    %4388 = vmatprep.subr.bf16.mxu0 %v3063
    %4389 = vmatpush1.bf16.msra.mxu0 %v3062
    %4390 = vmatprep.subr.bf16.mxu0 %v3059
    %4391 = vmatpush1.bf16.msra.mxu0 %v3058
    %4392 = vmatprep.subr.bf16.mxu0 %v3055
    %4393 = vmatpush1.bf16.msra.mxu0 %v3054
    %4394 = vmatprep.subr.bf16.mxu0 %v3051
    %4395 = vmatpush1.bf16.msra.mxu0 %v3050
    %4396 = vmatprep.subr.bf16.mxu0 %v3047
    %4397 = vmatpush1.bf16.msra.mxu0 %v3046
    %4398 = vmatprep.subr.bf16.mxu0 %v3043
    %4399 = vmatpush1.bf16.msra.mxu0 %v3042
    %4400 = vmatprep.subr.bf16.mxu0 %v3103
    %4401 = vmatpush2.bf16.msra.mxu0 %v3102
    %4402 = vmatprep.subr.bf16.mxu0 %v3099
    %4403 = vmatpush2.bf16.msra.mxu0 %v3098
    %4404 = vmatprep.subr.bf16.mxu0 %v3095
    %4405 = vmatpush2.bf16.msra.mxu0 %v3094
    %4406 = vmatprep.subr.bf16.mxu0 %v3091
    %4407 = vmatpush2.bf16.msra.mxu0 %v3090
    %4408 = vmatprep.subr.bf16.mxu0 %v3087
    %4409 = vmatpush2.bf16.msra.mxu0 %v3086
    %4410 = vmatprep.subr.bf16.mxu0 %v3083
    %4411 = vmatpush2.bf16.msra.mxu0 %v3082
    %4412 = vmatprep.subr.bf16.mxu0 %v3079
    %4413 = vmatpush2.bf16.msra.mxu0 %v3078
    %4414 = vmatprep.subr.bf16.mxu0 %v3075
    %4415 = vmatpush2.bf16.msra.mxu0 %v3074
    %4416 = vmatprep.mubr.bf16.mxu0 %v4213
    %4417 = vmatmul.mubr.bf16.gmra.mxu0 %v4212
    %v4418 = vpop.f32.mrf.mxu0
    %v4419 = vadd.f32 %v2263, %v4418
    %v4420 = vpop.f32.mrf.mxu0
    %v4421 = vadd.f32 %v2267, %v4420
    %v4422 = vpop.f32.mrf.mxu0
    %v4423 = vpop.f32.mrf.mxu0
    %4424 = vdwg.mxu0
    %4425 = vmatprep.subr.bf16.mxu0 %v3135
    %4426 = vmatpush1.bf16.msra.mxu0 %v3134
    %4427 = vmatprep.subr.bf16.mxu0 %v3131
    %4428 = vmatpush1.bf16.msra.mxu0 %v3130
    %4429 = vmatprep.subr.bf16.mxu0 %v3127
    %4430 = vmatpush1.bf16.msra.mxu0 %v3126
    %4431 = vmatprep.subr.bf16.mxu0 %v3123
    %4432 = vmatpush1.bf16.msra.mxu0 %v3122
    %4433 = vmatprep.subr.bf16.mxu0 %v3119
    %4434 = vmatpush1.bf16.msra.mxu0 %v3118
    %4435 = vmatprep.subr.bf16.mxu0 %v3115
    %4436 = vmatpush1.bf16.msra.mxu0 %v3114
    %4437 = vmatprep.subr.bf16.mxu0 %v3111
    %4438 = vmatpush1.bf16.msra.mxu0 %v3110
    %4439 = vmatprep.subr.bf16.mxu0 %v3107
    %4440 = vmatpush1.bf16.msra.mxu0 %v3106
    %4441 = vmatprep.subr.bf16.mxu0 %v3167
    %4442 = vmatpush2.bf16.msra.mxu0 %v3166
    %4443 = vmatprep.subr.bf16.mxu0 %v3163
    %4444 = vmatpush2.bf16.msra.mxu0 %v3162
    %4445 = vmatprep.subr.bf16.mxu0 %v3159
    %4446 = vmatpush2.bf16.msra.mxu0 %v3158
    %4447 = vmatprep.subr.bf16.mxu0 %v3155
    %4448 = vmatpush2.bf16.msra.mxu0 %v3154
    %4449 = vmatprep.subr.bf16.mxu0 %v3151
    %4450 = vmatpush2.bf16.msra.mxu0 %v3150
    %4451 = vmatprep.subr.bf16.mxu0 %v3147
    %4452 = vmatpush2.bf16.msra.mxu0 %v3146
    %4453 = vmatprep.subr.bf16.mxu0 %v3143
    %4454 = vmatpush2.bf16.msra.mxu0 %v3142
    %4455 = vmatprep.subr.bf16.mxu0 %v3139
    %4456 = vmatpush2.bf16.msra.mxu0 %v3138
    %4457 = vmatprep.mubr.bf16.mxu0 %v4215
    %4458 = vmatmul.mubr.bf16.gmra.mxu0 %v4214
    %v4459 = vpop.f32.mrf.mxu0
    %v4460 = vadd.f32 %v4419, %v4459
    %v4461 = vpop.f32.mrf.mxu0
    %v4462 = vadd.f32 %v4421, %v4461
    %v4463 = vpop.f32.mrf.mxu0
    %v4464 = vpop.f32.mrf.mxu0
    %4465 = vdwg.mxu0
    %4466 = vmatprep.subr.bf16.mxu0 %v3199
    %4467 = vmatpush1.bf16.msra.mxu0 %v3198
    %4468 = vmatprep.subr.bf16.mxu0 %v3195
    %4469 = vmatpush1.bf16.msra.mxu0 %v3194
    %4470 = vmatprep.subr.bf16.mxu0 %v3191
    %4471 = vmatpush1.bf16.msra.mxu0 %v3190
    %4472 = vmatprep.subr.bf16.mxu0 %v3187
    %4473 = vmatpush1.bf16.msra.mxu0 %v3186
    %4474 = vmatprep.subr.bf16.mxu0 %v3183
    %4475 = vmatpush1.bf16.msra.mxu0 %v3182
    %4476 = vmatprep.subr.bf16.mxu0 %v3179
    %4477 = vmatpush1.bf16.msra.mxu0 %v3178
    %4478 = vmatprep.subr.bf16.mxu0 %v3175
    %4479 = vmatpush1.bf16.msra.mxu0 %v3174
    %4480 = vmatprep.subr.bf16.mxu0 %v3171
    %4481 = vmatpush1.bf16.msra.mxu0 %v3170
    %4482 = vmatprep.subr.bf16.mxu0 %v3231
    %4483 = vmatpush2.bf16.msra.mxu0 %v3230
    %4484 = vmatprep.subr.bf16.mxu0 %v3227
    %4485 = vmatpush2.bf16.msra.mxu0 %v3226
    %4486 = vmatprep.subr.bf16.mxu0 %v3223
    %4487 = vmatpush2.bf16.msra.mxu0 %v3222
    %4488 = vmatprep.subr.bf16.mxu0 %v3219
    %4489 = vmatpush2.bf16.msra.mxu0 %v3218
    %4490 = vmatprep.subr.bf16.mxu0 %v3215
    %4491 = vmatpush2.bf16.msra.mxu0 %v3214
    %4492 = vmatprep.subr.bf16.mxu0 %v3211
    %4493 = vmatpush2.bf16.msra.mxu0 %v3210
    %4494 = vmatprep.subr.bf16.mxu0 %v3207
    %4495 = vmatpush2.bf16.msra.mxu0 %v3206
    %4496 = vmatprep.subr.bf16.mxu0 %v3203
    %4497 = vmatpush2.bf16.msra.mxu0 %v3202
    %4498 = vmatprep.mubr.bf16.mxu0 %v4217
    %4499 = vmatmul.mubr.bf16.gmra.mxu0 %v4216
    %v4500 = vpop.f32.mrf.mxu0
    %v4501 = vadd.f32 %v4460, %v4500
    %v4502 = vpop.f32.mrf.mxu0
    %v4503 = vadd.f32 %v4462, %v4502
    %v4504 = vpop.f32.mrf.mxu0
    %v4505 = vpop.f32.mrf.mxu0
    %4506 = vdwg.mxu0
    %4507 = vmatprep.subr.bf16.mxu0 %v3263
    %4508 = vmatpush1.bf16.msra.mxu0 %v3262
    %4509 = vmatprep.subr.bf16.mxu0 %v3259
    %4510 = vmatpush1.bf16.msra.mxu0 %v3258
    %4511 = vmatprep.subr.bf16.mxu0 %v3255
    %4512 = vmatpush1.bf16.msra.mxu0 %v3254
    %4513 = vmatprep.subr.bf16.mxu0 %v3251
    %4514 = vmatpush1.bf16.msra.mxu0 %v3250
    %4515 = vmatprep.subr.bf16.mxu0 %v3247
    %4516 = vmatpush1.bf16.msra.mxu0 %v3246
    %4517 = vmatprep.subr.bf16.mxu0 %v3243
    %4518 = vmatpush1.bf16.msra.mxu0 %v3242
    %4519 = vmatprep.subr.bf16.mxu0 %v3239
    %4520 = vmatpush1.bf16.msra.mxu0 %v3238
    %4521 = vmatprep.subr.bf16.mxu0 %v3235
    %4522 = vmatpush1.bf16.msra.mxu0 %v3234
    %4523 = vmatprep.subr.bf16.mxu0 %v3295
    %4524 = vmatpush2.bf16.msra.mxu0 %v3294
    %4525 = vmatprep.subr.bf16.mxu0 %v3291
    %4526 = vmatpush2.bf16.msra.mxu0 %v3290
    %4527 = vmatprep.subr.bf16.mxu0 %v3287
    %4528 = vmatpush2.bf16.msra.mxu0 %v3286
    %4529 = vmatprep.subr.bf16.mxu0 %v3283
    %4530 = vmatpush2.bf16.msra.mxu0 %v3282
    %4531 = vmatprep.subr.bf16.mxu0 %v3279
    %4532 = vmatpush2.bf16.msra.mxu0 %v3278
    %4533 = vmatprep.subr.bf16.mxu0 %v3275
    %4534 = vmatpush2.bf16.msra.mxu0 %v3274
    %4535 = vmatprep.subr.bf16.mxu0 %v3271
    %4536 = vmatpush2.bf16.msra.mxu0 %v3270
    %4537 = vmatprep.subr.bf16.mxu0 %v3267
    %4538 = vmatpush2.bf16.msra.mxu0 %v3266
    %4539 = vmatprep.mubr.bf16.mxu0 %v4219
    %4540 = vmatmul.mubr.bf16.gmra.mxu0 %v4218
    %v4541 = vpop.f32.mrf.mxu0
    %v4542 = vadd.f32 %v4501, %v4541
    %v4543 = vpop.f32.mrf.mxu0
    %v4544 = vadd.f32 %v4503, %v4543
    %v4545 = vpop.f32.mrf.mxu0
    %v4546 = vpop.f32.mrf.mxu0
    %4547 = vdwg.mxu0
    %4548 = vst [vmem:[#allocation10] sm:$0xff] %v4378
    %4549 = vst [vmem:[#allocation10 + $0x8] sm:$0xff] %v4380
    %4550 = vst [vmem:[#allocation10 + $0x10] sm:$0xff] %v4542
    %4551 = vst [vmem:[#allocation10 + $0x18] sm:$0xff] %v4544
    // Predicated region
    $region38: #{tpu_custom_call.1} parent=1 // pred_check
      _
    $region39: #{tpu_custom_call.1} parent=1 // pred_check_branch
      %4553 = sbr.rel (0) target = $region41
    $region40: #{tpu_custom_call.1} parent=1 // pred_region
      %s4555 = ssub.s32 512, 512
      %4556 = vsyncadd [#allocation4], %s4555
      %s4558 = sshll.u32 [#allocation10], 4
      %s4559 = int_to_ptr.vmem [resolvable:$true] %s4558
      %4561 = dma.vmem_to_hbm [thread:$0]  %s4559, 512, %s5, [#allocation4]
    $region41: #{tpu_custom_call.1} parent=1 // pred_fallthru
      _
    // Predicated region
    $region42: #{tpu_custom_call.1} parent=1 // pred_check
      _
    $region43: #{tpu_custom_call.1} parent=1 // pred_check_branch
      %4563 = sbr.rel (0) target = $region45
    $region44: #{tpu_custom_call.1} parent=1 // pred_region
      %4564 = dma.done [#allocation4], 512
    $region45: #{tpu_custom_call.1} parent=1 // pred_fallthru
      _
    %4565 = vsyncpa [#allocation3], 1
    %4566 = vsyncpa [#allocation6], 1
    %4567 = vsyncpa [#allocation9], 1
    %4568 = vsyncpa [#allocation4], 1

</llo_original>
